<compile_context>
chip_gen: v7x
topology: tpu7x:2x2x1
jax: 0.10.0
libtpu: 0.0.40
codegen_flags: <defaults>
</compile_context>

<pallas_src>
import functools

import jax
import jax.numpy as jnp
import numpy as np
from jax import lax
from jax.experimental import pallas as pl
from jax.experimental.pallas import tpu as pltpu

OPAD = 128   # lane-dense channel padding for every layer output
CIN1 = 8     # conv1 input channels padded 1 -> 8 (keeps tap slices sublane aligned)


# ----------------------------------------------------------------------------
# Kernels
# ----------------------------------------------------------------------------
def conv_relu_pool_kernel(x_ref, w_ref, b_ref, o_ref, *, kh, kw, cin, wo):
    """Fused 5x5 conv + bias + ReLU + 2x2 max-pool for one (image, pooled row).

    x_ref : (Hp, Wp, cin)      spatially padded NHWC image (VMEM resident / image)
    w_ref : (kh*kw*cin, OPAD)  bf16 weights, rows ordered (i, j, cin)
    b_ref : (1, OPAD)          f32 bias
    o_ref : (wo//2, OPAD)      bf16 pooled output row
    """
    half = wo // 2
    h0 = 2 * pl.program_id(1)          # first conv row covered by this pooled row

    acc0 = jnp.zeros((wo, OPAD), jnp.float32)   # conv row 2*ph
    acc1 = jnp.zeros((wo, OPAD), jnp.float32)   # conv row 2*ph + 1
    for i in range(kh):
        # Cast to f32 before the sub-lane row slice so we never have to
        # relayout a packed bf16 register at an odd sublane offset.
        r0 = x_ref[h0 + i].astype(jnp.float32)        # (Wp, cin)
        r1 = x_ref[h0 + i + 1].astype(jnp.float32)    # (Wp, cin)
        for j in range(kw):
            t = i * kw + j
            w_tap = w_ref[t * cin:(t + 1) * cin, :]   # (cin, OPAD), aligned slice
            xs0 = r0[j:j + wo, :].astype(jnp.bfloat16)
            xs1 = r1[j:j + wo, :].astype(jnp.bfloat16)
            acc0 += jnp.dot(xs0, w_tap, preferred_element_type=jnp.float32)
            acc1 += jnp.dot(xs1, w_tap, preferred_element_type=jnp.float32)

    b = b_ref[...]
    # H-direction pool of the two ReLU'd conv rows.
    y = jnp.maximum(jnp.maximum(acc0 + b, 0.0), jnp.maximum(acc1 + b, 0.0))

    # W-direction pool (max over adjacent column pairs) via selection matmuls:
    # keeps everything on the MXU, no strided loads / reshapes required.
    rows = lax.broadcasted_iota(jnp.int32, (half, wo), 0)
    cols = lax.broadcasted_iota(jnp.int32, (half, wo), 1)
    sel_e = jnp.where(cols == 2 * rows, 1.0, 0.0)
    sel_o = jnp.where(cols == 2 * rows + 1, 1.0, 0.0)
    pooled = jnp.maximum(
        jnp.dot(sel_e, y, preferred_element_type=jnp.float32),
        jnp.dot(sel_o, y, preferred_element_type=jnp.float32))
    o_ref[...] = pooled.astype(o_ref.dtype)


def tail_kernel(x_ref, w3_ref, b3_ref, w4_ref, b4_ref, w5_ref, b5_ref, o_ref):
    """Fused tail: conv3 (== 400-wide linear) + ReLU + fc1 + ReLU + fc2."""
    h = jnp.dot(x_ref[...], w3_ref[...], preferred_element_type=jnp.float32)
    h = jnp.maximum(h + b3_ref[...], 0.0).astype(w4_ref.dtype)
    h = jnp.dot(h, w4_ref[...], preferred_element_type=jnp.float32)
    h = jnp.maximum(h + b4_ref[...], 0.0).astype(w5_ref.dtype)
    h = jnp.dot(h, w5_ref[...], preferred_element_type=jnp.float32)
    o_ref[...] = (h + b5_ref[...]).astype(o_ref.dtype)


# ----------------------------------------------------------------------------
# Pallas wrappers
# ----------------------------------------------------------------------------
def conv_relu_pool(x_pad, w2d, b2d, *, kh, kw, ho, wo):
    """x_pad: (N, Hp, Wp, cin) bf16 -> pooled (N, ho//2, wo//2, OPAD) bf16."""
    N, Hp, Wp, cin = x_pad.shape
    assert w2d.shape == (kh * kw * cin, OPAD), w2d.shape
    ph, half = ho // 2, wo // 2
    kernel = functools.partial(conv_relu_pool_kernel, kh=kh, kw=kw, cin=cin, wo=wo)
    return pl.pallas_call(
        kernel,
        out_shape=jax.ShapeDtypeStruct((N, ph, half, OPAD), jnp.bfloat16),
        grid=(N, ph),
        in_specs=[
            # whole padded image, fetched once per image (index ignores the
            # pooled-row axis), weights/bias constant -> VMEM resident.
            pl.BlockSpec((None, Hp, Wp, cin), lambda n, p: (n, 0, 0, 0)),
            pl.BlockSpec((kh * kw * cin, OPAD), lambda n, p: (0, 0)),
            pl.BlockSpec((1, OPAD), lambda n, p: (0, 0)),
        ],
        out_specs=pl.BlockSpec((None, None, half, OPAD), lambda n, p: (n, p, 0, 0)),
        compiler_params=pltpu.CompilerParams(
            dimension_semantics=("parallel", "parallel")),
    )(x_pad, w2d, b2d)


def tail_mlp(h2d, w3, b3, w4, b4, w5, b5):
    """h2d: (N, 5*5*OPAD) bf16 -> logits (N, OPAD) f32 (cols >= 10 are padding)."""
    N, K = h2d.shape
    tn = N if N <= 128 else 128
    nb = pl.cdiv(N, tn)
    n_pad = nb * tn
    if n_pad != N:
        h2d = jnp.pad(h2d, ((0, n_pad - N), (0, 0)))
    out = pl.pallas_call(
        tail_kernel,
        out_shape=jax.ShapeDtypeStruct((n_pad, OPAD), jnp.float32),
        grid=(nb,),
        in_specs=[
            pl.BlockSpec((tn, K), lambda t: (t, 0)),
            pl.BlockSpec(w3.shape, lambda t: (0, 0)),
            pl.BlockSpec(b3.shape, lambda t: (0, 0)),
            pl.BlockSpec(w4.shape, lambda t: (0, 0)),
            pl.BlockSpec(b4.shape, lambda t: (0, 0)),
            pl.BlockSpec(w5.shape, lambda t: (0, 0)),
            pl.BlockSpec(b5.shape, lambda t: (0, 0)),
        ],
        out_specs=pl.BlockSpec((tn, OPAD), lambda t: (t, 0)),
        compiler_params=pltpu.CompilerParams(dimension_semantics=("parallel",)),
    )(h2d, w3, b3, w4, b4, w5, b5)
    return out[:N]


# ----------------------------------------------------------------------------
# Parameter init / one-time packing (pre-transposed, channel-padded, bf16)
# ----------------------------------------------------------------------------
def init_raw_params(key):
    ks = jax.random.split(key, 10)

    def u(k, shape, fan_in):
        bound = 1.0 / np.sqrt(fan_in)
        return jax.random.uniform(k, shape, jnp.float32, -bound, bound)

    return dict(
        conv1_w=u(ks[0], (6, 1, 5, 5), 1 * 25),
        conv1_b=u(ks[1], (6,), 1 * 25),
        conv2_w=u(ks[2], (16, 6, 5, 5), 6 * 25),
        conv2_b=u(ks[3], (16,), 6 * 25),
        conv3_w=u(ks[4], (120, 16, 5, 5), 16 * 25),
        conv3_b=u(ks[5], (120,), 16 * 25),
        fc1_w=u(ks[6], (84, 120), 120),
        fc1_b=u(ks[7], (84,), 120),
        fc2_w=u(ks[8], (10, 84), 84),
        fc2_b=u(ks[9], (10,), 84),
    )


def _pack_conv(w_oihw, b, cin_pad):
    O, C, KH, KW = w_oihw.shape
    w = jnp.transpose(w_oihw, (2, 3, 1, 0))                      # (KH, KW, C, O)
    w = jnp.pad(w, ((0, 0), (0, 0), (0, cin_pad - C), (0, OPAD - O)))
    w = w.reshape(KH * KW * cin_pad, OPAD).astype(jnp.bfloat16)  # rows = (i, j, c)
    bb = jnp.pad(b, (0, OPAD - O)).reshape(1, OPAD).astype(jnp.float32)
    return w, bb


def _pack_fc(w_oi, b, in_pad):
    O, I = w_oi.shape
    w = jnp.pad(w_oi.T, ((0, in_pad - I), (0, OPAD - O))).astype(jnp.bfloat16)
    bb = jnp.pad(b, (0, OPAD - O)).reshape(1, OPAD).astype(jnp.float32)
    return w, bb


def pack_params(raw):
    c1_w, c1_b = _pack_conv(raw["conv1_w"], raw["conv1_b"], CIN1)
    c2_w, c2_b = _pack_conv(raw["conv2_w"], raw["conv2_b"], OPAD)
    c3_w, c3_b = _pack_conv(raw["conv3_w"], raw["conv3_b"], OPAD)
    f1_w, f1_b = _pack_fc(raw["fc1_w"], raw["fc1_b"], OPAD)
    f2_w, f2_b = _pack_fc(raw["fc2_w"], raw["fc2_b"], OPAD)
    return dict(c1_w=c1_w, c1_b=c1_b, c2_w=c2_w, c2_b=c2_b, c3_w=c3_w, c3_b=c3_b,
                f1_w=f1_w, f1_b=f1_b, f2_w=f2_w, f2_b=f2_b)


# ----------------------------------------------------------------------------
# LeNet forward
# ----------------------------------------------------------------------------
def lenet_forward(params, x):
    """x: (N, 1, 28, 28) NCHW float32, like the PyTorch module."""
    N = x.shape[0]
    # One-time layout glue: NCHW -> NHWC (C=1, trivial), conv1's pad=2 spatial
    # padding, channel pad 1 -> 8, cast to bf16.
    xh = jnp.transpose(x, (0, 2, 3, 1))
    xh = jnp.pad(xh, ((0, 0), (2, 2), (2, 2), (0, CIN1 - 1)))
    xh = xh.astype(jnp.bfloat16)

    h = conv_relu_pool(xh, params["c1_w"], params["c1_b"],
                       kh=5, kw=5, ho=28, wo=28)        # (N, 14, 14, 128)
    h = conv_relu_pool(h, params["c2_w"], params["c2_b"],
                       kh=5, kw=5, ho=10, wo=10)        # (N, 5, 5, 128)
    h = h.reshape(N, 5 * 5 * OPAD)                      # contiguous, no relayout
    logits = tail_mlp(h, params["c3_w"], params["c3_b"],
                      params["f1_w"], params["f1_b"],
                      params["f2_w"], params["f2_b"])   # (N, 128)
    return logits[:, :10]                               # drop lane padding


# ----------------------------------------------------------------------------
# Pure-JAX f32 reference (correctness sanity check)
# ----------------------------------------------------------------------------
def lenet_reference(raw, x):
    def conv(x, w, b, pad):
        y = lax.conv_general_dilated(
            x, w, window_strides=(1, 1),
            padding=((pad, pad), (pad, pad)),
            dimension_numbers=("NCHW", "OIHW", "NCHW"))
        return y + b[None, :, None, None]

    def pool(x):
        return lax.reduce_window(x, -jnp.inf, lax.max,
                                 (1, 1, 2, 2), (1, 1, 2, 2), "VALID")

    h = pool(jax.nn.relu(conv(x, raw["conv1_w"], raw["conv1_b"], 2)))
    h = pool(jax.nn.relu(conv(h, raw["conv2_w"], raw["conv2_b"], 0)))
    h = jax.nn.relu(conv(h, raw["conv3_w"], raw["conv3_b"], 0)).reshape(-1, 120)
    h = jax.nn.relu(h @ raw["fc1_w"].T + raw["fc1_b"])
    return h @ raw["fc2_w"].T + raw["fc2_b"]


if __name__ == "__main__":
    key = jax.random.PRNGKey(0)
    pkey, xkey = jax.random.split(key)
    raw = init_raw_params(pkey)
    params = pack_params(raw)
    # LeNet geometry requires 28x28 single-channel inputs for view(-1, 120).
    x = jax.random.normal(xkey, (2, 1, 28, 28), jnp.float32)

    fwd = jax.jit(lenet_forward)
    out = jax.block_until_ready(fwd(params, x))
    ref = jax.block_until_ready(lenet_reference(raw, x))

    assert out.shape == (2, 10), out.shape
    np.testing.assert_allclose(np.asarray(out, np.float32),
                               np.asarray(ref, np.float32),
                               rtol=5e-2, atol=5e-2)
    print("KERNEL_OK")
</pallas_src>

<mosaic_0001>
module attributes {stable_mosaic.version = 11 : i64} {
  func.func @tail_kernel(%arg0: i32, %arg1: memref<2x3200xbf16, #tpu.memory_space<vmem>>, %arg2: memref<3200x128xbf16, #tpu.memory_space<vmem>>, %arg3: memref<1x128xf32, #tpu.memory_space<vmem>>, %arg4: memref<128x128xbf16, #tpu.memory_space<vmem>>, %arg5: memref<1x128xf32, #tpu.memory_space<vmem>>, %arg6: memref<128x128xbf16, #tpu.memory_space<vmem>>, %arg7: memref<1x128xf32, #tpu.memory_space<vmem>>, %arg8: memref<2x128xf32, #tpu.memory_space<vmem>>) attributes {dimension_semantics = [#tpu.dimension_semantics<parallel>], iteration_bounds = array<i64: 1>, scalar_prefetch = 0 : i64, scratch_operands = 0 : i64, tpu.core_type = #tpu.core_type<tc>, window_params = [{transform_indices = @transform_0, window_bounds = array<i64: 2, 3200>}, {pipeline_mode = #tpu.pipeline_mode<synchronous>, transform_indices = @transform_1, window_bounds = array<i64: 3200, 128>}, {pipeline_mode = #tpu.pipeline_mode<synchronous>, transform_indices = @transform_2, window_bounds = array<i64: 1, 128>}, {pipeline_mode = #tpu.pipeline_mode<synchronous>, transform_indices = @transform_3, window_bounds = array<i64: 128, 128>}, {pipeline_mode = #tpu.pipeline_mode<synchronous>, transform_indices = @transform_4, window_bounds = array<i64: 1, 128>}, {pipeline_mode = #tpu.pipeline_mode<synchronous>, transform_indices = @transform_5, window_bounds = array<i64: 128, 128>}, {pipeline_mode = #tpu.pipeline_mode<synchronous>, transform_indices = @transform_6, window_bounds = array<i64: 1, 128>}, {transform_indices = @transform_7, window_bounds = array<i64: 2, 128>}]} {
    %c0 = arith.constant 0 : index
    %c0_0 = arith.constant 0 : index
    %0 = vector.load %arg1[%c0, %c0_0] : memref<2x3200xbf16, #tpu.memory_space<vmem>>, vector<2x3200xbf16>
    %c0_1 = arith.constant 0 : index
    %c0_2 = arith.constant 0 : index
    %1 = vector.load %arg2[%c0_1, %c0_2] : memref<3200x128xbf16, #tpu.memory_space<vmem>>, vector<3200x128xbf16>
    %cst = arith.constant dense<0.000000e+00> : vector<2x128xf32>
    %2 = tpu.matmul %0, %1, %cst {dimension_numbers = #tpu.dot_dimension_numbers<[1], [0], [0], [1], [0, 0, 1, 1], [], []>} : vector<2x3200xbf16>, vector<3200x128xbf16>, vector<2x128xf32> -> vector<2x128xf32>
    %c0_3 = arith.constant 0 : index
    %c0_4 = arith.constant 0 : index
    %3 = vector.load %arg3[%c0_3, %c0_4] : memref<1x128xf32, #tpu.memory_space<vmem>>, vector<1x128xf32>
    %4 = vector.broadcast %3 : vector<1x128xf32> to vector<2x128xf32>
    %5 = arith.addf %2, %4 : vector<2x128xf32>
    %cst_5 = arith.constant 0.000000e+00 : f32
    %6 = vector.broadcast %cst_5 : f32 to vector<2x128xf32>
    %7 = arith.maximumf %5, %6 : vector<2x128xf32>
    %8 = arith.truncf %7 : vector<2x128xf32> to vector<2x128xbf16>
    %c0_6 = arith.constant 0 : index
    %c0_7 = arith.constant 0 : index
    %9 = vector.load %arg4[%c0_6, %c0_7] : memref<128x128xbf16, #tpu.memory_space<vmem>>, vector<128x128xbf16>
    %cst_8 = arith.constant dense<0.000000e+00> : vector<2x128xf32>
    %10 = tpu.matmul %8, %9, %cst_8 {dimension_numbers = #tpu.dot_dimension_numbers<[1], [0], [0], [1], [0, 0, 1, 1], [], []>} : vector<2x128xbf16>, vector<128x128xbf16>, vector<2x128xf32> -> vector<2x128xf32>
    %c0_9 = arith.constant 0 : index
    %c0_10 = arith.constant 0 : index
    %11 = vector.load %arg5[%c0_9, %c0_10] : memref<1x128xf32, #tpu.memory_space<vmem>>, vector<1x128xf32>
    %12 = vector.broadcast %11 : vector<1x128xf32> to vector<2x128xf32>
    %13 = arith.addf %10, %12 : vector<2x128xf32>
    %cst_11 = arith.constant 0.000000e+00 : f32
    %14 = vector.broadcast %cst_11 : f32 to vector<2x128xf32>
    %15 = arith.maximumf %13, %14 : vector<2x128xf32>
    %16 = arith.truncf %15 : vector<2x128xf32> to vector<2x128xbf16>
    %c0_12 = arith.constant 0 : index
    %c0_13 = arith.constant 0 : index
    %17 = vector.load %arg6[%c0_12, %c0_13] : memref<128x128xbf16, #tpu.memory_space<vmem>>, vector<128x128xbf16>
    %cst_14 = arith.constant dense<0.000000e+00> : vector<2x128xf32>
    %18 = tpu.matmul %16, %17, %cst_14 {dimension_numbers = #tpu.dot_dimension_numbers<[1], [0], [0], [1], [0, 0, 1, 1], [], []>} : vector<2x128xbf16>, vector<128x128xbf16>, vector<2x128xf32> -> vector<2x128xf32>
    %c0_15 = arith.constant 0 : index
    %c0_16 = arith.constant 0 : index
    %19 = vector.load %arg7[%c0_15, %c0_16] : memref<1x128xf32, #tpu.memory_space<vmem>>, vector<1x128xf32>
    %20 = vector.broadcast %19 : vector<1x128xf32> to vector<2x128xf32>
    %21 = arith.addf %18, %20 : vector<2x128xf32>
    %c0_17 = arith.constant 0 : index
    %c0_18 = arith.constant 0 : index
    %22 = vector.load %arg8[%c0_17, %c0_18] : memref<2x128xf32, #tpu.memory_space<vmem>>, vector<2x128xf32>
    tpu.vector_store %arg8[%c0_17, %c0_18], %21 {strides = array<i32>} : memref<2x128xf32, #tpu.memory_space<vmem>>, vector<2x128xf32>,
    return
  }
  func.func @transform_0(%arg0: i32) -> (i32, i32) {
    %c0_i32 = arith.constant 0 : i32
    %c0_i32_0 = arith.constant 0 : i32
    return %arg0, %c0_i32 : i32, i32
  }
  func.func @transform_1(%arg0: i32) -> (i32, i32) {
    %c0_i32 = arith.constant 0 : i32
    %c0_i32_0 = arith.constant 0 : i32
    %c0_i32_1 = arith.constant 0 : i32
    return %c0_i32, %c0_i32_0 : i32, i32
  }
  func.func @transform_2(%arg0: i32) -> (i32, i32) {
    %c0_i32 = arith.constant 0 : i32
    %c0_i32_0 = arith.constant 0 : i32
    %c0_i32_1 = arith.constant 0 : i32
    return %c0_i32, %c0_i32_0 : i32, i32
  }
  func.func @transform_3(%arg0: i32) -> (i32, i32) {
    %c0_i32 = arith.constant 0 : i32
    %c0_i32_0 = arith.constant 0 : i32
    %c0_i32_1 = arith.constant 0 : i32
    return %c0_i32, %c0_i32_0 : i32, i32
  }
  func.func @transform_4(%arg0: i32) -> (i32, i32) {
    %c0_i32 = arith.constant 0 : i32
    %c0_i32_0 = arith.constant 0 : i32
    %c0_i32_1 = arith.constant 0 : i32
    return %c0_i32, %c0_i32_0 : i32, i32
  }
  func.func @transform_5(%arg0: i32) -> (i32, i32) {
    %c0_i32 = arith.constant 0 : i32
    %c0_i32_0 = arith.constant 0 : i32
    %c0_i32_1 = arith.constant 0 : i32
    return %c0_i32, %c0_i32_0 : i32, i32
  }
  func.func @transform_6(%arg0: i32) -> (i32, i32) {
    %c0_i32 = arith.constant 0 : i32
    %c0_i32_0 = arith.constant 0 : i32
    %c0_i32_1 = arith.constant 0 : i32
    return %c0_i32, %c0_i32_0 : i32, i32
  }
  func.func @transform_7(%arg0: i32) -> (i32, i32) {
    %c0_i32 = arith.constant 0 : i32
    %c0_i32_0 = arith.constant 0 : i32
    return %arg0, %c0_i32 : i32, i32
  }
}

module attributes {stable_mosaic.version = 11 : i64} {
  func.func @conv_relu_pool_kernel(%arg0: i32, %arg1: i32, %arg2: memref<1x14x14x128xbf16, #tpu.memory_space<vmem>>, %arg3: memref<3200x128xbf16, #tpu.memory_space<vmem>>, %arg4: memref<1x128xf32, #tpu.memory_space<vmem>>, %arg5: memref<1x1x5x128xbf16, #tpu.memory_space<vmem>>) attributes {dimension_semantics = [#tpu.dimension_semantics<parallel>, #tpu.dimension_semantics<parallel>], iteration_bounds = array<i64: 2, 5>, scalar_prefetch = 0 : i64, scratch_operands = 0 : i64, tpu.core_type = #tpu.core_type<tc>, window_params = [{transform_indices = @transform_0, window_bounds = array<i64: 1, 14, 14, 128>}, {pipeline_mode = #tpu.pipeline_mode<synchronous>, transform_indices = @transform_1, window_bounds = array<i64: 3200, 128>}, {pipeline_mode = #tpu.pipeline_mode<synchronous>, transform_indices = @transform_2, window_bounds = array<i64: 1, 128>}, {transform_indices = @transform_3, window_bounds = array<i64: 1, 1, 5, 128>}]} {
    %c2_i32 = arith.constant 2 : i32
    %0 = arith.muli %c2_i32, %arg1 : i32
    %cst = arith.constant 0.000000e+00 : f32
    %1 = vector.broadcast %cst : f32 to vector<10x128xf32>
    %cst_0 = arith.constant 0.000000e+00 : f32
    %2 = vector.broadcast %cst_0 : f32 to vector<10x128xf32>
    %c0_i32 = arith.constant 0 : i32
    %3 = arith.addi %0, %c0_i32 : i32
    %c0 = arith.constant 0 : index
    %4 = arith.index_cast %3 : i32 to index
    %c0_1 = arith.constant 0 : index
    %c0_2 = arith.constant 0 : index
    %5 = vector.load %arg2[%c0, %4, %c0_1, %c0_2] : memref<1x14x14x128xbf16, #tpu.memory_space<vmem>>, vector<1x1x14x128xbf16>
    %6 = vector.shape_cast %5 : vector<1x1x14x128xbf16> to vector<14x128xbf16>
    %7 = arith.extf %6 : vector<14x128xbf16> to vector<14x128xf32>
    %c0_i32_3 = arith.constant 0 : i32
    %8 = arith.addi %0, %c0_i32_3 : i32
    %c1_i32 = arith.constant 1 : i32
    %9 = arith.addi %8, %c1_i32 : i32
    %c0_4 = arith.constant 0 : index
    %10 = arith.index_cast %9 : i32 to index
    %c0_5 = arith.constant 0 : index
    %c0_6 = arith.constant 0 : index
    %11 = vector.load %arg2[%c0_4, %10, %c0_5, %c0_6] : memref<1x14x14x128xbf16, #tpu.memory_space<vmem>>, vector<1x1x14x128xbf16>
    %12 = vector.shape_cast %11 : vector<1x1x14x128xbf16> to vector<14x128xbf16>
    %13 = arith.extf %12 : vector<14x128xbf16> to vector<14x128xf32>
    %c0_7 = arith.constant 0 : index
    %c0_8 = arith.constant 0 : index
    %14 = vector.load %arg3[%c0_7, %c0_8] : memref<3200x128xbf16, #tpu.memory_space<vmem>>, vector<128x128xbf16>
    %15 = vector.extract_strided_slice %7 {offsets = [0, 0], sizes = [10, 128], strides = [1, 1]} : vector<14x128xf32> to vector<10x128xf32>
    %16 = arith.truncf %15 : vector<10x128xf32> to vector<10x128xbf16>
    %17 = vector.extract_strided_slice %13 {offsets = [0, 0], sizes = [10, 128], strides = [1, 1]} : vector<14x128xf32> to vector<10x128xf32>
    %18 = arith.truncf %17 : vector<10x128xf32> to vector<10x128xbf16>
    %cst_9 = arith.constant dense<0.000000e+00> : vector<10x128xf32>
    %19 = tpu.matmul %16, %14, %cst_9 {dimension_numbers = #tpu.dot_dimension_numbers<[1], [0], [0], [1], [0, 0, 1, 1], [], []>} : vector<10x128xbf16>, vector<128x128xbf16>, vector<10x128xf32> -> vector<10x128xf32>
    %20 = arith.addf %1, %19 : vector<10x128xf32>
    %cst_10 = arith.constant dense<0.000000e+00> : vector<10x128xf32>
    %21 = tpu.matmul %18, %14, %cst_10 {dimension_numbers = #tpu.dot_dimension_numbers<[1], [0], [0], [1], [0, 0, 1, 1], [], []>} : vector<10x128xbf16>, vector<128x128xbf16>, vector<10x128xf32> -> vector<10x128xf32>
    %22 = arith.addf %2, %21 : vector<10x128xf32>
    %c128 = arith.constant 128 : index
    %c0_11 = arith.constant 0 : index
    %23 = vector.load %arg3[%c128, %c0_11] : memref<3200x128xbf16, #tpu.memory_space<vmem>>, vector<128x128xbf16>
    %24 = vector.extract_strided_slice %7 {offsets = [1, 0], sizes = [10, 128], strides = [1, 1]} : vector<14x128xf32> to vector<10x128xf32>
    %25 = arith.truncf %24 : vector<10x128xf32> to vector<10x128xbf16>
    %26 = vector.extract_strided_slice %13 {offsets = [1, 0], sizes = [10, 128], strides = [1, 1]} : vector<14x128xf32> to vector<10x128xf32>
    %27 = arith.truncf %26 : vector<10x128xf32> to vector<10x128xbf16>
    %cst_12 = arith.constant dense<0.000000e+00> : vector<10x128xf32>
    %28 = tpu.matmul %25, %23, %cst_12 {dimension_numbers = #tpu.dot_dimension_numbers<[1], [0], [0], [1], [0, 0, 1, 1], [], []>} : vector<10x128xbf16>, vector<128x128xbf16>, vector<10x128xf32> -> vector<10x128xf32>
    %29 = arith.addf %20, %28 : vector<10x128xf32>
    %cst_13 = arith.constant dense<0.000000e+00> : vector<10x128xf32>
    %30 = tpu.matmul %27, %23, %cst_13 {dimension_numbers = #tpu.dot_dimension_numbers<[1], [0], [0], [1], [0, 0, 1, 1], [], []>} : vector<10x128xbf16>, vector<128x128xbf16>, vector<10x128xf32> -> vector<10x128xf32>
    %31 = arith.addf %22, %30 : vector<10x128xf32>
    %c256 = arith.constant 256 : index
    %c0_14 = arith.constant 0 : index
    %32 = vector.load %arg3[%c256, %c0_14] : memref<3200x128xbf16, #tpu.memory_space<vmem>>, vector<128x128xbf16>
    %33 = vector.extract_strided_slice %7 {offsets = [2, 0], sizes = [10, 128], strides = [1, 1]} : vector<14x128xf32> to vector<10x128xf32>
    %34 = arith.truncf %33 : vector<10x128xf32> to vector<10x128xbf16>
    %35 = vector.extract_strided_slice %13 {offsets = [2, 0], sizes = [10, 128], strides = [1, 1]} : vector<14x128xf32> to vector<10x128xf32>
    %36 = arith.truncf %35 : vector<10x128xf32> to vector<10x128xbf16>
    %cst_15 = arith.constant dense<0.000000e+00> : vector<10x128xf32>
    %37 = tpu.matmul %34, %32, %cst_15 {dimension_numbers = #tpu.dot_dimension_numbers<[1], [0], [0], [1], [0, 0, 1, 1], [], []>} : vector<10x128xbf16>, vector<128x128xbf16>, vector<10x128xf32> -> vector<10x128xf32>
    %38 = arith.addf %29, %37 : vector<10x128xf32>
    %cst_16 = arith.constant dense<0.000000e+00> : vector<10x128xf32>
    %39 = tpu.matmul %36, %32, %cst_16 {dimension_numbers = #tpu.dot_dimension_numbers<[1], [0], [0], [1], [0, 0, 1, 1], [], []>} : vector<10x128xbf16>, vector<128x128xbf16>, vector<10x128xf32> -> vector<10x128xf32>
    %40 = arith.addf %31, %39 : vector<10x128xf32>
    %c384 = arith.constant 384 : index
    %c0_17 = arith.constant 0 : index
    %41 = vector.load %arg3[%c384, %c0_17] : memref<3200x128xbf16, #tpu.memory_space<vmem>>, vector<128x128xbf16>
    %42 = vector.extract_strided_slice %7 {offsets = [3, 0], sizes = [10, 128], strides = [1, 1]} : vector<14x128xf32> to vector<10x128xf32>
    %43 = arith.truncf %42 : vector<10x128xf32> to vector<10x128xbf16>
    %44 = vector.extract_strided_slice %13 {offsets = [3, 0], sizes = [10, 128], strides = [1, 1]} : vector<14x128xf32> to vector<10x128xf32>
    %45 = arith.truncf %44 : vector<10x128xf32> to vector<10x128xbf16>
    %cst_18 = arith.constant dense<0.000000e+00> : vector<10x128xf32>
    %46 = tpu.matmul %43, %41, %cst_18 {dimension_numbers = #tpu.dot_dimension_numbers<[1], [0], [0], [1], [0, 0, 1, 1], [], []>} : vector<10x128xbf16>, vector<128x128xbf16>, vector<10x128xf32> -> vector<10x128xf32>
    %47 = arith.addf %38, %46 : vector<10x128xf32>
    %cst_19 = arith.constant dense<0.000000e+00> : vector<10x128xf32>
    %48 = tpu.matmul %45, %41, %cst_19 {dimension_numbers = #tpu.dot_dimension_numbers<[1], [0], [0], [1], [0, 0, 1, 1], [], []>} : vector<10x128xbf16>, vector<128x128xbf16>, vector<10x128xf32> -> vector<10x128xf32>
    %49 = arith.addf %40, %48 : vector<10x128xf32>
    %c512 = arith.constant 512 : index
    %c0_20 = arith.constant 0 : index
    %50 = vector.load %arg3[%c512, %c0_20] : memref<3200x128xbf16, #tpu.memory_space<vmem>>, vector<128x128xbf16>
    %51 = vector.extract_strided_slice %7 {offsets = [4, 0], sizes = [10, 128], strides = [1, 1]} : vector<14x128xf32> to vector<10x128xf32>
    %52 = arith.truncf %51 : vector<10x128xf32> to vector<10x128xbf16>
    %53 = vector.extract_strided_slice %13 {offsets = [4, 0], sizes = [10, 128], strides = [1, 1]} : vector<14x128xf32> to vector<10x128xf32>
    %54 = arith.truncf %53 : vector<10x128xf32> to vector<10x128xbf16>
    %cst_21 = arith.constant dense<0.000000e+00> : vector<10x128xf32>
    %55 = tpu.matmul %52, %50, %cst_21 {dimension_numbers = #tpu.dot_dimension_numbers<[1], [0], [0], [1], [0, 0, 1, 1], [], []>} : vector<10x128xbf16>, vector<128x128xbf16>, vector<10x128xf32> -> vector<10x128xf32>
    %56 = arith.addf %47, %55 : vector<10x128xf32>
    %cst_22 = arith.constant dense<0.000000e+00> : vector<10x128xf32>
    %57 = tpu.matmul %54, %50, %cst_22 {dimension_numbers = #tpu.dot_dimension_numbers<[1], [0], [0], [1], [0, 0, 1, 1], [], []>} : vector<10x128xbf16>, vector<128x128xbf16>, vector<10x128xf32> -> vector<10x128xf32>
    %58 = arith.addf %49, %57 : vector<10x128xf32>
    %c1_i32_23 = arith.constant 1 : i32
    %59 = arith.addi %0, %c1_i32_23 : i32
    %c0_24 = arith.constant 0 : index
    %60 = arith.index_cast %59 : i32 to index
    %c0_25 = arith.constant 0 : index
    %c0_26 = arith.constant 0 : index
    %61 = vector.load %arg2[%c0_24, %60, %c0_25, %c0_26] : memref<1x14x14x128xbf16, #tpu.memory_space<vmem>>, vector<1x1x14x128xbf16>
    %62 = vector.shape_cast %61 : vector<1x1x14x128xbf16> to vector<14x128xbf16>
    %63 = arith.extf %62 : vector<14x128xbf16> to vector<14x128xf32>
    %c1_i32_27 = arith.constant 1 : i32
    %64 = arith.addi %0, %c1_i32_27 : i32
    %c1_i32_28 = arith.constant 1 : i32
    %65 = arith.addi %64, %c1_i32_28 : i32
    %c0_29 = arith.constant 0 : index
    %66 = arith.index_cast %65 : i32 to index
    %c0_30 = arith.constant 0 : index
    %c0_31 = arith.constant 0 : index
    %67 = vector.load %arg2[%c0_29, %66, %c0_30, %c0_31] : memref<1x14x14x128xbf16, #tpu.memory_space<vmem>>, vector<1x1x14x128xbf16>
    %68 = vector.shape_cast %67 : vector<1x1x14x128xbf16> to vector<14x128xbf16>
    %69 = arith.extf %68 : vector<14x128xbf16> to vector<14x128xf32>
    %c640 = arith.constant 640 : index
    %c0_32 = arith.constant 0 : index
    %70 = vector.load %arg3[%c640, %c0_32] : memref<3200x128xbf16, #tpu.memory_space<vmem>>, vector<128x128xbf16>
    %71 = vector.extract_strided_slice %63 {offsets = [0, 0], sizes = [10, 128], strides = [1, 1]} : vector<14x128xf32> to vector<10x128xf32>
    %72 = arith.truncf %71 : vector<10x128xf32> to vector<10x128xbf16>
    %73 = vector.extract_strided_slice %69 {offsets = [0, 0], sizes = [10, 128], strides = [1, 1]} : vector<14x128xf32> to vector<10x128xf32>
    %74 = arith.truncf %73 : vector<10x128xf32> to vector<10x128xbf16>
    %cst_33 = arith.constant dense<0.000000e+00> : vector<10x128xf32>
    %75 = tpu.matmul %72, %70, %cst_33 {dimension_numbers = #tpu.dot_dimension_numbers<[1], [0], [0], [1], [0, 0, 1, 1], [], []>} : vector<10x128xbf16>, vector<128x128xbf16>, vector<10x128xf32> -> vector<10x128xf32>
    %76 = arith.addf %56, %75 : vector<10x128xf32>
    %cst_34 = arith.constant dense<0.000000e+00> : vector<10x128xf32>
    %77 = tpu.matmul %74, %70, %cst_34 {dimension_numbers = #tpu.dot_dimension_numbers<[1], [0], [0], [1], [0, 0, 1, 1], [], []>} : vector<10x128xbf16>, vector<128x128xbf16>, vector<10x128xf32> -> vector<10x128xf32>
    %78 = arith.addf %58, %77 : vector<10x128xf32>
    %c768 = arith.constant 768 : index
    %c0_35 = arith.constant 0 : index
    %79 = vector.load %arg3[%c768, %c0_35] : memref<3200x128xbf16, #tpu.memory_space<vmem>>, vector<128x128xbf16>
    %80 = vector.extract_strided_slice %63 {offsets = [1, 0], sizes = [10, 128], strides = [1, 1]} : vector<14x128xf32> to vector<10x128xf32>
    %81 = arith.truncf %80 : vector<10x128xf32> to vector<10x128xbf16>
    %82 = vector.extract_strided_slice %69 {offsets = [1, 0], sizes = [10, 128], strides = [1, 1]} : vector<14x128xf32> to vector<10x128xf32>
    %83 = arith.truncf %82 : vector<10x128xf32> to vector<10x128xbf16>
    %cst_36 = arith.constant dense<0.000000e+00> : vector<10x128xf32>
    %84 = tpu.matmul %81, %79, %cst_36 {dimension_numbers = #tpu.dot_dimension_numbers<[1], [0], [0], [1], [0, 0, 1, 1], [], []>} : vector<10x128xbf16>, vector<128x128xbf16>, vector<10x128xf32> -> vector<10x128xf32>
    %85 = arith.addf %76, %84 : vector<10x128xf32>
    %cst_37 = arith.constant dense<0.000000e+00> : vector<10x128xf32>
    %86 = tpu.matmul %83, %79, %cst_37 {dimension_numbers = #tpu.dot_dimension_numbers<[1], [0], [0], [1], [0, 0, 1, 1], [], []>} : vector<10x128xbf16>, vector<128x128xbf16>, vector<10x128xf32> -> vector<10x128xf32>
    %87 = arith.addf %78, %86 : vector<10x128xf32>
    %c896 = arith.constant 896 : index
    %c0_38 = arith.constant 0 : index
    %88 = vector.load %arg3[%c896, %c0_38] : memref<3200x128xbf16, #tpu.memory_space<vmem>>, vector<128x128xbf16>
    %89 = vector.extract_strided_slice %63 {offsets = [2, 0], sizes = [10, 128], strides = [1, 1]} : vector<14x128xf32> to vector<10x128xf32>
    %90 = arith.truncf %89 : vector<10x128xf32> to vector<10x128xbf16>
    %91 = vector.extract_strided_slice %69 {offsets = [2, 0], sizes = [10, 128], strides = [1, 1]} : vector<14x128xf32> to vector<10x128xf32>
    %92 = arith.truncf %91 : vector<10x128xf32> to vector<10x128xbf16>
    %cst_39 = arith.constant dense<0.000000e+00> : vector<10x128xf32>
    %93 = tpu.matmul %90, %88, %cst_39 {dimension_numbers = #tpu.dot_dimension_numbers<[1], [0], [0], [1], [0, 0, 1, 1], [], []>} : vector<10x128xbf16>, vector<128x128xbf16>, vector<10x128xf32> -> vector<10x128xf32>
    %94 = arith.addf %85, %93 : vector<10x128xf32>
    %cst_40 = arith.constant dense<0.000000e+00> : vector<10x128xf32>
    %95 = tpu.matmul %92, %88, %cst_40 {dimension_numbers = #tpu.dot_dimension_numbers<[1], [0], [0], [1], [0, 0, 1, 1], [], []>} : vector<10x128xbf16>, vector<128x128xbf16>, vector<10x128xf32> -> vector<10x128xf32>
    %96 = arith.addf %87, %95 : vector<10x128xf32>
    %c1024 = arith.constant 1024 : index
    %c0_41 = arith.constant 0 : index
    %97 = vector.load %arg3[%c1024, %c0_41] : memref<3200x128xbf16, #tpu.memory_space<vmem>>, vector<128x128xbf16>
    %98 = vector.extract_strided_slice %63 {offsets = [3, 0], sizes = [10, 128], strides = [1, 1]} : vector<14x128xf32> to vector<10x128xf32>
    %99 = arith.truncf %98 : vector<10x128xf32> to vector<10x128xbf16>
    %100 = vector.extract_strided_slice %69 {offsets = [3, 0], sizes = [10, 128], strides = [1, 1]} : vector<14x128xf32> to vector<10x128xf32>
    %101 = arith.truncf %100 : vector<10x128xf32> to vector<10x128xbf16>
    %cst_42 = arith.constant dense<0.000000e+00> : vector<10x128xf32>
    %102 = tpu.matmul %99, %97, %cst_42 {dimension_numbers = #tpu.dot_dimension_numbers<[1], [0], [0], [1], [0, 0, 1, 1], [], []>} : vector<10x128xbf16>, vector<128x128xbf16>, vector<10x128xf32> -> vector<10x128xf32>
    %103 = arith.addf %94, %102 : vector<10x128xf32>
    %cst_43 = arith.constant dense<0.000000e+00> : vector<10x128xf32>
    %104 = tpu.matmul %101, %97, %cst_43 {dimension_numbers = #tpu.dot_dimension_numbers<[1], [0], [0], [1], [0, 0, 1, 1], [], []>} : vector<10x128xbf16>, vector<128x128xbf16>, vector<10x128xf32> -> vector<10x128xf32>
    %105 = arith.addf %96, %104 : vector<10x128xf32>
    %c1152 = arith.constant 1152 : index
    %c0_44 = arith.constant 0 : index
    %106 = vector.load %arg3[%c1152, %c0_44] : memref<3200x128xbf16, #tpu.memory_space<vmem>>, vector<128x128xbf16>
    %107 = vector.extract_strided_slice %63 {offsets = [4, 0], sizes = [10, 128], strides = [1, 1]} : vector<14x128xf32> to vector<10x128xf32>
    %108 = arith.truncf %107 : vector<10x128xf32> to vector<10x128xbf16>
    %109 = vector.extract_strided_slice %69 {offsets = [4, 0], sizes = [10, 128], strides = [1, 1]} : vector<14x128xf32> to vector<10x128xf32>
    %110 = arith.truncf %109 : vector<10x128xf32> to vector<10x128xbf16>
    %cst_45 = arith.constant dense<0.000000e+00> : vector<10x128xf32>
    %111 = tpu.matmul %108, %106, %cst_45 {dimension_numbers = #tpu.dot_dimension_numbers<[1], [0], [0], [1], [0, 0, 1, 1], [], []>} : vector<10x128xbf16>, vector<128x128xbf16>, vector<10x128xf32> -> vector<10x128xf32>
    %112 = arith.addf %103, %111 : vector<10x128xf32>
    %cst_46 = arith.constant dense<0.000000e+00> : vector<10x128xf32>
    %113 = tpu.matmul %110, %106, %cst_46 {dimension_numbers = #tpu.dot_dimension_numbers<[1], [0], [0], [1], [0, 0, 1, 1], [], []>} : vector<10x128xbf16>, vector<128x128xbf16>, vector<10x128xf32> -> vector<10x128xf32>
    %114 = arith.addf %105, %113 : vector<10x128xf32>
    %c2_i32_47 = arith.constant 2 : i32
    %115 = arith.addi %0, %c2_i32_47 : i32
    %c0_48 = arith.constant 0 : index
    %116 = arith.index_cast %115 : i32 to index
    %c0_49 = arith.constant 0 : index
    %c0_50 = arith.constant 0 : index
    %117 = vector.load %arg2[%c0_48, %116, %c0_49, %c0_50] : memref<1x14x14x128xbf16, #tpu.memory_space<vmem>>, vector<1x1x14x128xbf16>
    %118 = vector.shape_cast %117 : vector<1x1x14x128xbf16> to vector<14x128xbf16>
    %119 = arith.extf %118 : vector<14x128xbf16> to vector<14x128xf32>
    %c2_i32_51 = arith.constant 2 : i32
    %120 = arith.addi %0, %c2_i32_51 : i32
    %c1_i32_52 = arith.constant 1 : i32
    %121 = arith.addi %120, %c1_i32_52 : i32
    %c0_53 = arith.constant 0 : index
    %122 = arith.index_cast %121 : i32 to index
    %c0_54 = arith.constant 0 : index
    %c0_55 = arith.constant 0 : index
    %123 = vector.load %arg2[%c0_53, %122, %c0_54, %c0_55] : memref<1x14x14x128xbf16, #tpu.memory_space<vmem>>, vector<1x1x14x128xbf16>
    %124 = vector.shape_cast %123 : vector<1x1x14x128xbf16> to vector<14x128xbf16>
    %125 = arith.extf %124 : vector<14x128xbf16> to vector<14x128xf32>
    %c1280 = arith.constant 1280 : index
    %c0_56 = arith.constant 0 : index
    %126 = vector.load %arg3[%c1280, %c0_56] : memref<3200x128xbf16, #tpu.memory_space<vmem>>, vector<128x128xbf16>
    %127 = vector.extract_strided_slice %119 {offsets = [0, 0], sizes = [10, 128], strides = [1, 1]} : vector<14x128xf32> to vector<10x128xf32>
    %128 = arith.truncf %127 : vector<10x128xf32> to vector<10x128xbf16>
    %129 = vector.extract_strided_slice %125 {offsets = [0, 0], sizes = [10, 128], strides = [1, 1]} : vector<14x128xf32> to vector<10x128xf32>
    %130 = arith.truncf %129 : vector<10x128xf32> to vector<10x128xbf16>
    %cst_57 = arith.constant dense<0.000000e+00> : vector<10x128xf32>
    %131 = tpu.matmul %128, %126, %cst_57 {dimension_numbers = #tpu.dot_dimension_numbers<[1], [0], [0], [1], [0, 0, 1, 1], [], []>} : vector<10x128xbf16>, vector<128x128xbf16>, vector<10x128xf32> -> vector<10x128xf32>
    %132 = arith.addf %112, %131 : vector<10x128xf32>
    %cst_58 = arith.constant dense<0.000000e+00> : vector<10x128xf32>
    %133 = tpu.matmul %130, %126, %cst_58 {dimension_numbers = #tpu.dot_dimension_numbers<[1], [0], [0], [1], [0, 0, 1, 1], [], []>} : vector<10x128xbf16>, vector<128x128xbf16>, vector<10x128xf32> -> vector<10x128xf32>
    %134 = arith.addf %114, %133 : vector<10x128xf32>
    %c1408 = arith.constant 1408 : index
    %c0_59 = arith.constant 0 : index
    %135 = vector.load %arg3[%c1408, %c0_59] : memref<3200x128xbf16, #tpu.memory_space<vmem>>, vector<128x128xbf16>
    %136 = vector.extract_strided_slice %119 {offsets = [1, 0], sizes = [10, 128], strides = [1, 1]} : vector<14x128xf32> to vector<10x128xf32>
    %137 = arith.truncf %136 : vector<10x128xf32> to vector<10x128xbf16>
    %138 = vector.extract_strided_slice %125 {offsets = [1, 0], sizes = [10, 128], strides = [1, 1]} : vector<14x128xf32> to vector<10x128xf32>
    %139 = arith.truncf %138 : vector<10x128xf32> to vector<10x128xbf16>
    %cst_60 = arith.constant dense<0.000000e+00> : vector<10x128xf32>
    %140 = tpu.matmul %137, %135, %cst_60 {dimension_numbers = #tpu.dot_dimension_numbers<[1], [0], [0], [1], [0, 0, 1, 1], [], []>} : vector<10x128xbf16>, vector<128x128xbf16>, vector<10x128xf32> -> vector<10x128xf32>
    %141 = arith.addf %132, %140 : vector<10x128xf32>
    %cst_61 = arith.constant dense<0.000000e+00> : vector<10x128xf32>
    %142 = tpu.matmul %139, %135, %cst_61 {dimension_numbers = #tpu.dot_dimension_numbers<[1], [0], [0], [1], [0, 0, 1, 1], [], []>} : vector<10x128xbf16>, vector<128x128xbf16>, vector<10x128xf32> -> vector<10x128xf32>
    %143 = arith.addf %134, %142 : vector<10x128xf32>
    %c1536 = arith.constant 1536 : index
    %c0_62 = arith.constant 0 : index
    %144 = vector.load %arg3[%c1536, %c0_62] : memref<3200x128xbf16, #tpu.memory_space<vmem>>, vector<128x128xbf16>
    %145 = vector.extract_strided_slice %119 {offsets = [2, 0], sizes = [10, 128], strides = [1, 1]} : vector<14x128xf32> to vector<10x128xf32>
    %146 = arith.truncf %145 : vector<10x128xf32> to vector<10x128xbf16>
    %147 = vector.extract_strided_slice %125 {offsets = [2, 0], sizes = [10, 128], strides = [1, 1]} : vector<14x128xf32> to vector<10x128xf32>
    %148 = arith.truncf %147 : vector<10x128xf32> to vector<10x128xbf16>
    %cst_63 = arith.constant dense<0.000000e+00> : vector<10x128xf32>
    %149 = tpu.matmul %146, %144, %cst_63 {dimension_numbers = #tpu.dot_dimension_numbers<[1], [0], [0], [1], [0, 0, 1, 1], [], []>} : vector<10x128xbf16>, vector<128x128xbf16>, vector<10x128xf32> -> vector<10x128xf32>
    %150 = arith.addf %141, %149 : vector<10x128xf32>
    %cst_64 = arith.constant dense<0.000000e+00> : vector<10x128xf32>
    %151 = tpu.matmul %148, %144, %cst_64 {dimension_numbers = #tpu.dot_dimension_numbers<[1], [0], [0], [1], [0, 0, 1, 1], [], []>} : vector<10x128xbf16>, vector<128x128xbf16>, vector<10x128xf32> -> vector<10x128xf32>
    %152 = arith.addf %143, %151 : vector<10x128xf32>
    %c1664 = arith.constant 1664 : index
    %c0_65 = arith.constant 0 : index
    %153 = vector.load %arg3[%c1664, %c0_65] : memref<3200x128xbf16, #tpu.memory_space<vmem>>, vector<128x128xbf16>
    %154 = vector.extract_strided_slice %119 {offsets = [3, 0], sizes = [10, 128], strides = [1, 1]} : vector<14x128xf32> to vector<10x128xf32>
    %155 = arith.truncf %154 : vector<10x128xf32> to vector<10x128xbf16>
    %156 = vector.extract_strided_slice %125 {offsets = [3, 0], sizes = [10, 128], strides = [1, 1]} : vector<14x128xf32> to vector<10x128xf32>
    %157 = arith.truncf %156 : vector<10x128xf32> to vector<10x128xbf16>
    %cst_66 = arith.constant dense<0.000000e+00> : vector<10x128xf32>
    %158 = tpu.matmul %155, %153, %cst_66 {dimension_numbers = #tpu.dot_dimension_numbers<[1], [0], [0], [1], [0, 0, 1, 1], [], []>} : vector<10x128xbf16>, vector<128x128xbf16>, vector<10x128xf32> -> vector<10x128xf32>
    %159 = arith.addf %150, %158 : vector<10x128xf32>
    %cst_67 = arith.constant dense<0.000000e+00> : vector<10x128xf32>
    %160 = tpu.matmul %157, %153, %cst_67 {dimension_numbers = #tpu.dot_dimension_numbers<[1], [0], [0], [1], [0, 0, 1, 1], [], []>} : vector<10x128xbf16>, vector<128x128xbf16>, vector<10x128xf32> -> vector<10x128xf32>
    %161 = arith.addf %152, %160 : vector<10x128xf32>
    %c1792 = arith.constant 1792 : index
    %c0_68 = arith.constant 0 : index
    %162 = vector.load %arg3[%c1792, %c0_68] : memref<3200x128xbf16, #tpu.memory_space<vmem>>, vector<128x128xbf16>
    %163 = vector.extract_strided_slice %119 {offsets = [4, 0], sizes = [10, 128], strides = [1, 1]} : vector<14x128xf32> to vector<10x128xf32>
    %164 = arith.truncf %163 : vector<10x128xf32> to vector<10x128xbf16>
    %165 = vector.extract_strided_slice %125 {offsets = [4, 0], sizes = [10, 128], strides = [1, 1]} : vector<14x128xf32> to vector<10x128xf32>
    %166 = arith.truncf %165 : vector<10x128xf32> to vector<10x128xbf16>
    %cst_69 = arith.constant dense<0.000000e+00> : vector<10x128xf32>
    %167 = tpu.matmul %164, %162, %cst_69 {dimension_numbers = #tpu.dot_dimension_numbers<[1], [0], [0], [1], [0, 0, 1, 1], [], []>} : vector<10x128xbf16>, vector<128x128xbf16>, vector<10x128xf32> -> vector<10x128xf32>
    %168 = arith.addf %159, %167 : vector<10x128xf32>
    %cst_70 = arith.constant dense<0.000000e+00> : vector<10x128xf32>
    %169 = tpu.matmul %166, %162, %cst_70 {dimension_numbers = #tpu.dot_dimension_numbers<[1], [0], [0], [1], [0, 0, 1, 1], [], []>} : vector<10x128xbf16>, vector<128x128xbf16>, vector<10x128xf32> -> vector<10x128xf32>
    %170 = arith.addf %161, %169 : vector<10x128xf32>
    %c3_i32 = arith.constant 3 : i32
    %171 = arith.addi %0, %c3_i32 : i32
    %c0_71 = arith.constant 0 : index
    %172 = arith.index_cast %171 : i32 to index
    %c0_72 = arith.constant 0 : index
    %c0_73 = arith.constant 0 : index
    %173 = vector.load %arg2[%c0_71, %172, %c0_72, %c0_73] : memref<1x14x14x128xbf16, #tpu.memory_space<vmem>>, vector<1x1x14x128xbf16>
    %174 = vector.shape_cast %173 : vector<1x1x14x128xbf16> to vector<14x128xbf16>
    %175 = arith.extf %174 : vector<14x128xbf16> to vector<14x128xf32>
    %c3_i32_74 = arith.constant 3 : i32
    %176 = arith.addi %0, %c3_i32_74 : i32
    %c1_i32_75 = arith.constant 1 : i32
    %177 = arith.addi %176, %c1_i32_75 : i32
    %c0_76 = arith.constant 0 : index
    %178 = arith.index_cast %177 : i32 to index
    %c0_77 = arith.constant 0 : index
    %c0_78 = arith.constant 0 : index
    %179 = vector.load %arg2[%c0_76, %178, %c0_77, %c0_78] : memref<1x14x14x128xbf16, #tpu.memory_space<vmem>>, vector<1x1x14x128xbf16>
    %180 = vector.shape_cast %179 : vector<1x1x14x128xbf16> to vector<14x128xbf16>
    %181 = arith.extf %180 : vector<14x128xbf16> to vector<14x128xf32>
    %c1920 = arith.constant 1920 : index
    %c0_79 = arith.constant 0 : index
    %182 = vector.load %arg3[%c1920, %c0_79] : memref<3200x128xbf16, #tpu.memory_space<vmem>>, vector<128x128xbf16>
    %183 = vector.extract_strided_slice %175 {offsets = [0, 0], sizes = [10, 128], strides = [1, 1]} : vector<14x128xf32> to vector<10x128xf32>
    %184 = arith.truncf %183 : vector<10x128xf32> to vector<10x128xbf16>
    %185 = vector.extract_strided_slice %181 {offsets = [0, 0], sizes = [10, 128], strides = [1, 1]} : vector<14x128xf32> to vector<10x128xf32>
    %186 = arith.truncf %185 : vector<10x128xf32> to vector<10x128xbf16>
    %cst_80 = arith.constant dense<0.000000e+00> : vector<10x128xf32>
    %187 = tpu.matmul %184, %182, %cst_80 {dimension_numbers = #tpu.dot_dimension_numbers<[1], [0], [0], [1], [0, 0, 1, 1], [], []>} : vector<10x128xbf16>, vector<128x128xbf16>, vector<10x128xf32> -> vector<10x128xf32>
    %188 = arith.addf %168, %187 : vector<10x128xf32>
    %cst_81 = arith.constant dense<0.000000e+00> : vector<10x128xf32>
    %189 = tpu.matmul %186, %182, %cst_81 {dimension_numbers = #tpu.dot_dimension_numbers<[1], [0], [0], [1], [0, 0, 1, 1], [], []>} : vector<10x128xbf16>, vector<128x128xbf16>, vector<10x128xf32> -> vector<10x128xf32>
    %190 = arith.addf %170, %189 : vector<10x128xf32>
    %c2048 = arith.constant 2048 : index
    %c0_82 = arith.constant 0 : index
    %191 = vector.load %arg3[%c2048, %c0_82] : memref<3200x128xbf16, #tpu.memory_space<vmem>>, vector<128x128xbf16>
    %192 = vector.extract_strided_slice %175 {offsets = [1, 0], sizes = [10, 128], strides = [1, 1]} : vector<14x128xf32> to vector<10x128xf32>
    %193 = arith.truncf %192 : vector<10x128xf32> to vector<10x128xbf16>
    %194 = vector.extract_strided_slice %181 {offsets = [1, 0], sizes = [10, 128], strides = [1, 1]} : vector<14x128xf32> to vector<10x128xf32>
    %195 = arith.truncf %194 : vector<10x128xf32> to vector<10x128xbf16>
    %cst_83 = arith.constant dense<0.000000e+00> : vector<10x128xf32>
    %196 = tpu.matmul %193, %191, %cst_83 {dimension_numbers = #tpu.dot_dimension_numbers<[1], [0], [0], [1], [0, 0, 1, 1], [], []>} : vector<10x128xbf16>, vector<128x128xbf16>, vector<10x128xf32> -> vector<10x128xf32>
    %197 = arith.addf %188, %196 : vector<10x128xf32>
    %cst_84 = arith.constant dense<0.000000e+00> : vector<10x128xf32>
    %198 = tpu.matmul %195, %191, %cst_84 {dimension_numbers = #tpu.dot_dimension_numbers<[1], [0], [0], [1], [0, 0, 1, 1], [], []>} : vector<10x128xbf16>, vector<128x128xbf16>, vector<10x128xf32> -> vector<10x128xf32>
    %199 = arith.addf %190, %198 : vector<10x128xf32>
    %c2176 = arith.constant 2176 : index
    %c0_85 = arith.constant 0 : index
    %200 = vector.load %arg3[%c2176, %c0_85] : memref<3200x128xbf16, #tpu.memory_space<vmem>>, vector<128x128xbf16>
    %201 = vector.extract_strided_slice %175 {offsets = [2, 0], sizes = [10, 128], strides = [1, 1]} : vector<14x128xf32> to vector<10x128xf32>
    %202 = arith.truncf %201 : vector<10x128xf32> to vector<10x128xbf16>
    %203 = vector.extract_strided_slice %181 {offsets = [2, 0], sizes = [10, 128], strides = [1, 1]} : vector<14x128xf32> to vector<10x128xf32>
    %204 = arith.truncf %203 : vector<10x128xf32> to vector<10x128xbf16>
    %cst_86 = arith.constant dense<0.000000e+00> : vector<10x128xf32>
    %205 = tpu.matmul %202, %200, %cst_86 {dimension_numbers = #tpu.dot_dimension_numbers<[1], [0], [0], [1], [0, 0, 1, 1], [], []>} : vector<10x128xbf16>, vector<128x128xbf16>, vector<10x128xf32> -> vector<10x128xf32>
    %206 = arith.addf %197, %205 : vector<10x128xf32>
    %cst_87 = arith.constant dense<0.000000e+00> : vector<10x128xf32>
    %207 = tpu.matmul %204, %200, %cst_87 {dimension_numbers = #tpu.dot_dimension_numbers<[1], [0], [0], [1], [0, 0, 1, 1], [], []>} : vector<10x128xbf16>, vector<128x128xbf16>, vector<10x128xf32> -> vector<10x128xf32>
    %208 = arith.addf %199, %207 : vector<10x128xf32>
    %c2304 = arith.constant 2304 : index
    %c0_88 = arith.constant 0 : index
    %209 = vector.load %arg3[%c2304, %c0_88] : memref<3200x128xbf16, #tpu.memory_space<vmem>>, vector<128x128xbf16>
    %210 = vector.extract_strided_slice %175 {offsets = [3, 0], sizes = [10, 128], strides = [1, 1]} : vector<14x128xf32> to vector<10x128xf32>
    %211 = arith.truncf %210 : vector<10x128xf32> to vector<10x128xbf16>
    %212 = vector.extract_strided_slice %181 {offsets = [3, 0], sizes = [10, 128], strides = [1, 1]} : vector<14x128xf32> to vector<10x128xf32>
    %213 = arith.truncf %212 : vector<10x128xf32> to vector<10x128xbf16>
    %cst_89 = arith.constant dense<0.000000e+00> : vector<10x128xf32>
    %214 = tpu.matmul %211, %209, %cst_89 {dimension_numbers = #tpu.dot_dimension_numbers<[1], [0], [0], [1], [0, 0, 1, 1], [], []>} : vector<10x128xbf16>, vector<128x128xbf16>, vector<10x128xf32> -> vector<10x128xf32>
    %215 = arith.addf %206, %214 : vector<10x128xf32>
    %cst_90 = arith.constant dense<0.000000e+00> : vector<10x128xf32>
    %216 = tpu.matmul %213, %209, %cst_90 {dimension_numbers = #tpu.dot_dimension_numbers<[1], [0], [0], [1], [0, 0, 1, 1], [], []>} : vector<10x128xbf16>, vector<128x128xbf16>, vector<10x128xf32> -> vector<10x128xf32>
    %217 = arith.addf %208, %216 : vector<10x128xf32>
    %c2432 = arith.constant 2432 : index
    %c0_91 = arith.constant 0 : index
    %218 = vector.load %arg3[%c2432, %c0_91] : memref<3200x128xbf16, #tpu.memory_space<vmem>>, vector<128x128xbf16>
    %219 = vector.extract_strided_slice %175 {offsets = [4, 0], sizes = [10, 128], strides = [1, 1]} : vector<14x128xf32> to vector<10x128xf32>
    %220 = arith.truncf %219 : vector<10x128xf32> to vector<10x128xbf16>
    %221 = vector.extract_strided_slice %181 {offsets = [4, 0], sizes = [10, 128], strides = [1, 1]} : vector<14x128xf32> to vector<10x128xf32>
    %222 = arith.truncf %221 : vector<10x128xf32> to vector<10x128xbf16>
    %cst_92 = arith.constant dense<0.000000e+00> : vector<10x128xf32>
    %223 = tpu.matmul %220, %218, %cst_92 {dimension_numbers = #tpu.dot_dimension_numbers<[1], [0], [0], [1], [0, 0, 1, 1], [], []>} : vector<10x128xbf16>, vector<128x128xbf16>, vector<10x128xf32> -> vector<10x128xf32>
    %224 = arith.addf %215, %223 : vector<10x128xf32>
    %cst_93 = arith.constant dense<0.000000e+00> : vector<10x128xf32>
    %225 = tpu.matmul %222, %218, %cst_93 {dimension_numbers = #tpu.dot_dimension_numbers<[1], [0], [0], [1], [0, 0, 1, 1], [], []>} : vector<10x128xbf16>, vector<128x128xbf16>, vector<10x128xf32> -> vector<10x128xf32>
    %226 = arith.addf %217, %225 : vector<10x128xf32>
    %c4_i32 = arith.constant 4 : i32
    %227 = arith.addi %0, %c4_i32 : i32
    %c0_94 = arith.constant 0 : index
    %228 = arith.index_cast %227 : i32 to index
    %c0_95 = arith.constant 0 : index
    %c0_96 = arith.constant 0 : index
    %229 = vector.load %arg2[%c0_94, %228, %c0_95, %c0_96] : memref<1x14x14x128xbf16, #tpu.memory_space<vmem>>, vector<1x1x14x128xbf16>
    %230 = vector.shape_cast %229 : vector<1x1x14x128xbf16> to vector<14x128xbf16>
    %231 = arith.extf %230 : vector<14x128xbf16> to vector<14x128xf32>
    %c4_i32_97 = arith.constant 4 : i32
    %232 = arith.addi %0, %c4_i32_97 : i32
    %c1_i32_98 = arith.constant 1 : i32
    %233 = arith.addi %232, %c1_i32_98 : i32
    %c0_99 = arith.constant 0 : index
    %234 = arith.index_cast %233 : i32 to index
    %c0_100 = arith.constant 0 : index
    %c0_101 = arith.constant 0 : index
    %235 = vector.load %arg2[%c0_99, %234, %c0_100, %c0_101] : memref<1x14x14x128xbf16, #tpu.memory_space<vmem>>, vector<1x1x14x128xbf16>
    %236 = vector.shape_cast %235 : vector<1x1x14x128xbf16> to vector<14x128xbf16>
    %237 = arith.extf %236 : vector<14x128xbf16> to vector<14x128xf32>
    %c2560 = arith.constant 2560 : index
    %c0_102 = arith.constant 0 : index
    %238 = vector.load %arg3[%c2560, %c0_102] : memref<3200x128xbf16, #tpu.memory_space<vmem>>, vector<128x128xbf16>
    %239 = vector.extract_strided_slice %231 {offsets = [0, 0], sizes = [10, 128], strides = [1, 1]} : vector<14x128xf32> to vector<10x128xf32>
    %240 = arith.truncf %239 : vector<10x128xf32> to vector<10x128xbf16>
    %241 = vector.extract_strided_slice %237 {offsets = [0, 0], sizes = [10, 128], strides = [1, 1]} : vector<14x128xf32> to vector<10x128xf32>
    %242 = arith.truncf %241 : vector<10x128xf32> to vector<10x128xbf16>
    %cst_103 = arith.constant dense<0.000000e+00> : vector<10x128xf32>
    %243 = tpu.matmul %240, %238, %cst_103 {dimension_numbers = #tpu.dot_dimension_numbers<[1], [0], [0], [1], [0, 0, 1, 1], [], []>} : vector<10x128xbf16>, vector<128x128xbf16>, vector<10x128xf32> -> vector<10x128xf32>
    %244 = arith.addf %224, %243 : vector<10x128xf32>
    %cst_104 = arith.constant dense<0.000000e+00> : vector<10x128xf32>
    %245 = tpu.matmul %242, %238, %cst_104 {dimension_numbers = #tpu.dot_dimension_numbers<[1], [0], [0], [1], [0, 0, 1, 1], [], []>} : vector<10x128xbf16>, vector<128x128xbf16>, vector<10x128xf32> -> vector<10x128xf32>
    %246 = arith.addf %226, %245 : vector<10x128xf32>
    %c2688 = arith.constant 2688 : index
    %c0_105 = arith.constant 0 : index
    %247 = vector.load %arg3[%c2688, %c0_105] : memref<3200x128xbf16, #tpu.memory_space<vmem>>, vector<128x128xbf16>
    %248 = vector.extract_strided_slice %231 {offsets = [1, 0], sizes = [10, 128], strides = [1, 1]} : vector<14x128xf32> to vector<10x128xf32>
    %249 = arith.truncf %248 : vector<10x128xf32> to vector<10x128xbf16>
    %250 = vector.extract_strided_slice %237 {offsets = [1, 0], sizes = [10, 128], strides = [1, 1]} : vector<14x128xf32> to vector<10x128xf32>
    %251 = arith.truncf %250 : vector<10x128xf32> to vector<10x128xbf16>
    %cst_106 = arith.constant dense<0.000000e+00> : vector<10x128xf32>
    %252 = tpu.matmul %249, %247, %cst_106 {dimension_numbers = #tpu.dot_dimension_numbers<[1], [0], [0], [1], [0, 0, 1, 1], [], []>} : vector<10x128xbf16>, vector<128x128xbf16>, vector<10x128xf32> -> vector<10x128xf32>
    %253 = arith.addf %244, %252 : vector<10x128xf32>
    %cst_107 = arith.constant dense<0.000000e+00> : vector<10x128xf32>
    %254 = tpu.matmul %251, %247, %cst_107 {dimension_numbers = #tpu.dot_dimension_numbers<[1], [0], [0], [1], [0, 0, 1, 1], [], []>} : vector<10x128xbf16>, vector<128x128xbf16>, vector<10x128xf32> -> vector<10x128xf32>
    %255 = arith.addf %246, %254 : vector<10x128xf32>
    %c2816 = arith.constant 2816 : index
    %c0_108 = arith.constant 0 : index
    %256 = vector.load %arg3[%c2816, %c0_108] : memref<3200x128xbf16, #tpu.memory_space<vmem>>, vector<128x128xbf16>
    %257 = vector.extract_strided_slice %231 {offsets = [2, 0], sizes = [10, 128], strides = [1, 1]} : vector<14x128xf32> to vector<10x128xf32>
    %258 = arith.truncf %257 : vector<10x128xf32> to vector<10x128xbf16>
    %259 = vector.extract_strided_slice %237 {offsets = [2, 0], sizes = [10, 128], strides = [1, 1]} : vector<14x128xf32> to vector<10x128xf32>
    %260 = arith.truncf %259 : vector<10x128xf32> to vector<10x128xbf16>
    %cst_109 = arith.constant dense<0.000000e+00> : vector<10x128xf32>
    %261 = tpu.matmul %258, %256, %cst_109 {dimension_numbers = #tpu.dot_dimension_numbers<[1], [0], [0], [1], [0, 0, 1, 1], [], []>} : vector<10x128xbf16>, vector<128x128xbf16>, vector<10x128xf32> -> vector<10x128xf32>
    %262 = arith.addf %253, %261 : vector<10x128xf32>
    %cst_110 = arith.constant dense<0.000000e+00> : vector<10x128xf32>
    %263 = tpu.matmul %260, %256, %cst_110 {dimension_numbers = #tpu.dot_dimension_numbers<[1], [0], [0], [1], [0, 0, 1, 1], [], []>} : vector<10x128xbf16>, vector<128x128xbf16>, vector<10x128xf32> -> vector<10x128xf32>
    %264 = arith.addf %255, %263 : vector<10x128xf32>
    %c2944 = arith.constant 2944 : index
    %c0_111 = arith.constant 0 : index
    %265 = vector.load %arg3[%c2944, %c0_111] : memref<3200x128xbf16, #tpu.memory_space<vmem>>, vector<128x128xbf16>
    %266 = vector.extract_strided_slice %231 {offsets = [3, 0], sizes = [10, 128], strides = [1, 1]} : vector<14x128xf32> to vector<10x128xf32>
    %267 = arith.truncf %266 : vector<10x128xf32> to vector<10x128xbf16>
    %268 = vector.extract_strided_slice %237 {offsets = [3, 0], sizes = [10, 128], strides = [1, 1]} : vector<14x128xf32> to vector<10x128xf32>
    %269 = arith.truncf %268 : vector<10x128xf32> to vector<10x128xbf16>
    %cst_112 = arith.constant dense<0.000000e+00> : vector<10x128xf32>
    %270 = tpu.matmul %267, %265, %cst_112 {dimension_numbers = #tpu.dot_dimension_numbers<[1], [0], [0], [1], [0, 0, 1, 1], [], []>} : vector<10x128xbf16>, vector<128x128xbf16>, vector<10x128xf32> -> vector<10x128xf32>
    %271 = arith.addf %262, %270 : vector<10x128xf32>
    %cst_113 = arith.constant dense<0.000000e+00> : vector<10x128xf32>
    %272 = tpu.matmul %269, %265, %cst_113 {dimension_numbers = #tpu.dot_dimension_numbers<[1], [0], [0], [1], [0, 0, 1, 1], [], []>} : vector<10x128xbf16>, vector<128x128xbf16>, vector<10x128xf32> -> vector<10x128xf32>
    %273 = arith.addf %264, %272 : vector<10x128xf32>
    %c3072 = arith.constant 3072 : index
    %c0_114 = arith.constant 0 : index
    %274 = vector.load %arg3[%c3072, %c0_114] : memref<3200x128xbf16, #tpu.memory_space<vmem>>, vector<128x128xbf16>
    %275 = vector.extract_strided_slice %231 {offsets = [4, 0], sizes = [10, 128], strides = [1, 1]} : vector<14x128xf32> to vector<10x128xf32>
    %276 = arith.truncf %275 : vector<10x128xf32> to vector<10x128xbf16>
    %277 = vector.extract_strided_slice %237 {offsets = [4, 0], sizes = [10, 128], strides = [1, 1]} : vector<14x128xf32> to vector<10x128xf32>
    %278 = arith.truncf %277 : vector<10x128xf32> to vector<10x128xbf16>
    %cst_115 = arith.constant dense<0.000000e+00> : vector<10x128xf32>
    %279 = tpu.matmul %276, %274, %cst_115 {dimension_numbers = #tpu.dot_dimension_numbers<[1], [0], [0], [1], [0, 0, 1, 1], [], []>} : vector<10x128xbf16>, vector<128x128xbf16>, vector<10x128xf32> -> vector<10x128xf32>
    %280 = arith.addf %271, %279 : vector<10x128xf32>
    %cst_116 = arith.constant dense<0.000000e+00> : vector<10x128xf32>
    %281 = tpu.matmul %278, %274, %cst_116 {dimension_numbers = #tpu.dot_dimension_numbers<[1], [0], [0], [1], [0, 0, 1, 1], [], []>} : vector<10x128xbf16>, vector<128x128xbf16>, vector<10x128xf32> -> vector<10x128xf32>
    %282 = arith.addf %273, %281 : vector<10x128xf32>
    %c0_117 = arith.constant 0 : index
    %c0_118 = arith.constant 0 : index
    %283 = vector.load %arg4[%c0_117, %c0_118] : memref<1x128xf32, #tpu.memory_space<vmem>>, vector<1x128xf32>
    %284 = vector.broadcast %283 : vector<1x128xf32> to vector<10x128xf32>
    %285 = arith.addf %280, %284 : vector<10x128xf32>
    %cst_119 = arith.constant 0.000000e+00 : f32
    %286 = vector.broadcast %cst_119 : f32 to vector<10x128xf32>
    %287 = arith.maximumf %285, %286 : vector<10x128xf32>
    %288 = vector.broadcast %283 : vector<1x128xf32> to vector<10x128xf32>
    %289 = arith.addf %282, %288 : vector<10x128xf32>
    %cst_120 = arith.constant 0.000000e+00 : f32
    %290 = vector.broadcast %cst_120 : f32 to vector<10x128xf32>
    %291 = arith.maximumf %289, %290 : vector<10x128xf32>
    %292 = arith.maximumf %287, %291 : vector<10x128xf32>
    %293 = tpu.iota {dimensions = array<i32: 0>} : vector<5x10xi32>
    %294 = tpu.iota {dimensions = array<i32: 1>} : vector<5x10xi32>
    %c2_i32_121 = arith.constant 2 : i32
    %295 = vector.broadcast %c2_i32_121 : i32 to vector<5x10xi32>
    %296 = arith.muli %295, %293 : vector<5x10xi32>
    %297 = arith.cmpi eq, %294, %296 : vector<5x10xi32>
    %cst_122 = arith.constant 1.000000e+00 : f32
    %cst_123 = arith.constant 0.000000e+00 : f32
    %298 = vector.broadcast %cst_122 : f32 to vector<5x10xf32>
    %299 = vector.broadcast %cst_123 : f32 to vector<5x10xf32>
    %300 = arith.select %297, %298, %299 : vector<5x10xi1>, vector<5x10xf32>
    %c2_i32_124 = arith.constant 2 : i32
    %301 = vector.broadcast %c2_i32_124 : i32 to vector<5x10xi32>
    %302 = arith.muli %301, %293 : vector<5x10xi32>
    %c1_i32_125 = arith.constant 1 : i32
    %303 = vector.broadcast %c1_i32_125 : i32 to vector<5x10xi32>
    %304 = arith.addi %302, %303 : vector<5x10xi32>
    %305 = arith.cmpi eq, %294, %304 : vector<5x10xi32>
    %cst_126 = arith.constant 1.000000e+00 : f32
    %cst_127 = arith.constant 0.000000e+00 : f32
    %306 = vector.broadcast %cst_126 : f32 to vector<5x10xf32>
    %307 = vector.broadcast %cst_127 : f32 to vector<5x10xf32>
    %308 = arith.select %305, %306, %307 : vector<5x10xi1>, vector<5x10xf32>
    %cst_128 = arith.constant dense<0.000000e+00> : vector<5x128xf32>
    %309 = tpu.matmul %300, %292, %cst_128 {dimension_numbers = #tpu.dot_dimension_numbers<[1], [0], [0], [1], [0, 0, 1, 1], [], []>} : vector<5x10xf32>, vector<10x128xf32>, vector<5x128xf32> -> vector<5x128xf32>
    %cst_129 = arith.constant dense<0.000000e+00> : vector<5x128xf32>
    %310 = tpu.matmul %308, %292, %cst_129 {dimension_numbers = #tpu.dot_dimension_numbers<[1], [0], [0], [1], [0, 0, 1, 1], [], []>} : vector<5x10xf32>, vector<10x128xf32>, vector<5x128xf32> -> vector<5x128xf32>
    %311 = arith.maximumf %309, %310 : vector<5x128xf32>
    %312 = arith.truncf %311 : vector<5x128xf32> to vector<5x128xbf16>
    %c0_130 = arith.constant 0 : index
    %c0_131 = arith.constant 0 : index
    %c0_132 = arith.constant 0 : index
    %c0_133 = arith.constant 0 : index
    %313 = vector.load %arg5[%c0_130, %c0_131, %c0_132, %c0_133] : memref<1x1x5x128xbf16, #tpu.memory_space<vmem>>, vector<1x1x5x128xbf16>
    %314 = vector.shape_cast %313 : vector<1x1x5x128xbf16> to vector<5x128xbf16>
    %315 = vector.shape_cast %312 : vector<5x128xbf16> to vector<1x1x5x128xbf16>
    tpu.vector_store %arg5[%c0_130, %c0_131, %c0_132, %c0_133], %315 {strides = array<i32>} : memref<1x1x5x128xbf16, #tpu.memory_space<vmem>>, vector<1x1x5x128xbf16>,
    return
  }
  func.func @transform_0(%arg0: i32, %arg1: i32) -> (i32, i32, i32, i32) {
    %c0_i32 = arith.constant 0 : i32
    %c0_i32_0 = arith.constant 0 : i32
    %c0_i32_1 = arith.constant 0 : i32
    %c0_i32_2 = arith.constant 0 : i32
    return %arg0, %c0_i32, %c0_i32_0, %c0_i32_1 : i32, i32, i32, i32
  }
  func.func @transform_1(%arg0: i32, %arg1: i32) -> (i32, i32) {
    %c0_i32 = arith.constant 0 : i32
    %c0_i32_0 = arith.constant 0 : i32
    %c0_i32_1 = arith.constant 0 : i32
    return %c0_i32, %c0_i32_0 : i32, i32
  }
  func.func @transform_2(%arg0: i32, %arg1: i32) -> (i32, i32) {
    %c0_i32 = arith.constant 0 : i32
    %c0_i32_0 = arith.constant 0 : i32
    %c0_i32_1 = arith.constant 0 : i32
    return %c0_i32, %c0_i32_0 : i32, i32
  }
  func.func @transform_3(%arg0: i32, %arg1: i32) -> (i32, i32, i32, i32) {
    %c0_i32 = arith.constant 0 : i32
    %c0_i32_0 = arith.constant 0 : i32
    %c0_i32_1 = arith.constant 0 : i32
    return %arg0, %arg1, %c0_i32, %c0_i32_0 : i32, i32, i32, i32
  }
}

module attributes {stable_mosaic.version = 11 : i64} {
  func.func @conv_relu_pool_kernel(%arg0: i32, %arg1: i32, %arg2: memref<1x32x32x8xbf16, #tpu.memory_space<vmem>>, %arg3: memref<200x128xbf16, #tpu.memory_space<vmem>>, %arg4: memref<1x128xf32, #tpu.memory_space<vmem>>, %arg5: memref<1x1x14x128xbf16, #tpu.memory_space<vmem>>) attributes {dimension_semantics = [#tpu.dimension_semantics<parallel>, #tpu.dimension_semantics<parallel>], iteration_bounds = array<i64: 2, 14>, scalar_prefetch = 0 : i64, scratch_operands = 0 : i64, tpu.core_type = #tpu.core_type<tc>, window_params = [{transform_indices = @transform_0, window_bounds = array<i64: 1, 32, 32, 8>}, {pipeline_mode = #tpu.pipeline_mode<synchronous>, transform_indices = @transform_1, window_bounds = array<i64: 200, 128>}, {pipeline_mode = #tpu.pipeline_mode<synchronous>, transform_indices = @transform_2, window_bounds = array<i64: 1, 128>}, {transform_indices = @transform_3, window_bounds = array<i64: 1, 1, 14, 128>}]} {
    %c2_i32 = arith.constant 2 : i32
    %0 = arith.muli %c2_i32, %arg1 : i32
    %cst = arith.constant 0.000000e+00 : f32
    %1 = vector.broadcast %cst : f32 to vector<28x128xf32>
    %cst_0 = arith.constant 0.000000e+00 : f32
    %2 = vector.broadcast %cst_0 : f32 to vector<28x128xf32>
    %c0_i32 = arith.constant 0 : i32
    %3 = arith.addi %0, %c0_i32 : i32
    %c0 = arith.constant 0 : index
    %4 = arith.index_cast %3 : i32 to index
    %c0_1 = arith.constant 0 : index
    %c0_2 = arith.constant 0 : index
    %5 = vector.load %arg2[%c0, %4, %c0_1, %c0_2] : memref<1x32x32x8xbf16, #tpu.memory_space<vmem>>, vector<1x1x32x8xbf16>
    %6 = vector.shape_cast %5 : vector<1x1x32x8xbf16> to vector<32x8xbf16>
    %7 = arith.extf %6 : vector<32x8xbf16> to vector<32x8xf32>
    %c0_i32_3 = arith.constant 0 : i32
    %8 = arith.addi %0, %c0_i32_3 : i32
    %c1_i32 = arith.constant 1 : i32
    %9 = arith.addi %8, %c1_i32 : i32
    %c0_4 = arith.constant 0 : index
    %10 = arith.index_cast %9 : i32 to index
    %c0_5 = arith.constant 0 : index
    %c0_6 = arith.constant 0 : index
    %11 = vector.load %arg2[%c0_4, %10, %c0_5, %c0_6] : memref<1x32x32x8xbf16, #tpu.memory_space<vmem>>, vector<1x1x32x8xbf16>
    %12 = vector.shape_cast %11 : vector<1x1x32x8xbf16> to vector<32x8xbf16>
    %13 = arith.extf %12 : vector<32x8xbf16> to vector<32x8xf32>
    %c0_7 = arith.constant 0 : index
    %c0_8 = arith.constant 0 : index
    %14 = vector.load %arg3[%c0_7, %c0_8] : memref<200x128xbf16, #tpu.memory_space<vmem>>, vector<8x128xbf16>
    %15 = vector.extract_strided_slice %7 {offsets = [0, 0], sizes = [28, 8], strides = [1, 1]} : vector<32x8xf32> to vector<28x8xf32>
    %16 = arith.truncf %15 : vector<28x8xf32> to vector<28x8xbf16>
    %17 = vector.extract_strided_slice %13 {offsets = [0, 0], sizes = [28, 8], strides = [1, 1]} : vector<32x8xf32> to vector<28x8xf32>
    %18 = arith.truncf %17 : vector<28x8xf32> to vector<28x8xbf16>
    %cst_9 = arith.constant dense<0.000000e+00> : vector<28x128xf32>
    %19 = tpu.matmul %16, %14, %cst_9 {dimension_numbers = #tpu.dot_dimension_numbers<[1], [0], [0], [1], [0, 0, 1, 1], [], []>} : vector<28x8xbf16>, vector<8x128xbf16>, vector<28x128xf32> -> vector<28x128xf32>
    %20 = arith.addf %1, %19 : vector<28x128xf32>
    %cst_10 = arith.constant dense<0.000000e+00> : vector<28x128xf32>
    %21 = tpu.matmul %18, %14, %cst_10 {dimension_numbers = #tpu.dot_dimension_numbers<[1], [0], [0], [1], [0, 0, 1, 1], [], []>} : vector<28x8xbf16>, vector<8x128xbf16>, vector<28x128xf32> -> vector<28x128xf32>
    %22 = arith.addf %2, %21 : vector<28x128xf32>
    %c8 = arith.constant 8 : index
    %c0_11 = arith.constant 0 : index
    %23 = vector.load %arg3[%c8, %c0_11] : memref<200x128xbf16, #tpu.memory_space<vmem>>, vector<8x128xbf16>
    %24 = vector.extract_strided_slice %7 {offsets = [1, 0], sizes = [28, 8], strides = [1, 1]} : vector<32x8xf32> to vector<28x8xf32>
    %25 = arith.truncf %24 : vector<28x8xf32> to vector<28x8xbf16>
    %26 = vector.extract_strided_slice %13 {offsets = [1, 0], sizes = [28, 8], strides = [1, 1]} : vector<32x8xf32> to vector<28x8xf32>
    %27 = arith.truncf %26 : vector<28x8xf32> to vector<28x8xbf16>
    %cst_12 = arith.constant dense<0.000000e+00> : vector<28x128xf32>
    %28 = tpu.matmul %25, %23, %cst_12 {dimension_numbers = #tpu.dot_dimension_numbers<[1], [0], [0], [1], [0, 0, 1, 1], [], []>} : vector<28x8xbf16>, vector<8x128xbf16>, vector<28x128xf32> -> vector<28x128xf32>
    %29 = arith.addf %20, %28 : vector<28x128xf32>
    %cst_13 = arith.constant dense<0.000000e+00> : vector<28x128xf32>
    %30 = tpu.matmul %27, %23, %cst_13 {dimension_numbers = #tpu.dot_dimension_numbers<[1], [0], [0], [1], [0, 0, 1, 1], [], []>} : vector<28x8xbf16>, vector<8x128xbf16>, vector<28x128xf32> -> vector<28x128xf32>
    %31 = arith.addf %22, %30 : vector<28x128xf32>
    %c16 = arith.constant 16 : index
    %c0_14 = arith.constant 0 : index
    %32 = vector.load %arg3[%c16, %c0_14] : memref<200x128xbf16, #tpu.memory_space<vmem>>, vector<8x128xbf16>
    %33 = vector.extract_strided_slice %7 {offsets = [2, 0], sizes = [28, 8], strides = [1, 1]} : vector<32x8xf32> to vector<28x8xf32>
    %34 = arith.truncf %33 : vector<28x8xf32> to vector<28x8xbf16>
    %35 = vector.extract_strided_slice %13 {offsets = [2, 0], sizes = [28, 8], strides = [1, 1]} : vector<32x8xf32> to vector<28x8xf32>
    %36 = arith.truncf %35 : vector<28x8xf32> to vector<28x8xbf16>
    %cst_15 = arith.constant dense<0.000000e+00> : vector<28x128xf32>
    %37 = tpu.matmul %34, %32, %cst_15 {dimension_numbers = #tpu.dot_dimension_numbers<[1], [0], [0], [1], [0, 0, 1, 1], [], []>} : vector<28x8xbf16>, vector<8x128xbf16>, vector<28x128xf32> -> vector<28x128xf32>
    %38 = arith.addf %29, %37 : vector<28x128xf32>
    %cst_16 = arith.constant dense<0.000000e+00> : vector<28x128xf32>
    %39 = tpu.matmul %36, %32, %cst_16 {dimension_numbers = #tpu.dot_dimension_numbers<[1], [0], [0], [1], [0, 0, 1, 1], [], []>} : vector<28x8xbf16>, vector<8x128xbf16>, vector<28x128xf32> -> vector<28x128xf32>
    %40 = arith.addf %31, %39 : vector<28x128xf32>
    %c24 = arith.constant 24 : index
    %c0_17 = arith.constant 0 : index
    %41 = vector.load %arg3[%c24, %c0_17] : memref<200x128xbf16, #tpu.memory_space<vmem>>, vector<8x128xbf16>
    %42 = vector.extract_strided_slice %7 {offsets = [3, 0], sizes = [28, 8], strides = [1, 1]} : vector<32x8xf32> to vector<28x8xf32>
    %43 = arith.truncf %42 : vector<28x8xf32> to vector<28x8xbf16>
    %44 = vector.extract_strided_slice %13 {offsets = [3, 0], sizes = [28, 8], strides = [1, 1]} : vector<32x8xf32> to vector<28x8xf32>
    %45 = arith.truncf %44 : vector<28x8xf32> to vector<28x8xbf16>
    %cst_18 = arith.constant dense<0.000000e+00> : vector<28x128xf32>
    %46 = tpu.matmul %43, %41, %cst_18 {dimension_numbers = #tpu.dot_dimension_numbers<[1], [0], [0], [1], [0, 0, 1, 1], [], []>} : vector<28x8xbf16>, vector<8x128xbf16>, vector<28x128xf32> -> vector<28x128xf32>
    %47 = arith.addf %38, %46 : vector<28x128xf32>
    %cst_19 = arith.constant dense<0.000000e+00> : vector<28x128xf32>
    %48 = tpu.matmul %45, %41, %cst_19 {dimension_numbers = #tpu.dot_dimension_numbers<[1], [0], [0], [1], [0, 0, 1, 1], [], []>} : vector<28x8xbf16>, vector<8x128xbf16>, vector<28x128xf32> -> vector<28x128xf32>
    %49 = arith.addf %40, %48 : vector<28x128xf32>
    %c32 = arith.constant 32 : index
    %c0_20 = arith.constant 0 : index
    %50 = vector.load %arg3[%c32, %c0_20] : memref<200x128xbf16, #tpu.memory_space<vmem>>, vector<8x128xbf16>
    %51 = vector.extract_strided_slice %7 {offsets = [4, 0], sizes = [28, 8], strides = [1, 1]} : vector<32x8xf32> to vector<28x8xf32>
    %52 = arith.truncf %51 : vector<28x8xf32> to vector<28x8xbf16>
    %53 = vector.extract_strided_slice %13 {offsets = [4, 0], sizes = [28, 8], strides = [1, 1]} : vector<32x8xf32> to vector<28x8xf32>
    %54 = arith.truncf %53 : vector<28x8xf32> to vector<28x8xbf16>
    %cst_21 = arith.constant dense<0.000000e+00> : vector<28x128xf32>
    %55 = tpu.matmul %52, %50, %cst_21 {dimension_numbers = #tpu.dot_dimension_numbers<[1], [0], [0], [1], [0, 0, 1, 1], [], []>} : vector<28x8xbf16>, vector<8x128xbf16>, vector<28x128xf32> -> vector<28x128xf32>
    %56 = arith.addf %47, %55 : vector<28x128xf32>
    %cst_22 = arith.constant dense<0.000000e+00> : vector<28x128xf32>
    %57 = tpu.matmul %54, %50, %cst_22 {dimension_numbers = #tpu.dot_dimension_numbers<[1], [0], [0], [1], [0, 0, 1, 1], [], []>} : vector<28x8xbf16>, vector<8x128xbf16>, vector<28x128xf32> -> vector<28x128xf32>
    %58 = arith.addf %49, %57 : vector<28x128xf32>
    %c1_i32_23 = arith.constant 1 : i32
    %59 = arith.addi %0, %c1_i32_23 : i32
    %c0_24 = arith.constant 0 : index
    %60 = arith.index_cast %59 : i32 to index
    %c0_25 = arith.constant 0 : index
    %c0_26 = arith.constant 0 : index
    %61 = vector.load %arg2[%c0_24, %60, %c0_25, %c0_26] : memref<1x32x32x8xbf16, #tpu.memory_space<vmem>>, vector<1x1x32x8xbf16>
    %62 = vector.shape_cast %61 : vector<1x1x32x8xbf16> to vector<32x8xbf16>
    %63 = arith.extf %62 : vector<32x8xbf16> to vector<32x8xf32>
    %c1_i32_27 = arith.constant 1 : i32
    %64 = arith.addi %0, %c1_i32_27 : i32
    %c1_i32_28 = arith.constant 1 : i32
    %65 = arith.addi %64, %c1_i32_28 : i32
    %c0_29 = arith.constant 0 : index
    %66 = arith.index_cast %65 : i32 to index
    %c0_30 = arith.constant 0 : index
    %c0_31 = arith.constant 0 : index
    %67 = vector.load %arg2[%c0_29, %66, %c0_30, %c0_31] : memref<1x32x32x8xbf16, #tpu.memory_space<vmem>>, vector<1x1x32x8xbf16>
    %68 = vector.shape_cast %67 : vector<1x1x32x8xbf16> to vector<32x8xbf16>
    %69 = arith.extf %68 : vector<32x8xbf16> to vector<32x8xf32>
    %c40 = arith.constant 40 : index
    %c0_32 = arith.constant 0 : index
    %70 = vector.load %arg3[%c40, %c0_32] : memref<200x128xbf16, #tpu.memory_space<vmem>>, vector<8x128xbf16>
    %71 = vector.extract_strided_slice %63 {offsets = [0, 0], sizes = [28, 8], strides = [1, 1]} : vector<32x8xf32> to vector<28x8xf32>
    %72 = arith.truncf %71 : vector<28x8xf32> to vector<28x8xbf16>
    %73 = vector.extract_strided_slice %69 {offsets = [0, 0], sizes = [28, 8], strides = [1, 1]} : vector<32x8xf32> to vector<28x8xf32>
    %74 = arith.truncf %73 : vector<28x8xf32> to vector<28x8xbf16>
    %cst_33 = arith.constant dense<0.000000e+00> : vector<28x128xf32>
    %75 = tpu.matmul %72, %70, %cst_33 {dimension_numbers = #tpu.dot_dimension_numbers<[1], [0], [0], [1], [0, 0, 1, 1], [], []>} : vector<28x8xbf16>, vector<8x128xbf16>, vector<28x128xf32> -> vector<28x128xf32>
    %76 = arith.addf %56, %75 : vector<28x128xf32>
    %cst_34 = arith.constant dense<0.000000e+00> : vector<28x128xf32>
    %77 = tpu.matmul %74, %70, %cst_34 {dimension_numbers = #tpu.dot_dimension_numbers<[1], [0], [0], [1], [0, 0, 1, 1], [], []>} : vector<28x8xbf16>, vector<8x128xbf16>, vector<28x128xf32> -> vector<28x128xf32>
    %78 = arith.addf %58, %77 : vector<28x128xf32>
    %c48 = arith.constant 48 : index
    %c0_35 = arith.constant 0 : index
    %79 = vector.load %arg3[%c48, %c0_35] : memref<200x128xbf16, #tpu.memory_space<vmem>>, vector<8x128xbf16>
    %80 = vector.extract_strided_slice %63 {offsets = [1, 0], sizes = [28, 8], strides = [1, 1]} : vector<32x8xf32> to vector<28x8xf32>
    %81 = arith.truncf %80 : vector<28x8xf32> to vector<28x8xbf16>
    %82 = vector.extract_strided_slice %69 {offsets = [1, 0], sizes = [28, 8], strides = [1, 1]} : vector<32x8xf32> to vector<28x8xf32>
    %83 = arith.truncf %82 : vector<28x8xf32> to vector<28x8xbf16>
    %cst_36 = arith.constant dense<0.000000e+00> : vector<28x128xf32>
    %84 = tpu.matmul %81, %79, %cst_36 {dimension_numbers = #tpu.dot_dimension_numbers<[1], [0], [0], [1], [0, 0, 1, 1], [], []>} : vector<28x8xbf16>, vector<8x128xbf16>, vector<28x128xf32> -> vector<28x128xf32>
    %85 = arith.addf %76, %84 : vector<28x128xf32>
    %cst_37 = arith.constant dense<0.000000e+00> : vector<28x128xf32>
    %86 = tpu.matmul %83, %79, %cst_37 {dimension_numbers = #tpu.dot_dimension_numbers<[1], [0], [0], [1], [0, 0, 1, 1], [], []>} : vector<28x8xbf16>, vector<8x128xbf16>, vector<28x128xf32> -> vector<28x128xf32>
    %87 = arith.addf %78, %86 : vector<28x128xf32>
    %c56 = arith.constant 56 : index
    %c0_38 = arith.constant 0 : index
    %88 = vector.load %arg3[%c56, %c0_38] : memref<200x128xbf16, #tpu.memory_space<vmem>>, vector<8x128xbf16>
    %89 = vector.extract_strided_slice %63 {offsets = [2, 0], sizes = [28, 8], strides = [1, 1]} : vector<32x8xf32> to vector<28x8xf32>
    %90 = arith.truncf %89 : vector<28x8xf32> to vector<28x8xbf16>
    %91 = vector.extract_strided_slice %69 {offsets = [2, 0], sizes = [28, 8], strides = [1, 1]} : vector<32x8xf32> to vector<28x8xf32>
    %92 = arith.truncf %91 : vector<28x8xf32> to vector<28x8xbf16>
    %cst_39 = arith.constant dense<0.000000e+00> : vector<28x128xf32>
    %93 = tpu.matmul %90, %88, %cst_39 {dimension_numbers = #tpu.dot_dimension_numbers<[1], [0], [0], [1], [0, 0, 1, 1], [], []>} : vector<28x8xbf16>, vector<8x128xbf16>, vector<28x128xf32> -> vector<28x128xf32>
    %94 = arith.addf %85, %93 : vector<28x128xf32>
    %cst_40 = arith.constant dense<0.000000e+00> : vector<28x128xf32>
    %95 = tpu.matmul %92, %88, %cst_40 {dimension_numbers = #tpu.dot_dimension_numbers<[1], [0], [0], [1], [0, 0, 1, 1], [], []>} : vector<28x8xbf16>, vector<8x128xbf16>, vector<28x128xf32> -> vector<28x128xf32>
    %96 = arith.addf %87, %95 : vector<28x128xf32>
    %c64 = arith.constant 64 : index
    %c0_41 = arith.constant 0 : index
    %97 = vector.load %arg3[%c64, %c0_41] : memref<200x128xbf16, #tpu.memory_space<vmem>>, vector<8x128xbf16>
    %98 = vector.extract_strided_slice %63 {offsets = [3, 0], sizes = [28, 8], strides = [1, 1]} : vector<32x8xf32> to vector<28x8xf32>
    %99 = arith.truncf %98 : vector<28x8xf32> to vector<28x8xbf16>
    %100 = vector.extract_strided_slice %69 {offsets = [3, 0], sizes = [28, 8], strides = [1, 1]} : vector<32x8xf32> to vector<28x8xf32>
    %101 = arith.truncf %100 : vector<28x8xf32> to vector<28x8xbf16>
    %cst_42 = arith.constant dense<0.000000e+00> : vector<28x128xf32>
    %102 = tpu.matmul %99, %97, %cst_42 {dimension_numbers = #tpu.dot_dimension_numbers<[1], [0], [0], [1], [0, 0, 1, 1], [], []>} : vector<28x8xbf16>, vector<8x128xbf16>, vector<28x128xf32> -> vector<28x128xf32>
    %103 = arith.addf %94, %102 : vector<28x128xf32>
    %cst_43 = arith.constant dense<0.000000e+00> : vector<28x128xf32>
    %104 = tpu.matmul %101, %97, %cst_43 {dimension_numbers = #tpu.dot_dimension_numbers<[1], [0], [0], [1], [0, 0, 1, 1], [], []>} : vector<28x8xbf16>, vector<8x128xbf16>, vector<28x128xf32> -> vector<28x128xf32>
    %105 = arith.addf %96, %104 : vector<28x128xf32>
    %c72 = arith.constant 72 : index
    %c0_44 = arith.constant 0 : index
    %106 = vector.load %arg3[%c72, %c0_44] : memref<200x128xbf16, #tpu.memory_space<vmem>>, vector<8x128xbf16>
    %107 = vector.extract_strided_slice %63 {offsets = [4, 0], sizes = [28, 8], strides = [1, 1]} : vector<32x8xf32> to vector<28x8xf32>
    %108 = arith.truncf %107 : vector<28x8xf32> to vector<28x8xbf16>
    %109 = vector.extract_strided_slice %69 {offsets = [4, 0], sizes = [28, 8], strides = [1, 1]} : vector<32x8xf32> to vector<28x8xf32>
    %110 = arith.truncf %109 : vector<28x8xf32> to vector<28x8xbf16>
    %cst_45 = arith.constant dense<0.000000e+00> : vector<28x128xf32>
    %111 = tpu.matmul %108, %106, %cst_45 {dimension_numbers = #tpu.dot_dimension_numbers<[1], [0], [0], [1], [0, 0, 1, 1], [], []>} : vector<28x8xbf16>, vector<8x128xbf16>, vector<28x128xf32> -> vector<28x128xf32>
    %112 = arith.addf %103, %111 : vector<28x128xf32>
    %cst_46 = arith.constant dense<0.000000e+00> : vector<28x128xf32>
    %113 = tpu.matmul %110, %106, %cst_46 {dimension_numbers = #tpu.dot_dimension_numbers<[1], [0], [0], [1], [0, 0, 1, 1], [], []>} : vector<28x8xbf16>, vector<8x128xbf16>, vector<28x128xf32> -> vector<28x128xf32>
    %114 = arith.addf %105, %113 : vector<28x128xf32>
    %c2_i32_47 = arith.constant 2 : i32
    %115 = arith.addi %0, %c2_i32_47 : i32
    %c0_48 = arith.constant 0 : index
    %116 = arith.index_cast %115 : i32 to index
    %c0_49 = arith.constant 0 : index
    %c0_50 = arith.constant 0 : index
    %117 = vector.load %arg2[%c0_48, %116, %c0_49, %c0_50] : memref<1x32x32x8xbf16, #tpu.memory_space<vmem>>, vector<1x1x32x8xbf16>
    %118 = vector.shape_cast %117 : vector<1x1x32x8xbf16> to vector<32x8xbf16>
    %119 = arith.extf %118 : vector<32x8xbf16> to vector<32x8xf32>
    %c2_i32_51 = arith.constant 2 : i32
    %120 = arith.addi %0, %c2_i32_51 : i32
    %c1_i32_52 = arith.constant 1 : i32
    %121 = arith.addi %120, %c1_i32_52 : i32
    %c0_53 = arith.constant 0 : index
    %122 = arith.index_cast %121 : i32 to index
    %c0_54 = arith.constant 0 : index
    %c0_55 = arith.constant 0 : index
    %123 = vector.load %arg2[%c0_53, %122, %c0_54, %c0_55] : memref<1x32x32x8xbf16, #tpu.memory_space<vmem>>, vector<1x1x32x8xbf16>
    %124 = vector.shape_cast %123 : vector<1x1x32x8xbf16> to vector<32x8xbf16>
    %125 = arith.extf %124 : vector<32x8xbf16> to vector<32x8xf32>
    %c80 = arith.constant 80 : index
    %c0_56 = arith.constant 0 : index
    %126 = vector.load %arg3[%c80, %c0_56] : memref<200x128xbf16, #tpu.memory_space<vmem>>, vector<8x128xbf16>
    %127 = vector.extract_strided_slice %119 {offsets = [0, 0], sizes = [28, 8], strides = [1, 1]} : vector<32x8xf32> to vector<28x8xf32>
    %128 = arith.truncf %127 : vector<28x8xf32> to vector<28x8xbf16>
    %129 = vector.extract_strided_slice %125 {offsets = [0, 0], sizes = [28, 8], strides = [1, 1]} : vector<32x8xf32> to vector<28x8xf32>
    %130 = arith.truncf %129 : vector<28x8xf32> to vector<28x8xbf16>
    %cst_57 = arith.constant dense<0.000000e+00> : vector<28x128xf32>
    %131 = tpu.matmul %128, %126, %cst_57 {dimension_numbers = #tpu.dot_dimension_numbers<[1], [0], [0], [1], [0, 0, 1, 1], [], []>} : vector<28x8xbf16>, vector<8x128xbf16>, vector<28x128xf32> -> vector<28x128xf32>
    %132 = arith.addf %112, %131 : vector<28x128xf32>
    %cst_58 = arith.constant dense<0.000000e+00> : vector<28x128xf32>
    %133 = tpu.matmul %130, %126, %cst_58 {dimension_numbers = #tpu.dot_dimension_numbers<[1], [0], [0], [1], [0, 0, 1, 1], [], []>} : vector<28x8xbf16>, vector<8x128xbf16>, vector<28x128xf32> -> vector<28x128xf32>
    %134 = arith.addf %114, %133 : vector<28x128xf32>
    %c88 = arith.constant 88 : index
    %c0_59 = arith.constant 0 : index
    %135 = vector.load %arg3[%c88, %c0_59] : memref<200x128xbf16, #tpu.memory_space<vmem>>, vector<8x128xbf16>
    %136 = vector.extract_strided_slice %119 {offsets = [1, 0], sizes = [28, 8], strides = [1, 1]} : vector<32x8xf32> to vector<28x8xf32>
    %137 = arith.truncf %136 : vector<28x8xf32> to vector<28x8xbf16>
    %138 = vector.extract_strided_slice %125 {offsets = [1, 0], sizes = [28, 8], strides = [1, 1]} : vector<32x8xf32> to vector<28x8xf32>
    %139 = arith.truncf %138 : vector<28x8xf32> to vector<28x8xbf16>
    %cst_60 = arith.constant dense<0.000000e+00> : vector<28x128xf32>
    %140 = tpu.matmul %137, %135, %cst_60 {dimension_numbers = #tpu.dot_dimension_numbers<[1], [0], [0], [1], [0, 0, 1, 1], [], []>} : vector<28x8xbf16>, vector<8x128xbf16>, vector<28x128xf32> -> vector<28x128xf32>
    %141 = arith.addf %132, %140 : vector<28x128xf32>
    %cst_61 = arith.constant dense<0.000000e+00> : vector<28x128xf32>
    %142 = tpu.matmul %139, %135, %cst_61 {dimension_numbers = #tpu.dot_dimension_numbers<[1], [0], [0], [1], [0, 0, 1, 1], [], []>} : vector<28x8xbf16>, vector<8x128xbf16>, vector<28x128xf32> -> vector<28x128xf32>
    %143 = arith.addf %134, %142 : vector<28x128xf32>
    %c96 = arith.constant 96 : index
    %c0_62 = arith.constant 0 : index
    %144 = vector.load %arg3[%c96, %c0_62] : memref<200x128xbf16, #tpu.memory_space<vmem>>, vector<8x128xbf16>
    %145 = vector.extract_strided_slice %119 {offsets = [2, 0], sizes = [28, 8], strides = [1, 1]} : vector<32x8xf32> to vector<28x8xf32>
    %146 = arith.truncf %145 : vector<28x8xf32> to vector<28x8xbf16>
    %147 = vector.extract_strided_slice %125 {offsets = [2, 0], sizes = [28, 8], strides = [1, 1]} : vector<32x8xf32> to vector<28x8xf32>
    %148 = arith.truncf %147 : vector<28x8xf32> to vector<28x8xbf16>
    %cst_63 = arith.constant dense<0.000000e+00> : vector<28x128xf32>
    %149 = tpu.matmul %146, %144, %cst_63 {dimension_numbers = #tpu.dot_dimension_numbers<[1], [0], [0], [1], [0, 0, 1, 1], [], []>} : vector<28x8xbf16>, vector<8x128xbf16>, vector<28x128xf32> -> vector<28x128xf32>
    %150 = arith.addf %141, %149 : vector<28x128xf32>
    %cst_64 = arith.constant dense<0.000000e+00> : vector<28x128xf32>
    %151 = tpu.matmul %148, %144, %cst_64 {dimension_numbers = #tpu.dot_dimension_numbers<[1], [0], [0], [1], [0, 0, 1, 1], [], []>} : vector<28x8xbf16>, vector<8x128xbf16>, vector<28x128xf32> -> vector<28x128xf32>
    %152 = arith.addf %143, %151 : vector<28x128xf32>
    %c104 = arith.constant 104 : index
    %c0_65 = arith.constant 0 : index
    %153 = vector.load %arg3[%c104, %c0_65] : memref<200x128xbf16, #tpu.memory_space<vmem>>, vector<8x128xbf16>
    %154 = vector.extract_strided_slice %119 {offsets = [3, 0], sizes = [28, 8], strides = [1, 1]} : vector<32x8xf32> to vector<28x8xf32>
    %155 = arith.truncf %154 : vector<28x8xf32> to vector<28x8xbf16>
    %156 = vector.extract_strided_slice %125 {offsets = [3, 0], sizes = [28, 8], strides = [1, 1]} : vector<32x8xf32> to vector<28x8xf32>
    %157 = arith.truncf %156 : vector<28x8xf32> to vector<28x8xbf16>
    %cst_66 = arith.constant dense<0.000000e+00> : vector<28x128xf32>
    %158 = tpu.matmul %155, %153, %cst_66 {dimension_numbers = #tpu.dot_dimension_numbers<[1], [0], [0], [1], [0, 0, 1, 1], [], []>} : vector<28x8xbf16>, vector<8x128xbf16>, vector<28x128xf32> -> vector<28x128xf32>
    %159 = arith.addf %150, %158 : vector<28x128xf32>
    %cst_67 = arith.constant dense<0.000000e+00> : vector<28x128xf32>
    %160 = tpu.matmul %157, %153, %cst_67 {dimension_numbers = #tpu.dot_dimension_numbers<[1], [0], [0], [1], [0, 0, 1, 1], [], []>} : vector<28x8xbf16>, vector<8x128xbf16>, vector<28x128xf32> -> vector<28x128xf32>
    %161 = arith.addf %152, %160 : vector<28x128xf32>
    %c112 = arith.constant 112 : index
    %c0_68 = arith.constant 0 : index
    %162 = vector.load %arg3[%c112, %c0_68] : memref<200x128xbf16, #tpu.memory_space<vmem>>, vector<8x128xbf16>
    %163 = vector.extract_strided_slice %119 {offsets = [4, 0], sizes = [28, 8], strides = [1, 1]} : vector<32x8xf32> to vector<28x8xf32>
    %164 = arith.truncf %163 : vector<28x8xf32> to vector<28x8xbf16>
    %165 = vector.extract_strided_slice %125 {offsets = [4, 0], sizes = [28, 8], strides = [1, 1]} : vector<32x8xf32> to vector<28x8xf32>
    %166 = arith.truncf %165 : vector<28x8xf32> to vector<28x8xbf16>
    %cst_69 = arith.constant dense<0.000000e+00> : vector<28x128xf32>
    %167 = tpu.matmul %164, %162, %cst_69 {dimension_numbers = #tpu.dot_dimension_numbers<[1], [0], [0], [1], [0, 0, 1, 1], [], []>} : vector<28x8xbf16>, vector<8x128xbf16>, vector<28x128xf32> -> vector<28x128xf32>
    %168 = arith.addf %159, %167 : vector<28x128xf32>
    %cst_70 = arith.constant dense<0.000000e+00> : vector<28x128xf32>
    %169 = tpu.matmul %166, %162, %cst_70 {dimension_numbers = #tpu.dot_dimension_numbers<[1], [0], [0], [1], [0, 0, 1, 1], [], []>} : vector<28x8xbf16>, vector<8x128xbf16>, vector<28x128xf32> -> vector<28x128xf32>
    %170 = arith.addf %161, %169 : vector<28x128xf32>
    %c3_i32 = arith.constant 3 : i32
    %171 = arith.addi %0, %c3_i32 : i32
    %c0_71 = arith.constant 0 : index
    %172 = arith.index_cast %171 : i32 to index
    %c0_72 = arith.constant 0 : index
    %c0_73 = arith.constant 0 : index
    %173 = vector.load %arg2[%c0_71, %172, %c0_72, %c0_73] : memref<1x32x32x8xbf16, #tpu.memory_space<vmem>>, vector<1x1x32x8xbf16>
    %174 = vector.shape_cast %173 : vector<1x1x32x8xbf16> to vector<32x8xbf16>
    %175 = arith.extf %174 : vector<32x8xbf16> to vector<32x8xf32>
    %c3_i32_74 = arith.constant 3 : i32
    %176 = arith.addi %0, %c3_i32_74 : i32
    %c1_i32_75 = arith.constant 1 : i32
    %177 = arith.addi %176, %c1_i32_75 : i32
    %c0_76 = arith.constant 0 : index
    %178 = arith.index_cast %177 : i32 to index
    %c0_77 = arith.constant 0 : index
    %c0_78 = arith.constant 0 : index
    %179 = vector.load %arg2[%c0_76, %178, %c0_77, %c0_78] : memref<1x32x32x8xbf16, #tpu.memory_space<vmem>>, vector<1x1x32x8xbf16>
    %180 = vector.shape_cast %179 : vector<1x1x32x8xbf16> to vector<32x8xbf16>
    %181 = arith.extf %180 : vector<32x8xbf16> to vector<32x8xf32>
    %c120 = arith.constant 120 : index
    %c0_79 = arith.constant 0 : index
    %182 = vector.load %arg3[%c120, %c0_79] : memref<200x128xbf16, #tpu.memory_space<vmem>>, vector<8x128xbf16>
    %183 = vector.extract_strided_slice %175 {offsets = [0, 0], sizes = [28, 8], strides = [1, 1]} : vector<32x8xf32> to vector<28x8xf32>
    %184 = arith.truncf %183 : vector<28x8xf32> to vector<28x8xbf16>
    %185 = vector.extract_strided_slice %181 {offsets = [0, 0], sizes = [28, 8], strides = [1, 1]} : vector<32x8xf32> to vector<28x8xf32>
    %186 = arith.truncf %185 : vector<28x8xf32> to vector<28x8xbf16>
    %cst_80 = arith.constant dense<0.000000e+00> : vector<28x128xf32>
    %187 = tpu.matmul %184, %182, %cst_80 {dimension_numbers = #tpu.dot_dimension_numbers<[1], [0], [0], [1], [0, 0, 1, 1], [], []>} : vector<28x8xbf16>, vector<8x128xbf16>, vector<28x128xf32> -> vector<28x128xf32>
    %188 = arith.addf %168, %187 : vector<28x128xf32>
    %cst_81 = arith.constant dense<0.000000e+00> : vector<28x128xf32>
    %189 = tpu.matmul %186, %182, %cst_81 {dimension_numbers = #tpu.dot_dimension_numbers<[1], [0], [0], [1], [0, 0, 1, 1], [], []>} : vector<28x8xbf16>, vector<8x128xbf16>, vector<28x128xf32> -> vector<28x128xf32>
    %190 = arith.addf %170, %189 : vector<28x128xf32>
    %c128 = arith.constant 128 : index
    %c0_82 = arith.constant 0 : index
    %191 = vector.load %arg3[%c128, %c0_82] : memref<200x128xbf16, #tpu.memory_space<vmem>>, vector<8x128xbf16>
    %192 = vector.extract_strided_slice %175 {offsets = [1, 0], sizes = [28, 8], strides = [1, 1]} : vector<32x8xf32> to vector<28x8xf32>
    %193 = arith.truncf %192 : vector<28x8xf32> to vector<28x8xbf16>
    %194 = vector.extract_strided_slice %181 {offsets = [1, 0], sizes = [28, 8], strides = [1, 1]} : vector<32x8xf32> to vector<28x8xf32>
    %195 = arith.truncf %194 : vector<28x8xf32> to vector<28x8xbf16>
    %cst_83 = arith.constant dense<0.000000e+00> : vector<28x128xf32>
    %196 = tpu.matmul %193, %191, %cst_83 {dimension_numbers = #tpu.dot_dimension_numbers<[1], [0], [0], [1], [0, 0, 1, 1], [], []>} : vector<28x8xbf16>, vector<8x128xbf16>, vector<28x128xf32> -> vector<28x128xf32>
    %197 = arith.addf %188, %196 : vector<28x128xf32>
    %cst_84 = arith.constant dense<0.000000e+00> : vector<28x128xf32>
    %198 = tpu.matmul %195, %191, %cst_84 {dimension_numbers = #tpu.dot_dimension_numbers<[1], [0], [0], [1], [0, 0, 1, 1], [], []>} : vector<28x8xbf16>, vector<8x128xbf16>, vector<28x128xf32> -> vector<28x128xf32>
    %199 = arith.addf %190, %198 : vector<28x128xf32>
    %c136 = arith.constant 136 : index
    %c0_85 = arith.constant 0 : index
    %200 = vector.load %arg3[%c136, %c0_85] : memref<200x128xbf16, #tpu.memory_space<vmem>>, vector<8x128xbf16>
    %201 = vector.extract_strided_slice %175 {offsets = [2, 0], sizes = [28, 8], strides = [1, 1]} : vector<32x8xf32> to vector<28x8xf32>
    %202 = arith.truncf %201 : vector<28x8xf32> to vector<28x8xbf16>
    %203 = vector.extract_strided_slice %181 {offsets = [2, 0], sizes = [28, 8], strides = [1, 1]} : vector<32x8xf32> to vector<28x8xf32>
    %204 = arith.truncf %203 : vector<28x8xf32> to vector<28x8xbf16>
    %cst_86 = arith.constant dense<0.000000e+00> : vector<28x128xf32>
    %205 = tpu.matmul %202, %200, %cst_86 {dimension_numbers = #tpu.dot_dimension_numbers<[1], [0], [0], [1], [0, 0, 1, 1], [], []>} : vector<28x8xbf16>, vector<8x128xbf16>, vector<28x128xf32> -> vector<28x128xf32>
    %206 = arith.addf %197, %205 : vector<28x128xf32>
    %cst_87 = arith.constant dense<0.000000e+00> : vector<28x128xf32>
    %207 = tpu.matmul %204, %200, %cst_87 {dimension_numbers = #tpu.dot_dimension_numbers<[1], [0], [0], [1], [0, 0, 1, 1], [], []>} : vector<28x8xbf16>, vector<8x128xbf16>, vector<28x128xf32> -> vector<28x128xf32>
    %208 = arith.addf %199, %207 : vector<28x128xf32>
    %c144 = arith.constant 144 : index
    %c0_88 = arith.constant 0 : index
    %209 = vector.load %arg3[%c144, %c0_88] : memref<200x128xbf16, #tpu.memory_space<vmem>>, vector<8x128xbf16>
    %210 = vector.extract_strided_slice %175 {offsets = [3, 0], sizes = [28, 8], strides = [1, 1]} : vector<32x8xf32> to vector<28x8xf32>
    %211 = arith.truncf %210 : vector<28x8xf32> to vector<28x8xbf16>
    %212 = vector.extract_strided_slice %181 {offsets = [3, 0], sizes = [28, 8], strides = [1, 1]} : vector<32x8xf32> to vector<28x8xf32>
    %213 = arith.truncf %212 : vector<28x8xf32> to vector<28x8xbf16>
    %cst_89 = arith.constant dense<0.000000e+00> : vector<28x128xf32>
    %214 = tpu.matmul %211, %209, %cst_89 {dimension_numbers = #tpu.dot_dimension_numbers<[1], [0], [0], [1], [0, 0, 1, 1], [], []>} : vector<28x8xbf16>, vector<8x128xbf16>, vector<28x128xf32> -> vector<28x128xf32>
    %215 = arith.addf %206, %214 : vector<28x128xf32>
    %cst_90 = arith.constant dense<0.000000e+00> : vector<28x128xf32>
    %216 = tpu.matmul %213, %209, %cst_90 {dimension_numbers = #tpu.dot_dimension_numbers<[1], [0], [0], [1], [0, 0, 1, 1], [], []>} : vector<28x8xbf16>, vector<8x128xbf16>, vector<28x128xf32> -> vector<28x128xf32>
    %217 = arith.addf %208, %216 : vector<28x128xf32>
    %c152 = arith.constant 152 : index
    %c0_91 = arith.constant 0 : index
    %218 = vector.load %arg3[%c152, %c0_91] : memref<200x128xbf16, #tpu.memory_space<vmem>>, vector<8x128xbf16>
    %219 = vector.extract_strided_slice %175 {offsets = [4, 0], sizes = [28, 8], strides = [1, 1]} : vector<32x8xf32> to vector<28x8xf32>
    %220 = arith.truncf %219 : vector<28x8xf32> to vector<28x8xbf16>
    %221 = vector.extract_strided_slice %181 {offsets = [4, 0], sizes = [28, 8], strides = [1, 1]} : vector<32x8xf32> to vector<28x8xf32>
    %222 = arith.truncf %221 : vector<28x8xf32> to vector<28x8xbf16>
    %cst_92 = arith.constant dense<0.000000e+00> : vector<28x128xf32>
    %223 = tpu.matmul %220, %218, %cst_92 {dimension_numbers = #tpu.dot_dimension_numbers<[1], [0], [0], [1], [0, 0, 1, 1], [], []>} : vector<28x8xbf16>, vector<8x128xbf16>, vector<28x128xf32> -> vector<28x128xf32>
    %224 = arith.addf %215, %223 : vector<28x128xf32>
    %cst_93 = arith.constant dense<0.000000e+00> : vector<28x128xf32>
    %225 = tpu.matmul %222, %218, %cst_93 {dimension_numbers = #tpu.dot_dimension_numbers<[1], [0], [0], [1], [0, 0, 1, 1], [], []>} : vector<28x8xbf16>, vector<8x128xbf16>, vector<28x128xf32> -> vector<28x128xf32>
    %226 = arith.addf %217, %225 : vector<28x128xf32>
    %c4_i32 = arith.constant 4 : i32
    %227 = arith.addi %0, %c4_i32 : i32
    %c0_94 = arith.constant 0 : index
    %228 = arith.index_cast %227 : i32 to index
    %c0_95 = arith.constant 0 : index
    %c0_96 = arith.constant 0 : index
    %229 = vector.load %arg2[%c0_94, %228, %c0_95, %c0_96] : memref<1x32x32x8xbf16, #tpu.memory_space<vmem>>, vector<1x1x32x8xbf16>
    %230 = vector.shape_cast %229 : vector<1x1x32x8xbf16> to vector<32x8xbf16>
    %231 = arith.extf %230 : vector<32x8xbf16> to vector<32x8xf32>
    %c4_i32_97 = arith.constant 4 : i32
    %232 = arith.addi %0, %c4_i32_97 : i32
    %c1_i32_98 = arith.constant 1 : i32
    %233 = arith.addi %232, %c1_i32_98 : i32
    %c0_99 = arith.constant 0 : index
    %234 = arith.index_cast %233 : i32 to index
    %c0_100 = arith.constant 0 : index
    %c0_101 = arith.constant 0 : index
    %235 = vector.load %arg2[%c0_99, %234, %c0_100, %c0_101] : memref<1x32x32x8xbf16, #tpu.memory_space<vmem>>, vector<1x1x32x8xbf16>
    %236 = vector.shape_cast %235 : vector<1x1x32x8xbf16> to vector<32x8xbf16>
    %237 = arith.extf %236 : vector<32x8xbf16> to vector<32x8xf32>
    %c160 = arith.constant 160 : index
    %c0_102 = arith.constant 0 : index
    %238 = vector.load %arg3[%c160, %c0_102] : memref<200x128xbf16, #tpu.memory_space<vmem>>, vector<8x128xbf16>
    %239 = vector.extract_strided_slice %231 {offsets = [0, 0], sizes = [28, 8], strides = [1, 1]} : vector<32x8xf32> to vector<28x8xf32>
    %240 = arith.truncf %239 : vector<28x8xf32> to vector<28x8xbf16>
    %241 = vector.extract_strided_slice %237 {offsets = [0, 0], sizes = [28, 8], strides = [1, 1]} : vector<32x8xf32> to vector<28x8xf32>
    %242 = arith.truncf %241 : vector<28x8xf32> to vector<28x8xbf16>
    %cst_103 = arith.constant dense<0.000000e+00> : vector<28x128xf32>
    %243 = tpu.matmul %240, %238, %cst_103 {dimension_numbers = #tpu.dot_dimension_numbers<[1], [0], [0], [1], [0, 0, 1, 1], [], []>} : vector<28x8xbf16>, vector<8x128xbf16>, vector<28x128xf32> -> vector<28x128xf32>
    %244 = arith.addf %224, %243 : vector<28x128xf32>
    %cst_104 = arith.constant dense<0.000000e+00> : vector<28x128xf32>
    %245 = tpu.matmul %242, %238, %cst_104 {dimension_numbers = #tpu.dot_dimension_numbers<[1], [0], [0], [1], [0, 0, 1, 1], [], []>} : vector<28x8xbf16>, vector<8x128xbf16>, vector<28x128xf32> -> vector<28x128xf32>
    %246 = arith.addf %226, %245 : vector<28x128xf32>
    %c168 = arith.constant 168 : index
    %c0_105 = arith.constant 0 : index
    %247 = vector.load %arg3[%c168, %c0_105] : memref<200x128xbf16, #tpu.memory_space<vmem>>, vector<8x128xbf16>
    %248 = vector.extract_strided_slice %231 {offsets = [1, 0], sizes = [28, 8], strides = [1, 1]} : vector<32x8xf32> to vector<28x8xf32>
    %249 = arith.truncf %248 : vector<28x8xf32> to vector<28x8xbf16>
    %250 = vector.extract_strided_slice %237 {offsets = [1, 0], sizes = [28, 8], strides = [1, 1]} : vector<32x8xf32> to vector<28x8xf32>
    %251 = arith.truncf %250 : vector<28x8xf32> to vector<28x8xbf16>
    %cst_106 = arith.constant dense<0.000000e+00> : vector<28x128xf32>
    %252 = tpu.matmul %249, %247, %cst_106 {dimension_numbers = #tpu.dot_dimension_numbers<[1], [0], [0], [1], [0, 0, 1, 1], [], []>} : vector<28x8xbf16>, vector<8x128xbf16>, vector<28x128xf32> -> vector<28x128xf32>
    %253 = arith.addf %244, %252 : vector<28x128xf32>
    %cst_107 = arith.constant dense<0.000000e+00> : vector<28x128xf32>
    %254 = tpu.matmul %251, %247, %cst_107 {dimension_numbers = #tpu.dot_dimension_numbers<[1], [0], [0], [1], [0, 0, 1, 1], [], []>} : vector<28x8xbf16>, vector<8x128xbf16>, vector<28x128xf32> -> vector<28x128xf32>
    %255 = arith.addf %246, %254 : vector<28x128xf32>
    %c176 = arith.constant 176 : index
    %c0_108 = arith.constant 0 : index
    %256 = vector.load %arg3[%c176, %c0_108] : memref<200x128xbf16, #tpu.memory_space<vmem>>, vector<8x128xbf16>
    %257 = vector.extract_strided_slice %231 {offsets = [2, 0], sizes = [28, 8], strides = [1, 1]} : vector<32x8xf32> to vector<28x8xf32>
    %258 = arith.truncf %257 : vector<28x8xf32> to vector<28x8xbf16>
    %259 = vector.extract_strided_slice %237 {offsets = [2, 0], sizes = [28, 8], strides = [1, 1]} : vector<32x8xf32> to vector<28x8xf32>
    %260 = arith.truncf %259 : vector<28x8xf32> to vector<28x8xbf16>
    %cst_109 = arith.constant dense<0.000000e+00> : vector<28x128xf32>
    %261 = tpu.matmul %258, %256, %cst_109 {dimension_numbers = #tpu.dot_dimension_numbers<[1], [0], [0], [1], [0, 0, 1, 1], [], []>} : vector<28x8xbf16>, vector<8x128xbf16>, vector<28x128xf32> -> vector<28x128xf32>
    %262 = arith.addf %253, %261 : vector<28x128xf32>
    %cst_110 = arith.constant dense<0.000000e+00> : vector<28x128xf32>
    %263 = tpu.matmul %260, %256, %cst_110 {dimension_numbers = #tpu.dot_dimension_numbers<[1], [0], [0], [1], [0, 0, 1, 1], [], []>} : vector<28x8xbf16>, vector<8x128xbf16>, vector<28x128xf32> -> vector<28x128xf32>
    %264 = arith.addf %255, %263 : vector<28x128xf32>
    %c184 = arith.constant 184 : index
    %c0_111 = arith.constant 0 : index
    %265 = vector.load %arg3[%c184, %c0_111] : memref<200x128xbf16, #tpu.memory_space<vmem>>, vector<8x128xbf16>
    %266 = vector.extract_strided_slice %231 {offsets = [3, 0], sizes = [28, 8], strides = [1, 1]} : vector<32x8xf32> to vector<28x8xf32>
    %267 = arith.truncf %266 : vector<28x8xf32> to vector<28x8xbf16>
    %268 = vector.extract_strided_slice %237 {offsets = [3, 0], sizes = [28, 8], strides = [1, 1]} : vector<32x8xf32> to vector<28x8xf32>
    %269 = arith.truncf %268 : vector<28x8xf32> to vector<28x8xbf16>
    %cst_112 = arith.constant dense<0.000000e+00> : vector<28x128xf32>
    %270 = tpu.matmul %267, %265, %cst_112 {dimension_numbers = #tpu.dot_dimension_numbers<[1], [0], [0], [1], [0, 0, 1, 1], [], []>} : vector<28x8xbf16>, vector<8x128xbf16>, vector<28x128xf32> -> vector<28x128xf32>
    %271 = arith.addf %262, %270 : vector<28x128xf32>
    %cst_113 = arith.constant dense<0.000000e+00> : vector<28x128xf32>
    %272 = tpu.matmul %269, %265, %cst_113 {dimension_numbers = #tpu.dot_dimension_numbers<[1], [0], [0], [1], [0, 0, 1, 1], [], []>} : vector<28x8xbf16>, vector<8x128xbf16>, vector<28x128xf32> -> vector<28x128xf32>
    %273 = arith.addf %264, %272 : vector<28x128xf32>
    %c192 = arith.constant 192 : index
    %c0_114 = arith.constant 0 : index
    %274 = vector.load %arg3[%c192, %c0_114] : memref<200x128xbf16, #tpu.memory_space<vmem>>, vector<8x128xbf16>
    %275 = vector.extract_strided_slice %231 {offsets = [4, 0], sizes = [28, 8], strides = [1, 1]} : vector<32x8xf32> to vector<28x8xf32>
    %276 = arith.truncf %275 : vector<28x8xf32> to vector<28x8xbf16>
    %277 = vector.extract_strided_slice %237 {offsets = [4, 0], sizes = [28, 8], strides = [1, 1]} : vector<32x8xf32> to vector<28x8xf32>
    %278 = arith.truncf %277 : vector<28x8xf32> to vector<28x8xbf16>
    %cst_115 = arith.constant dense<0.000000e+00> : vector<28x128xf32>
    %279 = tpu.matmul %276, %274, %cst_115 {dimension_numbers = #tpu.dot_dimension_numbers<[1], [0], [0], [1], [0, 0, 1, 1], [], []>} : vector<28x8xbf16>, vector<8x128xbf16>, vector<28x128xf32> -> vector<28x128xf32>
    %280 = arith.addf %271, %279 : vector<28x128xf32>
    %cst_116 = arith.constant dense<0.000000e+00> : vector<28x128xf32>
    %281 = tpu.matmul %278, %274, %cst_116 {dimension_numbers = #tpu.dot_dimension_numbers<[1], [0], [0], [1], [0, 0, 1, 1], [], []>} : vector<28x8xbf16>, vector<8x128xbf16>, vector<28x128xf32> -> vector<28x128xf32>
    %282 = arith.addf %273, %281 : vector<28x128xf32>
    %c0_117 = arith.constant 0 : index
    %c0_118 = arith.constant 0 : index
    %283 = vector.load %arg4[%c0_117, %c0_118] : memref<1x128xf32, #tpu.memory_space<vmem>>, vector<1x128xf32>
    %284 = vector.broadcast %283 : vector<1x128xf32> to vector<28x128xf32>
    %285 = arith.addf %280, %284 : vector<28x128xf32>
    %cst_119 = arith.constant 0.000000e+00 : f32
    %286 = vector.broadcast %cst_119 : f32 to vector<28x128xf32>
    %287 = arith.maximumf %285, %286 : vector<28x128xf32>
    %288 = vector.broadcast %283 : vector<1x128xf32> to vector<28x128xf32>
    %289 = arith.addf %282, %288 : vector<28x128xf32>
    %cst_120 = arith.constant 0.000000e+00 : f32
    %290 = vector.broadcast %cst_120 : f32 to vector<28x128xf32>
    %291 = arith.maximumf %289, %290 : vector<28x128xf32>
    %292 = arith.maximumf %287, %291 : vector<28x128xf32>
    %293 = tpu.iota {dimensions = array<i32: 0>} : vector<14x28xi32>
    %294 = tpu.iota {dimensions = array<i32: 1>} : vector<14x28xi32>
    %c2_i32_121 = arith.constant 2 : i32
    %295 = vector.broadcast %c2_i32_121 : i32 to vector<14x28xi32>
    %296 = arith.muli %295, %293 : vector<14x28xi32>
    %297 = arith.cmpi eq, %294, %296 : vector<14x28xi32>
    %cst_122 = arith.constant 1.000000e+00 : f32
    %cst_123 = arith.constant 0.000000e+00 : f32
    %298 = vector.broadcast %cst_122 : f32 to vector<14x28xf32>
    %299 = vector.broadcast %cst_123 : f32 to vector<14x28xf32>
    %300 = arith.select %297, %298, %299 : vector<14x28xi1>, vector<14x28xf32>
    %c2_i32_124 = arith.constant 2 : i32
    %301 = vector.broadcast %c2_i32_124 : i32 to vector<14x28xi32>
    %302 = arith.muli %301, %293 : vector<14x28xi32>
    %c1_i32_125 = arith.constant 1 : i32
    %303 = vector.broadcast %c1_i32_125 : i32 to vector<14x28xi32>
    %304 = arith.addi %302, %303 : vector<14x28xi32>
    %305 = arith.cmpi eq, %294, %304 : vector<14x28xi32>
    %cst_126 = arith.constant 1.000000e+00 : f32
    %cst_127 = arith.constant 0.000000e+00 : f32
    %306 = vector.broadcast %cst_126 : f32 to vector<14x28xf32>
    %307 = vector.broadcast %cst_127 : f32 to vector<14x28xf32>
    %308 = arith.select %305, %306, %307 : vector<14x28xi1>, vector<14x28xf32>
    %cst_128 = arith.constant dense<0.000000e+00> : vector<14x128xf32>
    %309 = tpu.matmul %300, %292, %cst_128 {dimension_numbers = #tpu.dot_dimension_numbers<[1], [0], [0], [1], [0, 0, 1, 1], [], []>} : vector<14x28xf32>, vector<28x128xf32>, vector<14x128xf32> -> vector<14x128xf32>
    %cst_129 = arith.constant dense<0.000000e+00> : vector<14x128xf32>
    %310 = tpu.matmul %308, %292, %cst_129 {dimension_numbers = #tpu.dot_dimension_numbers<[1], [0], [0], [1], [0, 0, 1, 1], [], []>} : vector<14x28xf32>, vector<28x128xf32>, vector<14x128xf32> -> vector<14x128xf32>
    %311 = arith.maximumf %309, %310 : vector<14x128xf32>
    %312 = arith.truncf %311 : vector<14x128xf32> to vector<14x128xbf16>
    %c0_130 = arith.constant 0 : index
    %c0_131 = arith.constant 0 : index
    %c0_132 = arith.constant 0 : index
    %c0_133 = arith.constant 0 : index
    %313 = vector.load %arg5[%c0_130, %c0_131, %c0_132, %c0_133] : memref<1x1x14x128xbf16, #tpu.memory_space<vmem>>, vector<1x1x14x128xbf16>
    %314 = vector.shape_cast %313 : vector<1x1x14x128xbf16> to vector<14x128xbf16>
    %315 = vector.shape_cast %312 : vector<14x128xbf16> to vector<1x1x14x128xbf16>
    tpu.vector_store %arg5[%c0_130, %c0_131, %c0_132, %c0_133], %315 {strides = array<i32>} : memref<1x1x14x128xbf16, #tpu.memory_space<vmem>>, vector<1x1x14x128xbf16>,
    return
  }
  func.func @transform_0(%arg0: i32, %arg1: i32) -> (i32, i32, i32, i32) {
    %c0_i32 = arith.constant 0 : i32
    %c0_i32_0 = arith.constant 0 : i32
    %c0_i32_1 = arith.constant 0 : i32
    %c0_i32_2 = arith.constant 0 : i32
    return %arg0, %c0_i32, %c0_i32_0, %c0_i32_1 : i32, i32, i32, i32
  }
  func.func @transform_1(%arg0: i32, %arg1: i32) -> (i32, i32) {
    %c0_i32 = arith.constant 0 : i32
    %c0_i32_0 = arith.constant 0 : i32
    %c0_i32_1 = arith.constant 0 : i32
    return %c0_i32, %c0_i32_0 : i32, i32
  }
  func.func @transform_2(%arg0: i32, %arg1: i32) -> (i32, i32) {
    %c0_i32 = arith.constant 0 : i32
    %c0_i32_0 = arith.constant 0 : i32
    %c0_i32_1 = arith.constant 0 : i32
    return %c0_i32, %c0_i32_0 : i32, i32
  }
  func.func @transform_3(%arg0: i32, %arg1: i32) -> (i32, i32, i32, i32) {
    %c0_i32 = arith.constant 0 : i32
    %c0_i32_0 = arith.constant 0 : i32
    %c0_i32_1 = arith.constant 0 : i32
    return %arg0, %arg1, %c0_i32, %c0_i32_0 : i32, i32, i32, i32
  }
}

</mosaic_0001>

<llo_original>
// kernel: lenet_forward.3
$region0: #{lenet_forward.3}
  #allocation0 [shape = 'u32[]', space=smem, size = 0x4, offset = 0x4, fixed_abs, tag = 'smem constant byte address 0x4 - core index']
  #allocation1 [shape = 'u32[144,128]{1,0:T(1,128)}', space=vmem, size = 0x12000, scoped, tag = 'internal scratch']
  %s0 = inlined_call_operand.vmem [shape: bf16[2,32,32,8], index: 0, kind: input, shape index: {}]
  %s1 = inlined_call_operand.vmem [shape: bf16[200,128], index: 1, kind: input, shape index: {}]
  %s2 = inlined_call_operand.vmem [shape: f32[1,128], index: 2, kind: input, shape index: {}]
  %s3 = inlined_call_operand.vmem [shape: bf16[2,14,14,128], index: 3, kind: output, shape index: {}]
  %s4 = sld [smem:[#allocation0]]
  $region45: #{lenet_forward.3} parent=0
    _
  %s6 = ssub.s32 1, %s4
  %s7 = scalar_select 0, %s6, %s4
  loop: start=0, step=1, limit=30
  $region2: #{lenet_forward.3} parent=0 // loop_pre_header
    _
  $region3: #{lenet_forward.3} parent=0 // loop_header
    %s9 = sphi 0, %s13
    %p10 = scmp.ge.s32.totalorder %s9, 30
    %s16 = sphi 0, %s28
    %s17 = sphi 0, %s24
    %s18 = sphi 0, %s16
    %s19 = sphi 0, %s17
    %s20 = sphi 0, %s18
    %s21 = sphi 0, %s19
    %s31 = sphi 0, %s33
    %s34 = sphi 0, %s31
    %s35 = sphi 0, %s34
    %s51 = sphi 0, %s35
    %s55 = sphi 0, %s55
    %s57 = sphi 0, %s55
    %s58 = sphi 0, %s57
    %s72 = sphi 0, %s58
    %s76 = sphi 0, %s76
    %s78 = sphi 0, %s76
    %s79 = sphi 0, %s78
    %s93 = sphi 0, %s79
    %s101 = sphi 0, %s103
    %s104 = sphi 0, %s101
    %s105 = sphi 0, %s104
    %s121 = sphi 0, %s105
  $region4: #{lenet_forward.3} parent=0 // loop_header_branch
    %12 = sbr.rel (%p10) target = $region8
  $region5: #{lenet_forward.3} parent=0 // loop_body
    %s14 = ssub.s32 %s9, 1
    %s15 = ssub.s32 %s9, 2
    %s22 = sadd.s32 1, %s17
    %p23 = scmp.ge.s32.totalorder %s22, 14
    %s24 = scalar_select %p23, 0, %s22
    %s25 = sadd.s32 1, %s16
    %s26 = scalar_select %p23, %s25, %s16
    %p27 = scmp.ge.s32.totalorder %s26, 2
    %s28 = scalar_select %p27, 0, %s26
    %s29 = ssub.s32 %s16, %s28
    %p30 = scmp.eq.s32.totalorder %s29, 0
    %s32 = sadd.s32 %s31, 1
    %s33 = scalar_select %p30, %s31, %s32
    %p36 = pneg %p30
    %p37 = scmp.eq.s32.totalorder %s9, 27
    %p38 = por %p36, %p37
    %p39 = scmp.ne.s32.totalorder %s31, %s34
    %p40 = scmp.eq.s32.totalorder %s9, 0
    %p41 = por %p39, %p40
    %p42 = scmp.ne.s32.totalorder %s31, %s34
    %p43 = scmp.eq.s32.totalorder %s14, 27
    %p44 = por %p42, %p43
    %p45 = scmp.ne.s32.totalorder %s34, %s35
    %p46 = scmp.eq.s32.totalorder %s14, 0
    %p47 = por %p45, %p46
    %p48 = scmp.ne.s32.totalorder %s34, %s35
    %p49 = scmp.eq.s32.totalorder %s15, 27
    %p50 = por %p48, %p49
    %p52 = scmp.ne.s32.totalorder %s35, %s51
    %p53 = scmp.eq.s32.totalorder %s15, 0
    %p54 = por %p52, %p53
    %s56 = sadd.s32 %s55, 1
    %p59 = scmp.eq.s32.totalorder %s9, 27
    %p60 = scmp.ne.s32.totalorder %s55, %s57
    %p61 = scmp.eq.s32.totalorder %s9, 0
    %p62 = por %p60, %p61
    %p63 = scmp.ne.s32.totalorder %s55, %s57
    %p64 = scmp.eq.s32.totalorder %s14, 27
    %p65 = por %p63, %p64
    %p66 = scmp.ne.s32.totalorder %s57, %s58
    %p67 = scmp.eq.s32.totalorder %s14, 0
    %p68 = por %p66, %p67
    %p69 = scmp.ne.s32.totalorder %s57, %s58
    %p70 = scmp.eq.s32.totalorder %s15, 27
    %p71 = por %p69, %p70
    %p73 = scmp.ne.s32.totalorder %s58, %s72
    %p74 = scmp.eq.s32.totalorder %s15, 0
    %p75 = por %p73, %p74
    %s77 = sadd.s32 %s76, 1
    %p80 = scmp.eq.s32.totalorder %s9, 27
    %p81 = scmp.ne.s32.totalorder %s76, %s78
    %p82 = scmp.eq.s32.totalorder %s9, 0
    %p83 = por %p81, %p82
    %p84 = scmp.ne.s32.totalorder %s76, %s78
    %p85 = scmp.eq.s32.totalorder %s14, 27
    %p86 = por %p84, %p85
    %p87 = scmp.ne.s32.totalorder %s78, %s79
    %p88 = scmp.eq.s32.totalorder %s14, 0
    %p89 = por %p87, %p88
    %p90 = scmp.ne.s32.totalorder %s78, %s79
    %p91 = scmp.eq.s32.totalorder %s15, 27
    %p92 = por %p90, %p91
    %p94 = scmp.ne.s32.totalorder %s79, %s93
    %p95 = scmp.eq.s32.totalorder %s15, 0
    %p96 = por %p94, %p95
    %s97 = ssub.s32 %s16, %s28
    %s98 = ssub.s32 %s17, %s24
    %s99 = sor.u32 %s97, %s98
    %p100 = scmp.eq.s32.totalorder %s99, 0
    %s102 = sadd.s32 %s101, 1
    %s103 = scalar_select %p100, %s101, %s102
    %p106 = pneg %p100
    %p107 = scmp.eq.s32.totalorder %s9, 27
    %p108 = por %p106, %p107
    %p109 = scmp.ne.s32.totalorder %s101, %s104
    %p110 = scmp.eq.s32.totalorder %s9, 0
    %p111 = por %p109, %p110
    %p112 = scmp.ne.s32.totalorder %s101, %s104
    %p113 = scmp.eq.s32.totalorder %s14, 27
    %p114 = por %p112, %p113
    %p115 = scmp.ne.s32.totalorder %s104, %s105
    %p116 = scmp.eq.s32.totalorder %s14, 0
    %p117 = por %p115, %p116
    %p118 = scmp.ne.s32.totalorder %s104, %s105
    %p119 = scmp.eq.s32.totalorder %s15, 27
    %p120 = por %p118, %p119
    %p122 = scmp.ne.s32.totalorder %s105, %s121
    %p123 = scmp.eq.s32.totalorder %s15, 0
    %p124 = por %p122, %p123
    %p125 = scmp.le.s32.totalorder 1, %s9
    %p126 = scmp.lt.s32.totalorder %s9, 29
    %p127 = pnand %p125, %p126
    %p128 = pneg %p127
    // Predicated region
    $region9: #{lenet_forward.3} parent=5 // pred_check
      _
    $region10: #{lenet_forward.3} parent=5 // pred_check_branch
      %130 = sbr.rel (%p127) target = $region12
    $region11: #{lenet_forward.3} parent=5 // pred_region
      %s131 = ssub.s32 %s9, 1
      // Predicated region
      $region13: #{lenet_forward.3} parent=11 // pred_check
        %p132 = pneg %p68
      $region14: #{lenet_forward.3} parent=11 // pred_check_branch
        %134 = sbr.rel (%p132) target = $region16
      $region15: #{lenet_forward.3} parent=11 // pred_region
        _
      $region16: #{lenet_forward.3} parent=11 // pred_fallthru
        _
      // Predicated region
      $region17: #{lenet_forward.3} parent=11 // pred_check
        %p135 = pneg %p89
      $region18: #{lenet_forward.3} parent=11 // pred_check_branch
        %137 = sbr.rel (%p135) target = $region20
      $region19: #{lenet_forward.3} parent=11 // pred_region
        _
      $region20: #{lenet_forward.3} parent=11 // pred_fallthru
        _
    $region12: #{lenet_forward.3} parent=5 // pred_fallthru
      _
    %p138 = scmp.lt.s32.totalorder %s9, 28
    // Predicated region
    $region21: #{lenet_forward.3} parent=5 // pred_check
      %p139 = pneg %p138
    $region22: #{lenet_forward.3} parent=5 // pred_check_branch
      %141 = sbr.rel (%p139) target = $region24
    $region23: #{lenet_forward.3} parent=5 // pred_region
      // Predicated region
      $region25: #{lenet_forward.3} parent=23 // pred_check
        %p142 = pneg %p41
      $region26: #{lenet_forward.3} parent=23 // pred_check_branch
        %144 = sbr.rel (%p142) target = $region28
      $region27: #{lenet_forward.3} parent=23 // pred_region
        %p145 = scmp.lt.s32.totalorder %s16, 1
        %s146 = scalar_select %p145, %s16, 1
        %s147 = smul.addr %s146, 128
        %s148 = smul.addr %s147, 4
        %s149 = scalar_lea.vmem %s0, %s148
      $region28: #{lenet_forward.3} parent=23 // pred_fallthru
        _
    $region24: #{lenet_forward.3} parent=5 // pred_fallthru
      _
    %p150 = scmp.le.s32.totalorder 1, %s9
    %p151 = scmp.lt.s32.totalorder %s9, 29
    %p152 = pnand %p150, %p151
    %p153 = pneg %p152
    // Predicated region
    $region29: #{lenet_forward.3} parent=5 // pred_check
      _
    $region30: #{lenet_forward.3} parent=5 // pred_check_branch
      %155 = sbr.rel (%p152) target = $region32
    $region31: #{lenet_forward.3} parent=5 // pred_region
      %s156 = ssub.s32 %s9, 1
      %p157 = scmp.lt.s32.totalorder %s18, 1
      %s158 = scalar_select %p157, %s18, 1
      %s159 = smul.addr %s158, 128
      %s160 = smul.addr %s159, 4
      %s161 = scalar_lea.vmem %s0, %s160
      %p162 = pneg %p47
      %p163 = pneg %p44
      %p164 = pneg %p68
      %p165 = pneg %p65
      %p166 = pneg %p89
      %p167 = pneg %p86
      %p168 = pneg %p117
      %p169 = pneg %p114
      %p170 = scmp.lt.s32.totalorder %s18, 1
      %s171 = scalar_select %p170, %s18, 1
      %p172 = scmp.lt.s32.totalorder %s19, 13
      %s173 = scalar_select %p172, %s19, 13
      %s174 = smul.addr %s173, 2
      %s175 = smul.addr %s171, 28
      %s176 = sadd.s32 %s174, %s175
      %s177 = smul.addr %s176, 4
      %s178 = scalar_lea.vmem %s3, %s177
      %p179 = scmp.lt.s32.totalorder %s18, 1
      %s180 = scalar_select %p179, %s18, 1
      %s181 = smul.addr %s180, 128
      %s182 = smul.addr %s181, 4
      %s183 = scalar_lea.vmem %s0, %s182
      %p184 = scmp.lt.s32.totalorder %s18, 1
      %s185 = scalar_select %p184, %s18, 1
      %p186 = scmp.lt.s32.totalorder %s19, 13
      %s187 = scalar_select %p186, %s19, 13
      %s188 = smul.addr %s187, 2
      %s189 = smul.addr %s185, 28
      %s190 = sadd.s32 %s188, %s189
      %s191 = smul.addr %s190, 4
      %s192 = scalar_lea.vmem %s3, %s191
      %s194 = smul.u32 %s19, 2
      %s195 = smul.u32 %s194, 4
      %s196 = smul.addr %s195, 4
      %s197 = scalar_lea.vmem %s183, %s196
      %v198 = vld [vmem:[%s197] sm:$0xf]
      %v199 = vld [vmem:[%s197 + $0x4] sm:$0xf]
      %v200 = vld [vmem:[%s197 + $0x8] sm:$0xf]
      %v201 = vld [vmem:[%s197 + $0xc] sm:$0xf]
      %v202 = vunpack.c.l.bf16 %v198
      %v203 = vunpack.c.l.bf16 %v199
      %v204 = vunpack.c.l.bf16 %v200
      %v205 = vunpack.c.l.bf16 %v201
      %s206 = sadd.s32 %s194, 1
      %s207 = smul.u32 %s206, 4
      %s208 = smul.addr %s207, 4
      %s209 = scalar_lea.vmem %s183, %s208
      %v210 = vld [vmem:[%s209] sm:$0xf]
      %v211 = vld [vmem:[%s209 + $0x4] sm:$0xf]
      %v212 = vld [vmem:[%s209 + $0x8] sm:$0xf]
      %v213 = vld [vmem:[%s209 + $0xc] sm:$0xf]
      %v214 = vunpack.c.l.bf16 %v210
      %v215 = vunpack.c.l.bf16 %v211
      %v216 = vunpack.c.l.bf16 %v212
      %v217 = vunpack.c.l.bf16 %v213
      %v218 = vld [vmem:[%s1] sm:$0xf]
      %v219 = vpack.c.bf16 %v203, %v202
      %v220 = vpack.c.bf16 %v205, %v204
      %v221 = vpack.c.bf16 %v215, %v214
      %v222 = vpack.c.bf16 %v217, %v216
      %v223 = vld [vmem:[%s1 + $0x4] sm:$0xf]
      %vm224 = vsmask.f32 7424
      %v226 = vshrl.u32 %v219, 16
      %v228 = vshll.u32 %v219, 16
      %v230 = vrot.slane %v228, 1
      %v231 = vor.u32 %v226, %v230
      %v233 = vshll.u32 %v220, 16
      %v235 = vrot.slane %v233, 1
      %v236 = vsel %vm224, %v231, %v235
      %v237 = vshrl.u32 %v220, 16
      %v239 = vor.u32 %v237, %v235
      %vm240 = vcmask 64512
      %v242 = vsel %vm240, %v236, 0
      %v245 = vsel %vm240, %v239, 0
      %vm247 = vcmask 1043456
      %v249 = vsel %vm247, %v223, 0
      %251 = vmatprep.subr.bf16.mxu0 0
      %252 = vmatpush1.bf16.msra.mxu0 %v249
      %253 = vmatprep.subr.bf16.mxu0 0
      %254 = vmatpush1.bf16.msra.mxu0 0
      %255 = vmatprep.subr.bf16.mxu0 0
      %256 = vmatpush1.bf16.msra.mxu0 0
      %257 = vmatprep.subr.bf16.mxu0 0
      %258 = vmatpush1.bf16.msra.mxu0 0
      %259 = vmatprep.subr.bf16.mxu0 0
      %260 = vmatpush1.bf16.msra.mxu0 0
      %261 = vmatprep.subr.bf16.mxu0 0
      %262 = vmatpush1.bf16.msra.mxu0 0
      %263 = vmatprep.subr.bf16.mxu0 0
      %264 = vmatpush1.bf16.msra.mxu0 0
      %265 = vmatprep.subr.bf16.mxu0 0
      %266 = vmatpush1.bf16.msra.mxu0 0
      %267 = vmatprep.subr.bf16.mxu0 0
      %268 = vmatpush1.bf16.msra.mxu0 0
      %269 = vmatprep.subr.bf16.mxu0 0
      %270 = vmatpush1.bf16.msra.mxu0 0
      %271 = vmatprep.subr.bf16.mxu0 0
      %272 = vmatpush1.bf16.msra.mxu0 0
      %273 = vmatprep.subr.bf16.mxu0 0
      %274 = vmatpush1.bf16.msra.mxu0 0
      %275 = vmatprep.subr.bf16.mxu0 0
      %276 = vmatpush1.bf16.msra.mxu0 0
      %277 = vmatprep.subr.bf16.mxu0 0
      %278 = vmatpush1.bf16.msra.mxu0 0
      %279 = vmatprep.subr.bf16.mxu0 0
      %280 = vmatpush1.bf16.msra.mxu0 0
      %281 = vmatprep.subr.bf16.mxu0 0
      %282 = vmatpush1.bf16.msra.mxu0 0
      %283 = vmatprep.mubr.bf16.mxu0 0
      %284 = vmatmul.mubr.bf16.gmra.mrb[0].mxu0 %v242
      %v285 = vpop.f32.mrb[0].mxu0
      %v286 = vadd.f32 0.0, %v285
      %v287 = vpop.f32.mrb[0].mxu0
      %v288 = vpop.f32.mrb[0].mxu0
      %v289 = vadd.f32 0.0, %v288
      %v290 = vpop.f32.mrb[0].mxu0
      %291 = vmatprep.mubr.bf16.mxu0 0
      %292 = vmatmul.mubr.bf16.gmra.mrb[0].mxu0 %v245
      %v293 = vpop.f32.mrb[0].mxu0
      %v294 = vadd.f32 0.0, %v293
      %v295 = vpop.f32.mrb[0].mxu0
      %v296 = vpop.f32.mrb[0].mxu0
      %v297 = vadd.f32 0.0, %v296
      %v298 = vpop.f32.mrb[0].mxu0
      %299 = vdwg.mxu0
      %v300 = vsel %vm240, %v219, 0
      %v302 = vsel %vm240, %v220, 0
      %v305 = vsel %vm247, %v218, 0
      %307 = vmatprep.subr.bf16.mxu0 0
      %308 = vmatpush1.bf16.msra.mxu0 %v305
      %309 = vmatprep.subr.bf16.mxu0 0
      %310 = vmatpush1.bf16.msra.mxu0 0
      %311 = vmatprep.subr.bf16.mxu0 0
      %312 = vmatpush1.bf16.msra.mxu0 0
      %313 = vmatprep.subr.bf16.mxu0 0
      %314 = vmatpush1.bf16.msra.mxu0 0
      %315 = vmatprep.subr.bf16.mxu0 0
      %316 = vmatpush1.bf16.msra.mxu0 0
      %317 = vmatprep.subr.bf16.mxu0 0
      %318 = vmatpush1.bf16.msra.mxu0 0
      %319 = vmatprep.subr.bf16.mxu0 0
      %320 = vmatpush1.bf16.msra.mxu0 0
      %321 = vmatprep.subr.bf16.mxu0 0
      %322 = vmatpush1.bf16.msra.mxu0 0
      %323 = vmatprep.subr.bf16.mxu0 0
      %324 = vmatpush1.bf16.msra.mxu0 0
      %325 = vmatprep.subr.bf16.mxu0 0
      %326 = vmatpush1.bf16.msra.mxu0 0
      %327 = vmatprep.subr.bf16.mxu0 0
      %328 = vmatpush1.bf16.msra.mxu0 0
      %329 = vmatprep.subr.bf16.mxu0 0
      %330 = vmatpush1.bf16.msra.mxu0 0
      %331 = vmatprep.subr.bf16.mxu0 0
      %332 = vmatpush1.bf16.msra.mxu0 0
      %333 = vmatprep.subr.bf16.mxu0 0
      %334 = vmatpush1.bf16.msra.mxu0 0
      %335 = vmatprep.subr.bf16.mxu0 0
      %336 = vmatpush1.bf16.msra.mxu0 0
      %337 = vmatprep.subr.bf16.mxu0 0
      %338 = vmatpush1.bf16.msra.mxu0 0
      %339 = vmatprep.mubr.bf16.mxu0 0
      %340 = vmatmul.mubr.bf16.gmra.mrb[0].mxu0 %v300
      %v341 = vpop.f32.mrb[0].mxu0
      %v342 = vadd.f32 %v286, %v341
      %v343 = vpop.f32.mrb[0].mxu0
      %v344 = vpop.f32.mrb[0].mxu0
      %v345 = vadd.f32 %v289, %v344
      %v346 = vpop.f32.mrb[0].mxu0
      %347 = vmatprep.mubr.bf16.mxu0 0
      %348 = vmatmul.mubr.bf16.gmra.mrb[0].mxu0 %v302
      %v349 = vpop.f32.mrb[0].mxu0
      %v350 = vadd.f32 %v294, %v349
      %v351 = vpop.f32.mrb[0].mxu0
      %v352 = vpop.f32.mrb[0].mxu0
      %v353 = vadd.f32 %v297, %v352
      %v354 = vpop.f32.mrb[0].mxu0
      %355 = vdwg.mxu0
      %v357 = vshrl.u32 %v221, 16
      %v359 = vshll.u32 %v221, 16
      %v361 = vrot.slane %v359, 1
      %v362 = vor.u32 %v357, %v361
      %v364 = vshll.u32 %v222, 16
      %v366 = vrot.slane %v364, 1
      %v367 = vsel %vm224, %v362, %v366
      %v368 = vshrl.u32 %v222, 16
      %v370 = vor.u32 %v368, %v366
      %v372 = vsel %vm240, %v367, 0
      %v375 = vsel %vm240, %v370, 0
      %377 = vmatprep.subr.bf16.mxu0 0
      %378 = vmatpush1.bf16.msra.mxu0 %v249
      %379 = vmatprep.subr.bf16.mxu0 0
      %380 = vmatpush1.bf16.msra.mxu0 0
      %381 = vmatprep.subr.bf16.mxu0 0
      %382 = vmatpush1.bf16.msra.mxu0 0
      %383 = vmatprep.subr.bf16.mxu0 0
      %384 = vmatpush1.bf16.msra.mxu0 0
      %385 = vmatprep.subr.bf16.mxu0 0
      %386 = vmatpush1.bf16.msra.mxu0 0
      %387 = vmatprep.subr.bf16.mxu0 0
      %388 = vmatpush1.bf16.msra.mxu0 0
      %389 = vmatprep.subr.bf16.mxu0 0
      %390 = vmatpush1.bf16.msra.mxu0 0
      %391 = vmatprep.subr.bf16.mxu0 0
      %392 = vmatpush1.bf16.msra.mxu0 0
      %393 = vmatprep.subr.bf16.mxu0 0
      %394 = vmatpush1.bf16.msra.mxu0 0
      %395 = vmatprep.subr.bf16.mxu0 0
      %396 = vmatpush1.bf16.msra.mxu0 0
      %397 = vmatprep.subr.bf16.mxu0 0
      %398 = vmatpush1.bf16.msra.mxu0 0
      %399 = vmatprep.subr.bf16.mxu0 0
      %400 = vmatpush1.bf16.msra.mxu0 0
      %401 = vmatprep.subr.bf16.mxu0 0
      %402 = vmatpush1.bf16.msra.mxu0 0
      %403 = vmatprep.subr.bf16.mxu0 0
      %404 = vmatpush1.bf16.msra.mxu0 0
      %405 = vmatprep.subr.bf16.mxu0 0
      %406 = vmatpush1.bf16.msra.mxu0 0
      %407 = vmatprep.subr.bf16.mxu0 0
      %408 = vmatpush1.bf16.msra.mxu0 0
      %409 = vmatprep.mubr.bf16.mxu0 0
      %410 = vmatmul.mubr.bf16.gmra.mrb[0].mxu0 %v372
      %v411 = vpop.f32.mrb[0].mxu0
      %v412 = vadd.f32 0.0, %v411
      %v413 = vpop.f32.mrb[0].mxu0
      %v414 = vpop.f32.mrb[0].mxu0
      %v415 = vadd.f32 0.0, %v414
      %v416 = vpop.f32.mrb[0].mxu0
      %417 = vmatprep.mubr.bf16.mxu0 0
      %418 = vmatmul.mubr.bf16.gmra.mrb[0].mxu0 %v375
      %v419 = vpop.f32.mrb[0].mxu0
      %v420 = vadd.f32 0.0, %v419
      %v421 = vpop.f32.mrb[0].mxu0
      %v422 = vpop.f32.mrb[0].mxu0
      %v423 = vadd.f32 0.0, %v422
      %v424 = vpop.f32.mrb[0].mxu0
      %425 = vdwg.mxu0
      %v426 = vsel %vm240, %v221, 0
      %v428 = vsel %vm240, %v222, 0
      %430 = vmatprep.subr.bf16.mxu0 0
      %431 = vmatpush1.bf16.msra.mxu0 %v305
      %432 = vmatprep.subr.bf16.mxu0 0
      %433 = vmatpush1.bf16.msra.mxu0 0
      %434 = vmatprep.subr.bf16.mxu0 0
      %435 = vmatpush1.bf16.msra.mxu0 0
      %436 = vmatprep.subr.bf16.mxu0 0
      %437 = vmatpush1.bf16.msra.mxu0 0
      %438 = vmatprep.subr.bf16.mxu0 0
      %439 = vmatpush1.bf16.msra.mxu0 0
      %440 = vmatprep.subr.bf16.mxu0 0
      %441 = vmatpush1.bf16.msra.mxu0 0
      %442 = vmatprep.subr.bf16.mxu0 0
      %443 = vmatpush1.bf16.msra.mxu0 0
      %444 = vmatprep.subr.bf16.mxu0 0
      %445 = vmatpush1.bf16.msra.mxu0 0
      %446 = vmatprep.subr.bf16.mxu0 0
      %447 = vmatpush1.bf16.msra.mxu0 0
      %448 = vmatprep.subr.bf16.mxu0 0
      %449 = vmatpush1.bf16.msra.mxu0 0
      %450 = vmatprep.subr.bf16.mxu0 0
      %451 = vmatpush1.bf16.msra.mxu0 0
      %452 = vmatprep.subr.bf16.mxu0 0
      %453 = vmatpush1.bf16.msra.mxu0 0
      %454 = vmatprep.subr.bf16.mxu0 0
      %455 = vmatpush1.bf16.msra.mxu0 0
      %456 = vmatprep.subr.bf16.mxu0 0
      %457 = vmatpush1.bf16.msra.mxu0 0
      %458 = vmatprep.subr.bf16.mxu0 0
      %459 = vmatpush1.bf16.msra.mxu0 0
      %460 = vmatprep.subr.bf16.mxu0 0
      %461 = vmatpush1.bf16.msra.mxu0 0
      %462 = vmatprep.mubr.bf16.mxu0 0
      %463 = vmatmul.mubr.bf16.gmra.mrb[0].mxu0 %v426
      %v464 = vpop.f32.mrb[0].mxu0
      %v465 = vadd.f32 %v412, %v464
      %v466 = vpop.f32.mrb[0].mxu0
      %v467 = vpop.f32.mrb[0].mxu0
      %v468 = vadd.f32 %v415, %v467
      %v469 = vpop.f32.mrb[0].mxu0
      %470 = vmatprep.mubr.bf16.mxu0 0
      %471 = vmatmul.mubr.bf16.gmra.mrb[0].mxu0 %v428
      %v472 = vpop.f32.mrb[0].mxu0
      %v473 = vadd.f32 %v420, %v472
      %v474 = vpop.f32.mrb[0].mxu0
      %v475 = vpop.f32.mrb[0].mxu0
      %v476 = vadd.f32 %v423, %v475
      %v477 = vpop.f32.mrb[0].mxu0
      %478 = vdwg.mxu0
      %v479 = vld [vmem:[%s1 + $0x8] sm:$0xf]
      %vm482 = vcmask 1046528
      %v483 = vrot.slane %v219, 1
      %v484 = vrot.slane %v220, 1
      %v485 = vsel %vm482, %v483, %v484
      %v487 = vsel %vm240, %v485, 0
      %v490 = vsel %vm240, %v484, 0
      %v493 = vsel %vm247, %v479, 0
      %495 = vmatprep.subr.bf16.mxu0 0
      %496 = vmatpush1.bf16.msra.mxu0 %v493
      %497 = vmatprep.subr.bf16.mxu0 0
      %498 = vmatpush1.bf16.msra.mxu0 0
      %499 = vmatprep.subr.bf16.mxu0 0
      %500 = vmatpush1.bf16.msra.mxu0 0
      %501 = vmatprep.subr.bf16.mxu0 0
      %502 = vmatpush1.bf16.msra.mxu0 0
      %503 = vmatprep.subr.bf16.mxu0 0
      %504 = vmatpush1.bf16.msra.mxu0 0
      %505 = vmatprep.subr.bf16.mxu0 0
      %506 = vmatpush1.bf16.msra.mxu0 0
      %507 = vmatprep.subr.bf16.mxu0 0
      %508 = vmatpush1.bf16.msra.mxu0 0
      %509 = vmatprep.subr.bf16.mxu0 0
      %510 = vmatpush1.bf16.msra.mxu0 0
      %511 = vmatprep.subr.bf16.mxu0 0
      %512 = vmatpush1.bf16.msra.mxu0 0
      %513 = vmatprep.subr.bf16.mxu0 0
      %514 = vmatpush1.bf16.msra.mxu0 0
      %515 = vmatprep.subr.bf16.mxu0 0
      %516 = vmatpush1.bf16.msra.mxu0 0
      %517 = vmatprep.subr.bf16.mxu0 0
      %518 = vmatpush1.bf16.msra.mxu0 0
      %519 = vmatprep.subr.bf16.mxu0 0
      %520 = vmatpush1.bf16.msra.mxu0 0
      %521 = vmatprep.subr.bf16.mxu0 0
      %522 = vmatpush1.bf16.msra.mxu0 0
      %523 = vmatprep.subr.bf16.mxu0 0
      %524 = vmatpush1.bf16.msra.mxu0 0
      %525 = vmatprep.subr.bf16.mxu0 0
      %526 = vmatpush1.bf16.msra.mxu0 0
      %527 = vmatprep.mubr.bf16.mxu0 0
      %528 = vmatmul.mubr.bf16.gmra.mrb[0].mxu0 %v487
      %v529 = vpop.f32.mrb[0].mxu0
      %v530 = vadd.f32 0.0, %v529
      %v531 = vpop.f32.mrb[0].mxu0
      %v532 = vpop.f32.mrb[0].mxu0
      %v533 = vadd.f32 0.0, %v532
      %v534 = vpop.f32.mrb[0].mxu0
      %535 = vmatprep.mubr.bf16.mxu0 0
      %536 = vmatmul.mubr.bf16.gmra.mrb[0].mxu0 %v490
      %v537 = vpop.f32.mrb[0].mxu0
      %v538 = vadd.f32 0.0, %v537
      %v539 = vpop.f32.mrb[0].mxu0
      %v540 = vpop.f32.mrb[0].mxu0
      %v541 = vadd.f32 0.0, %v540
      %v542 = vpop.f32.mrb[0].mxu0
      %543 = vdwg.mxu0
      %v544 = vadd.f32 %v342, %v530
      %v545 = vadd.f32 %v345, %v533
      %v546 = vadd.f32 %v350, %v538
      %v547 = vadd.f32 %v353, %v541
      %v550 = vrot.slane %v221, 1
      %v551 = vrot.slane %v222, 1
      %v552 = vsel %vm482, %v550, %v551
      %v554 = vsel %vm240, %v552, 0
      %v557 = vsel %vm240, %v551, 0
      %559 = vmatprep.subr.bf16.mxu0 0
      %560 = vmatpush1.bf16.msra.mxu0 %v493
      %561 = vmatprep.subr.bf16.mxu0 0
      %562 = vmatpush1.bf16.msra.mxu0 0
      %563 = vmatprep.subr.bf16.mxu0 0
      %564 = vmatpush1.bf16.msra.mxu0 0
      %565 = vmatprep.subr.bf16.mxu0 0
      %566 = vmatpush1.bf16.msra.mxu0 0
      %567 = vmatprep.subr.bf16.mxu0 0
      %568 = vmatpush1.bf16.msra.mxu0 0
      %569 = vmatprep.subr.bf16.mxu0 0
      %570 = vmatpush1.bf16.msra.mxu0 0
      %571 = vmatprep.subr.bf16.mxu0 0
      %572 = vmatpush1.bf16.msra.mxu0 0
      %573 = vmatprep.subr.bf16.mxu0 0
      %574 = vmatpush1.bf16.msra.mxu0 0
      %575 = vmatprep.subr.bf16.mxu0 0
      %576 = vmatpush1.bf16.msra.mxu0 0
      %577 = vmatprep.subr.bf16.mxu0 0
      %578 = vmatpush1.bf16.msra.mxu0 0
      %579 = vmatprep.subr.bf16.mxu0 0
      %580 = vmatpush1.bf16.msra.mxu0 0
      %581 = vmatprep.subr.bf16.mxu0 0
      %582 = vmatpush1.bf16.msra.mxu0 0
      %583 = vmatprep.subr.bf16.mxu0 0
      %584 = vmatpush1.bf16.msra.mxu0 0
      %585 = vmatprep.subr.bf16.mxu0 0
      %586 = vmatpush1.bf16.msra.mxu0 0
      %587 = vmatprep.subr.bf16.mxu0 0
      %588 = vmatpush1.bf16.msra.mxu0 0
      %589 = vmatprep.subr.bf16.mxu0 0
      %590 = vmatpush1.bf16.msra.mxu0 0
      %591 = vmatprep.mubr.bf16.mxu0 0
      %592 = vmatmul.mubr.bf16.gmra.mrb[0].mxu0 %v554
      %v593 = vpop.f32.mrb[0].mxu0
      %v594 = vadd.f32 0.0, %v593
      %v595 = vpop.f32.mrb[0].mxu0
      %v596 = vpop.f32.mrb[0].mxu0
      %v597 = vadd.f32 0.0, %v596
      %v598 = vpop.f32.mrb[0].mxu0
      %599 = vmatprep.mubr.bf16.mxu0 0
      %600 = vmatmul.mubr.bf16.gmra.mrb[0].mxu0 %v557
      %v601 = vpop.f32.mrb[0].mxu0
      %v602 = vadd.f32 0.0, %v601
      %v603 = vpop.f32.mrb[0].mxu0
      %v604 = vpop.f32.mrb[0].mxu0
      %v605 = vadd.f32 0.0, %v604
      %v606 = vpop.f32.mrb[0].mxu0
      %607 = vdwg.mxu0
      %v608 = vadd.f32 %v465, %v594
      %v609 = vadd.f32 %v468, %v597
      %v610 = vadd.f32 %v473, %v602
      %v611 = vadd.f32 %v476, %v605
      %v612 = vld [vmem:[%s1 + $0xc] sm:$0xf]
      %vm613 = vsmask.f32 6400
      %v614 = vrot.slane %v226, 1
      %v615 = vrot.slane %v228, 2
      %v616 = vor.u32 %v614, %v615
      %v617 = vrot.slane %v237, 1
      %v618 = vrot.slane %v233, 2
      %v619 = vor.u32 %v617, %v618
      %v620 = vsel %vm613, %v616, %v619
      %v622 = vsel %vm240, %v620, 0
      %v625 = vsel %vm240, %v619, 0
      %v628 = vsel %vm247, %v612, 0
      %630 = vmatprep.subr.bf16.mxu0 0
      %631 = vmatpush1.bf16.msra.mxu0 %v628
      %632 = vmatprep.subr.bf16.mxu0 0
      %633 = vmatpush1.bf16.msra.mxu0 0
      %634 = vmatprep.subr.bf16.mxu0 0
      %635 = vmatpush1.bf16.msra.mxu0 0
      %636 = vmatprep.subr.bf16.mxu0 0
      %637 = vmatpush1.bf16.msra.mxu0 0
      %638 = vmatprep.subr.bf16.mxu0 0
      %639 = vmatpush1.bf16.msra.mxu0 0
      %640 = vmatprep.subr.bf16.mxu0 0
      %641 = vmatpush1.bf16.msra.mxu0 0
      %642 = vmatprep.subr.bf16.mxu0 0
      %643 = vmatpush1.bf16.msra.mxu0 0
      %644 = vmatprep.subr.bf16.mxu0 0
      %645 = vmatpush1.bf16.msra.mxu0 0
      %646 = vmatprep.subr.bf16.mxu0 0
      %647 = vmatpush1.bf16.msra.mxu0 0
      %648 = vmatprep.subr.bf16.mxu0 0
      %649 = vmatpush1.bf16.msra.mxu0 0
      %650 = vmatprep.subr.bf16.mxu0 0
      %651 = vmatpush1.bf16.msra.mxu0 0
      %652 = vmatprep.subr.bf16.mxu0 0
      %653 = vmatpush1.bf16.msra.mxu0 0
      %654 = vmatprep.subr.bf16.mxu0 0
      %655 = vmatpush1.bf16.msra.mxu0 0
      %656 = vmatprep.subr.bf16.mxu0 0
      %657 = vmatpush1.bf16.msra.mxu0 0
      %658 = vmatprep.subr.bf16.mxu0 0
      %659 = vmatpush1.bf16.msra.mxu0 0
      %660 = vmatprep.subr.bf16.mxu0 0
      %661 = vmatpush1.bf16.msra.mxu0 0
      %662 = vmatprep.mubr.bf16.mxu0 0
      %663 = vmatmul.mubr.bf16.gmra.mrb[0].mxu0 %v622
      %v664 = vpop.f32.mrb[0].mxu0
      %v665 = vadd.f32 0.0, %v664
      %v666 = vpop.f32.mrb[0].mxu0
      %v667 = vpop.f32.mrb[0].mxu0
      %v668 = vadd.f32 0.0, %v667
      %v669 = vpop.f32.mrb[0].mxu0
      %670 = vmatprep.mubr.bf16.mxu0 0
      %671 = vmatmul.mubr.bf16.gmra.mrb[0].mxu0 %v625
      %v672 = vpop.f32.mrb[0].mxu0
      %v673 = vadd.f32 0.0, %v672
      %v674 = vpop.f32.mrb[0].mxu0
      %v675 = vpop.f32.mrb[0].mxu0
      %v676 = vadd.f32 0.0, %v675
      %v677 = vpop.f32.mrb[0].mxu0
      %678 = vdwg.mxu0
      %v679 = vadd.f32 %v544, %v665
      %v680 = vadd.f32 %v545, %v668
      %v681 = vadd.f32 %v546, %v673
      %v682 = vadd.f32 %v547, %v676
      %v683 = vrot.slane %v357, 1
      %v684 = vrot.slane %v359, 2
      %v685 = vor.u32 %v683, %v684
      %v686 = vrot.slane %v368, 1
      %v687 = vrot.slane %v364, 2
      %v688 = vor.u32 %v686, %v687
      %v689 = vsel %vm613, %v685, %v688
      %v691 = vsel %vm240, %v689, 0
      %v694 = vsel %vm240, %v688, 0
      %696 = vmatprep.subr.bf16.mxu0 0
      %697 = vmatpush1.bf16.msra.mxu0 %v628
      %698 = vmatprep.subr.bf16.mxu0 0
      %699 = vmatpush1.bf16.msra.mxu0 0
      %700 = vmatprep.subr.bf16.mxu0 0
      %701 = vmatpush1.bf16.msra.mxu0 0
      %702 = vmatprep.subr.bf16.mxu0 0
      %703 = vmatpush1.bf16.msra.mxu0 0
      %704 = vmatprep.subr.bf16.mxu0 0
      %705 = vmatpush1.bf16.msra.mxu0 0
      %706 = vmatprep.subr.bf16.mxu0 0
      %707 = vmatpush1.bf16.msra.mxu0 0
      %708 = vmatprep.subr.bf16.mxu0 0
      %709 = vmatpush1.bf16.msra.mxu0 0
      %710 = vmatprep.subr.bf16.mxu0 0
      %711 = vmatpush1.bf16.msra.mxu0 0
      %712 = vmatprep.subr.bf16.mxu0 0
      %713 = vmatpush1.bf16.msra.mxu0 0
      %714 = vmatprep.subr.bf16.mxu0 0
      %715 = vmatpush1.bf16.msra.mxu0 0
      %716 = vmatprep.subr.bf16.mxu0 0
      %717 = vmatpush1.bf16.msra.mxu0 0
      %718 = vmatprep.subr.bf16.mxu0 0
      %719 = vmatpush1.bf16.msra.mxu0 0
      %720 = vmatprep.subr.bf16.mxu0 0
      %721 = vmatpush1.bf16.msra.mxu0 0
      %722 = vmatprep.subr.bf16.mxu0 0
      %723 = vmatpush1.bf16.msra.mxu0 0
      %724 = vmatprep.subr.bf16.mxu0 0
      %725 = vmatpush1.bf16.msra.mxu0 0
      %726 = vmatprep.subr.bf16.mxu0 0
      %727 = vmatpush1.bf16.msra.mxu0 0
      %728 = vmatprep.mubr.bf16.mxu0 0
      %729 = vmatmul.mubr.bf16.gmra.mrb[0].mxu0 %v691
      %v730 = vpop.f32.mrb[0].mxu0
      %v731 = vadd.f32 0.0, %v730
      %v732 = vpop.f32.mrb[0].mxu0
      %v733 = vpop.f32.mrb[0].mxu0
      %v734 = vadd.f32 0.0, %v733
      %v735 = vpop.f32.mrb[0].mxu0
      %736 = vmatprep.mubr.bf16.mxu0 0
      %737 = vmatmul.mubr.bf16.gmra.mrb[0].mxu0 %v694
      %v738 = vpop.f32.mrb[0].mxu0
      %v739 = vadd.f32 0.0, %v738
      %v740 = vpop.f32.mrb[0].mxu0
      %v741 = vpop.f32.mrb[0].mxu0
      %v742 = vadd.f32 0.0, %v741
      %v743 = vpop.f32.mrb[0].mxu0
      %744 = vdwg.mxu0
      %v745 = vadd.f32 %v608, %v731
      %v746 = vadd.f32 %v609, %v734
      %v747 = vadd.f32 %v610, %v739
      %v748 = vadd.f32 %v611, %v742
      %v749 = vld [vmem:[%s1 + $0x10] sm:$0xf]
      %vm750 = vcmask 1045504
      %v751 = vrot.slane %v219, 2
      %v752 = vrot.slane %v220, 2
      %v753 = vsel %vm750, %v751, %v752
      %v755 = vsel %vm240, %v753, 0
      %v758 = vsel %vm240, %v752, 0
      %v761 = vsel %vm247, %v749, 0
      %763 = vmatprep.subr.bf16.mxu0 0
      %764 = vmatpush1.bf16.msra.mxu0 %v761
      %765 = vmatprep.subr.bf16.mxu0 0
      %766 = vmatpush1.bf16.msra.mxu0 0
      %767 = vmatprep.subr.bf16.mxu0 0
      %768 = vmatpush1.bf16.msra.mxu0 0
      %769 = vmatprep.subr.bf16.mxu0 0
      %770 = vmatpush1.bf16.msra.mxu0 0
      %771 = vmatprep.subr.bf16.mxu0 0
      %772 = vmatpush1.bf16.msra.mxu0 0
      %773 = vmatprep.subr.bf16.mxu0 0
      %774 = vmatpush1.bf16.msra.mxu0 0
      %775 = vmatprep.subr.bf16.mxu0 0
      %776 = vmatpush1.bf16.msra.mxu0 0
      %777 = vmatprep.subr.bf16.mxu0 0
      %778 = vmatpush1.bf16.msra.mxu0 0
      %779 = vmatprep.subr.bf16.mxu0 0
      %780 = vmatpush1.bf16.msra.mxu0 0
      %781 = vmatprep.subr.bf16.mxu0 0
      %782 = vmatpush1.bf16.msra.mxu0 0
      %783 = vmatprep.subr.bf16.mxu0 0
      %784 = vmatpush1.bf16.msra.mxu0 0
      %785 = vmatprep.subr.bf16.mxu0 0
      %786 = vmatpush1.bf16.msra.mxu0 0
      %787 = vmatprep.subr.bf16.mxu0 0
      %788 = vmatpush1.bf16.msra.mxu0 0
      %789 = vmatprep.subr.bf16.mxu0 0
      %790 = vmatpush1.bf16.msra.mxu0 0
      %791 = vmatprep.subr.bf16.mxu0 0
      %792 = vmatpush1.bf16.msra.mxu0 0
      %793 = vmatprep.subr.bf16.mxu0 0
      %794 = vmatpush1.bf16.msra.mxu0 0
      %795 = vmatprep.mubr.bf16.mxu0 0
      %796 = vmatmul.mubr.bf16.gmra.mrb[0].mxu0 %v755
      %v797 = vpop.f32.mrb[0].mxu0
      %v798 = vadd.f32 0.0, %v797
      %v799 = vpop.f32.mrb[0].mxu0
      %v800 = vpop.f32.mrb[0].mxu0
      %v801 = vadd.f32 0.0, %v800
      %v802 = vpop.f32.mrb[0].mxu0
      %803 = vmatprep.mubr.bf16.mxu0 0
      %804 = vmatmul.mubr.bf16.gmra.mrb[0].mxu0 %v758
      %v805 = vpop.f32.mrb[0].mxu0
      %v806 = vadd.f32 0.0, %v805
      %v807 = vpop.f32.mrb[0].mxu0
      %v808 = vpop.f32.mrb[0].mxu0
      %v809 = vadd.f32 0.0, %v808
      %v810 = vpop.f32.mrb[0].mxu0
      %811 = vdwg.mxu0
      %v812 = vadd.f32 %v679, %v798
      %v813 = vadd.f32 %v680, %v801
      %v814 = vadd.f32 %v681, %v806
      %v815 = vadd.f32 %v682, %v809
      %v816 = vrot.slane %v221, 2
      %v817 = vrot.slane %v222, 2
      %v818 = vsel %vm750, %v816, %v817
      %v820 = vsel %vm240, %v818, 0
      %v823 = vsel %vm240, %v817, 0
      %825 = vmatprep.subr.bf16.mxu0 0
      %826 = vmatpush1.bf16.msra.mxu0 %v761
      %827 = vmatprep.subr.bf16.mxu0 0
      %828 = vmatpush1.bf16.msra.mxu0 0
      %829 = vmatprep.subr.bf16.mxu0 0
      %830 = vmatpush1.bf16.msra.mxu0 0
      %831 = vmatprep.subr.bf16.mxu0 0
      %832 = vmatpush1.bf16.msra.mxu0 0
      %833 = vmatprep.subr.bf16.mxu0 0
      %834 = vmatpush1.bf16.msra.mxu0 0
      %835 = vmatprep.subr.bf16.mxu0 0
      %836 = vmatpush1.bf16.msra.mxu0 0
      %837 = vmatprep.subr.bf16.mxu0 0
      %838 = vmatpush1.bf16.msra.mxu0 0
      %839 = vmatprep.subr.bf16.mxu0 0
      %840 = vmatpush1.bf16.msra.mxu0 0
      %841 = vmatprep.subr.bf16.mxu0 0
      %842 = vmatpush1.bf16.msra.mxu0 0
      %843 = vmatprep.subr.bf16.mxu0 0
      %844 = vmatpush1.bf16.msra.mxu0 0
      %845 = vmatprep.subr.bf16.mxu0 0
      %846 = vmatpush1.bf16.msra.mxu0 0
      %847 = vmatprep.subr.bf16.mxu0 0
      %848 = vmatpush1.bf16.msra.mxu0 0
      %849 = vmatprep.subr.bf16.mxu0 0
      %850 = vmatpush1.bf16.msra.mxu0 0
      %851 = vmatprep.subr.bf16.mxu0 0
      %852 = vmatpush1.bf16.msra.mxu0 0
      %853 = vmatprep.subr.bf16.mxu0 0
      %854 = vmatpush1.bf16.msra.mxu0 0
      %855 = vmatprep.subr.bf16.mxu0 0
      %856 = vmatpush1.bf16.msra.mxu0 0
      %857 = vmatprep.mubr.bf16.mxu0 0
      %858 = vmatmul.mubr.bf16.gmra.mrb[0].mxu0 %v820
      %v859 = vpop.f32.mrb[0].mxu0
      %v860 = vadd.f32 0.0, %v859
      %v861 = vpop.f32.mrb[0].mxu0
      %v862 = vpop.f32.mrb[0].mxu0
      %v863 = vadd.f32 0.0, %v862
      %v864 = vpop.f32.mrb[0].mxu0
      %865 = vmatprep.mubr.bf16.mxu0 0
      %866 = vmatmul.mubr.bf16.gmra.mrb[0].mxu0 %v823
      %v867 = vpop.f32.mrb[0].mxu0
      %v868 = vadd.f32 0.0, %v867
      %v869 = vpop.f32.mrb[0].mxu0
      %v870 = vpop.f32.mrb[0].mxu0
      %v871 = vadd.f32 0.0, %v870
      %v872 = vpop.f32.mrb[0].mxu0
      %873 = vdwg.mxu0
      %v874 = vadd.f32 %v745, %v860
      %v875 = vadd.f32 %v746, %v863
      %v876 = vadd.f32 %v747, %v868
      %v877 = vadd.f32 %v748, %v871
      %s878 = sadd.s32 %s194, 2
      %s879 = smul.u32 %s878, 4
      %s880 = smul.addr %s879, 4
      %s881 = scalar_lea.vmem %s183, %s880
      %v882 = vld [vmem:[%s881] sm:$0xf]
      %v883 = vld [vmem:[%s881 + $0x4] sm:$0xf]
      %v884 = vld [vmem:[%s881 + $0x8] sm:$0xf]
      %v885 = vld [vmem:[%s881 + $0xc] sm:$0xf]
      %v886 = vunpack.c.l.bf16 %v882
      %v887 = vunpack.c.l.bf16 %v883
      %v888 = vunpack.c.l.bf16 %v884
      %v889 = vunpack.c.l.bf16 %v885
      %v890 = vld [vmem:[%s1 + $0x14] sm:$0xf]
      %v891 = vpack.c.bf16 %v887, %v886
      %v892 = vpack.c.bf16 %v889, %v888
      %v894 = vsel %vm247, %v890, 0
      %896 = vmatprep.subr.bf16.mxu0 0
      %897 = vmatpush1.bf16.msra.mxu0 %v894
      %898 = vmatprep.subr.bf16.mxu0 0
      %899 = vmatpush1.bf16.msra.mxu0 0
      %900 = vmatprep.subr.bf16.mxu0 0
      %901 = vmatpush1.bf16.msra.mxu0 0
      %902 = vmatprep.subr.bf16.mxu0 0
      %903 = vmatpush1.bf16.msra.mxu0 0
      %904 = vmatprep.subr.bf16.mxu0 0
      %905 = vmatpush1.bf16.msra.mxu0 0
      %906 = vmatprep.subr.bf16.mxu0 0
      %907 = vmatpush1.bf16.msra.mxu0 0
      %908 = vmatprep.subr.bf16.mxu0 0
      %909 = vmatpush1.bf16.msra.mxu0 0
      %910 = vmatprep.subr.bf16.mxu0 0
      %911 = vmatpush1.bf16.msra.mxu0 0
      %912 = vmatprep.subr.bf16.mxu0 0
      %913 = vmatpush1.bf16.msra.mxu0 0
      %914 = vmatprep.subr.bf16.mxu0 0
      %915 = vmatpush1.bf16.msra.mxu0 0
      %916 = vmatprep.subr.bf16.mxu0 0
      %917 = vmatpush1.bf16.msra.mxu0 0
      %918 = vmatprep.subr.bf16.mxu0 0
      %919 = vmatpush1.bf16.msra.mxu0 0
      %920 = vmatprep.subr.bf16.mxu0 0
      %921 = vmatpush1.bf16.msra.mxu0 0
      %922 = vmatprep.subr.bf16.mxu0 0
      %923 = vmatpush1.bf16.msra.mxu0 0
      %924 = vmatprep.subr.bf16.mxu0 0
      %925 = vmatpush1.bf16.msra.mxu0 0
      %926 = vmatprep.subr.bf16.mxu0 0
      %927 = vmatpush1.bf16.msra.mxu0 0
      %928 = vmatprep.mubr.bf16.mxu0 0
      %929 = vmatmul.mubr.bf16.gmra.mrb[0].mxu0 %v426
      %v930 = vpop.f32.mrb[0].mxu0
      %v931 = vadd.f32 0.0, %v930
      %v932 = vpop.f32.mrb[0].mxu0
      %v933 = vpop.f32.mrb[0].mxu0
      %v934 = vadd.f32 0.0, %v933
      %v935 = vpop.f32.mrb[0].mxu0
      %936 = vmatprep.mubr.bf16.mxu0 0
      %937 = vmatmul.mubr.bf16.gmra.mrb[0].mxu0 %v428
      %v938 = vpop.f32.mrb[0].mxu0
      %v939 = vadd.f32 0.0, %v938
      %v940 = vpop.f32.mrb[0].mxu0
      %v941 = vpop.f32.mrb[0].mxu0
      %v942 = vadd.f32 0.0, %v941
      %v943 = vpop.f32.mrb[0].mxu0
      %944 = vdwg.mxu0
      %v945 = vadd.f32 %v812, %v931
      %v946 = vadd.f32 %v813, %v934
      %v947 = vadd.f32 %v814, %v939
      %v948 = vadd.f32 %v815, %v942
      %v950 = vsel %vm240, %v891, 0
      %v953 = vsel %vm240, %v892, 0
      %955 = vmatprep.subr.bf16.mxu0 0
      %956 = vmatpush1.bf16.msra.mxu0 %v894
      %957 = vmatprep.subr.bf16.mxu0 0
      %958 = vmatpush1.bf16.msra.mxu0 0
      %959 = vmatprep.subr.bf16.mxu0 0
      %960 = vmatpush1.bf16.msra.mxu0 0
      %961 = vmatprep.subr.bf16.mxu0 0
      %962 = vmatpush1.bf16.msra.mxu0 0
      %963 = vmatprep.subr.bf16.mxu0 0
      %964 = vmatpush1.bf16.msra.mxu0 0
      %965 = vmatprep.subr.bf16.mxu0 0
      %966 = vmatpush1.bf16.msra.mxu0 0
      %967 = vmatprep.subr.bf16.mxu0 0
      %968 = vmatpush1.bf16.msra.mxu0 0
      %969 = vmatprep.subr.bf16.mxu0 0
      %970 = vmatpush1.bf16.msra.mxu0 0
      %971 = vmatprep.subr.bf16.mxu0 0
      %972 = vmatpush1.bf16.msra.mxu0 0
      %973 = vmatprep.subr.bf16.mxu0 0
      %974 = vmatpush1.bf16.msra.mxu0 0
      %975 = vmatprep.subr.bf16.mxu0 0
      %976 = vmatpush1.bf16.msra.mxu0 0
      %977 = vmatprep.subr.bf16.mxu0 0
      %978 = vmatpush1.bf16.msra.mxu0 0
      %979 = vmatprep.subr.bf16.mxu0 0
      %980 = vmatpush1.bf16.msra.mxu0 0
      %981 = vmatprep.subr.bf16.mxu0 0
      %982 = vmatpush1.bf16.msra.mxu0 0
      %983 = vmatprep.subr.bf16.mxu0 0
      %984 = vmatpush1.bf16.msra.mxu0 0
      %985 = vmatprep.subr.bf16.mxu0 0
      %986 = vmatpush1.bf16.msra.mxu0 0
      %987 = vmatprep.mubr.bf16.mxu0 0
      %988 = vmatmul.mubr.bf16.gmra.mrb[0].mxu0 %v950
      %v989 = vpop.f32.mrb[0].mxu0
      %v990 = vadd.f32 0.0, %v989
      %v991 = vpop.f32.mrb[0].mxu0
      %v992 = vpop.f32.mrb[0].mxu0
      %v993 = vadd.f32 0.0, %v992
      %v994 = vpop.f32.mrb[0].mxu0
      %995 = vmatprep.mubr.bf16.mxu0 0
      %996 = vmatmul.mubr.bf16.gmra.mrb[0].mxu0 %v953
      %v997 = vpop.f32.mrb[0].mxu0
      %v998 = vadd.f32 0.0, %v997
      %v999 = vpop.f32.mrb[0].mxu0
      %v1000 = vpop.f32.mrb[0].mxu0
      %v1001 = vadd.f32 0.0, %v1000
      %v1002 = vpop.f32.mrb[0].mxu0
      %1003 = vdwg.mxu0
      %v1004 = vadd.f32 %v874, %v990
      %v1005 = vadd.f32 %v875, %v993
      %v1006 = vadd.f32 %v876, %v998
      %v1007 = vadd.f32 %v877, %v1001
      %v1008 = vld [vmem:[%s1 + $0x18] sm:$0xf]
      %v1010 = vsel %vm247, %v1008, 0
      %1012 = vmatprep.subr.bf16.mxu0 0
      %1013 = vmatpush1.bf16.msra.mxu0 %v1010
      %1014 = vmatprep.subr.bf16.mxu0 0
      %1015 = vmatpush1.bf16.msra.mxu0 0
      %1016 = vmatprep.subr.bf16.mxu0 0
      %1017 = vmatpush1.bf16.msra.mxu0 0
      %1018 = vmatprep.subr.bf16.mxu0 0
      %1019 = vmatpush1.bf16.msra.mxu0 0
      %1020 = vmatprep.subr.bf16.mxu0 0
      %1021 = vmatpush1.bf16.msra.mxu0 0
      %1022 = vmatprep.subr.bf16.mxu0 0
      %1023 = vmatpush1.bf16.msra.mxu0 0
      %1024 = vmatprep.subr.bf16.mxu0 0
      %1025 = vmatpush1.bf16.msra.mxu0 0
      %1026 = vmatprep.subr.bf16.mxu0 0
      %1027 = vmatpush1.bf16.msra.mxu0 0
      %1028 = vmatprep.subr.bf16.mxu0 0
      %1029 = vmatpush1.bf16.msra.mxu0 0
      %1030 = vmatprep.subr.bf16.mxu0 0
      %1031 = vmatpush1.bf16.msra.mxu0 0
      %1032 = vmatprep.subr.bf16.mxu0 0
      %1033 = vmatpush1.bf16.msra.mxu0 0
      %1034 = vmatprep.subr.bf16.mxu0 0
      %1035 = vmatpush1.bf16.msra.mxu0 0
      %1036 = vmatprep.subr.bf16.mxu0 0
      %1037 = vmatpush1.bf16.msra.mxu0 0
      %1038 = vmatprep.subr.bf16.mxu0 0
      %1039 = vmatpush1.bf16.msra.mxu0 0
      %1040 = vmatprep.subr.bf16.mxu0 0
      %1041 = vmatpush1.bf16.msra.mxu0 0
      %1042 = vmatprep.subr.bf16.mxu0 0
      %1043 = vmatpush1.bf16.msra.mxu0 0
      %1044 = vmatprep.mubr.bf16.mxu0 0
      %1045 = vmatmul.mubr.bf16.gmra.mrb[0].mxu0 %v372
      %v1046 = vpop.f32.mrb[0].mxu0
      %v1047 = vadd.f32 0.0, %v1046
      %v1048 = vpop.f32.mrb[0].mxu0
      %v1049 = vpop.f32.mrb[0].mxu0
      %v1050 = vadd.f32 0.0, %v1049
      %v1051 = vpop.f32.mrb[0].mxu0
      %1052 = vmatprep.mubr.bf16.mxu0 0
      %1053 = vmatmul.mubr.bf16.gmra.mrb[0].mxu0 %v375
      %v1054 = vpop.f32.mrb[0].mxu0
      %v1055 = vadd.f32 0.0, %v1054
      %v1056 = vpop.f32.mrb[0].mxu0
      %v1057 = vpop.f32.mrb[0].mxu0
      %v1058 = vadd.f32 0.0, %v1057
      %v1059 = vpop.f32.mrb[0].mxu0
      %1060 = vdwg.mxu0
      %v1061 = vadd.f32 %v945, %v1047
      %v1062 = vadd.f32 %v946, %v1050
      %v1063 = vadd.f32 %v947, %v1055
      %v1064 = vadd.f32 %v948, %v1058
      %v1065 = vshrl.u32 %v891, 16
      %v1067 = vshll.u32 %v891, 16
      %v1069 = vrot.slane %v1067, 1
      %v1070 = vor.u32 %v1065, %v1069
      %v1071 = vshll.u32 %v892, 16
      %v1073 = vrot.slane %v1071, 1
      %v1074 = vsel %vm224, %v1070, %v1073
      %v1075 = vshrl.u32 %v892, 16
      %v1077 = vor.u32 %v1075, %v1073
      %v1079 = vsel %vm240, %v1074, 0
      %v1082 = vsel %vm240, %v1077, 0
      %1084 = vmatprep.subr.bf16.mxu0 0
      %1085 = vmatpush1.bf16.msra.mxu0 %v1010
      %1086 = vmatprep.subr.bf16.mxu0 0
      %1087 = vmatpush1.bf16.msra.mxu0 0
      %1088 = vmatprep.subr.bf16.mxu0 0
      %1089 = vmatpush1.bf16.msra.mxu0 0
      %1090 = vmatprep.subr.bf16.mxu0 0
      %1091 = vmatpush1.bf16.msra.mxu0 0
      %1092 = vmatprep.subr.bf16.mxu0 0
      %1093 = vmatpush1.bf16.msra.mxu0 0
      %1094 = vmatprep.subr.bf16.mxu0 0
      %1095 = vmatpush1.bf16.msra.mxu0 0
      %1096 = vmatprep.subr.bf16.mxu0 0
      %1097 = vmatpush1.bf16.msra.mxu0 0
      %1098 = vmatprep.subr.bf16.mxu0 0
      %1099 = vmatpush1.bf16.msra.mxu0 0
      %1100 = vmatprep.subr.bf16.mxu0 0
      %1101 = vmatpush1.bf16.msra.mxu0 0
      %1102 = vmatprep.subr.bf16.mxu0 0
      %1103 = vmatpush1.bf16.msra.mxu0 0
      %1104 = vmatprep.subr.bf16.mxu0 0
      %1105 = vmatpush1.bf16.msra.mxu0 0
      %1106 = vmatprep.subr.bf16.mxu0 0
      %1107 = vmatpush1.bf16.msra.mxu0 0
      %1108 = vmatprep.subr.bf16.mxu0 0
      %1109 = vmatpush1.bf16.msra.mxu0 0
      %1110 = vmatprep.subr.bf16.mxu0 0
      %1111 = vmatpush1.bf16.msra.mxu0 0
      %1112 = vmatprep.subr.bf16.mxu0 0
      %1113 = vmatpush1.bf16.msra.mxu0 0
      %1114 = vmatprep.subr.bf16.mxu0 0
      %1115 = vmatpush1.bf16.msra.mxu0 0
      %1116 = vmatprep.mubr.bf16.mxu0 0
      %1117 = vmatmul.mubr.bf16.gmra.mrb[0].mxu0 %v1079
      %v1118 = vpop.f32.mrb[0].mxu0
      %v1119 = vadd.f32 0.0, %v1118
      %v1120 = vpop.f32.mrb[0].mxu0
      %v1121 = vpop.f32.mrb[0].mxu0
      %v1122 = vadd.f32 0.0, %v1121
      %v1123 = vpop.f32.mrb[0].mxu0
      %1124 = vmatprep.mubr.bf16.mxu0 0
      %1125 = vmatmul.mubr.bf16.gmra.mrb[0].mxu0 %v1082
      %v1126 = vpop.f32.mrb[0].mxu0
      %v1127 = vadd.f32 0.0, %v1126
      %v1128 = vpop.f32.mrb[0].mxu0
      %v1129 = vpop.f32.mrb[0].mxu0
      %v1130 = vadd.f32 0.0, %v1129
      %v1131 = vpop.f32.mrb[0].mxu0
      %1132 = vdwg.mxu0
      %v1133 = vadd.f32 %v1004, %v1119
      %v1134 = vadd.f32 %v1005, %v1122
      %v1135 = vadd.f32 %v1006, %v1127
      %v1136 = vadd.f32 %v1007, %v1130
      %v1137 = vld [vmem:[%s1 + $0x1c] sm:$0xf]
      %v1139 = vsel %vm247, %v1137, 0
      %1141 = vmatprep.subr.bf16.mxu0 0
      %1142 = vmatpush1.bf16.msra.mxu0 %v1139
      %1143 = vmatprep.subr.bf16.mxu0 0
      %1144 = vmatpush1.bf16.msra.mxu0 0
      %1145 = vmatprep.subr.bf16.mxu0 0
      %1146 = vmatpush1.bf16.msra.mxu0 0
      %1147 = vmatprep.subr.bf16.mxu0 0
      %1148 = vmatpush1.bf16.msra.mxu0 0
      %1149 = vmatprep.subr.bf16.mxu0 0
      %1150 = vmatpush1.bf16.msra.mxu0 0
      %1151 = vmatprep.subr.bf16.mxu0 0
      %1152 = vmatpush1.bf16.msra.mxu0 0
      %1153 = vmatprep.subr.bf16.mxu0 0
      %1154 = vmatpush1.bf16.msra.mxu0 0
      %1155 = vmatprep.subr.bf16.mxu0 0
      %1156 = vmatpush1.bf16.msra.mxu0 0
      %1157 = vmatprep.subr.bf16.mxu0 0
      %1158 = vmatpush1.bf16.msra.mxu0 0
      %1159 = vmatprep.subr.bf16.mxu0 0
      %1160 = vmatpush1.bf16.msra.mxu0 0
      %1161 = vmatprep.subr.bf16.mxu0 0
      %1162 = vmatpush1.bf16.msra.mxu0 0
      %1163 = vmatprep.subr.bf16.mxu0 0
      %1164 = vmatpush1.bf16.msra.mxu0 0
      %1165 = vmatprep.subr.bf16.mxu0 0
      %1166 = vmatpush1.bf16.msra.mxu0 0
      %1167 = vmatprep.subr.bf16.mxu0 0
      %1168 = vmatpush1.bf16.msra.mxu0 0
      %1169 = vmatprep.subr.bf16.mxu0 0
      %1170 = vmatpush1.bf16.msra.mxu0 0
      %1171 = vmatprep.subr.bf16.mxu0 0
      %1172 = vmatpush1.bf16.msra.mxu0 0
      %1173 = vmatprep.mubr.bf16.mxu0 0
      %1174 = vmatmul.mubr.bf16.gmra.mrb[0].mxu0 %v554
      %v1175 = vpop.f32.mrb[0].mxu0
      %v1176 = vadd.f32 0.0, %v1175
      %v1177 = vpop.f32.mrb[0].mxu0
      %v1178 = vpop.f32.mrb[0].mxu0
      %v1179 = vadd.f32 0.0, %v1178
      %v1180 = vpop.f32.mrb[0].mxu0
      %1181 = vmatprep.mubr.bf16.mxu0 0
      %1182 = vmatmul.mubr.bf16.gmra.mrb[0].mxu0 %v557
      %v1183 = vpop.f32.mrb[0].mxu0
      %v1184 = vadd.f32 0.0, %v1183
      %v1185 = vpop.f32.mrb[0].mxu0
      %v1186 = vpop.f32.mrb[0].mxu0
      %v1187 = vadd.f32 0.0, %v1186
      %v1188 = vpop.f32.mrb[0].mxu0
      %1189 = vdwg.mxu0
      %v1190 = vadd.f32 %v1061, %v1176
      %v1191 = vadd.f32 %v1062, %v1179
      %v1192 = vadd.f32 %v1063, %v1184
      %v1193 = vadd.f32 %v1064, %v1187
      %v1196 = vrot.slane %v891, 1
      %v1197 = vrot.slane %v892, 1
      %v1198 = vsel %vm482, %v1196, %v1197
      %v1200 = vsel %vm240, %v1198, 0
      %v1203 = vsel %vm240, %v1197, 0
      %1205 = vmatprep.subr.bf16.mxu0 0
      %1206 = vmatpush1.bf16.msra.mxu0 %v1139
      %1207 = vmatprep.subr.bf16.mxu0 0
      %1208 = vmatpush1.bf16.msra.mxu0 0
      %1209 = vmatprep.subr.bf16.mxu0 0
      %1210 = vmatpush1.bf16.msra.mxu0 0
      %1211 = vmatprep.subr.bf16.mxu0 0
      %1212 = vmatpush1.bf16.msra.mxu0 0
      %1213 = vmatprep.subr.bf16.mxu0 0
      %1214 = vmatpush1.bf16.msra.mxu0 0
      %1215 = vmatprep.subr.bf16.mxu0 0
      %1216 = vmatpush1.bf16.msra.mxu0 0
      %1217 = vmatprep.subr.bf16.mxu0 0
      %1218 = vmatpush1.bf16.msra.mxu0 0
      %1219 = vmatprep.subr.bf16.mxu0 0
      %1220 = vmatpush1.bf16.msra.mxu0 0
      %1221 = vmatprep.subr.bf16.mxu0 0
      %1222 = vmatpush1.bf16.msra.mxu0 0
      %1223 = vmatprep.subr.bf16.mxu0 0
      %1224 = vmatpush1.bf16.msra.mxu0 0
      %1225 = vmatprep.subr.bf16.mxu0 0
      %1226 = vmatpush1.bf16.msra.mxu0 0
      %1227 = vmatprep.subr.bf16.mxu0 0
      %1228 = vmatpush1.bf16.msra.mxu0 0
      %1229 = vmatprep.subr.bf16.mxu0 0
      %1230 = vmatpush1.bf16.msra.mxu0 0
      %1231 = vmatprep.subr.bf16.mxu0 0
      %1232 = vmatpush1.bf16.msra.mxu0 0
      %1233 = vmatprep.subr.bf16.mxu0 0
      %1234 = vmatpush1.bf16.msra.mxu0 0
      %1235 = vmatprep.subr.bf16.mxu0 0
      %1236 = vmatpush1.bf16.msra.mxu0 0
      %1237 = vmatprep.mubr.bf16.mxu0 0
      %1238 = vmatmul.mubr.bf16.gmra.mrb[0].mxu0 %v1200
      %v1239 = vpop.f32.mrb[0].mxu0
      %v1240 = vadd.f32 0.0, %v1239
      %v1241 = vpop.f32.mrb[0].mxu0
      %v1242 = vpop.f32.mrb[0].mxu0
      %v1243 = vadd.f32 0.0, %v1242
      %v1244 = vpop.f32.mrb[0].mxu0
      %1245 = vmatprep.mubr.bf16.mxu0 0
      %1246 = vmatmul.mubr.bf16.gmra.mrb[0].mxu0 %v1203
      %v1247 = vpop.f32.mrb[0].mxu0
      %v1248 = vadd.f32 0.0, %v1247
      %v1249 = vpop.f32.mrb[0].mxu0
      %v1250 = vpop.f32.mrb[0].mxu0
      %v1251 = vadd.f32 0.0, %v1250
      %v1252 = vpop.f32.mrb[0].mxu0
      %1253 = vdwg.mxu0
      %v1254 = vadd.f32 %v1133, %v1240
      %v1255 = vadd.f32 %v1134, %v1243
      %v1256 = vadd.f32 %v1135, %v1248
      %v1257 = vadd.f32 %v1136, %v1251
      %v1258 = vld [vmem:[%s1 + $0x20] sm:$0xf]
      %v1260 = vsel %vm247, %v1258, 0
      %1262 = vmatprep.subr.bf16.mxu0 0
      %1263 = vmatpush1.bf16.msra.mxu0 %v1260
      %1264 = vmatprep.subr.bf16.mxu0 0
      %1265 = vmatpush1.bf16.msra.mxu0 0
      %1266 = vmatprep.subr.bf16.mxu0 0
      %1267 = vmatpush1.bf16.msra.mxu0 0
      %1268 = vmatprep.subr.bf16.mxu0 0
      %1269 = vmatpush1.bf16.msra.mxu0 0
      %1270 = vmatprep.subr.bf16.mxu0 0
      %1271 = vmatpush1.bf16.msra.mxu0 0
      %1272 = vmatprep.subr.bf16.mxu0 0
      %1273 = vmatpush1.bf16.msra.mxu0 0
      %1274 = vmatprep.subr.bf16.mxu0 0
      %1275 = vmatpush1.bf16.msra.mxu0 0
      %1276 = vmatprep.subr.bf16.mxu0 0
      %1277 = vmatpush1.bf16.msra.mxu0 0
      %1278 = vmatprep.subr.bf16.mxu0 0
      %1279 = vmatpush1.bf16.msra.mxu0 0
      %1280 = vmatprep.subr.bf16.mxu0 0
      %1281 = vmatpush1.bf16.msra.mxu0 0
      %1282 = vmatprep.subr.bf16.mxu0 0
      %1283 = vmatpush1.bf16.msra.mxu0 0
      %1284 = vmatprep.subr.bf16.mxu0 0
      %1285 = vmatpush1.bf16.msra.mxu0 0
      %1286 = vmatprep.subr.bf16.mxu0 0
      %1287 = vmatpush1.bf16.msra.mxu0 0
      %1288 = vmatprep.subr.bf16.mxu0 0
      %1289 = vmatpush1.bf16.msra.mxu0 0
      %1290 = vmatprep.subr.bf16.mxu0 0
      %1291 = vmatpush1.bf16.msra.mxu0 0
      %1292 = vmatprep.subr.bf16.mxu0 0
      %1293 = vmatpush1.bf16.msra.mxu0 0
      %1294 = vmatprep.mubr.bf16.mxu0 0
      %1295 = vmatmul.mubr.bf16.gmra.mrb[0].mxu0 %v691
      %v1296 = vpop.f32.mrb[0].mxu0
      %v1297 = vadd.f32 0.0, %v1296
      %v1298 = vpop.f32.mrb[0].mxu0
      %v1299 = vpop.f32.mrb[0].mxu0
      %v1300 = vadd.f32 0.0, %v1299
      %v1301 = vpop.f32.mrb[0].mxu0
      %1302 = vmatprep.mubr.bf16.mxu0 0
      %1303 = vmatmul.mubr.bf16.gmra.mrb[0].mxu0 %v694
      %v1304 = vpop.f32.mrb[0].mxu0
      %v1305 = vadd.f32 0.0, %v1304
      %v1306 = vpop.f32.mrb[0].mxu0
      %v1307 = vpop.f32.mrb[0].mxu0
      %v1308 = vadd.f32 0.0, %v1307
      %v1309 = vpop.f32.mrb[0].mxu0
      %1310 = vdwg.mxu0
      %v1311 = vadd.f32 %v1190, %v1297
      %v1312 = vadd.f32 %v1191, %v1300
      %v1313 = vadd.f32 %v1192, %v1305
      %v1314 = vadd.f32 %v1193, %v1308
      %v1315 = vrot.slane %v1065, 1
      %v1316 = vrot.slane %v1067, 2
      %v1317 = vor.u32 %v1315, %v1316
      %v1318 = vrot.slane %v1075, 1
      %v1319 = vrot.slane %v1071, 2
      %v1320 = vor.u32 %v1318, %v1319
      %v1321 = vsel %vm613, %v1317, %v1320
      %v1323 = vsel %vm240, %v1321, 0
      %v1326 = vsel %vm240, %v1320, 0
      %1328 = vmatprep.subr.bf16.mxu0 0
      %1329 = vmatpush1.bf16.msra.mxu0 %v1260
      %1330 = vmatprep.subr.bf16.mxu0 0
      %1331 = vmatpush1.bf16.msra.mxu0 0
      %1332 = vmatprep.subr.bf16.mxu0 0
      %1333 = vmatpush1.bf16.msra.mxu0 0
      %1334 = vmatprep.subr.bf16.mxu0 0
      %1335 = vmatpush1.bf16.msra.mxu0 0
      %1336 = vmatprep.subr.bf16.mxu0 0
      %1337 = vmatpush1.bf16.msra.mxu0 0
      %1338 = vmatprep.subr.bf16.mxu0 0
      %1339 = vmatpush1.bf16.msra.mxu0 0
      %1340 = vmatprep.subr.bf16.mxu0 0
      %1341 = vmatpush1.bf16.msra.mxu0 0
      %1342 = vmatprep.subr.bf16.mxu0 0
      %1343 = vmatpush1.bf16.msra.mxu0 0
      %1344 = vmatprep.subr.bf16.mxu0 0
      %1345 = vmatpush1.bf16.msra.mxu0 0
      %1346 = vmatprep.subr.bf16.mxu0 0
      %1347 = vmatpush1.bf16.msra.mxu0 0
      %1348 = vmatprep.subr.bf16.mxu0 0
      %1349 = vmatpush1.bf16.msra.mxu0 0
      %1350 = vmatprep.subr.bf16.mxu0 0
      %1351 = vmatpush1.bf16.msra.mxu0 0
      %1352 = vmatprep.subr.bf16.mxu0 0
      %1353 = vmatpush1.bf16.msra.mxu0 0
      %1354 = vmatprep.subr.bf16.mxu0 0
      %1355 = vmatpush1.bf16.msra.mxu0 0
      %1356 = vmatprep.subr.bf16.mxu0 0
      %1357 = vmatpush1.bf16.msra.mxu0 0
      %1358 = vmatprep.subr.bf16.mxu0 0
      %1359 = vmatpush1.bf16.msra.mxu0 0
      %1360 = vmatprep.mubr.bf16.mxu0 0
      %1361 = vmatmul.mubr.bf16.gmra.mrb[0].mxu0 %v1323
      %v1362 = vpop.f32.mrb[0].mxu0
      %v1363 = vadd.f32 0.0, %v1362
      %v1364 = vpop.f32.mrb[0].mxu0
      %v1365 = vpop.f32.mrb[0].mxu0
      %v1366 = vadd.f32 0.0, %v1365
      %v1367 = vpop.f32.mrb[0].mxu0
      %1368 = vmatprep.mubr.bf16.mxu0 0
      %1369 = vmatmul.mubr.bf16.gmra.mrb[0].mxu0 %v1326
      %v1370 = vpop.f32.mrb[0].mxu0
      %v1371 = vadd.f32 0.0, %v1370
      %v1372 = vpop.f32.mrb[0].mxu0
      %v1373 = vpop.f32.mrb[0].mxu0
      %v1374 = vadd.f32 0.0, %v1373
      %v1375 = vpop.f32.mrb[0].mxu0
      %1376 = vdwg.mxu0
      %v1377 = vadd.f32 %v1254, %v1363
      %v1378 = vadd.f32 %v1255, %v1366
      %v1379 = vadd.f32 %v1256, %v1371
      %v1380 = vadd.f32 %v1257, %v1374
      %v1381 = vld [vmem:[%s1 + $0x24] sm:$0xf]
      %v1383 = vsel %vm247, %v1381, 0
      %1385 = vmatprep.subr.bf16.mxu0 0
      %1386 = vmatpush1.bf16.msra.mxu0 %v1383
      %1387 = vmatprep.subr.bf16.mxu0 0
      %1388 = vmatpush1.bf16.msra.mxu0 0
      %1389 = vmatprep.subr.bf16.mxu0 0
      %1390 = vmatpush1.bf16.msra.mxu0 0
      %1391 = vmatprep.subr.bf16.mxu0 0
      %1392 = vmatpush1.bf16.msra.mxu0 0
      %1393 = vmatprep.subr.bf16.mxu0 0
      %1394 = vmatpush1.bf16.msra.mxu0 0
      %1395 = vmatprep.subr.bf16.mxu0 0
      %1396 = vmatpush1.bf16.msra.mxu0 0
      %1397 = vmatprep.subr.bf16.mxu0 0
      %1398 = vmatpush1.bf16.msra.mxu0 0
      %1399 = vmatprep.subr.bf16.mxu0 0
      %1400 = vmatpush1.bf16.msra.mxu0 0
      %1401 = vmatprep.subr.bf16.mxu0 0
      %1402 = vmatpush1.bf16.msra.mxu0 0
      %1403 = vmatprep.subr.bf16.mxu0 0
      %1404 = vmatpush1.bf16.msra.mxu0 0
      %1405 = vmatprep.subr.bf16.mxu0 0
      %1406 = vmatpush1.bf16.msra.mxu0 0
      %1407 = vmatprep.subr.bf16.mxu0 0
      %1408 = vmatpush1.bf16.msra.mxu0 0
      %1409 = vmatprep.subr.bf16.mxu0 0
      %1410 = vmatpush1.bf16.msra.mxu0 0
      %1411 = vmatprep.subr.bf16.mxu0 0
      %1412 = vmatpush1.bf16.msra.mxu0 0
      %1413 = vmatprep.subr.bf16.mxu0 0
      %1414 = vmatpush1.bf16.msra.mxu0 0
      %1415 = vmatprep.subr.bf16.mxu0 0
      %1416 = vmatpush1.bf16.msra.mxu0 0
      %1417 = vmatprep.mubr.bf16.mxu0 0
      %1418 = vmatmul.mubr.bf16.gmra.mrb[0].mxu0 %v820
      %v1419 = vpop.f32.mrb[0].mxu0
      %v1420 = vadd.f32 0.0, %v1419
      %v1421 = vpop.f32.mrb[0].mxu0
      %v1422 = vpop.f32.mrb[0].mxu0
      %v1423 = vadd.f32 0.0, %v1422
      %v1424 = vpop.f32.mrb[0].mxu0
      %1425 = vmatprep.mubr.bf16.mxu0 0
      %1426 = vmatmul.mubr.bf16.gmra.mrb[0].mxu0 %v823
      %v1427 = vpop.f32.mrb[0].mxu0
      %v1428 = vadd.f32 0.0, %v1427
      %v1429 = vpop.f32.mrb[0].mxu0
      %v1430 = vpop.f32.mrb[0].mxu0
      %v1431 = vadd.f32 0.0, %v1430
      %v1432 = vpop.f32.mrb[0].mxu0
      %1433 = vdwg.mxu0
      %v1434 = vadd.f32 %v1311, %v1420
      %v1435 = vadd.f32 %v1312, %v1423
      %v1436 = vadd.f32 %v1313, %v1428
      %v1437 = vadd.f32 %v1314, %v1431
      %v1438 = vrot.slane %v891, 2
      %v1439 = vrot.slane %v892, 2
      %v1440 = vsel %vm750, %v1438, %v1439
      %v1442 = vsel %vm240, %v1440, 0
      %v1445 = vsel %vm240, %v1439, 0
      %1447 = vmatprep.subr.bf16.mxu0 0
      %1448 = vmatpush1.bf16.msra.mxu0 %v1383
      %1449 = vmatprep.subr.bf16.mxu0 0
      %1450 = vmatpush1.bf16.msra.mxu0 0
      %1451 = vmatprep.subr.bf16.mxu0 0
      %1452 = vmatpush1.bf16.msra.mxu0 0
      %1453 = vmatprep.subr.bf16.mxu0 0
      %1454 = vmatpush1.bf16.msra.mxu0 0
      %1455 = vmatprep.subr.bf16.mxu0 0
      %1456 = vmatpush1.bf16.msra.mxu0 0
      %1457 = vmatprep.subr.bf16.mxu0 0
      %1458 = vmatpush1.bf16.msra.mxu0 0
      %1459 = vmatprep.subr.bf16.mxu0 0
      %1460 = vmatpush1.bf16.msra.mxu0 0
      %1461 = vmatprep.subr.bf16.mxu0 0
      %1462 = vmatpush1.bf16.msra.mxu0 0
      %1463 = vmatprep.subr.bf16.mxu0 0
      %1464 = vmatpush1.bf16.msra.mxu0 0
      %1465 = vmatprep.subr.bf16.mxu0 0
      %1466 = vmatpush1.bf16.msra.mxu0 0
      %1467 = vmatprep.subr.bf16.mxu0 0
      %1468 = vmatpush1.bf16.msra.mxu0 0
      %1469 = vmatprep.subr.bf16.mxu0 0
      %1470 = vmatpush1.bf16.msra.mxu0 0
      %1471 = vmatprep.subr.bf16.mxu0 0
      %1472 = vmatpush1.bf16.msra.mxu0 0
      %1473 = vmatprep.subr.bf16.mxu0 0
      %1474 = vmatpush1.bf16.msra.mxu0 0
      %1475 = vmatprep.subr.bf16.mxu0 0
      %1476 = vmatpush1.bf16.msra.mxu0 0
      %1477 = vmatprep.subr.bf16.mxu0 0
      %1478 = vmatpush1.bf16.msra.mxu0 0
      %1479 = vmatprep.mubr.bf16.mxu0 0
      %1480 = vmatmul.mubr.bf16.gmra.mrb[0].mxu0 %v1442
      %v1481 = vpop.f32.mrb[0].mxu0
      %v1482 = vadd.f32 0.0, %v1481
      %v1483 = vpop.f32.mrb[0].mxu0
      %v1484 = vpop.f32.mrb[0].mxu0
      %v1485 = vadd.f32 0.0, %v1484
      %v1486 = vpop.f32.mrb[0].mxu0
      %1487 = vmatprep.mubr.bf16.mxu0 0
      %1488 = vmatmul.mubr.bf16.gmra.mrb[0].mxu0 %v1445
      %v1489 = vpop.f32.mrb[0].mxu0
      %v1490 = vadd.f32 0.0, %v1489
      %v1491 = vpop.f32.mrb[0].mxu0
      %v1492 = vpop.f32.mrb[0].mxu0
      %v1493 = vadd.f32 0.0, %v1492
      %v1494 = vpop.f32.mrb[0].mxu0
      %1495 = vdwg.mxu0
      %v1496 = vadd.f32 %v1377, %v1482
      %v1497 = vadd.f32 %v1378, %v1485
      %v1498 = vadd.f32 %v1379, %v1490
      %v1499 = vadd.f32 %v1380, %v1493
      %s1500 = sadd.s32 %s194, 3
      %s1501 = smul.u32 %s1500, 4
      %s1502 = smul.addr %s1501, 4
      %s1503 = scalar_lea.vmem %s183, %s1502
      %v1504 = vld [vmem:[%s1503] sm:$0xf]
      %v1505 = vld [vmem:[%s1503 + $0x4] sm:$0xf]
      %v1506 = vld [vmem:[%s1503 + $0x8] sm:$0xf]
      %v1507 = vld [vmem:[%s1503 + $0xc] sm:$0xf]
      %v1508 = vunpack.c.l.bf16 %v1504
      %v1509 = vunpack.c.l.bf16 %v1505
      %v1510 = vunpack.c.l.bf16 %v1506
      %v1511 = vunpack.c.l.bf16 %v1507
      %v1512 = vld [vmem:[%s1 + $0x28] sm:$0xf]
      %v1513 = vpack.c.bf16 %v1509, %v1508
      %v1514 = vpack.c.bf16 %v1511, %v1510
      %v1516 = vsel %vm247, %v1512, 0
      %1518 = vmatprep.subr.bf16.mxu0 0
      %1519 = vmatpush1.bf16.msra.mxu0 %v1516
      %1520 = vmatprep.subr.bf16.mxu0 0
      %1521 = vmatpush1.bf16.msra.mxu0 0
      %1522 = vmatprep.subr.bf16.mxu0 0
      %1523 = vmatpush1.bf16.msra.mxu0 0
      %1524 = vmatprep.subr.bf16.mxu0 0
      %1525 = vmatpush1.bf16.msra.mxu0 0
      %1526 = vmatprep.subr.bf16.mxu0 0
      %1527 = vmatpush1.bf16.msra.mxu0 0
      %1528 = vmatprep.subr.bf16.mxu0 0
      %1529 = vmatpush1.bf16.msra.mxu0 0
      %1530 = vmatprep.subr.bf16.mxu0 0
      %1531 = vmatpush1.bf16.msra.mxu0 0
      %1532 = vmatprep.subr.bf16.mxu0 0
      %1533 = vmatpush1.bf16.msra.mxu0 0
      %1534 = vmatprep.subr.bf16.mxu0 0
      %1535 = vmatpush1.bf16.msra.mxu0 0
      %1536 = vmatprep.subr.bf16.mxu0 0
      %1537 = vmatpush1.bf16.msra.mxu0 0
      %1538 = vmatprep.subr.bf16.mxu0 0
      %1539 = vmatpush1.bf16.msra.mxu0 0
      %1540 = vmatprep.subr.bf16.mxu0 0
      %1541 = vmatpush1.bf16.msra.mxu0 0
      %1542 = vmatprep.subr.bf16.mxu0 0
      %1543 = vmatpush1.bf16.msra.mxu0 0
      %1544 = vmatprep.subr.bf16.mxu0 0
      %1545 = vmatpush1.bf16.msra.mxu0 0
      %1546 = vmatprep.subr.bf16.mxu0 0
      %1547 = vmatpush1.bf16.msra.mxu0 0
      %1548 = vmatprep.subr.bf16.mxu0 0
      %1549 = vmatpush1.bf16.msra.mxu0 0
      %1550 = vmatprep.mubr.bf16.mxu0 0
      %1551 = vmatmul.mubr.bf16.gmra.mrb[0].mxu0 %v950
      %v1552 = vpop.f32.mrb[0].mxu0
      %v1553 = vadd.f32 0.0, %v1552
      %v1554 = vpop.f32.mrb[0].mxu0
      %v1555 = vpop.f32.mrb[0].mxu0
      %v1556 = vadd.f32 0.0, %v1555
      %v1557 = vpop.f32.mrb[0].mxu0
      %1558 = vmatprep.mubr.bf16.mxu0 0
      %1559 = vmatmul.mubr.bf16.gmra.mrb[0].mxu0 %v953
      %v1560 = vpop.f32.mrb[0].mxu0
      %v1561 = vadd.f32 0.0, %v1560
      %v1562 = vpop.f32.mrb[0].mxu0
      %v1563 = vpop.f32.mrb[0].mxu0
      %v1564 = vadd.f32 0.0, %v1563
      %v1565 = vpop.f32.mrb[0].mxu0
      %1566 = vdwg.mxu0
      %v1567 = vadd.f32 %v1434, %v1553
      %v1568 = vadd.f32 %v1435, %v1556
      %v1569 = vadd.f32 %v1436, %v1561
      %v1570 = vadd.f32 %v1437, %v1564
      %v1572 = vsel %vm240, %v1513, 0
      %v1575 = vsel %vm240, %v1514, 0
      %1577 = vmatprep.subr.bf16.mxu0 0
      %1578 = vmatpush1.bf16.msra.mxu0 %v1516
      %1579 = vmatprep.subr.bf16.mxu0 0
      %1580 = vmatpush1.bf16.msra.mxu0 0
      %1581 = vmatprep.subr.bf16.mxu0 0
      %1582 = vmatpush1.bf16.msra.mxu0 0
      %1583 = vmatprep.subr.bf16.mxu0 0
      %1584 = vmatpush1.bf16.msra.mxu0 0
      %1585 = vmatprep.subr.bf16.mxu0 0
      %1586 = vmatpush1.bf16.msra.mxu0 0
      %1587 = vmatprep.subr.bf16.mxu0 0
      %1588 = vmatpush1.bf16.msra.mxu0 0
      %1589 = vmatprep.subr.bf16.mxu0 0
      %1590 = vmatpush1.bf16.msra.mxu0 0
      %1591 = vmatprep.subr.bf16.mxu0 0
      %1592 = vmatpush1.bf16.msra.mxu0 0
      %1593 = vmatprep.subr.bf16.mxu0 0
      %1594 = vmatpush1.bf16.msra.mxu0 0
      %1595 = vmatprep.subr.bf16.mxu0 0
      %1596 = vmatpush1.bf16.msra.mxu0 0
      %1597 = vmatprep.subr.bf16.mxu0 0
      %1598 = vmatpush1.bf16.msra.mxu0 0
      %1599 = vmatprep.subr.bf16.mxu0 0
      %1600 = vmatpush1.bf16.msra.mxu0 0
      %1601 = vmatprep.subr.bf16.mxu0 0
      %1602 = vmatpush1.bf16.msra.mxu0 0
      %1603 = vmatprep.subr.bf16.mxu0 0
      %1604 = vmatpush1.bf16.msra.mxu0 0
      %1605 = vmatprep.subr.bf16.mxu0 0
      %1606 = vmatpush1.bf16.msra.mxu0 0
      %1607 = vmatprep.subr.bf16.mxu0 0
      %1608 = vmatpush1.bf16.msra.mxu0 0
      %1609 = vmatprep.mubr.bf16.mxu0 0
      %1610 = vmatmul.mubr.bf16.gmra.mrb[0].mxu0 %v1572
      %v1611 = vpop.f32.mrb[0].mxu0
      %v1612 = vadd.f32 0.0, %v1611
      %v1613 = vpop.f32.mrb[0].mxu0
      %v1614 = vpop.f32.mrb[0].mxu0
      %v1615 = vadd.f32 0.0, %v1614
      %v1616 = vpop.f32.mrb[0].mxu0
      %1617 = vmatprep.mubr.bf16.mxu0 0
      %1618 = vmatmul.mubr.bf16.gmra.mrb[0].mxu0 %v1575
      %v1619 = vpop.f32.mrb[0].mxu0
      %v1620 = vadd.f32 0.0, %v1619
      %v1621 = vpop.f32.mrb[0].mxu0
      %v1622 = vpop.f32.mrb[0].mxu0
      %v1623 = vadd.f32 0.0, %v1622
      %v1624 = vpop.f32.mrb[0].mxu0
      %1625 = vdwg.mxu0
      %v1626 = vadd.f32 %v1496, %v1612
      %v1627 = vadd.f32 %v1497, %v1615
      %v1628 = vadd.f32 %v1498, %v1620
      %v1629 = vadd.f32 %v1499, %v1623
      %v1630 = vld [vmem:[%s1 + $0x2c] sm:$0xf]
      %v1632 = vsel %vm247, %v1630, 0
      %1634 = vmatprep.subr.bf16.mxu0 0
      %1635 = vmatpush1.bf16.msra.mxu0 %v1632
      %1636 = vmatprep.subr.bf16.mxu0 0
      %1637 = vmatpush1.bf16.msra.mxu0 0
      %1638 = vmatprep.subr.bf16.mxu0 0
      %1639 = vmatpush1.bf16.msra.mxu0 0
      %1640 = vmatprep.subr.bf16.mxu0 0
      %1641 = vmatpush1.bf16.msra.mxu0 0
      %1642 = vmatprep.subr.bf16.mxu0 0
      %1643 = vmatpush1.bf16.msra.mxu0 0
      %1644 = vmatprep.subr.bf16.mxu0 0
      %1645 = vmatpush1.bf16.msra.mxu0 0
      %1646 = vmatprep.subr.bf16.mxu0 0
      %1647 = vmatpush1.bf16.msra.mxu0 0
      %1648 = vmatprep.subr.bf16.mxu0 0
      %1649 = vmatpush1.bf16.msra.mxu0 0
      %1650 = vmatprep.subr.bf16.mxu0 0
      %1651 = vmatpush1.bf16.msra.mxu0 0
      %1652 = vmatprep.subr.bf16.mxu0 0
      %1653 = vmatpush1.bf16.msra.mxu0 0
      %1654 = vmatprep.subr.bf16.mxu0 0
      %1655 = vmatpush1.bf16.msra.mxu0 0
      %1656 = vmatprep.subr.bf16.mxu0 0
      %1657 = vmatpush1.bf16.msra.mxu0 0
      %1658 = vmatprep.subr.bf16.mxu0 0
      %1659 = vmatpush1.bf16.msra.mxu0 0
      %1660 = vmatprep.subr.bf16.mxu0 0
      %1661 = vmatpush1.bf16.msra.mxu0 0
      %1662 = vmatprep.subr.bf16.mxu0 0
      %1663 = vmatpush1.bf16.msra.mxu0 0
      %1664 = vmatprep.subr.bf16.mxu0 0
      %1665 = vmatpush1.bf16.msra.mxu0 0
      %1666 = vmatprep.mubr.bf16.mxu0 0
      %1667 = vmatmul.mubr.bf16.gmra.mrb[0].mxu0 %v1079
      %v1668 = vpop.f32.mrb[0].mxu0
      %v1669 = vadd.f32 0.0, %v1668
      %v1670 = vpop.f32.mrb[0].mxu0
      %v1671 = vpop.f32.mrb[0].mxu0
      %v1672 = vadd.f32 0.0, %v1671
      %v1673 = vpop.f32.mrb[0].mxu0
      %1674 = vmatprep.mubr.bf16.mxu0 0
      %1675 = vmatmul.mubr.bf16.gmra.mrb[0].mxu0 %v1082
      %v1676 = vpop.f32.mrb[0].mxu0
      %v1677 = vadd.f32 0.0, %v1676
      %v1678 = vpop.f32.mrb[0].mxu0
      %v1679 = vpop.f32.mrb[0].mxu0
      %v1680 = vadd.f32 0.0, %v1679
      %v1681 = vpop.f32.mrb[0].mxu0
      %1682 = vdwg.mxu0
      %v1683 = vadd.f32 %v1567, %v1669
      %v1684 = vadd.f32 %v1568, %v1672
      %v1685 = vadd.f32 %v1569, %v1677
      %v1686 = vadd.f32 %v1570, %v1680
      %v1687 = vshrl.u32 %v1513, 16
      %v1689 = vshll.u32 %v1513, 16
      %v1691 = vrot.slane %v1689, 1
      %v1692 = vor.u32 %v1687, %v1691
      %v1693 = vshll.u32 %v1514, 16
      %v1695 = vrot.slane %v1693, 1
      %v1696 = vsel %vm224, %v1692, %v1695
      %v1697 = vshrl.u32 %v1514, 16
      %v1699 = vor.u32 %v1697, %v1695
      %v1701 = vsel %vm240, %v1696, 0
      %v1704 = vsel %vm240, %v1699, 0
      %1706 = vmatprep.subr.bf16.mxu0 0
      %1707 = vmatpush1.bf16.msra.mxu0 %v1632
      %1708 = vmatprep.subr.bf16.mxu0 0
      %1709 = vmatpush1.bf16.msra.mxu0 0
      %1710 = vmatprep.subr.bf16.mxu0 0
      %1711 = vmatpush1.bf16.msra.mxu0 0
      %1712 = vmatprep.subr.bf16.mxu0 0
      %1713 = vmatpush1.bf16.msra.mxu0 0
      %1714 = vmatprep.subr.bf16.mxu0 0
      %1715 = vmatpush1.bf16.msra.mxu0 0
      %1716 = vmatprep.subr.bf16.mxu0 0
      %1717 = vmatpush1.bf16.msra.mxu0 0
      %1718 = vmatprep.subr.bf16.mxu0 0
      %1719 = vmatpush1.bf16.msra.mxu0 0
      %1720 = vmatprep.subr.bf16.mxu0 0
      %1721 = vmatpush1.bf16.msra.mxu0 0
      %1722 = vmatprep.subr.bf16.mxu0 0
      %1723 = vmatpush1.bf16.msra.mxu0 0
      %1724 = vmatprep.subr.bf16.mxu0 0
      %1725 = vmatpush1.bf16.msra.mxu0 0
      %1726 = vmatprep.subr.bf16.mxu0 0
      %1727 = vmatpush1.bf16.msra.mxu0 0
      %1728 = vmatprep.subr.bf16.mxu0 0
      %1729 = vmatpush1.bf16.msra.mxu0 0
      %1730 = vmatprep.subr.bf16.mxu0 0
      %1731 = vmatpush1.bf16.msra.mxu0 0
      %1732 = vmatprep.subr.bf16.mxu0 0
      %1733 = vmatpush1.bf16.msra.mxu0 0
      %1734 = vmatprep.subr.bf16.mxu0 0
      %1735 = vmatpush1.bf16.msra.mxu0 0
      %1736 = vmatprep.subr.bf16.mxu0 0
      %1737 = vmatpush1.bf16.msra.mxu0 0
      %1738 = vmatprep.mubr.bf16.mxu0 0
      %1739 = vmatmul.mubr.bf16.gmra.mrb[0].mxu0 %v1701
      %v1740 = vpop.f32.mrb[0].mxu0
      %v1741 = vadd.f32 0.0, %v1740
      %v1742 = vpop.f32.mrb[0].mxu0
      %v1743 = vpop.f32.mrb[0].mxu0
      %v1744 = vadd.f32 0.0, %v1743
      %v1745 = vpop.f32.mrb[0].mxu0
      %1746 = vmatprep.mubr.bf16.mxu0 0
      %1747 = vmatmul.mubr.bf16.gmra.mrb[0].mxu0 %v1704
      %v1748 = vpop.f32.mrb[0].mxu0
      %v1749 = vadd.f32 0.0, %v1748
      %v1750 = vpop.f32.mrb[0].mxu0
      %v1751 = vpop.f32.mrb[0].mxu0
      %v1752 = vadd.f32 0.0, %v1751
      %v1753 = vpop.f32.mrb[0].mxu0
      %1754 = vdwg.mxu0
      %v1755 = vadd.f32 %v1626, %v1741
      %v1756 = vadd.f32 %v1627, %v1744
      %v1757 = vadd.f32 %v1628, %v1749
      %v1758 = vadd.f32 %v1629, %v1752
      %v1759 = vld [vmem:[%s1 + $0x30] sm:$0xf]
      %v1761 = vsel %vm247, %v1759, 0
      %1763 = vmatprep.subr.bf16.mxu0 0
      %1764 = vmatpush1.bf16.msra.mxu0 %v1761
      %1765 = vmatprep.subr.bf16.mxu0 0
      %1766 = vmatpush1.bf16.msra.mxu0 0
      %1767 = vmatprep.subr.bf16.mxu0 0
      %1768 = vmatpush1.bf16.msra.mxu0 0
      %1769 = vmatprep.subr.bf16.mxu0 0
      %1770 = vmatpush1.bf16.msra.mxu0 0
      %1771 = vmatprep.subr.bf16.mxu0 0
      %1772 = vmatpush1.bf16.msra.mxu0 0
      %1773 = vmatprep.subr.bf16.mxu0 0
      %1774 = vmatpush1.bf16.msra.mxu0 0
      %1775 = vmatprep.subr.bf16.mxu0 0
      %1776 = vmatpush1.bf16.msra.mxu0 0
      %1777 = vmatprep.subr.bf16.mxu0 0
      %1778 = vmatpush1.bf16.msra.mxu0 0
      %1779 = vmatprep.subr.bf16.mxu0 0
      %1780 = vmatpush1.bf16.msra.mxu0 0
      %1781 = vmatprep.subr.bf16.mxu0 0
      %1782 = vmatpush1.bf16.msra.mxu0 0
      %1783 = vmatprep.subr.bf16.mxu0 0
      %1784 = vmatpush1.bf16.msra.mxu0 0
      %1785 = vmatprep.subr.bf16.mxu0 0
      %1786 = vmatpush1.bf16.msra.mxu0 0
      %1787 = vmatprep.subr.bf16.mxu0 0
      %1788 = vmatpush1.bf16.msra.mxu0 0
      %1789 = vmatprep.subr.bf16.mxu0 0
      %1790 = vmatpush1.bf16.msra.mxu0 0
      %1791 = vmatprep.subr.bf16.mxu0 0
      %1792 = vmatpush1.bf16.msra.mxu0 0
      %1793 = vmatprep.subr.bf16.mxu0 0
      %1794 = vmatpush1.bf16.msra.mxu0 0
      %1795 = vmatprep.mubr.bf16.mxu0 0
      %1796 = vmatmul.mubr.bf16.gmra.mrb[0].mxu0 %v1200
      %v1797 = vpop.f32.mrb[0].mxu0
      %v1798 = vadd.f32 0.0, %v1797
      %v1799 = vpop.f32.mrb[0].mxu0
      %v1800 = vpop.f32.mrb[0].mxu0
      %v1801 = vadd.f32 0.0, %v1800
      %v1802 = vpop.f32.mrb[0].mxu0
      %1803 = vmatprep.mubr.bf16.mxu0 0
      %1804 = vmatmul.mubr.bf16.gmra.mrb[0].mxu0 %v1203
      %v1805 = vpop.f32.mrb[0].mxu0
      %v1806 = vadd.f32 0.0, %v1805
      %v1807 = vpop.f32.mrb[0].mxu0
      %v1808 = vpop.f32.mrb[0].mxu0
      %v1809 = vadd.f32 0.0, %v1808
      %v1810 = vpop.f32.mrb[0].mxu0
      %1811 = vdwg.mxu0
      %v1812 = vadd.f32 %v1683, %v1798
      %v1813 = vadd.f32 %v1684, %v1801
      %v1814 = vadd.f32 %v1685, %v1806
      %v1815 = vadd.f32 %v1686, %v1809
      %v1818 = vrot.slane %v1513, 1
      %v1819 = vrot.slane %v1514, 1
      %v1820 = vsel %vm482, %v1818, %v1819
      %v1822 = vsel %vm240, %v1820, 0
      %v1825 = vsel %vm240, %v1819, 0
      %1827 = vmatprep.subr.bf16.mxu0 0
      %1828 = vmatpush1.bf16.msra.mxu0 %v1761
      %1829 = vmatprep.subr.bf16.mxu0 0
      %1830 = vmatpush1.bf16.msra.mxu0 0
      %1831 = vmatprep.subr.bf16.mxu0 0
      %1832 = vmatpush1.bf16.msra.mxu0 0
      %1833 = vmatprep.subr.bf16.mxu0 0
      %1834 = vmatpush1.bf16.msra.mxu0 0
      %1835 = vmatprep.subr.bf16.mxu0 0
      %1836 = vmatpush1.bf16.msra.mxu0 0
      %1837 = vmatprep.subr.bf16.mxu0 0
      %1838 = vmatpush1.bf16.msra.mxu0 0
      %1839 = vmatprep.subr.bf16.mxu0 0
      %1840 = vmatpush1.bf16.msra.mxu0 0
      %1841 = vmatprep.subr.bf16.mxu0 0
      %1842 = vmatpush1.bf16.msra.mxu0 0
      %1843 = vmatprep.subr.bf16.mxu0 0
      %1844 = vmatpush1.bf16.msra.mxu0 0
      %1845 = vmatprep.subr.bf16.mxu0 0
      %1846 = vmatpush1.bf16.msra.mxu0 0
      %1847 = vmatprep.subr.bf16.mxu0 0
      %1848 = vmatpush1.bf16.msra.mxu0 0
      %1849 = vmatprep.subr.bf16.mxu0 0
      %1850 = vmatpush1.bf16.msra.mxu0 0
      %1851 = vmatprep.subr.bf16.mxu0 0
      %1852 = vmatpush1.bf16.msra.mxu0 0
      %1853 = vmatprep.subr.bf16.mxu0 0
      %1854 = vmatpush1.bf16.msra.mxu0 0
      %1855 = vmatprep.subr.bf16.mxu0 0
      %1856 = vmatpush1.bf16.msra.mxu0 0
      %1857 = vmatprep.subr.bf16.mxu0 0
      %1858 = vmatpush1.bf16.msra.mxu0 0
      %1859 = vmatprep.mubr.bf16.mxu0 0
      %1860 = vmatmul.mubr.bf16.gmra.mrb[0].mxu0 %v1822
      %v1861 = vpop.f32.mrb[0].mxu0
      %v1862 = vadd.f32 0.0, %v1861
      %v1863 = vpop.f32.mrb[0].mxu0
      %v1864 = vpop.f32.mrb[0].mxu0
      %v1865 = vadd.f32 0.0, %v1864
      %v1866 = vpop.f32.mrb[0].mxu0
      %1867 = vmatprep.mubr.bf16.mxu0 0
      %1868 = vmatmul.mubr.bf16.gmra.mrb[0].mxu0 %v1825
      %v1869 = vpop.f32.mrb[0].mxu0
      %v1870 = vadd.f32 0.0, %v1869
      %v1871 = vpop.f32.mrb[0].mxu0
      %v1872 = vpop.f32.mrb[0].mxu0
      %v1873 = vadd.f32 0.0, %v1872
      %v1874 = vpop.f32.mrb[0].mxu0
      %1875 = vdwg.mxu0
      %v1876 = vadd.f32 %v1755, %v1862
      %v1877 = vadd.f32 %v1756, %v1865
      %v1878 = vadd.f32 %v1757, %v1870
      %v1879 = vadd.f32 %v1758, %v1873
      %v1880 = vld [vmem:[%s1 + $0x34] sm:$0xf]
      %v1882 = vsel %vm247, %v1880, 0
      %1884 = vmatprep.subr.bf16.mxu0 0
      %1885 = vmatpush1.bf16.msra.mxu0 %v1882
      %1886 = vmatprep.subr.bf16.mxu0 0
      %1887 = vmatpush1.bf16.msra.mxu0 0
      %1888 = vmatprep.subr.bf16.mxu0 0
      %1889 = vmatpush1.bf16.msra.mxu0 0
      %1890 = vmatprep.subr.bf16.mxu0 0
      %1891 = vmatpush1.bf16.msra.mxu0 0
      %1892 = vmatprep.subr.bf16.mxu0 0
      %1893 = vmatpush1.bf16.msra.mxu0 0
      %1894 = vmatprep.subr.bf16.mxu0 0
      %1895 = vmatpush1.bf16.msra.mxu0 0
      %1896 = vmatprep.subr.bf16.mxu0 0
      %1897 = vmatpush1.bf16.msra.mxu0 0
      %1898 = vmatprep.subr.bf16.mxu0 0
      %1899 = vmatpush1.bf16.msra.mxu0 0
      %1900 = vmatprep.subr.bf16.mxu0 0
      %1901 = vmatpush1.bf16.msra.mxu0 0
      %1902 = vmatprep.subr.bf16.mxu0 0
      %1903 = vmatpush1.bf16.msra.mxu0 0
      %1904 = vmatprep.subr.bf16.mxu0 0
      %1905 = vmatpush1.bf16.msra.mxu0 0
      %1906 = vmatprep.subr.bf16.mxu0 0
      %1907 = vmatpush1.bf16.msra.mxu0 0
      %1908 = vmatprep.subr.bf16.mxu0 0
      %1909 = vmatpush1.bf16.msra.mxu0 0
      %1910 = vmatprep.subr.bf16.mxu0 0
      %1911 = vmatpush1.bf16.msra.mxu0 0
      %1912 = vmatprep.subr.bf16.mxu0 0
      %1913 = vmatpush1.bf16.msra.mxu0 0
      %1914 = vmatprep.subr.bf16.mxu0 0
      %1915 = vmatpush1.bf16.msra.mxu0 0
      %1916 = vmatprep.mubr.bf16.mxu0 0
      %1917 = vmatmul.mubr.bf16.gmra.mrb[0].mxu0 %v1323
      %v1918 = vpop.f32.mrb[0].mxu0
      %v1919 = vadd.f32 0.0, %v1918
      %v1920 = vpop.f32.mrb[0].mxu0
      %v1921 = vpop.f32.mrb[0].mxu0
      %v1922 = vadd.f32 0.0, %v1921
      %v1923 = vpop.f32.mrb[0].mxu0
      %1924 = vmatprep.mubr.bf16.mxu0 0
      %1925 = vmatmul.mubr.bf16.gmra.mrb[0].mxu0 %v1326
      %v1926 = vpop.f32.mrb[0].mxu0
      %v1927 = vadd.f32 0.0, %v1926
      %v1928 = vpop.f32.mrb[0].mxu0
      %v1929 = vpop.f32.mrb[0].mxu0
      %v1930 = vadd.f32 0.0, %v1929
      %v1931 = vpop.f32.mrb[0].mxu0
      %1932 = vdwg.mxu0
      %v1933 = vadd.f32 %v1812, %v1919
      %v1934 = vadd.f32 %v1813, %v1922
      %v1935 = vadd.f32 %v1814, %v1927
      %v1936 = vadd.f32 %v1815, %v1930
      %v1937 = vrot.slane %v1687, 1
      %v1938 = vrot.slane %v1689, 2
      %v1939 = vor.u32 %v1937, %v1938
      %v1940 = vrot.slane %v1697, 1
      %v1941 = vrot.slane %v1693, 2
      %v1942 = vor.u32 %v1940, %v1941
      %v1943 = vsel %vm613, %v1939, %v1942
      %v1945 = vsel %vm240, %v1943, 0
      %v1948 = vsel %vm240, %v1942, 0
      %1950 = vmatprep.subr.bf16.mxu0 0
      %1951 = vmatpush1.bf16.msra.mxu0 %v1882
      %1952 = vmatprep.subr.bf16.mxu0 0
      %1953 = vmatpush1.bf16.msra.mxu0 0
      %1954 = vmatprep.subr.bf16.mxu0 0
      %1955 = vmatpush1.bf16.msra.mxu0 0
      %1956 = vmatprep.subr.bf16.mxu0 0
      %1957 = vmatpush1.bf16.msra.mxu0 0
      %1958 = vmatprep.subr.bf16.mxu0 0
      %1959 = vmatpush1.bf16.msra.mxu0 0
      %1960 = vmatprep.subr.bf16.mxu0 0
      %1961 = vmatpush1.bf16.msra.mxu0 0
      %1962 = vmatprep.subr.bf16.mxu0 0
      %1963 = vmatpush1.bf16.msra.mxu0 0
      %1964 = vmatprep.subr.bf16.mxu0 0
      %1965 = vmatpush1.bf16.msra.mxu0 0
      %1966 = vmatprep.subr.bf16.mxu0 0
      %1967 = vmatpush1.bf16.msra.mxu0 0
      %1968 = vmatprep.subr.bf16.mxu0 0
      %1969 = vmatpush1.bf16.msra.mxu0 0
      %1970 = vmatprep.subr.bf16.mxu0 0
      %1971 = vmatpush1.bf16.msra.mxu0 0
      %1972 = vmatprep.subr.bf16.mxu0 0
      %1973 = vmatpush1.bf16.msra.mxu0 0
      %1974 = vmatprep.subr.bf16.mxu0 0
      %1975 = vmatpush1.bf16.msra.mxu0 0
      %1976 = vmatprep.subr.bf16.mxu0 0
      %1977 = vmatpush1.bf16.msra.mxu0 0
      %1978 = vmatprep.subr.bf16.mxu0 0
      %1979 = vmatpush1.bf16.msra.mxu0 0
      %1980 = vmatprep.subr.bf16.mxu0 0
      %1981 = vmatpush1.bf16.msra.mxu0 0
      %1982 = vmatprep.mubr.bf16.mxu0 0
      %1983 = vmatmul.mubr.bf16.gmra.mrb[0].mxu0 %v1945
      %v1984 = vpop.f32.mrb[0].mxu0
      %v1985 = vadd.f32 0.0, %v1984
      %v1986 = vpop.f32.mrb[0].mxu0
      %v1987 = vpop.f32.mrb[0].mxu0
      %v1988 = vadd.f32 0.0, %v1987
      %v1989 = vpop.f32.mrb[0].mxu0
      %1990 = vmatprep.mubr.bf16.mxu0 0
      %1991 = vmatmul.mubr.bf16.gmra.mrb[0].mxu0 %v1948
      %v1992 = vpop.f32.mrb[0].mxu0
      %v1993 = vadd.f32 0.0, %v1992
      %v1994 = vpop.f32.mrb[0].mxu0
      %v1995 = vpop.f32.mrb[0].mxu0
      %v1996 = vadd.f32 0.0, %v1995
      %v1997 = vpop.f32.mrb[0].mxu0
      %1998 = vdwg.mxu0
      %v1999 = vadd.f32 %v1876, %v1985
      %v2000 = vadd.f32 %v1877, %v1988
      %v2001 = vadd.f32 %v1878, %v1993
      %v2002 = vadd.f32 %v1879, %v1996
      %v2003 = vld [vmem:[%s1 + $0x38] sm:$0xf]
      %v2005 = vsel %vm247, %v2003, 0
      %2007 = vmatprep.subr.bf16.mxu0 0
      %2008 = vmatpush1.bf16.msra.mxu0 %v2005
      %2009 = vmatprep.subr.bf16.mxu0 0
      %2010 = vmatpush1.bf16.msra.mxu0 0
      %2011 = vmatprep.subr.bf16.mxu0 0
      %2012 = vmatpush1.bf16.msra.mxu0 0
      %2013 = vmatprep.subr.bf16.mxu0 0
      %2014 = vmatpush1.bf16.msra.mxu0 0
      %2015 = vmatprep.subr.bf16.mxu0 0
      %2016 = vmatpush1.bf16.msra.mxu0 0
      %2017 = vmatprep.subr.bf16.mxu0 0
      %2018 = vmatpush1.bf16.msra.mxu0 0
      %2019 = vmatprep.subr.bf16.mxu0 0
      %2020 = vmatpush1.bf16.msra.mxu0 0
      %2021 = vmatprep.subr.bf16.mxu0 0
      %2022 = vmatpush1.bf16.msra.mxu0 0
      %2023 = vmatprep.subr.bf16.mxu0 0
      %2024 = vmatpush1.bf16.msra.mxu0 0
      %2025 = vmatprep.subr.bf16.mxu0 0
      %2026 = vmatpush1.bf16.msra.mxu0 0
      %2027 = vmatprep.subr.bf16.mxu0 0
      %2028 = vmatpush1.bf16.msra.mxu0 0
      %2029 = vmatprep.subr.bf16.mxu0 0
      %2030 = vmatpush1.bf16.msra.mxu0 0
      %2031 = vmatprep.subr.bf16.mxu0 0
      %2032 = vmatpush1.bf16.msra.mxu0 0
      %2033 = vmatprep.subr.bf16.mxu0 0
      %2034 = vmatpush1.bf16.msra.mxu0 0
      %2035 = vmatprep.subr.bf16.mxu0 0
      %2036 = vmatpush1.bf16.msra.mxu0 0
      %2037 = vmatprep.subr.bf16.mxu0 0
      %2038 = vmatpush1.bf16.msra.mxu0 0
      %2039 = vmatprep.mubr.bf16.mxu0 0
      %2040 = vmatmul.mubr.bf16.gmra.mrb[0].mxu0 %v1442
      %v2041 = vpop.f32.mrb[0].mxu0
      %v2042 = vadd.f32 0.0, %v2041
      %v2043 = vpop.f32.mrb[0].mxu0
      %v2044 = vpop.f32.mrb[0].mxu0
      %v2045 = vadd.f32 0.0, %v2044
      %v2046 = vpop.f32.mrb[0].mxu0
      %2047 = vmatprep.mubr.bf16.mxu0 0
      %2048 = vmatmul.mubr.bf16.gmra.mrb[0].mxu0 %v1445
      %v2049 = vpop.f32.mrb[0].mxu0
      %v2050 = vadd.f32 0.0, %v2049
      %v2051 = vpop.f32.mrb[0].mxu0
      %v2052 = vpop.f32.mrb[0].mxu0
      %v2053 = vadd.f32 0.0, %v2052
      %v2054 = vpop.f32.mrb[0].mxu0
      %2055 = vdwg.mxu0
      %v2056 = vadd.f32 %v1933, %v2042
      %v2057 = vadd.f32 %v1934, %v2045
      %v2058 = vadd.f32 %v1935, %v2050
      %v2059 = vadd.f32 %v1936, %v2053
      %v2060 = vrot.slane %v1513, 2
      %v2061 = vrot.slane %v1514, 2
      %v2062 = vsel %vm750, %v2060, %v2061
      %v2064 = vsel %vm240, %v2062, 0
      %v2067 = vsel %vm240, %v2061, 0
      %2069 = vmatprep.subr.bf16.mxu0 0
      %2070 = vmatpush1.bf16.msra.mxu0 %v2005
      %2071 = vmatprep.subr.bf16.mxu0 0
      %2072 = vmatpush1.bf16.msra.mxu0 0
      %2073 = vmatprep.subr.bf16.mxu0 0
      %2074 = vmatpush1.bf16.msra.mxu0 0
      %2075 = vmatprep.subr.bf16.mxu0 0
      %2076 = vmatpush1.bf16.msra.mxu0 0
      %2077 = vmatprep.subr.bf16.mxu0 0
      %2078 = vmatpush1.bf16.msra.mxu0 0
      %2079 = vmatprep.subr.bf16.mxu0 0
      %2080 = vmatpush1.bf16.msra.mxu0 0
      %2081 = vmatprep.subr.bf16.mxu0 0
      %2082 = vmatpush1.bf16.msra.mxu0 0
      %2083 = vmatprep.subr.bf16.mxu0 0
      %2084 = vmatpush1.bf16.msra.mxu0 0
      %2085 = vmatprep.subr.bf16.mxu0 0
      %2086 = vmatpush1.bf16.msra.mxu0 0
      %2087 = vmatprep.subr.bf16.mxu0 0
      %2088 = vmatpush1.bf16.msra.mxu0 0
      %2089 = vmatprep.subr.bf16.mxu0 0
      %2090 = vmatpush1.bf16.msra.mxu0 0
      %2091 = vmatprep.subr.bf16.mxu0 0
      %2092 = vmatpush1.bf16.msra.mxu0 0
      %2093 = vmatprep.subr.bf16.mxu0 0
      %2094 = vmatpush1.bf16.msra.mxu0 0
      %2095 = vmatprep.subr.bf16.mxu0 0
      %2096 = vmatpush1.bf16.msra.mxu0 0
      %2097 = vmatprep.subr.bf16.mxu0 0
      %2098 = vmatpush1.bf16.msra.mxu0 0
      %2099 = vmatprep.subr.bf16.mxu0 0
      %2100 = vmatpush1.bf16.msra.mxu0 0
      %2101 = vmatprep.mubr.bf16.mxu0 0
      %2102 = vmatmul.mubr.bf16.gmra.mrb[0].mxu0 %v2064
      %v2103 = vpop.f32.mrb[0].mxu0
      %v2104 = vadd.f32 0.0, %v2103
      %v2105 = vpop.f32.mrb[0].mxu0
      %v2106 = vpop.f32.mrb[0].mxu0
      %v2107 = vadd.f32 0.0, %v2106
      %v2108 = vpop.f32.mrb[0].mxu0
      %2109 = vmatprep.mubr.bf16.mxu0 0
      %2110 = vmatmul.mubr.bf16.gmra.mrb[0].mxu0 %v2067
      %v2111 = vpop.f32.mrb[0].mxu0
      %v2112 = vadd.f32 0.0, %v2111
      %v2113 = vpop.f32.mrb[0].mxu0
      %v2114 = vpop.f32.mrb[0].mxu0
      %v2115 = vadd.f32 0.0, %v2114
      %v2116 = vpop.f32.mrb[0].mxu0
      %2117 = vdwg.mxu0
      %v2118 = vadd.f32 %v1999, %v2104
      %v2119 = vadd.f32 %v2000, %v2107
      %v2120 = vadd.f32 %v2001, %v2112
      %v2121 = vadd.f32 %v2002, %v2115
      %s2122 = sadd.s32 %s194, 4
      %s2123 = smul.u32 %s2122, 4
      %s2124 = smul.addr %s2123, 4
      %s2125 = scalar_lea.vmem %s183, %s2124
      %v2126 = vld [vmem:[%s2125] sm:$0xf]
      %v2127 = vld [vmem:[%s2125 + $0x4] sm:$0xf]
      %v2128 = vld [vmem:[%s2125 + $0x8] sm:$0xf]
      %v2129 = vld [vmem:[%s2125 + $0xc] sm:$0xf]
      %v2130 = vunpack.c.l.bf16 %v2126
      %v2131 = vunpack.c.l.bf16 %v2127
      %v2132 = vunpack.c.l.bf16 %v2128
      %v2133 = vunpack.c.l.bf16 %v2129
      %v2134 = vld [vmem:[%s1 + $0x3c] sm:$0xf]
      %v2135 = vpack.c.bf16 %v2131, %v2130
      %v2136 = vpack.c.bf16 %v2133, %v2132
      %v2138 = vsel %vm247, %v2134, 0
      %2140 = vmatprep.subr.bf16.mxu0 0
      %2141 = vmatpush1.bf16.msra.mxu0 %v2138
      %2142 = vmatprep.subr.bf16.mxu0 0
      %2143 = vmatpush1.bf16.msra.mxu0 0
      %2144 = vmatprep.subr.bf16.mxu0 0
      %2145 = vmatpush1.bf16.msra.mxu0 0
      %2146 = vmatprep.subr.bf16.mxu0 0
      %2147 = vmatpush1.bf16.msra.mxu0 0
      %2148 = vmatprep.subr.bf16.mxu0 0
      %2149 = vmatpush1.bf16.msra.mxu0 0
      %2150 = vmatprep.subr.bf16.mxu0 0
      %2151 = vmatpush1.bf16.msra.mxu0 0
      %2152 = vmatprep.subr.bf16.mxu0 0
      %2153 = vmatpush1.bf16.msra.mxu0 0
      %2154 = vmatprep.subr.bf16.mxu0 0
      %2155 = vmatpush1.bf16.msra.mxu0 0
      %2156 = vmatprep.subr.bf16.mxu0 0
      %2157 = vmatpush1.bf16.msra.mxu0 0
      %2158 = vmatprep.subr.bf16.mxu0 0
      %2159 = vmatpush1.bf16.msra.mxu0 0
      %2160 = vmatprep.subr.bf16.mxu0 0
      %2161 = vmatpush1.bf16.msra.mxu0 0
      %2162 = vmatprep.subr.bf16.mxu0 0
      %2163 = vmatpush1.bf16.msra.mxu0 0
      %2164 = vmatprep.subr.bf16.mxu0 0
      %2165 = vmatpush1.bf16.msra.mxu0 0
      %2166 = vmatprep.subr.bf16.mxu0 0
      %2167 = vmatpush1.bf16.msra.mxu0 0
      %2168 = vmatprep.subr.bf16.mxu0 0
      %2169 = vmatpush1.bf16.msra.mxu0 0
      %2170 = vmatprep.subr.bf16.mxu0 0
      %2171 = vmatpush1.bf16.msra.mxu0 0
      %2172 = vmatprep.mubr.bf16.mxu0 0
      %2173 = vmatmul.mubr.bf16.gmra.mrb[0].mxu0 %v1572
      %v2174 = vpop.f32.mrb[0].mxu0
      %v2175 = vadd.f32 0.0, %v2174
      %v2176 = vpop.f32.mrb[0].mxu0
      %v2177 = vpop.f32.mrb[0].mxu0
      %v2178 = vadd.f32 0.0, %v2177
      %v2179 = vpop.f32.mrb[0].mxu0
      %2180 = vmatprep.mubr.bf16.mxu0 0
      %2181 = vmatmul.mubr.bf16.gmra.mrb[0].mxu0 %v1575
      %v2182 = vpop.f32.mrb[0].mxu0
      %v2183 = vadd.f32 0.0, %v2182
      %v2184 = vpop.f32.mrb[0].mxu0
      %v2185 = vpop.f32.mrb[0].mxu0
      %v2186 = vadd.f32 0.0, %v2185
      %v2187 = vpop.f32.mrb[0].mxu0
      %2188 = vdwg.mxu0
      %v2189 = vadd.f32 %v2056, %v2175
      %v2190 = vadd.f32 %v2057, %v2178
      %v2191 = vadd.f32 %v2058, %v2183
      %v2192 = vadd.f32 %v2059, %v2186
      %v2194 = vsel %vm240, %v2135, 0
      %v2197 = vsel %vm240, %v2136, 0
      %2199 = vmatprep.subr.bf16.mxu0 0
      %2200 = vmatpush1.bf16.msra.mxu0 %v2138
      %2201 = vmatprep.subr.bf16.mxu0 0
      %2202 = vmatpush1.bf16.msra.mxu0 0
      %2203 = vmatprep.subr.bf16.mxu0 0
      %2204 = vmatpush1.bf16.msra.mxu0 0
      %2205 = vmatprep.subr.bf16.mxu0 0
      %2206 = vmatpush1.bf16.msra.mxu0 0
      %2207 = vmatprep.subr.bf16.mxu0 0
      %2208 = vmatpush1.bf16.msra.mxu0 0
      %2209 = vmatprep.subr.bf16.mxu0 0
      %2210 = vmatpush1.bf16.msra.mxu0 0
      %2211 = vmatprep.subr.bf16.mxu0 0
      %2212 = vmatpush1.bf16.msra.mxu0 0
      %2213 = vmatprep.subr.bf16.mxu0 0
      %2214 = vmatpush1.bf16.msra.mxu0 0
      %2215 = vmatprep.subr.bf16.mxu0 0
      %2216 = vmatpush1.bf16.msra.mxu0 0
      %2217 = vmatprep.subr.bf16.mxu0 0
      %2218 = vmatpush1.bf16.msra.mxu0 0
      %2219 = vmatprep.subr.bf16.mxu0 0
      %2220 = vmatpush1.bf16.msra.mxu0 0
      %2221 = vmatprep.subr.bf16.mxu0 0
      %2222 = vmatpush1.bf16.msra.mxu0 0
      %2223 = vmatprep.subr.bf16.mxu0 0
      %2224 = vmatpush1.bf16.msra.mxu0 0
      %2225 = vmatprep.subr.bf16.mxu0 0
      %2226 = vmatpush1.bf16.msra.mxu0 0
      %2227 = vmatprep.subr.bf16.mxu0 0
      %2228 = vmatpush1.bf16.msra.mxu0 0
      %2229 = vmatprep.subr.bf16.mxu0 0
      %2230 = vmatpush1.bf16.msra.mxu0 0
      %2231 = vmatprep.mubr.bf16.mxu0 0
      %2232 = vmatmul.mubr.bf16.gmra.mrb[0].mxu0 %v2194
      %v2233 = vpop.f32.mrb[0].mxu0
      %v2234 = vadd.f32 0.0, %v2233
      %v2235 = vpop.f32.mrb[0].mxu0
      %v2236 = vpop.f32.mrb[0].mxu0
      %v2237 = vadd.f32 0.0, %v2236
      %v2238 = vpop.f32.mrb[0].mxu0
      %2239 = vmatprep.mubr.bf16.mxu0 0
      %2240 = vmatmul.mubr.bf16.gmra.mrb[0].mxu0 %v2197
      %v2241 = vpop.f32.mrb[0].mxu0
      %v2242 = vadd.f32 0.0, %v2241
      %v2243 = vpop.f32.mrb[0].mxu0
      %v2244 = vpop.f32.mrb[0].mxu0
      %v2245 = vadd.f32 0.0, %v2244
      %v2246 = vpop.f32.mrb[0].mxu0
      %2247 = vdwg.mxu0
      %v2248 = vadd.f32 %v2118, %v2234
      %v2249 = vadd.f32 %v2119, %v2237
      %v2250 = vadd.f32 %v2120, %v2242
      %v2251 = vadd.f32 %v2121, %v2245
      %v2252 = vld [vmem:[%s1 + $0x40] sm:$0xf]
      %v2254 = vsel %vm247, %v2252, 0
      %2256 = vmatprep.subr.bf16.mxu0 0
      %2257 = vmatpush1.bf16.msra.mxu0 %v2254
      %2258 = vmatprep.subr.bf16.mxu0 0
      %2259 = vmatpush1.bf16.msra.mxu0 0
      %2260 = vmatprep.subr.bf16.mxu0 0
      %2261 = vmatpush1.bf16.msra.mxu0 0
      %2262 = vmatprep.subr.bf16.mxu0 0
      %2263 = vmatpush1.bf16.msra.mxu0 0
      %2264 = vmatprep.subr.bf16.mxu0 0
      %2265 = vmatpush1.bf16.msra.mxu0 0
      %2266 = vmatprep.subr.bf16.mxu0 0
      %2267 = vmatpush1.bf16.msra.mxu0 0
      %2268 = vmatprep.subr.bf16.mxu0 0
      %2269 = vmatpush1.bf16.msra.mxu0 0
      %2270 = vmatprep.subr.bf16.mxu0 0
      %2271 = vmatpush1.bf16.msra.mxu0 0
      %2272 = vmatprep.subr.bf16.mxu0 0
      %2273 = vmatpush1.bf16.msra.mxu0 0
      %2274 = vmatprep.subr.bf16.mxu0 0
      %2275 = vmatpush1.bf16.msra.mxu0 0
      %2276 = vmatprep.subr.bf16.mxu0 0
      %2277 = vmatpush1.bf16.msra.mxu0 0
      %2278 = vmatprep.subr.bf16.mxu0 0
      %2279 = vmatpush1.bf16.msra.mxu0 0
      %2280 = vmatprep.subr.bf16.mxu0 0
      %2281 = vmatpush1.bf16.msra.mxu0 0
      %2282 = vmatprep.subr.bf16.mxu0 0
      %2283 = vmatpush1.bf16.msra.mxu0 0
      %2284 = vmatprep.subr.bf16.mxu0 0
      %2285 = vmatpush1.bf16.msra.mxu0 0
      %2286 = vmatprep.subr.bf16.mxu0 0
      %2287 = vmatpush1.bf16.msra.mxu0 0
      %2288 = vmatprep.mubr.bf16.mxu0 0
      %2289 = vmatmul.mubr.bf16.gmra.mrb[0].mxu0 %v1701
      %v2290 = vpop.f32.mrb[0].mxu0
      %v2291 = vadd.f32 0.0, %v2290
      %v2292 = vpop.f32.mrb[0].mxu0
      %v2293 = vpop.f32.mrb[0].mxu0
      %v2294 = vadd.f32 0.0, %v2293
      %v2295 = vpop.f32.mrb[0].mxu0
      %2296 = vmatprep.mubr.bf16.mxu0 0
      %2297 = vmatmul.mubr.bf16.gmra.mrb[0].mxu0 %v1704
      %v2298 = vpop.f32.mrb[0].mxu0
      %v2299 = vadd.f32 0.0, %v2298
      %v2300 = vpop.f32.mrb[0].mxu0
      %v2301 = vpop.f32.mrb[0].mxu0
      %v2302 = vadd.f32 0.0, %v2301
      %v2303 = vpop.f32.mrb[0].mxu0
      %2304 = vdwg.mxu0
      %v2305 = vadd.f32 %v2189, %v2291
      %v2306 = vadd.f32 %v2190, %v2294
      %v2307 = vadd.f32 %v2191, %v2299
      %v2308 = vadd.f32 %v2192, %v2302
      %v2309 = vshrl.u32 %v2135, 16
      %v2311 = vshll.u32 %v2135, 16
      %v2313 = vrot.slane %v2311, 1
      %v2314 = vor.u32 %v2309, %v2313
      %v2315 = vshll.u32 %v2136, 16
      %v2317 = vrot.slane %v2315, 1
      %v2318 = vsel %vm224, %v2314, %v2317
      %v2319 = vshrl.u32 %v2136, 16
      %v2321 = vor.u32 %v2319, %v2317
      %v2323 = vsel %vm240, %v2318, 0
      %v2326 = vsel %vm240, %v2321, 0
      %2328 = vmatprep.subr.bf16.mxu0 0
      %2329 = vmatpush1.bf16.msra.mxu0 %v2254
      %2330 = vmatprep.subr.bf16.mxu0 0
      %2331 = vmatpush1.bf16.msra.mxu0 0
      %2332 = vmatprep.subr.bf16.mxu0 0
      %2333 = vmatpush1.bf16.msra.mxu0 0
      %2334 = vmatprep.subr.bf16.mxu0 0
      %2335 = vmatpush1.bf16.msra.mxu0 0
      %2336 = vmatprep.subr.bf16.mxu0 0
      %2337 = vmatpush1.bf16.msra.mxu0 0
      %2338 = vmatprep.subr.bf16.mxu0 0
      %2339 = vmatpush1.bf16.msra.mxu0 0
      %2340 = vmatprep.subr.bf16.mxu0 0
      %2341 = vmatpush1.bf16.msra.mxu0 0
      %2342 = vmatprep.subr.bf16.mxu0 0
      %2343 = vmatpush1.bf16.msra.mxu0 0
      %2344 = vmatprep.subr.bf16.mxu0 0
      %2345 = vmatpush1.bf16.msra.mxu0 0
      %2346 = vmatprep.subr.bf16.mxu0 0
      %2347 = vmatpush1.bf16.msra.mxu0 0
      %2348 = vmatprep.subr.bf16.mxu0 0
      %2349 = vmatpush1.bf16.msra.mxu0 0
      %2350 = vmatprep.subr.bf16.mxu0 0
      %2351 = vmatpush1.bf16.msra.mxu0 0
      %2352 = vmatprep.subr.bf16.mxu0 0
      %2353 = vmatpush1.bf16.msra.mxu0 0
      %2354 = vmatprep.subr.bf16.mxu0 0
      %2355 = vmatpush1.bf16.msra.mxu0 0
      %2356 = vmatprep.subr.bf16.mxu0 0
      %2357 = vmatpush1.bf16.msra.mxu0 0
      %2358 = vmatprep.subr.bf16.mxu0 0
      %2359 = vmatpush1.bf16.msra.mxu0 0
      %2360 = vmatprep.mubr.bf16.mxu0 0
      %2361 = vmatmul.mubr.bf16.gmra.mrb[0].mxu0 %v2323
      %v2362 = vpop.f32.mrb[0].mxu0
      %v2363 = vadd.f32 0.0, %v2362
      %v2364 = vpop.f32.mrb[0].mxu0
      %v2365 = vpop.f32.mrb[0].mxu0
      %v2366 = vadd.f32 0.0, %v2365
      %v2367 = vpop.f32.mrb[0].mxu0
      %2368 = vmatprep.mubr.bf16.mxu0 0
      %2369 = vmatmul.mubr.bf16.gmra.mrb[0].mxu0 %v2326
      %v2370 = vpop.f32.mrb[0].mxu0
      %v2371 = vadd.f32 0.0, %v2370
      %v2372 = vpop.f32.mrb[0].mxu0
      %v2373 = vpop.f32.mrb[0].mxu0
      %v2374 = vadd.f32 0.0, %v2373
      %v2375 = vpop.f32.mrb[0].mxu0
      %2376 = vdwg.mxu0
      %v2377 = vadd.f32 %v2248, %v2363
      %v2378 = vadd.f32 %v2249, %v2366
      %v2379 = vadd.f32 %v2250, %v2371
      %v2380 = vadd.f32 %v2251, %v2374
      %v2381 = vld [vmem:[%s1 + $0x44] sm:$0xf]
      %v2383 = vsel %vm247, %v2381, 0
      %2385 = vmatprep.subr.bf16.mxu0 0
      %2386 = vmatpush1.bf16.msra.mxu0 %v2383
      %2387 = vmatprep.subr.bf16.mxu0 0
      %2388 = vmatpush1.bf16.msra.mxu0 0
      %2389 = vmatprep.subr.bf16.mxu0 0
      %2390 = vmatpush1.bf16.msra.mxu0 0
      %2391 = vmatprep.subr.bf16.mxu0 0
      %2392 = vmatpush1.bf16.msra.mxu0 0
      %2393 = vmatprep.subr.bf16.mxu0 0
      %2394 = vmatpush1.bf16.msra.mxu0 0
      %2395 = vmatprep.subr.bf16.mxu0 0
      %2396 = vmatpush1.bf16.msra.mxu0 0
      %2397 = vmatprep.subr.bf16.mxu0 0
      %2398 = vmatpush1.bf16.msra.mxu0 0
      %2399 = vmatprep.subr.bf16.mxu0 0
      %2400 = vmatpush1.bf16.msra.mxu0 0
      %2401 = vmatprep.subr.bf16.mxu0 0
      %2402 = vmatpush1.bf16.msra.mxu0 0
      %2403 = vmatprep.subr.bf16.mxu0 0
      %2404 = vmatpush1.bf16.msra.mxu0 0
      %2405 = vmatprep.subr.bf16.mxu0 0
      %2406 = vmatpush1.bf16.msra.mxu0 0
      %2407 = vmatprep.subr.bf16.mxu0 0
      %2408 = vmatpush1.bf16.msra.mxu0 0
      %2409 = vmatprep.subr.bf16.mxu0 0
      %2410 = vmatpush1.bf16.msra.mxu0 0
      %2411 = vmatprep.subr.bf16.mxu0 0
      %2412 = vmatpush1.bf16.msra.mxu0 0
      %2413 = vmatprep.subr.bf16.mxu0 0
      %2414 = vmatpush1.bf16.msra.mxu0 0
      %2415 = vmatprep.subr.bf16.mxu0 0
      %2416 = vmatpush1.bf16.msra.mxu0 0
      %2417 = vmatprep.mubr.bf16.mxu0 0
      %2418 = vmatmul.mubr.bf16.gmra.mrb[0].mxu0 %v1822
      %v2419 = vpop.f32.mrb[0].mxu0
      %v2420 = vadd.f32 0.0, %v2419
      %v2421 = vpop.f32.mrb[0].mxu0
      %v2422 = vpop.f32.mrb[0].mxu0
      %v2423 = vadd.f32 0.0, %v2422
      %v2424 = vpop.f32.mrb[0].mxu0
      %2425 = vmatprep.mubr.bf16.mxu0 0
      %2426 = vmatmul.mubr.bf16.gmra.mrb[0].mxu0 %v1825
      %v2427 = vpop.f32.mrb[0].mxu0
      %v2428 = vadd.f32 0.0, %v2427
      %v2429 = vpop.f32.mrb[0].mxu0
      %v2430 = vpop.f32.mrb[0].mxu0
      %v2431 = vadd.f32 0.0, %v2430
      %v2432 = vpop.f32.mrb[0].mxu0
      %2433 = vdwg.mxu0
      %v2434 = vadd.f32 %v2305, %v2420
      %v2435 = vadd.f32 %v2306, %v2423
      %v2436 = vadd.f32 %v2307, %v2428
      %v2437 = vadd.f32 %v2308, %v2431
      %v2440 = vrot.slane %v2135, 1
      %v2441 = vrot.slane %v2136, 1
      %v2442 = vsel %vm482, %v2440, %v2441
      %v2444 = vsel %vm240, %v2442, 0
      %v2447 = vsel %vm240, %v2441, 0
      %2449 = vmatprep.subr.bf16.mxu0 0
      %2450 = vmatpush1.bf16.msra.mxu0 %v2383
      %2451 = vmatprep.subr.bf16.mxu0 0
      %2452 = vmatpush1.bf16.msra.mxu0 0
      %2453 = vmatprep.subr.bf16.mxu0 0
      %2454 = vmatpush1.bf16.msra.mxu0 0
      %2455 = vmatprep.subr.bf16.mxu0 0
      %2456 = vmatpush1.bf16.msra.mxu0 0
      %2457 = vmatprep.subr.bf16.mxu0 0
      %2458 = vmatpush1.bf16.msra.mxu0 0
      %2459 = vmatprep.subr.bf16.mxu0 0
      %2460 = vmatpush1.bf16.msra.mxu0 0
      %2461 = vmatprep.subr.bf16.mxu0 0
      %2462 = vmatpush1.bf16.msra.mxu0 0
      %2463 = vmatprep.subr.bf16.mxu0 0
      %2464 = vmatpush1.bf16.msra.mxu0 0
      %2465 = vmatprep.subr.bf16.mxu0 0
      %2466 = vmatpush1.bf16.msra.mxu0 0
      %2467 = vmatprep.subr.bf16.mxu0 0
      %2468 = vmatpush1.bf16.msra.mxu0 0
      %2469 = vmatprep.subr.bf16.mxu0 0
      %2470 = vmatpush1.bf16.msra.mxu0 0
      %2471 = vmatprep.subr.bf16.mxu0 0
      %2472 = vmatpush1.bf16.msra.mxu0 0
      %2473 = vmatprep.subr.bf16.mxu0 0
      %2474 = vmatpush1.bf16.msra.mxu0 0
      %2475 = vmatprep.subr.bf16.mxu0 0
      %2476 = vmatpush1.bf16.msra.mxu0 0
      %2477 = vmatprep.subr.bf16.mxu0 0
      %2478 = vmatpush1.bf16.msra.mxu0 0
      %2479 = vmatprep.subr.bf16.mxu0 0
      %2480 = vmatpush1.bf16.msra.mxu0 0
      %2481 = vmatprep.mubr.bf16.mxu0 0
      %2482 = vmatmul.mubr.bf16.gmra.mrb[0].mxu0 %v2444
      %v2483 = vpop.f32.mrb[0].mxu0
      %v2484 = vadd.f32 0.0, %v2483
      %v2485 = vpop.f32.mrb[0].mxu0
      %v2486 = vpop.f32.mrb[0].mxu0
      %v2487 = vadd.f32 0.0, %v2486
      %v2488 = vpop.f32.mrb[0].mxu0
      %2489 = vmatprep.mubr.bf16.mxu0 0
      %2490 = vmatmul.mubr.bf16.gmra.mrb[0].mxu0 %v2447
      %v2491 = vpop.f32.mrb[0].mxu0
      %v2492 = vadd.f32 0.0, %v2491
      %v2493 = vpop.f32.mrb[0].mxu0
      %v2494 = vpop.f32.mrb[0].mxu0
      %v2495 = vadd.f32 0.0, %v2494
      %v2496 = vpop.f32.mrb[0].mxu0
      %2497 = vdwg.mxu0
      %v2498 = vadd.f32 %v2377, %v2484
      %v2499 = vadd.f32 %v2378, %v2487
      %v2500 = vadd.f32 %v2379, %v2492
      %v2501 = vadd.f32 %v2380, %v2495
      %v2502 = vld [vmem:[%s1 + $0x48] sm:$0xf]
      %v2504 = vsel %vm247, %v2502, 0
      %2506 = vmatprep.subr.bf16.mxu0 0
      %2507 = vmatpush1.bf16.msra.mxu0 %v2504
      %2508 = vmatprep.subr.bf16.mxu0 0
      %2509 = vmatpush1.bf16.msra.mxu0 0
      %2510 = vmatprep.subr.bf16.mxu0 0
      %2511 = vmatpush1.bf16.msra.mxu0 0
      %2512 = vmatprep.subr.bf16.mxu0 0
      %2513 = vmatpush1.bf16.msra.mxu0 0
      %2514 = vmatprep.subr.bf16.mxu0 0
      %2515 = vmatpush1.bf16.msra.mxu0 0
      %2516 = vmatprep.subr.bf16.mxu0 0
      %2517 = vmatpush1.bf16.msra.mxu0 0
      %2518 = vmatprep.subr.bf16.mxu0 0
      %2519 = vmatpush1.bf16.msra.mxu0 0
      %2520 = vmatprep.subr.bf16.mxu0 0
      %2521 = vmatpush1.bf16.msra.mxu0 0
      %2522 = vmatprep.subr.bf16.mxu0 0
      %2523 = vmatpush1.bf16.msra.mxu0 0
      %2524 = vmatprep.subr.bf16.mxu0 0
      %2525 = vmatpush1.bf16.msra.mxu0 0
      %2526 = vmatprep.subr.bf16.mxu0 0
      %2527 = vmatpush1.bf16.msra.mxu0 0
      %2528 = vmatprep.subr.bf16.mxu0 0
      %2529 = vmatpush1.bf16.msra.mxu0 0
      %2530 = vmatprep.subr.bf16.mxu0 0
      %2531 = vmatpush1.bf16.msra.mxu0 0
      %2532 = vmatprep.subr.bf16.mxu0 0
      %2533 = vmatpush1.bf16.msra.mxu0 0
      %2534 = vmatprep.subr.bf16.mxu0 0
      %2535 = vmatpush1.bf16.msra.mxu0 0
      %2536 = vmatprep.subr.bf16.mxu0 0
      %2537 = vmatpush1.bf16.msra.mxu0 0
      %2538 = vmatprep.mubr.bf16.mxu0 0
      %2539 = vmatmul.mubr.bf16.gmra.mrb[0].mxu0 %v1945
      %v2540 = vpop.f32.mrb[0].mxu0
      %v2541 = vadd.f32 0.0, %v2540
      %v2542 = vpop.f32.mrb[0].mxu0
      %v2543 = vpop.f32.mrb[0].mxu0
      %v2544 = vadd.f32 0.0, %v2543
      %v2545 = vpop.f32.mrb[0].mxu0
      %2546 = vmatprep.mubr.bf16.mxu0 0
      %2547 = vmatmul.mubr.bf16.gmra.mrb[0].mxu0 %v1948
      %v2548 = vpop.f32.mrb[0].mxu0
      %v2549 = vadd.f32 0.0, %v2548
      %v2550 = vpop.f32.mrb[0].mxu0
      %v2551 = vpop.f32.mrb[0].mxu0
      %v2552 = vadd.f32 0.0, %v2551
      %v2553 = vpop.f32.mrb[0].mxu0
      %2554 = vdwg.mxu0
      %v2555 = vadd.f32 %v2434, %v2541
      %v2556 = vadd.f32 %v2435, %v2544
      %v2557 = vadd.f32 %v2436, %v2549
      %v2558 = vadd.f32 %v2437, %v2552
      %v2559 = vrot.slane %v2309, 1
      %v2560 = vrot.slane %v2311, 2
      %v2561 = vor.u32 %v2559, %v2560
      %v2562 = vrot.slane %v2319, 1
      %v2563 = vrot.slane %v2315, 2
      %v2564 = vor.u32 %v2562, %v2563
      %v2565 = vsel %vm613, %v2561, %v2564
      %v2567 = vsel %vm240, %v2565, 0
      %v2570 = vsel %vm240, %v2564, 0
      %2572 = vmatprep.subr.bf16.mxu0 0
      %2573 = vmatpush1.bf16.msra.mxu0 %v2504
      %2574 = vmatprep.subr.bf16.mxu0 0
      %2575 = vmatpush1.bf16.msra.mxu0 0
      %2576 = vmatprep.subr.bf16.mxu0 0
      %2577 = vmatpush1.bf16.msra.mxu0 0
      %2578 = vmatprep.subr.bf16.mxu0 0
      %2579 = vmatpush1.bf16.msra.mxu0 0
      %2580 = vmatprep.subr.bf16.mxu0 0
      %2581 = vmatpush1.bf16.msra.mxu0 0
      %2582 = vmatprep.subr.bf16.mxu0 0
      %2583 = vmatpush1.bf16.msra.mxu0 0
      %2584 = vmatprep.subr.bf16.mxu0 0
      %2585 = vmatpush1.bf16.msra.mxu0 0
      %2586 = vmatprep.subr.bf16.mxu0 0
      %2587 = vmatpush1.bf16.msra.mxu0 0
      %2588 = vmatprep.subr.bf16.mxu0 0
      %2589 = vmatpush1.bf16.msra.mxu0 0
      %2590 = vmatprep.subr.bf16.mxu0 0
      %2591 = vmatpush1.bf16.msra.mxu0 0
      %2592 = vmatprep.subr.bf16.mxu0 0
      %2593 = vmatpush1.bf16.msra.mxu0 0
      %2594 = vmatprep.subr.bf16.mxu0 0
      %2595 = vmatpush1.bf16.msra.mxu0 0
      %2596 = vmatprep.subr.bf16.mxu0 0
      %2597 = vmatpush1.bf16.msra.mxu0 0
      %2598 = vmatprep.subr.bf16.mxu0 0
      %2599 = vmatpush1.bf16.msra.mxu0 0
      %2600 = vmatprep.subr.bf16.mxu0 0
      %2601 = vmatpush1.bf16.msra.mxu0 0
      %2602 = vmatprep.subr.bf16.mxu0 0
      %2603 = vmatpush1.bf16.msra.mxu0 0
      %2604 = vmatprep.mubr.bf16.mxu0 0
      %2605 = vmatmul.mubr.bf16.gmra.mrb[0].mxu0 %v2567
      %v2606 = vpop.f32.mrb[0].mxu0
      %v2607 = vadd.f32 0.0, %v2606
      %v2608 = vpop.f32.mrb[0].mxu0
      %v2609 = vpop.f32.mrb[0].mxu0
      %v2610 = vadd.f32 0.0, %v2609
      %v2611 = vpop.f32.mrb[0].mxu0
      %2612 = vmatprep.mubr.bf16.mxu0 0
      %2613 = vmatmul.mubr.bf16.gmra.mrb[0].mxu0 %v2570
      %v2614 = vpop.f32.mrb[0].mxu0
      %v2615 = vadd.f32 0.0, %v2614
      %v2616 = vpop.f32.mrb[0].mxu0
      %v2617 = vpop.f32.mrb[0].mxu0
      %v2618 = vadd.f32 0.0, %v2617
      %v2619 = vpop.f32.mrb[0].mxu0
      %2620 = vdwg.mxu0
      %v2621 = vadd.f32 %v2498, %v2607
      %v2622 = vadd.f32 %v2499, %v2610
      %v2623 = vadd.f32 %v2500, %v2615
      %v2624 = vadd.f32 %v2501, %v2618
      %v2625 = vld [vmem:[%s1 + $0x4c] sm:$0xf]
      %v2627 = vsel %vm247, %v2625, 0
      %2629 = vmatprep.subr.bf16.mxu0 0
      %2630 = vmatpush1.bf16.msra.mxu0 %v2627
      %2631 = vmatprep.subr.bf16.mxu0 0
      %2632 = vmatpush1.bf16.msra.mxu0 0
      %2633 = vmatprep.subr.bf16.mxu0 0
      %2634 = vmatpush1.bf16.msra.mxu0 0
      %2635 = vmatprep.subr.bf16.mxu0 0
      %2636 = vmatpush1.bf16.msra.mxu0 0
      %2637 = vmatprep.subr.bf16.mxu0 0
      %2638 = vmatpush1.bf16.msra.mxu0 0
      %2639 = vmatprep.subr.bf16.mxu0 0
      %2640 = vmatpush1.bf16.msra.mxu0 0
      %2641 = vmatprep.subr.bf16.mxu0 0
      %2642 = vmatpush1.bf16.msra.mxu0 0
      %2643 = vmatprep.subr.bf16.mxu0 0
      %2644 = vmatpush1.bf16.msra.mxu0 0
      %2645 = vmatprep.subr.bf16.mxu0 0
      %2646 = vmatpush1.bf16.msra.mxu0 0
      %2647 = vmatprep.subr.bf16.mxu0 0
      %2648 = vmatpush1.bf16.msra.mxu0 0
      %2649 = vmatprep.subr.bf16.mxu0 0
      %2650 = vmatpush1.bf16.msra.mxu0 0
      %2651 = vmatprep.subr.bf16.mxu0 0
      %2652 = vmatpush1.bf16.msra.mxu0 0
      %2653 = vmatprep.subr.bf16.mxu0 0
      %2654 = vmatpush1.bf16.msra.mxu0 0
      %2655 = vmatprep.subr.bf16.mxu0 0
      %2656 = vmatpush1.bf16.msra.mxu0 0
      %2657 = vmatprep.subr.bf16.mxu0 0
      %2658 = vmatpush1.bf16.msra.mxu0 0
      %2659 = vmatprep.subr.bf16.mxu0 0
      %2660 = vmatpush1.bf16.msra.mxu0 0
      %2661 = vmatprep.mubr.bf16.mxu0 0
      %2662 = vmatmul.mubr.bf16.gmra.mrb[0].mxu0 %v2064
      %v2663 = vpop.f32.mrb[0].mxu0
      %v2664 = vadd.f32 0.0, %v2663
      %v2665 = vpop.f32.mrb[0].mxu0
      %v2666 = vpop.f32.mrb[0].mxu0
      %v2667 = vadd.f32 0.0, %v2666
      %v2668 = vpop.f32.mrb[0].mxu0
      %2669 = vmatprep.mubr.bf16.mxu0 0
      %2670 = vmatmul.mubr.bf16.gmra.mrb[0].mxu0 %v2067
      %v2671 = vpop.f32.mrb[0].mxu0
      %v2672 = vadd.f32 0.0, %v2671
      %v2673 = vpop.f32.mrb[0].mxu0
      %v2674 = vpop.f32.mrb[0].mxu0
      %v2675 = vadd.f32 0.0, %v2674
      %v2676 = vpop.f32.mrb[0].mxu0
      %2677 = vdwg.mxu0
      %v2678 = vadd.f32 %v2555, %v2664
      %v2679 = vadd.f32 %v2556, %v2667
      %v2680 = vadd.f32 %v2557, %v2672
      %v2681 = vadd.f32 %v2558, %v2675
      %v2682 = vrot.slane %v2135, 2
      %v2683 = vrot.slane %v2136, 2
      %v2684 = vsel %vm750, %v2682, %v2683
      %v2686 = vsel %vm240, %v2684, 0
      %v2689 = vsel %vm240, %v2683, 0
      %2691 = vmatprep.subr.bf16.mxu0 0
      %2692 = vmatpush1.bf16.msra.mxu0 %v2627
      %2693 = vmatprep.subr.bf16.mxu0 0
      %2694 = vmatpush1.bf16.msra.mxu0 0
      %2695 = vmatprep.subr.bf16.mxu0 0
      %2696 = vmatpush1.bf16.msra.mxu0 0
      %2697 = vmatprep.subr.bf16.mxu0 0
      %2698 = vmatpush1.bf16.msra.mxu0 0
      %2699 = vmatprep.subr.bf16.mxu0 0
      %2700 = vmatpush1.bf16.msra.mxu0 0
      %2701 = vmatprep.subr.bf16.mxu0 0
      %2702 = vmatpush1.bf16.msra.mxu0 0
      %2703 = vmatprep.subr.bf16.mxu0 0
      %2704 = vmatpush1.bf16.msra.mxu0 0
      %2705 = vmatprep.subr.bf16.mxu0 0
      %2706 = vmatpush1.bf16.msra.mxu0 0
      %2707 = vmatprep.subr.bf16.mxu0 0
      %2708 = vmatpush1.bf16.msra.mxu0 0
      %2709 = vmatprep.subr.bf16.mxu0 0
      %2710 = vmatpush1.bf16.msra.mxu0 0
      %2711 = vmatprep.subr.bf16.mxu0 0
      %2712 = vmatpush1.bf16.msra.mxu0 0
      %2713 = vmatprep.subr.bf16.mxu0 0
      %2714 = vmatpush1.bf16.msra.mxu0 0
      %2715 = vmatprep.subr.bf16.mxu0 0
      %2716 = vmatpush1.bf16.msra.mxu0 0
      %2717 = vmatprep.subr.bf16.mxu0 0
      %2718 = vmatpush1.bf16.msra.mxu0 0
      %2719 = vmatprep.subr.bf16.mxu0 0
      %2720 = vmatpush1.bf16.msra.mxu0 0
      %2721 = vmatprep.subr.bf16.mxu0 0
      %2722 = vmatpush1.bf16.msra.mxu0 0
      %2723 = vmatprep.mubr.bf16.mxu0 0
      %2724 = vmatmul.mubr.bf16.gmra.mrb[0].mxu0 %v2686
      %v2725 = vpop.f32.mrb[0].mxu0
      %v2726 = vadd.f32 0.0, %v2725
      %v2727 = vpop.f32.mrb[0].mxu0
      %v2728 = vpop.f32.mrb[0].mxu0
      %v2729 = vadd.f32 0.0, %v2728
      %v2730 = vpop.f32.mrb[0].mxu0
      %2731 = vmatprep.mubr.bf16.mxu0 0
      %2732 = vmatmul.mubr.bf16.gmra.mrb[0].mxu0 %v2689
      %v2733 = vpop.f32.mrb[0].mxu0
      %v2734 = vadd.f32 0.0, %v2733
      %v2735 = vpop.f32.mrb[0].mxu0
      %v2736 = vpop.f32.mrb[0].mxu0
      %v2737 = vadd.f32 0.0, %v2736
      %v2738 = vpop.f32.mrb[0].mxu0
      %2739 = vdwg.mxu0
      %v2740 = vadd.f32 %v2621, %v2726
      %v2741 = vadd.f32 %v2622, %v2729
      %v2742 = vadd.f32 %v2623, %v2734
      %v2743 = vadd.f32 %v2624, %v2737
      %s2744 = sadd.s32 %s194, 5
      %s2745 = smul.u32 %s2744, 4
      %s2746 = smul.addr %s2745, 4
      %s2747 = scalar_lea.vmem %s183, %s2746
      %v2748 = vld [vmem:[%s2747] sm:$0xf]
      %v2749 = vld [vmem:[%s2747 + $0x4] sm:$0xf]
      %v2750 = vld [vmem:[%s2747 + $0x8] sm:$0xf]
      %v2751 = vld [vmem:[%s2747 + $0xc] sm:$0xf]
      %v2752 = vunpack.c.l.bf16 %v2748
      %v2753 = vunpack.c.l.bf16 %v2749
      %v2754 = vunpack.c.l.bf16 %v2750
      %v2755 = vunpack.c.l.bf16 %v2751
      %v2756 = vld [vmem:[%s1 + $0x50] sm:$0xf]
      %v2757 = vpack.c.bf16 %v2753, %v2752
      %v2758 = vpack.c.bf16 %v2755, %v2754
      %v2760 = vsel %vm247, %v2756, 0
      %2762 = vmatprep.subr.bf16.mxu0 0
      %2763 = vmatpush1.bf16.msra.mxu0 %v2760
      %2764 = vmatprep.subr.bf16.mxu0 0
      %2765 = vmatpush1.bf16.msra.mxu0 0
      %2766 = vmatprep.subr.bf16.mxu0 0
      %2767 = vmatpush1.bf16.msra.mxu0 0
      %2768 = vmatprep.subr.bf16.mxu0 0
      %2769 = vmatpush1.bf16.msra.mxu0 0
      %2770 = vmatprep.subr.bf16.mxu0 0
      %2771 = vmatpush1.bf16.msra.mxu0 0
      %2772 = vmatprep.subr.bf16.mxu0 0
      %2773 = vmatpush1.bf16.msra.mxu0 0
      %2774 = vmatprep.subr.bf16.mxu0 0
      %2775 = vmatpush1.bf16.msra.mxu0 0
      %2776 = vmatprep.subr.bf16.mxu0 0
      %2777 = vmatpush1.bf16.msra.mxu0 0
      %2778 = vmatprep.subr.bf16.mxu0 0
      %2779 = vmatpush1.bf16.msra.mxu0 0
      %2780 = vmatprep.subr.bf16.mxu0 0
      %2781 = vmatpush1.bf16.msra.mxu0 0
      %2782 = vmatprep.subr.bf16.mxu0 0
      %2783 = vmatpush1.bf16.msra.mxu0 0
      %2784 = vmatprep.subr.bf16.mxu0 0
      %2785 = vmatpush1.bf16.msra.mxu0 0
      %2786 = vmatprep.subr.bf16.mxu0 0
      %2787 = vmatpush1.bf16.msra.mxu0 0
      %2788 = vmatprep.subr.bf16.mxu0 0
      %2789 = vmatpush1.bf16.msra.mxu0 0
      %2790 = vmatprep.subr.bf16.mxu0 0
      %2791 = vmatpush1.bf16.msra.mxu0 0
      %2792 = vmatprep.subr.bf16.mxu0 0
      %2793 = vmatpush1.bf16.msra.mxu0 0
      %2794 = vmatprep.mubr.bf16.mxu0 0
      %2795 = vmatmul.mubr.bf16.gmra.mrb[0].mxu0 %v2194
      %v2796 = vpop.f32.mrb[0].mxu0
      %v2797 = vadd.f32 0.0, %v2796
      %v2798 = vpop.f32.mrb[0].mxu0
      %v2799 = vpop.f32.mrb[0].mxu0
      %v2800 = vadd.f32 0.0, %v2799
      %v2801 = vpop.f32.mrb[0].mxu0
      %2802 = vmatprep.mubr.bf16.mxu0 0
      %2803 = vmatmul.mubr.bf16.gmra.mrb[0].mxu0 %v2197
      %v2804 = vpop.f32.mrb[0].mxu0
      %v2805 = vadd.f32 0.0, %v2804
      %v2806 = vpop.f32.mrb[0].mxu0
      %v2807 = vpop.f32.mrb[0].mxu0
      %v2808 = vadd.f32 0.0, %v2807
      %v2809 = vpop.f32.mrb[0].mxu0
      %2810 = vdwg.mxu0
      %v2811 = vadd.f32 %v2678, %v2797
      %v2812 = vadd.f32 %v2679, %v2800
      %v2813 = vadd.f32 %v2680, %v2805
      %v2814 = vadd.f32 %v2681, %v2808
      %v2816 = vsel %vm240, %v2757, 0
      %v2819 = vsel %vm240, %v2758, 0
      %2821 = vmatprep.subr.bf16.mxu0 0
      %2822 = vmatpush1.bf16.msra.mxu0 %v2760
      %2823 = vmatprep.subr.bf16.mxu0 0
      %2824 = vmatpush1.bf16.msra.mxu0 0
      %2825 = vmatprep.subr.bf16.mxu0 0
      %2826 = vmatpush1.bf16.msra.mxu0 0
      %2827 = vmatprep.subr.bf16.mxu0 0
      %2828 = vmatpush1.bf16.msra.mxu0 0
      %2829 = vmatprep.subr.bf16.mxu0 0
      %2830 = vmatpush1.bf16.msra.mxu0 0
      %2831 = vmatprep.subr.bf16.mxu0 0
      %2832 = vmatpush1.bf16.msra.mxu0 0
      %2833 = vmatprep.subr.bf16.mxu0 0
      %2834 = vmatpush1.bf16.msra.mxu0 0
      %2835 = vmatprep.subr.bf16.mxu0 0
      %2836 = vmatpush1.bf16.msra.mxu0 0
      %2837 = vmatprep.subr.bf16.mxu0 0
      %2838 = vmatpush1.bf16.msra.mxu0 0
      %2839 = vmatprep.subr.bf16.mxu0 0
      %2840 = vmatpush1.bf16.msra.mxu0 0
      %2841 = vmatprep.subr.bf16.mxu0 0
      %2842 = vmatpush1.bf16.msra.mxu0 0
      %2843 = vmatprep.subr.bf16.mxu0 0
      %2844 = vmatpush1.bf16.msra.mxu0 0
      %2845 = vmatprep.subr.bf16.mxu0 0
      %2846 = vmatpush1.bf16.msra.mxu0 0
      %2847 = vmatprep.subr.bf16.mxu0 0
      %2848 = vmatpush1.bf16.msra.mxu0 0
      %2849 = vmatprep.subr.bf16.mxu0 0
      %2850 = vmatpush1.bf16.msra.mxu0 0
      %2851 = vmatprep.subr.bf16.mxu0 0
      %2852 = vmatpush1.bf16.msra.mxu0 0
      %2853 = vmatprep.mubr.bf16.mxu0 0
      %2854 = vmatmul.mubr.bf16.gmra.mrb[0].mxu0 %v2816
      %v2855 = vpop.f32.mrb[0].mxu0
      %v2856 = vadd.f32 0.0, %v2855
      %v2857 = vpop.f32.mrb[0].mxu0
      %v2858 = vpop.f32.mrb[0].mxu0
      %v2859 = vadd.f32 0.0, %v2858
      %v2860 = vpop.f32.mrb[0].mxu0
      %2861 = vmatprep.mubr.bf16.mxu0 0
      %2862 = vmatmul.mubr.bf16.gmra.mrb[0].mxu0 %v2819
      %v2863 = vpop.f32.mrb[0].mxu0
      %v2864 = vadd.f32 0.0, %v2863
      %v2865 = vpop.f32.mrb[0].mxu0
      %v2866 = vpop.f32.mrb[0].mxu0
      %v2867 = vadd.f32 0.0, %v2866
      %v2868 = vpop.f32.mrb[0].mxu0
      %2869 = vdwg.mxu0
      %v2870 = vadd.f32 %v2740, %v2856
      %v2871 = vadd.f32 %v2741, %v2859
      %v2872 = vadd.f32 %v2742, %v2864
      %v2873 = vadd.f32 %v2743, %v2867
      %v2874 = vld [vmem:[%s1 + $0x54] sm:$0xf]
      %v2876 = vsel %vm247, %v2874, 0
      %2878 = vmatprep.subr.bf16.mxu0 0
      %2879 = vmatpush1.bf16.msra.mxu0 %v2876
      %2880 = vmatprep.subr.bf16.mxu0 0
      %2881 = vmatpush1.bf16.msra.mxu0 0
      %2882 = vmatprep.subr.bf16.mxu0 0
      %2883 = vmatpush1.bf16.msra.mxu0 0
      %2884 = vmatprep.subr.bf16.mxu0 0
      %2885 = vmatpush1.bf16.msra.mxu0 0
      %2886 = vmatprep.subr.bf16.mxu0 0
      %2887 = vmatpush1.bf16.msra.mxu0 0
      %2888 = vmatprep.subr.bf16.mxu0 0
      %2889 = vmatpush1.bf16.msra.mxu0 0
      %2890 = vmatprep.subr.bf16.mxu0 0
      %2891 = vmatpush1.bf16.msra.mxu0 0
      %2892 = vmatprep.subr.bf16.mxu0 0
      %2893 = vmatpush1.bf16.msra.mxu0 0
      %2894 = vmatprep.subr.bf16.mxu0 0
      %2895 = vmatpush1.bf16.msra.mxu0 0
      %2896 = vmatprep.subr.bf16.mxu0 0
      %2897 = vmatpush1.bf16.msra.mxu0 0
      %2898 = vmatprep.subr.bf16.mxu0 0
      %2899 = vmatpush1.bf16.msra.mxu0 0
      %2900 = vmatprep.subr.bf16.mxu0 0
      %2901 = vmatpush1.bf16.msra.mxu0 0
      %2902 = vmatprep.subr.bf16.mxu0 0
      %2903 = vmatpush1.bf16.msra.mxu0 0
      %2904 = vmatprep.subr.bf16.mxu0 0
      %2905 = vmatpush1.bf16.msra.mxu0 0
      %2906 = vmatprep.subr.bf16.mxu0 0
      %2907 = vmatpush1.bf16.msra.mxu0 0
      %2908 = vmatprep.subr.bf16.mxu0 0
      %2909 = vmatpush1.bf16.msra.mxu0 0
      %2910 = vmatprep.mubr.bf16.mxu0 0
      %2911 = vmatmul.mubr.bf16.gmra.mrb[0].mxu0 %v2323
      %v2912 = vpop.f32.mrb[0].mxu0
      %v2913 = vadd.f32 0.0, %v2912
      %v2914 = vpop.f32.mrb[0].mxu0
      %v2915 = vpop.f32.mrb[0].mxu0
      %v2916 = vadd.f32 0.0, %v2915
      %v2917 = vpop.f32.mrb[0].mxu0
      %2918 = vmatprep.mubr.bf16.mxu0 0
      %2919 = vmatmul.mubr.bf16.gmra.mrb[0].mxu0 %v2326
      %v2920 = vpop.f32.mrb[0].mxu0
      %v2921 = vadd.f32 0.0, %v2920
      %v2922 = vpop.f32.mrb[0].mxu0
      %v2923 = vpop.f32.mrb[0].mxu0
      %v2924 = vadd.f32 0.0, %v2923
      %v2925 = vpop.f32.mrb[0].mxu0
      %2926 = vdwg.mxu0
      %v2927 = vadd.f32 %v2811, %v2913
      %v2928 = vadd.f32 %v2812, %v2916
      %v2929 = vadd.f32 %v2813, %v2921
      %v2930 = vadd.f32 %v2814, %v2924
      %v2931 = vshrl.u32 %v2757, 16
      %v2933 = vshll.u32 %v2757, 16
      %v2935 = vrot.slane %v2933, 1
      %v2936 = vor.u32 %v2931, %v2935
      %v2937 = vshll.u32 %v2758, 16
      %v2939 = vrot.slane %v2937, 1
      %v2940 = vsel %vm224, %v2936, %v2939
      %v2941 = vshrl.u32 %v2758, 16
      %v2943 = vor.u32 %v2941, %v2939
      %v2945 = vsel %vm240, %v2940, 0
      %v2948 = vsel %vm240, %v2943, 0
      %2950 = vmatprep.subr.bf16.mxu0 0
      %2951 = vmatpush1.bf16.msra.mxu0 %v2876
      %2952 = vmatprep.subr.bf16.mxu0 0
      %2953 = vmatpush1.bf16.msra.mxu0 0
      %2954 = vmatprep.subr.bf16.mxu0 0
      %2955 = vmatpush1.bf16.msra.mxu0 0
      %2956 = vmatprep.subr.bf16.mxu0 0
      %2957 = vmatpush1.bf16.msra.mxu0 0
      %2958 = vmatprep.subr.bf16.mxu0 0
      %2959 = vmatpush1.bf16.msra.mxu0 0
      %2960 = vmatprep.subr.bf16.mxu0 0
      %2961 = vmatpush1.bf16.msra.mxu0 0
      %2962 = vmatprep.subr.bf16.mxu0 0
      %2963 = vmatpush1.bf16.msra.mxu0 0
      %2964 = vmatprep.subr.bf16.mxu0 0
      %2965 = vmatpush1.bf16.msra.mxu0 0
      %2966 = vmatprep.subr.bf16.mxu0 0
      %2967 = vmatpush1.bf16.msra.mxu0 0
      %2968 = vmatprep.subr.bf16.mxu0 0
      %2969 = vmatpush1.bf16.msra.mxu0 0
      %2970 = vmatprep.subr.bf16.mxu0 0
      %2971 = vmatpush1.bf16.msra.mxu0 0
      %2972 = vmatprep.subr.bf16.mxu0 0
      %2973 = vmatpush1.bf16.msra.mxu0 0
      %2974 = vmatprep.subr.bf16.mxu0 0
      %2975 = vmatpush1.bf16.msra.mxu0 0
      %2976 = vmatprep.subr.bf16.mxu0 0
      %2977 = vmatpush1.bf16.msra.mxu0 0
      %2978 = vmatprep.subr.bf16.mxu0 0
      %2979 = vmatpush1.bf16.msra.mxu0 0
      %2980 = vmatprep.subr.bf16.mxu0 0
      %2981 = vmatpush1.bf16.msra.mxu0 0
      %2982 = vmatprep.mubr.bf16.mxu0 0
      %2983 = vmatmul.mubr.bf16.gmra.mrb[0].mxu0 %v2945
      %v2984 = vpop.f32.mrb[0].mxu0
      %v2985 = vadd.f32 0.0, %v2984
      %v2986 = vpop.f32.mrb[0].mxu0
      %v2987 = vpop.f32.mrb[0].mxu0
      %v2988 = vadd.f32 0.0, %v2987
      %v2989 = vpop.f32.mrb[0].mxu0
      %2990 = vmatprep.mubr.bf16.mxu0 0
      %2991 = vmatmul.mubr.bf16.gmra.mrb[0].mxu0 %v2948
      %v2992 = vpop.f32.mrb[0].mxu0
      %v2993 = vadd.f32 0.0, %v2992
      %v2994 = vpop.f32.mrb[0].mxu0
      %v2995 = vpop.f32.mrb[0].mxu0
      %v2996 = vadd.f32 0.0, %v2995
      %v2997 = vpop.f32.mrb[0].mxu0
      %2998 = vdwg.mxu0
      %v2999 = vadd.f32 %v2870, %v2985
      %v3000 = vadd.f32 %v2871, %v2988
      %v3001 = vadd.f32 %v2872, %v2993
      %v3002 = vadd.f32 %v2873, %v2996
      %v3003 = vld [vmem:[%s1 + $0x58] sm:$0xf]
      %v3005 = vsel %vm247, %v3003, 0
      %3007 = vmatprep.subr.bf16.mxu0 0
      %3008 = vmatpush1.bf16.msra.mxu0 %v3005
      %3009 = vmatprep.subr.bf16.mxu0 0
      %3010 = vmatpush1.bf16.msra.mxu0 0
      %3011 = vmatprep.subr.bf16.mxu0 0
      %3012 = vmatpush1.bf16.msra.mxu0 0
      %3013 = vmatprep.subr.bf16.mxu0 0
      %3014 = vmatpush1.bf16.msra.mxu0 0
      %3015 = vmatprep.subr.bf16.mxu0 0
      %3016 = vmatpush1.bf16.msra.mxu0 0
      %3017 = vmatprep.subr.bf16.mxu0 0
      %3018 = vmatpush1.bf16.msra.mxu0 0
      %3019 = vmatprep.subr.bf16.mxu0 0
      %3020 = vmatpush1.bf16.msra.mxu0 0
      %3021 = vmatprep.subr.bf16.mxu0 0
      %3022 = vmatpush1.bf16.msra.mxu0 0
      %3023 = vmatprep.subr.bf16.mxu0 0
      %3024 = vmatpush1.bf16.msra.mxu0 0
      %3025 = vmatprep.subr.bf16.mxu0 0
      %3026 = vmatpush1.bf16.msra.mxu0 0
      %3027 = vmatprep.subr.bf16.mxu0 0
      %3028 = vmatpush1.bf16.msra.mxu0 0
      %3029 = vmatprep.subr.bf16.mxu0 0
      %3030 = vmatpush1.bf16.msra.mxu0 0
      %3031 = vmatprep.subr.bf16.mxu0 0
      %3032 = vmatpush1.bf16.msra.mxu0 0
      %3033 = vmatprep.subr.bf16.mxu0 0
      %3034 = vmatpush1.bf16.msra.mxu0 0
      %3035 = vmatprep.subr.bf16.mxu0 0
      %3036 = vmatpush1.bf16.msra.mxu0 0
      %3037 = vmatprep.subr.bf16.mxu0 0
      %3038 = vmatpush1.bf16.msra.mxu0 0
      %3039 = vmatprep.mubr.bf16.mxu0 0
      %3040 = vmatmul.mubr.bf16.gmra.mrb[0].mxu0 %v2444
      %v3041 = vpop.f32.mrb[0].mxu0
      %v3042 = vadd.f32 0.0, %v3041
      %v3043 = vpop.f32.mrb[0].mxu0
      %v3044 = vpop.f32.mrb[0].mxu0
      %v3045 = vadd.f32 0.0, %v3044
      %v3046 = vpop.f32.mrb[0].mxu0
      %3047 = vmatprep.mubr.bf16.mxu0 0
      %3048 = vmatmul.mubr.bf16.gmra.mrb[0].mxu0 %v2447
      %v3049 = vpop.f32.mrb[0].mxu0
      %v3050 = vadd.f32 0.0, %v3049
      %v3051 = vpop.f32.mrb[0].mxu0
      %v3052 = vpop.f32.mrb[0].mxu0
      %v3053 = vadd.f32 0.0, %v3052
      %v3054 = vpop.f32.mrb[0].mxu0
      %3055 = vdwg.mxu0
      %v3056 = vadd.f32 %v2927, %v3042
      %v3057 = vadd.f32 %v2928, %v3045
      %v3058 = vadd.f32 %v2929, %v3050
      %v3059 = vadd.f32 %v2930, %v3053
      %v3062 = vrot.slane %v2757, 1
      %v3063 = vrot.slane %v2758, 1
      %v3064 = vsel %vm482, %v3062, %v3063
      %v3066 = vsel %vm240, %v3064, 0
      %v3069 = vsel %vm240, %v3063, 0
      %3071 = vmatprep.subr.bf16.mxu0 0
      %3072 = vmatpush1.bf16.msra.mxu0 %v3005
      %3073 = vmatprep.subr.bf16.mxu0 0
      %3074 = vmatpush1.bf16.msra.mxu0 0
      %3075 = vmatprep.subr.bf16.mxu0 0
      %3076 = vmatpush1.bf16.msra.mxu0 0
      %3077 = vmatprep.subr.bf16.mxu0 0
      %3078 = vmatpush1.bf16.msra.mxu0 0
      %3079 = vmatprep.subr.bf16.mxu0 0
      %3080 = vmatpush1.bf16.msra.mxu0 0
      %3081 = vmatprep.subr.bf16.mxu0 0
      %3082 = vmatpush1.bf16.msra.mxu0 0
      %3083 = vmatprep.subr.bf16.mxu0 0
      %3084 = vmatpush1.bf16.msra.mxu0 0
      %3085 = vmatprep.subr.bf16.mxu0 0
      %3086 = vmatpush1.bf16.msra.mxu0 0
      %3087 = vmatprep.subr.bf16.mxu0 0
      %3088 = vmatpush1.bf16.msra.mxu0 0
      %3089 = vmatprep.subr.bf16.mxu0 0
      %3090 = vmatpush1.bf16.msra.mxu0 0
      %3091 = vmatprep.subr.bf16.mxu0 0
      %3092 = vmatpush1.bf16.msra.mxu0 0
      %3093 = vmatprep.subr.bf16.mxu0 0
      %3094 = vmatpush1.bf16.msra.mxu0 0
      %3095 = vmatprep.subr.bf16.mxu0 0
      %3096 = vmatpush1.bf16.msra.mxu0 0
      %3097 = vmatprep.subr.bf16.mxu0 0
      %3098 = vmatpush1.bf16.msra.mxu0 0
      %3099 = vmatprep.subr.bf16.mxu0 0
      %3100 = vmatpush1.bf16.msra.mxu0 0
      %3101 = vmatprep.subr.bf16.mxu0 0
      %3102 = vmatpush1.bf16.msra.mxu0 0
      %3103 = vmatprep.mubr.bf16.mxu0 0
      %3104 = vmatmul.mubr.bf16.gmra.mrb[0].mxu0 %v3066
      %v3105 = vpop.f32.mrb[0].mxu0
      %v3106 = vadd.f32 0.0, %v3105
      %v3107 = vpop.f32.mrb[0].mxu0
      %v3108 = vpop.f32.mrb[0].mxu0
      %v3109 = vadd.f32 0.0, %v3108
      %v3110 = vpop.f32.mrb[0].mxu0
      %3111 = vmatprep.mubr.bf16.mxu0 0
      %3112 = vmatmul.mubr.bf16.gmra.mrb[0].mxu0 %v3069
      %v3113 = vpop.f32.mrb[0].mxu0
      %v3114 = vadd.f32 0.0, %v3113
      %v3115 = vpop.f32.mrb[0].mxu0
      %v3116 = vpop.f32.mrb[0].mxu0
      %v3117 = vadd.f32 0.0, %v3116
      %v3118 = vpop.f32.mrb[0].mxu0
      %3119 = vdwg.mxu0
      %v3120 = vadd.f32 %v2999, %v3106
      %v3121 = vadd.f32 %v3000, %v3109
      %v3122 = vadd.f32 %v3001, %v3114
      %v3123 = vadd.f32 %v3002, %v3117
      %v3124 = vld [vmem:[%s1 + $0x5c] sm:$0xf]
      %v3126 = vsel %vm247, %v3124, 0
      %3128 = vmatprep.subr.bf16.mxu0 0
      %3129 = vmatpush1.bf16.msra.mxu0 %v3126
      %3130 = vmatprep.subr.bf16.mxu0 0
      %3131 = vmatpush1.bf16.msra.mxu0 0
      %3132 = vmatprep.subr.bf16.mxu0 0
      %3133 = vmatpush1.bf16.msra.mxu0 0
      %3134 = vmatprep.subr.bf16.mxu0 0
      %3135 = vmatpush1.bf16.msra.mxu0 0
      %3136 = vmatprep.subr.bf16.mxu0 0
      %3137 = vmatpush1.bf16.msra.mxu0 0
      %3138 = vmatprep.subr.bf16.mxu0 0
      %3139 = vmatpush1.bf16.msra.mxu0 0
      %3140 = vmatprep.subr.bf16.mxu0 0
      %3141 = vmatpush1.bf16.msra.mxu0 0
      %3142 = vmatprep.subr.bf16.mxu0 0
      %3143 = vmatpush1.bf16.msra.mxu0 0
      %3144 = vmatprep.subr.bf16.mxu0 0
      %3145 = vmatpush1.bf16.msra.mxu0 0
      %3146 = vmatprep.subr.bf16.mxu0 0
      %3147 = vmatpush1.bf16.msra.mxu0 0
      %3148 = vmatprep.subr.bf16.mxu0 0
      %3149 = vmatpush1.bf16.msra.mxu0 0
      %3150 = vmatprep.subr.bf16.mxu0 0
      %3151 = vmatpush1.bf16.msra.mxu0 0
      %3152 = vmatprep.subr.bf16.mxu0 0
      %3153 = vmatpush1.bf16.msra.mxu0 0
      %3154 = vmatprep.subr.bf16.mxu0 0
      %3155 = vmatpush1.bf16.msra.mxu0 0
      %3156 = vmatprep.subr.bf16.mxu0 0
      %3157 = vmatpush1.bf16.msra.mxu0 0
      %3158 = vmatprep.subr.bf16.mxu0 0
      %3159 = vmatpush1.bf16.msra.mxu0 0
      %3160 = vmatprep.mubr.bf16.mxu0 0
      %3161 = vmatmul.mubr.bf16.gmra.mrb[0].mxu0 %v2567
      %v3162 = vpop.f32.mrb[0].mxu0
      %v3163 = vadd.f32 0.0, %v3162
      %v3164 = vpop.f32.mrb[0].mxu0
      %v3165 = vpop.f32.mrb[0].mxu0
      %v3166 = vadd.f32 0.0, %v3165
      %v3167 = vpop.f32.mrb[0].mxu0
      %3168 = vmatprep.mubr.bf16.mxu0 0
      %3169 = vmatmul.mubr.bf16.gmra.mrb[0].mxu0 %v2570
      %v3170 = vpop.f32.mrb[0].mxu0
      %v3171 = vadd.f32 0.0, %v3170
      %v3172 = vpop.f32.mrb[0].mxu0
      %v3173 = vpop.f32.mrb[0].mxu0
      %v3174 = vadd.f32 0.0, %v3173
      %v3175 = vpop.f32.mrb[0].mxu0
      %3176 = vdwg.mxu0
      %v3177 = vadd.f32 %v3056, %v3163
      %v3178 = vadd.f32 %v3057, %v3166
      %v3179 = vadd.f32 %v3058, %v3171
      %v3180 = vadd.f32 %v3059, %v3174
      %v3181 = vrot.slane %v2931, 1
      %v3182 = vrot.slane %v2933, 2
      %v3183 = vor.u32 %v3181, %v3182
      %v3184 = vrot.slane %v2941, 1
      %v3185 = vrot.slane %v2937, 2
      %v3186 = vor.u32 %v3184, %v3185
      %v3187 = vsel %vm613, %v3183, %v3186
      %v3189 = vsel %vm240, %v3187, 0
      %v3192 = vsel %vm240, %v3186, 0
      %3194 = vmatprep.subr.bf16.mxu0 0
      %3195 = vmatpush1.bf16.msra.mxu0 %v3126
      %3196 = vmatprep.subr.bf16.mxu0 0
      %3197 = vmatpush1.bf16.msra.mxu0 0
      %3198 = vmatprep.subr.bf16.mxu0 0
      %3199 = vmatpush1.bf16.msra.mxu0 0
      %3200 = vmatprep.subr.bf16.mxu0 0
      %3201 = vmatpush1.bf16.msra.mxu0 0
      %3202 = vmatprep.subr.bf16.mxu0 0
      %3203 = vmatpush1.bf16.msra.mxu0 0
      %3204 = vmatprep.subr.bf16.mxu0 0
      %3205 = vmatpush1.bf16.msra.mxu0 0
      %3206 = vmatprep.subr.bf16.mxu0 0
      %3207 = vmatpush1.bf16.msra.mxu0 0
      %3208 = vmatprep.subr.bf16.mxu0 0
      %3209 = vmatpush1.bf16.msra.mxu0 0
      %3210 = vmatprep.subr.bf16.mxu0 0
      %3211 = vmatpush1.bf16.msra.mxu0 0
      %3212 = vmatprep.subr.bf16.mxu0 0
      %3213 = vmatpush1.bf16.msra.mxu0 0
      %3214 = vmatprep.subr.bf16.mxu0 0
      %3215 = vmatpush1.bf16.msra.mxu0 0
      %3216 = vmatprep.subr.bf16.mxu0 0
      %3217 = vmatpush1.bf16.msra.mxu0 0
      %3218 = vmatprep.subr.bf16.mxu0 0
      %3219 = vmatpush1.bf16.msra.mxu0 0
      %3220 = vmatprep.subr.bf16.mxu0 0
      %3221 = vmatpush1.bf16.msra.mxu0 0
      %3222 = vmatprep.subr.bf16.mxu0 0
      %3223 = vmatpush1.bf16.msra.mxu0 0
      %3224 = vmatprep.subr.bf16.mxu0 0
      %3225 = vmatpush1.bf16.msra.mxu0 0
      %3226 = vmatprep.mubr.bf16.mxu0 0
      %3227 = vmatmul.mubr.bf16.gmra.mrb[0].mxu0 %v3189
      %v3228 = vpop.f32.mrb[0].mxu0
      %v3229 = vadd.f32 0.0, %v3228
      %v3230 = vpop.f32.mrb[0].mxu0
      %v3231 = vpop.f32.mrb[0].mxu0
      %v3232 = vadd.f32 0.0, %v3231
      %v3233 = vpop.f32.mrb[0].mxu0
      %3234 = vmatprep.mubr.bf16.mxu0 0
      %3235 = vmatmul.mubr.bf16.gmra.mrb[0].mxu0 %v3192
      %v3236 = vpop.f32.mrb[0].mxu0
      %v3237 = vadd.f32 0.0, %v3236
      %v3238 = vpop.f32.mrb[0].mxu0
      %v3239 = vpop.f32.mrb[0].mxu0
      %v3240 = vadd.f32 0.0, %v3239
      %v3241 = vpop.f32.mrb[0].mxu0
      %3242 = vdwg.mxu0
      %v3243 = vadd.f32 %v3120, %v3229
      %v3244 = vadd.f32 %v3121, %v3232
      %v3245 = vadd.f32 %v3122, %v3237
      %v3246 = vadd.f32 %v3123, %v3240
      %v3247 = vld [vmem:[%s1 + $0x60] sm:$0xf]
      %v3249 = vsel %vm247, %v3247, 0
      %3251 = vmatprep.subr.bf16.mxu0 0
      %3252 = vmatpush1.bf16.msra.mxu0 %v3249
      %3253 = vmatprep.subr.bf16.mxu0 0
      %3254 = vmatpush1.bf16.msra.mxu0 0
      %3255 = vmatprep.subr.bf16.mxu0 0
      %3256 = vmatpush1.bf16.msra.mxu0 0
      %3257 = vmatprep.subr.bf16.mxu0 0
      %3258 = vmatpush1.bf16.msra.mxu0 0
      %3259 = vmatprep.subr.bf16.mxu0 0
      %3260 = vmatpush1.bf16.msra.mxu0 0
      %3261 = vmatprep.subr.bf16.mxu0 0
      %3262 = vmatpush1.bf16.msra.mxu0 0
      %3263 = vmatprep.subr.bf16.mxu0 0
      %3264 = vmatpush1.bf16.msra.mxu0 0
      %3265 = vmatprep.subr.bf16.mxu0 0
      %3266 = vmatpush1.bf16.msra.mxu0 0
      %3267 = vmatprep.subr.bf16.mxu0 0
      %3268 = vmatpush1.bf16.msra.mxu0 0
      %3269 = vmatprep.subr.bf16.mxu0 0
      %3270 = vmatpush1.bf16.msra.mxu0 0
      %3271 = vmatprep.subr.bf16.mxu0 0
      %3272 = vmatpush1.bf16.msra.mxu0 0
      %3273 = vmatprep.subr.bf16.mxu0 0
      %3274 = vmatpush1.bf16.msra.mxu0 0
      %3275 = vmatprep.subr.bf16.mxu0 0
      %3276 = vmatpush1.bf16.msra.mxu0 0
      %3277 = vmatprep.subr.bf16.mxu0 0
      %3278 = vmatpush1.bf16.msra.mxu0 0
      %3279 = vmatprep.subr.bf16.mxu0 0
      %3280 = vmatpush1.bf16.msra.mxu0 0
      %3281 = vmatprep.subr.bf16.mxu0 0
      %3282 = vmatpush1.bf16.msra.mxu0 0
      %3283 = vmatprep.mubr.bf16.mxu0 0
      %3284 = vmatmul.mubr.bf16.gmra.mrb[0].mxu0 %v2686
      %v3285 = vpop.f32.mrb[0].mxu0
      %v3286 = vadd.f32 0.0, %v3285
      %v3287 = vpop.f32.mrb[0].mxu0
      %v3288 = vpop.f32.mrb[0].mxu0
      %v3289 = vadd.f32 0.0, %v3288
      %v3290 = vpop.f32.mrb[0].mxu0
      %3291 = vmatprep.mubr.bf16.mxu0 0
      %3292 = vmatmul.mubr.bf16.gmra.mrb[0].mxu0 %v2689
      %v3293 = vpop.f32.mrb[0].mxu0
      %v3294 = vadd.f32 0.0, %v3293
      %v3295 = vpop.f32.mrb[0].mxu0
      %v3296 = vpop.f32.mrb[0].mxu0
      %v3297 = vadd.f32 0.0, %v3296
      %v3298 = vpop.f32.mrb[0].mxu0
      %3299 = vdwg.mxu0
      %v3300 = vadd.f32 %v3177, %v3286
      %v3301 = vadd.f32 %v3178, %v3289
      %v3302 = vadd.f32 %v3179, %v3294
      %v3303 = vadd.f32 %v3180, %v3297
      %v3304 = vrot.slane %v2757, 2
      %v3305 = vrot.slane %v2758, 2
      %v3306 = vsel %vm750, %v3304, %v3305
      %v3308 = vsel %vm240, %v3306, 0
      %v3311 = vsel %vm240, %v3305, 0
      %3313 = vmatprep.subr.bf16.mxu0 0
      %3314 = vmatpush1.bf16.msra.mxu0 %v3249
      %3315 = vmatprep.subr.bf16.mxu0 0
      %3316 = vmatpush1.bf16.msra.mxu0 0
      %3317 = vmatprep.subr.bf16.mxu0 0
      %3318 = vmatpush1.bf16.msra.mxu0 0
      %3319 = vmatprep.subr.bf16.mxu0 0
      %3320 = vmatpush1.bf16.msra.mxu0 0
      %3321 = vmatprep.subr.bf16.mxu0 0
      %3322 = vmatpush1.bf16.msra.mxu0 0
      %3323 = vmatprep.subr.bf16.mxu0 0
      %3324 = vmatpush1.bf16.msra.mxu0 0
      %3325 = vmatprep.subr.bf16.mxu0 0
      %3326 = vmatpush1.bf16.msra.mxu0 0
      %3327 = vmatprep.subr.bf16.mxu0 0
      %3328 = vmatpush1.bf16.msra.mxu0 0
      %3329 = vmatprep.subr.bf16.mxu0 0
      %3330 = vmatpush1.bf16.msra.mxu0 0
      %3331 = vmatprep.subr.bf16.mxu0 0
      %3332 = vmatpush1.bf16.msra.mxu0 0
      %3333 = vmatprep.subr.bf16.mxu0 0
      %3334 = vmatpush1.bf16.msra.mxu0 0
      %3335 = vmatprep.subr.bf16.mxu0 0
      %3336 = vmatpush1.bf16.msra.mxu0 0
      %3337 = vmatprep.subr.bf16.mxu0 0
      %3338 = vmatpush1.bf16.msra.mxu0 0
      %3339 = vmatprep.subr.bf16.mxu0 0
      %3340 = vmatpush1.bf16.msra.mxu0 0
      %3341 = vmatprep.subr.bf16.mxu0 0
      %3342 = vmatpush1.bf16.msra.mxu0 0
      %3343 = vmatprep.subr.bf16.mxu0 0
      %3344 = vmatpush1.bf16.msra.mxu0 0
      %3345 = vmatprep.mubr.bf16.mxu0 0
      %3346 = vmatmul.mubr.bf16.gmra.mrb[0].mxu0 %v3308
      %v3347 = vpop.f32.mrb[0].mxu0
      %v3348 = vadd.f32 0.0, %v3347
      %v3349 = vpop.f32.mrb[0].mxu0
      %v3350 = vpop.f32.mrb[0].mxu0
      %v3351 = vadd.f32 0.0, %v3350
      %v3352 = vpop.f32.mrb[0].mxu0
      %3353 = vmatprep.mubr.bf16.mxu0 0
      %3354 = vmatmul.mubr.bf16.gmra.mrb[0].mxu0 %v3311
      %v3355 = vpop.f32.mrb[0].mxu0
      %v3356 = vadd.f32 0.0, %v3355
      %v3357 = vpop.f32.mrb[0].mxu0
      %v3358 = vpop.f32.mrb[0].mxu0
      %v3359 = vadd.f32 0.0, %v3358
      %v3360 = vpop.f32.mrb[0].mxu0
      %3361 = vdwg.mxu0
      %v3362 = vadd.f32 %v3243, %v3348
      %v3363 = vadd.f32 %v3244, %v3351
      %v3364 = vadd.f32 %v3245, %v3356
      %v3365 = vadd.f32 %v3246, %v3359
      %v3366 = vld [vmem:[%s2] sm:$0x1]
      %v3368 = vlaneseq
      %v3369 = vshrl.u32 %v3368, 7
      %v3370 = vsub.s32 0, %v3369
      %v3371 = vrot.slane %v3366, %v3370
      %v3373 = vadd.f32 %v3300, %v3371
      %v3374 = vadd.f32 %v3301, %v3371
      %v3375 = vadd.f32 %v3302, %v3371
      %v3376 = vadd.f32 %v3303, %v3371
      %v3377 = vmax.f32 %v3373, 0.0
      %v3378 = vmax.f32 %v3374, 0.0
      %v3379 = vmax.f32 %v3375, 0.0
      %v3380 = vmax.f32 %v3376, 0.0
      %v3381 = vadd.f32 %v3362, %v3371
      %v3382 = vadd.f32 %v3363, %v3371
      %v3383 = vadd.f32 %v3364, %v3371
      %v3384 = vadd.f32 %v3365, %v3371
      %v3385 = vmax.f32 %v3381, 0.0
      %v3386 = vmax.f32 %v3382, 0.0
      %v3387 = vmax.f32 %v3383, 0.0
      %v3388 = vmax.f32 %v3384, 0.0
      %v3389 = vmax.f32 %v3377, %v3385
      %v3390 = vmax.f32 %v3378, %v3386
      %v3391 = vmax.f32 %v3379, %v3387
      %v3392 = vmax.f32 %v3380, %v3388
      %v3393 = vlaneseq
      %v3394 = vshrl.u32 %v3393, 7
      %v3395 = vadd.s32 %v3394, 8
      %v3396 = vlaneseq
      %v3397 = vand.u32 %v3396, 127
      %v3398 = vmul.u32 %v3394, 2
      %v3399 = vmul.u32 %v3395, 2
      %vm3400 = vcmp.eq.s32.totalorder %v3397, %v3398
      %vm3401 = vcmp.eq.s32.totalorder %v3397, %v3399
      %v3402 = vsel %vm3400, 1.0, 0.0
      %v3403 = vsel %vm3401, 1.0, 0.0
      %v3404 = vadd.s32 %v3398, 1
      %v3405 = vadd.s32 %v3399, 1
      %vm3406 = vcmp.eq.s32.totalorder %v3397, %v3404
      %vm3407 = vcmp.eq.s32.totalorder %v3397, %v3405
      %v3408 = vsel %vm3406, 1.0, 0.0
      %v3409 = vsel %vm3407, 1.0, 0.0
      %vm3410 = vcmask 228352
      %v3412 = vsel %vm3410, %v3402, 0
      %v3415 = vsel %vm3410, %v3403, 0
      %v3418 = vsel %vm247, %v3392, 0
      %3420 = vmatprep.subr.mxu0 0.0
      %3421 = vmatpush1.msra.mxu0 %v3389
      %3422 = vmatprep.subr.mxu0 0.0
      %3423 = vmatpush1.msra.mxu0 %v3390
      %3424 = vmatprep.subr.mxu0 0.0
      %3425 = vmatpush1.msra.mxu0 %v3391
      %3426 = vmatprep.subr.mxu0 0.0
      %3427 = vmatpush1.msra.mxu0 %v3418
      %3428 = vmatprep.subr.mxu0 0.0
      %3429 = vmatpush1.msra.mxu0 0.0
      %3430 = vmatprep.subr.mxu0 0.0
      %3431 = vmatpush1.msra.mxu0 0.0
      %3432 = vmatprep.subr.mxu0 0.0
      %3433 = vmatpush1.msra.mxu0 0.0
      %3434 = vmatprep.subr.mxu0 0.0
      %3435 = vmatpush1.msra.mxu0 0.0
      %3436 = vmatprep.subr.mxu0 0.0
      %3437 = vmatpush1.msra.mxu0 0.0
      %3438 = vmatprep.subr.mxu0 0.0
      %3439 = vmatpush1.msra.mxu0 0.0
      %3440 = vmatprep.subr.mxu0 0.0
      %3441 = vmatpush1.msra.mxu0 0.0
      %3442 = vmatprep.subr.mxu0 0.0
      %3443 = vmatpush1.msra.mxu0 0.0
      %3444 = vmatprep.subr.mxu0 0.0
      %3445 = vmatpush1.msra.mxu0 0.0
      %3446 = vmatprep.subr.mxu0 0.0
      %3447 = vmatpush1.msra.mxu0 0.0
      %3448 = vmatprep.subr.mxu0 0.0
      %3449 = vmatpush1.msra.mxu0 0.0
      %3450 = vmatprep.subr.mxu0 0.0
      %3451 = vmatpush1.msra.mxu0 0.0
      %3452 = vmatprep.subr.mxu0 0.0
      %3453 = vmatpush1.msra.mxu0 0.0
      %3454 = vmatprep.subr.mxu0 0.0
      %3455 = vmatpush1.msra.mxu0 0.0
      %3456 = vmatprep.subr.mxu0 0.0
      %3457 = vmatpush1.msra.mxu0 0.0
      %3458 = vmatprep.subr.mxu0 0.0
      %3459 = vmatpush1.msra.mxu0 0.0
      %3460 = vmatprep.subr.mxu0 0.0
      %3461 = vmatpush1.msra.mxu0 0.0
      %3462 = vmatprep.subr.mxu0 0.0
      %3463 = vmatpush1.msra.mxu0 0.0
      %3464 = vmatprep.subr.mxu0 0.0
      %3465 = vmatpush1.msra.mxu0 0.0
      %3466 = vmatprep.subr.mxu0 0.0
      %3467 = vmatpush1.msra.mxu0 0.0
      %3468 = vmatprep.subr.mxu0 0.0
      %3469 = vmatpush1.msra.mxu0 0.0
      %3470 = vmatprep.subr.mxu0 0.0
      %3471 = vmatpush1.msra.mxu0 0.0
      %3472 = vmatprep.subr.mxu0 0.0
      %3473 = vmatpush1.msra.mxu0 0.0
      %3474 = vmatprep.subr.mxu0 0.0
      %3475 = vmatpush1.msra.mxu0 0.0
      %3476 = vmatprep.subr.mxu0 0.0
      %3477 = vmatpush1.msra.mxu0 0.0
      %3478 = vmatprep.subr.mxu0 0.0
      %3479 = vmatpush1.msra.mxu0 0.0
      %3480 = vmatprep.subr.mxu0 0.0
      %3481 = vmatpush1.msra.mxu0 0.0
      %3482 = vmatprep.subr.mxu0 0.0
      %3483 = vmatpush1.msra.mxu0 0.0
      %3484 = vmatprep.mubr.f32.mxu0 0.0
      %3485 = vmatmul.mubr.f32.gmra.mrb[0].mxu0 %v3412
      %v3486 = vpop.f32.mrb[0].mxu0
      %v3487 = vadd.f32 0.0, %v3486
      %v3488 = vpop.f32.mrb[0].mxu0
      %3489 = vmatprep.mubr.f32.mxu0 0.0
      %3490 = vmatmul.mubr.f32.gmra.mrb[0].mxu0 %v3415
      %v3491 = vpop.f32.mrb[0].mxu0
      %v3492 = vadd.f32 0.0, %v3491
      %v3493 = vpop.f32.mrb[0].mxu0
      %3494 = vdwg.mxu0
      %v3496 = vsel %vm3410, %v3408, 0
      %v3499 = vsel %vm3410, %v3409, 0
      %3501 = vmatprep.subr.mxu0 0.0
      %3502 = vmatpush1.msra.mxu0 %v3389
      %3503 = vmatprep.subr.mxu0 0.0
      %3504 = vmatpush1.msra.mxu0 %v3390
      %3505 = vmatprep.subr.mxu0 0.0
      %3506 = vmatpush1.msra.mxu0 %v3391
      %3507 = vmatprep.subr.mxu0 0.0
      %3508 = vmatpush1.msra.mxu0 %v3418
      %3509 = vmatprep.subr.mxu0 0.0
      %3510 = vmatpush1.msra.mxu0 0.0
      %3511 = vmatprep.subr.mxu0 0.0
      %3512 = vmatpush1.msra.mxu0 0.0
      %3513 = vmatprep.subr.mxu0 0.0
      %3514 = vmatpush1.msra.mxu0 0.0
      %3515 = vmatprep.subr.mxu0 0.0
      %3516 = vmatpush1.msra.mxu0 0.0
      %3517 = vmatprep.subr.mxu0 0.0
      %3518 = vmatpush1.msra.mxu0 0.0
      %3519 = vmatprep.subr.mxu0 0.0
      %3520 = vmatpush1.msra.mxu0 0.0
      %3521 = vmatprep.subr.mxu0 0.0
      %3522 = vmatpush1.msra.mxu0 0.0
      %3523 = vmatprep.subr.mxu0 0.0
      %3524 = vmatpush1.msra.mxu0 0.0
      %3525 = vmatprep.subr.mxu0 0.0
      %3526 = vmatpush1.msra.mxu0 0.0
      %3527 = vmatprep.subr.mxu0 0.0
      %3528 = vmatpush1.msra.mxu0 0.0
      %3529 = vmatprep.subr.mxu0 0.0
      %3530 = vmatpush1.msra.mxu0 0.0
      %3531 = vmatprep.subr.mxu0 0.0
      %3532 = vmatpush1.msra.mxu0 0.0
      %3533 = vmatprep.subr.mxu0 0.0
      %3534 = vmatpush1.msra.mxu0 0.0
      %3535 = vmatprep.subr.mxu0 0.0
      %3536 = vmatpush1.msra.mxu0 0.0
      %3537 = vmatprep.subr.mxu0 0.0
      %3538 = vmatpush1.msra.mxu0 0.0
      %3539 = vmatprep.subr.mxu0 0.0
      %3540 = vmatpush1.msra.mxu0 0.0
      %3541 = vmatprep.subr.mxu0 0.0
      %3542 = vmatpush1.msra.mxu0 0.0
      %3543 = vmatprep.subr.mxu0 0.0
      %3544 = vmatpush1.msra.mxu0 0.0
      %3545 = vmatprep.subr.mxu0 0.0
      %3546 = vmatpush1.msra.mxu0 0.0
      %3547 = vmatprep.subr.mxu0 0.0
      %3548 = vmatpush1.msra.mxu0 0.0
      %3549 = vmatprep.subr.mxu0 0.0
      %3550 = vmatpush1.msra.mxu0 0.0
      %3551 = vmatprep.subr.mxu0 0.0
      %3552 = vmatpush1.msra.mxu0 0.0
      %3553 = vmatprep.subr.mxu0 0.0
      %3554 = vmatpush1.msra.mxu0 0.0
      %3555 = vmatprep.subr.mxu0 0.0
      %3556 = vmatpush1.msra.mxu0 0.0
      %3557 = vmatprep.subr.mxu0 0.0
      %3558 = vmatpush1.msra.mxu0 0.0
      %3559 = vmatprep.subr.mxu0 0.0
      %3560 = vmatpush1.msra.mxu0 0.0
      %3561 = vmatprep.subr.mxu0 0.0
      %3562 = vmatpush1.msra.mxu0 0.0
      %3563 = vmatprep.subr.mxu0 0.0
      %3564 = vmatpush1.msra.mxu0 0.0
      %3565 = vmatprep.mubr.f32.mxu0 0.0
      %3566 = vmatmul.mubr.f32.gmra.mrb[0].mxu0 %v3496
      %v3567 = vpop.f32.mrb[0].mxu0
      %v3568 = vadd.f32 0.0, %v3567
      %v3569 = vpop.f32.mrb[0].mxu0
      %3570 = vmatprep.mubr.f32.mxu0 0.0
      %3571 = vmatmul.mubr.f32.gmra.mrb[0].mxu0 %v3499
      %v3572 = vpop.f32.mrb[0].mxu0
      %v3573 = vadd.f32 0.0, %v3572
      %v3574 = vpop.f32.mrb[0].mxu0
      %3575 = vdwg.mxu0
      %v3576 = vmax.f32 %v3487, %v3568
      %v3577 = vmax.f32 %v3492, %v3573
      %v3578 = vpack.c.bf16 %v3577, %v3576
      %v3580 = vunpack.c.l.b16 %v3578
      %v3581 = vunpack.c.h.b16 %v3578
      %v3582 = vpack.c.b16 %v3580, %v3580
      %v3583 = vpack.c.b16 %v3581, %v3581
      %3586 = vst [vmem:[%s192] sm:$0xf] %v3582
      %3587 = vst [vmem:[%s192 + $0x4] sm:$0x7] %v3583
      %p3588 = scmp.lt.s32.totalorder %s18, 1
      %s3589 = scalar_select %p3588, %s18, 1
      %p3590 = scmp.lt.s32.totalorder %s19, 13
      %s3591 = scalar_select %p3590, %s19, 13
      %s3592 = smul.addr %s3591, 2
      %s3593 = smul.addr %s3589, 28
      %s3594 = sadd.s32 %s3592, %s3593
      %s3595 = smul.addr %s3594, 4
      %s3596 = scalar_lea.vmem %s3, %s3595
      // Predicated region
      $region33: #{lenet_forward.3} parent=31 // pred_check
        %p3597 = pneg %p114
      $region34: #{lenet_forward.3} parent=31 // pred_check_branch
        %3599 = sbr.rel (%p3597) target = $region36
      $region35: #{lenet_forward.3} parent=31 // pred_region
        _
      $region36: #{lenet_forward.3} parent=31 // pred_fallthru
        _
    $region32: #{lenet_forward.3} parent=5 // pred_fallthru
      _
    %p3600 = scmp.le.s32.totalorder 2, %s9
    // Predicated region
    $region37: #{lenet_forward.3} parent=5 // pred_check
      %p3601 = pneg %p3600
    $region38: #{lenet_forward.3} parent=5 // pred_check_branch
      %3603 = sbr.rel (%p3601) target = $region40
    $region39: #{lenet_forward.3} parent=5 // pred_region
      %s3604 = ssub.s32 %s9, 2
      // Predicated region
      $region41: #{lenet_forward.3} parent=39 // pred_check
        %p3605 = pneg %p120
      $region42: #{lenet_forward.3} parent=39 // pred_check_branch
        %3607 = sbr.rel (%p3605) target = $region44
      $region43: #{lenet_forward.3} parent=39 // pred_region
        %p3608 = scmp.lt.s32.totalorder %s20, 1
        %s3609 = scalar_select %p3608, %s20, 1
        %p3610 = scmp.lt.s32.totalorder %s21, 13
        %s3611 = scalar_select %p3610, %s21, 13
        %s3612 = smul.addr %s3611, 2
        %s3613 = smul.addr %s3609, 28
        %s3614 = sadd.s32 %s3612, %s3613
        %s3615 = smul.addr %s3614, 4
        %s3616 = scalar_lea.vmem %s3, %s3615
      $region44: #{lenet_forward.3} parent=39 // pred_fallthru
        _
    $region40: #{lenet_forward.3} parent=5 // pred_fallthru
      _
  $region6: #{lenet_forward.3} parent=0 // loop_footer
    %s13 = sadd.s32 1, %s9
  $region7: #{lenet_forward.3} parent=0 // loop_footer_branch
    %8 = sbr.rel target = $region3
  $region8: #{lenet_forward.3} parent=0 // loop_exit
    _

// kernel: lenet_forward.5
$region0: #{lenet_forward.5}
  #allocation0 [shape = 'u32[]', space=smem, size = 0x4, offset = 0x4, fixed_abs, tag = 'smem constant byte address 0x4 - core index']
  #allocation1 [shape = 'u32[144,128]{1,0:T(1,128)}', space=vmem, size = 0x12000, scoped, tag = 'internal scratch']
  %s0 = inlined_call_operand.vmem [shape: bf16[2,3200], index: 0, kind: input, shape index: {}]
  %s1 = inlined_call_operand.vmem [shape: bf16[3200,128], index: 1, kind: input, shape index: {}]
  %s2 = inlined_call_operand.vmem [shape: f32[1,128], index: 2, kind: input, shape index: {}]
  %s3 = inlined_call_operand.vmem [shape: bf16[128,128], index: 3, kind: input, shape index: {}]
  %s4 = inlined_call_operand.vmem [shape: f32[1,128], index: 4, kind: input, shape index: {}]
  %s5 = inlined_call_operand.vmem [shape: bf16[128,128], index: 5, kind: input, shape index: {}]
  %s6 = inlined_call_operand.vmem [shape: f32[1,128], index: 6, kind: input, shape index: {}]
  %s7 = inlined_call_operand.hbm [shape: f32[2,128], index: 7, kind: output, shape index: {}]
  %s8 = sld [smem:[#allocation0]]
  $region38: #{lenet_forward.5} parent=0
    _
  %s10 = ssub.s32 1, %s8
  %s11 = scalar_select 0, %s10, %s8
  $region1: #{lenet_forward.5} parent=0
    #allocation2 [shape = 'u8[1024]{0}', space=vmem, size = 0x400, scoped, tag = 'output window, operand 0, single buffered']
    #allocation3 [shape = 's32[1]{0}', space=sflag, size = 0x4, scoped, tag = 'scoped memory for lenet_forward.5']
    %12 = vsyncpa [#allocation3], 0
    // Predicated region
    $region2: #{lenet_forward.5} parent=1 // pred_check
      _
    $region3: #{lenet_forward.5} parent=1 // pred_check_branch
      %14 = sbr.rel (0) target = $region5
    $region4: #{lenet_forward.5} parent=1 // pred_region
      _
    $region5: #{lenet_forward.5} parent=1 // pred_fallthru
      _
    // Predicated region
    $region6: #{lenet_forward.5} parent=1 // pred_check
      _
    $region7: #{lenet_forward.5} parent=1 // pred_check_branch
      %16 = sbr.rel (0) target = $region9
    $region8: #{lenet_forward.5} parent=1 // pred_region
      _
    $region9: #{lenet_forward.5} parent=1 // pred_fallthru
      _
    // Predicated region
    $region10: #{lenet_forward.5} parent=1 // pred_check
      _
    $region11: #{lenet_forward.5} parent=1 // pred_check_branch
      %18 = sbr.rel (0) target = $region13
    $region12: #{lenet_forward.5} parent=1 // pred_region
      _
    $region13: #{lenet_forward.5} parent=1 // pred_fallthru
      _
    // Predicated region
    $region14: #{lenet_forward.5} parent=1 // pred_check
      _
    $region15: #{lenet_forward.5} parent=1 // pred_check_branch
      %20 = sbr.rel (0) target = $region17
    $region16: #{lenet_forward.5} parent=1 // pred_region
      _
    $region17: #{lenet_forward.5} parent=1 // pred_fallthru
      _
    // Predicated region
    $region18: #{lenet_forward.5} parent=1 // pred_check
      _
    $region19: #{lenet_forward.5} parent=1 // pred_check_branch
      %22 = sbr.rel (0) target = $region21
    $region20: #{lenet_forward.5} parent=1 // pred_region
      _
    $region21: #{lenet_forward.5} parent=1 // pred_fallthru
      _
    // Predicated region
    $region22: #{lenet_forward.5} parent=1 // pred_check
      _
    $region23: #{lenet_forward.5} parent=1 // pred_check_branch
      %24 = sbr.rel (0) target = $region25
    $region24: #{lenet_forward.5} parent=1 // pred_region
      _
    $region25: #{lenet_forward.5} parent=1 // pred_fallthru
      _
    // Predicated region
    $region26: #{lenet_forward.5} parent=1 // pred_check
      _
    $region27: #{lenet_forward.5} parent=1 // pred_check_branch
      %26 = sbr.rel (0) target = $region29
    $region28: #{lenet_forward.5} parent=1 // pred_region
      _
    $region29: #{lenet_forward.5} parent=1 // pred_fallthru
      _
    %v28 = vld [vmem:[%s0] sm:$0xff]
    %v29 = vld [vmem:[%s0 + $0x8] sm:$0xff]
    %v30 = vld [vmem:[%s0 + $0x10] sm:$0xff]
    %v31 = vld [vmem:[%s0 + $0x18] sm:$0x1]
    %v32 = vld [vmem:[%s1] sm:$0xf]
    %v33 = vld [vmem:[%s1 + $0x4] sm:$0xf]
    %v34 = vld [vmem:[%s1 + $0x8] sm:$0xf]
    %v35 = vld [vmem:[%s1 + $0xc] sm:$0xf]
    %v36 = vld [vmem:[%s1 + $0x10] sm:$0xf]
    %v37 = vld [vmem:[%s1 + $0x14] sm:$0xf]
    %v38 = vld [vmem:[%s1 + $0x18] sm:$0xf]
    %v39 = vld [vmem:[%s1 + $0x1c] sm:$0xf]
    %v40 = vld [vmem:[%s1 + $0x20] sm:$0xf]
    %v41 = vld [vmem:[%s1 + $0x24] sm:$0xf]
    %v42 = vld [vmem:[%s1 + $0x28] sm:$0xf]
    %v43 = vld [vmem:[%s1 + $0x2c] sm:$0xf]
    %v44 = vld [vmem:[%s1 + $0x30] sm:$0xf]
    %v45 = vld [vmem:[%s1 + $0x34] sm:$0xf]
    %v46 = vld [vmem:[%s1 + $0x38] sm:$0xf]
    %v47 = vld [vmem:[%s1 + $0x3c] sm:$0xf]
    %v48 = vld [vmem:[%s1 + $0x40] sm:$0xf]
    %v49 = vld [vmem:[%s1 + $0x44] sm:$0xf]
    %v50 = vld [vmem:[%s1 + $0x48] sm:$0xf]
    %v51 = vld [vmem:[%s1 + $0x4c] sm:$0xf]
    %v52 = vld [vmem:[%s1 + $0x50] sm:$0xf]
    %v53 = vld [vmem:[%s1 + $0x54] sm:$0xf]
    %v54 = vld [vmem:[%s1 + $0x58] sm:$0xf]
    %v55 = vld [vmem:[%s1 + $0x5c] sm:$0xf]
    %v56 = vld [vmem:[%s1 + $0x60] sm:$0xf]
    %v57 = vld [vmem:[%s1 + $0x64] sm:$0xf]
    %v58 = vld [vmem:[%s1 + $0x68] sm:$0xf]
    %v59 = vld [vmem:[%s1 + $0x6c] sm:$0xf]
    %v60 = vld [vmem:[%s1 + $0x70] sm:$0xf]
    %v61 = vld [vmem:[%s1 + $0x74] sm:$0xf]
    %v62 = vld [vmem:[%s1 + $0x78] sm:$0xf]
    %v63 = vld [vmem:[%s1 + $0x7c] sm:$0xf]
    %v64 = vld [vmem:[%s1 + $0x80] sm:$0xf]
    %v65 = vld [vmem:[%s1 + $0x84] sm:$0xf]
    %v66 = vld [vmem:[%s1 + $0x88] sm:$0xf]
    %v67 = vld [vmem:[%s1 + $0x8c] sm:$0xf]
    %v68 = vld [vmem:[%s1 + $0x90] sm:$0xf]
    %v69 = vld [vmem:[%s1 + $0x94] sm:$0xf]
    %v70 = vld [vmem:[%s1 + $0x98] sm:$0xf]
    %v71 = vld [vmem:[%s1 + $0x9c] sm:$0xf]
    %v72 = vld [vmem:[%s1 + $0xa0] sm:$0xf]
    %v73 = vld [vmem:[%s1 + $0xa4] sm:$0xf]
    %v74 = vld [vmem:[%s1 + $0xa8] sm:$0xf]
    %v75 = vld [vmem:[%s1 + $0xac] sm:$0xf]
    %v76 = vld [vmem:[%s1 + $0xb0] sm:$0xf]
    %v77 = vld [vmem:[%s1 + $0xb4] sm:$0xf]
    %v78 = vld [vmem:[%s1 + $0xb8] sm:$0xf]
    %v79 = vld [vmem:[%s1 + $0xbc] sm:$0xf]
    %v80 = vld [vmem:[%s1 + $0xc0] sm:$0xf]
    %v81 = vld [vmem:[%s1 + $0xc4] sm:$0xf]
    %v82 = vld [vmem:[%s1 + $0xc8] sm:$0xf]
    %v83 = vld [vmem:[%s1 + $0xcc] sm:$0xf]
    %v84 = vld [vmem:[%s1 + $0xd0] sm:$0xf]
    %v85 = vld [vmem:[%s1 + $0xd4] sm:$0xf]
    %v86 = vld [vmem:[%s1 + $0xd8] sm:$0xf]
    %v87 = vld [vmem:[%s1 + $0xdc] sm:$0xf]
    %v88 = vld [vmem:[%s1 + $0xe0] sm:$0xf]
    %v89 = vld [vmem:[%s1 + $0xe4] sm:$0xf]
    %v90 = vld [vmem:[%s1 + $0xe8] sm:$0xf]
    %v91 = vld [vmem:[%s1 + $0xec] sm:$0xf]
    %v92 = vld [vmem:[%s1 + $0xf0] sm:$0xf]
    %v93 = vld [vmem:[%s1 + $0xf4] sm:$0xf]
    %v94 = vld [vmem:[%s1 + $0xf8] sm:$0xf]
    %v95 = vld [vmem:[%s1 + $0xfc] sm:$0xf]
    %v96 = vld [vmem:[%s1 + $0x100] sm:$0xf]
    %v97 = vld [vmem:[%s1 + $0x104] sm:$0xf]
    %v98 = vld [vmem:[%s1 + $0x108] sm:$0xf]
    %v99 = vld [vmem:[%s1 + $0x10c] sm:$0xf]
    %v100 = vld [vmem:[%s1 + $0x110] sm:$0xf]
    %v101 = vld [vmem:[%s1 + $0x114] sm:$0xf]
    %v102 = vld [vmem:[%s1 + $0x118] sm:$0xf]
    %v103 = vld [vmem:[%s1 + $0x11c] sm:$0xf]
    %v104 = vld [vmem:[%s1 + $0x120] sm:$0xf]
    %v105 = vld [vmem:[%s1 + $0x124] sm:$0xf]
    %v106 = vld [vmem:[%s1 + $0x128] sm:$0xf]
    %v107 = vld [vmem:[%s1 + $0x12c] sm:$0xf]
    %v108 = vld [vmem:[%s1 + $0x130] sm:$0xf]
    %v109 = vld [vmem:[%s1 + $0x134] sm:$0xf]
    %v110 = vld [vmem:[%s1 + $0x138] sm:$0xf]
    %v111 = vld [vmem:[%s1 + $0x13c] sm:$0xf]
    %v112 = vld [vmem:[%s1 + $0x140] sm:$0xf]
    %v113 = vld [vmem:[%s1 + $0x144] sm:$0xf]
    %v114 = vld [vmem:[%s1 + $0x148] sm:$0xf]
    %v115 = vld [vmem:[%s1 + $0x14c] sm:$0xf]
    %v116 = vld [vmem:[%s1 + $0x150] sm:$0xf]
    %v117 = vld [vmem:[%s1 + $0x154] sm:$0xf]
    %v118 = vld [vmem:[%s1 + $0x158] sm:$0xf]
    %v119 = vld [vmem:[%s1 + $0x15c] sm:$0xf]
    %v120 = vld [vmem:[%s1 + $0x160] sm:$0xf]
    %v121 = vld [vmem:[%s1 + $0x164] sm:$0xf]
    %v122 = vld [vmem:[%s1 + $0x168] sm:$0xf]
    %v123 = vld [vmem:[%s1 + $0x16c] sm:$0xf]
    %v124 = vld [vmem:[%s1 + $0x170] sm:$0xf]
    %v125 = vld [vmem:[%s1 + $0x174] sm:$0xf]
    %v126 = vld [vmem:[%s1 + $0x178] sm:$0xf]
    %v127 = vld [vmem:[%s1 + $0x17c] sm:$0xf]
    %v128 = vld [vmem:[%s1 + $0x180] sm:$0xf]
    %v129 = vld [vmem:[%s1 + $0x184] sm:$0xf]
    %v130 = vld [vmem:[%s1 + $0x188] sm:$0xf]
    %v131 = vld [vmem:[%s1 + $0x18c] sm:$0xf]
    %v132 = vld [vmem:[%s1 + $0x190] sm:$0xf]
    %v133 = vld [vmem:[%s1 + $0x194] sm:$0xf]
    %v134 = vld [vmem:[%s1 + $0x198] sm:$0xf]
    %v135 = vld [vmem:[%s1 + $0x19c] sm:$0xf]
    %v136 = vld [vmem:[%s1 + $0x1a0] sm:$0xf]
    %v137 = vld [vmem:[%s1 + $0x1a4] sm:$0xf]
    %v138 = vld [vmem:[%s1 + $0x1a8] sm:$0xf]
    %v139 = vld [vmem:[%s1 + $0x1ac] sm:$0xf]
    %v140 = vld [vmem:[%s1 + $0x1b0] sm:$0xf]
    %v141 = vld [vmem:[%s1 + $0x1b4] sm:$0xf]
    %v142 = vld [vmem:[%s1 + $0x1b8] sm:$0xf]
    %v143 = vld [vmem:[%s1 + $0x1bc] sm:$0xf]
    %v144 = vld [vmem:[%s1 + $0x1c0] sm:$0xf]
    %v145 = vld [vmem:[%s1 + $0x1c4] sm:$0xf]
    %v146 = vld [vmem:[%s1 + $0x1c8] sm:$0xf]
    %v147 = vld [vmem:[%s1 + $0x1cc] sm:$0xf]
    %v148 = vld [vmem:[%s1 + $0x1d0] sm:$0xf]
    %v149 = vld [vmem:[%s1 + $0x1d4] sm:$0xf]
    %v150 = vld [vmem:[%s1 + $0x1d8] sm:$0xf]
    %v151 = vld [vmem:[%s1 + $0x1dc] sm:$0xf]
    %v152 = vld [vmem:[%s1 + $0x1e0] sm:$0xf]
    %v153 = vld [vmem:[%s1 + $0x1e4] sm:$0xf]
    %v154 = vld [vmem:[%s1 + $0x1e8] sm:$0xf]
    %v155 = vld [vmem:[%s1 + $0x1ec] sm:$0xf]
    %v156 = vld [vmem:[%s1 + $0x1f0] sm:$0xf]
    %v157 = vld [vmem:[%s1 + $0x1f4] sm:$0xf]
    %v158 = vld [vmem:[%s1 + $0x1f8] sm:$0xf]
    %v159 = vld [vmem:[%s1 + $0x1fc] sm:$0xf]
    %v160 = vld [vmem:[%s1 + $0x200] sm:$0xf]
    %v161 = vld [vmem:[%s1 + $0x204] sm:$0xf]
    %v162 = vld [vmem:[%s1 + $0x208] sm:$0xf]
    %v163 = vld [vmem:[%s1 + $0x20c] sm:$0xf]
    %v164 = vld [vmem:[%s1 + $0x210] sm:$0xf]
    %v165 = vld [vmem:[%s1 + $0x214] sm:$0xf]
    %v166 = vld [vmem:[%s1 + $0x218] sm:$0xf]
    %v167 = vld [vmem:[%s1 + $0x21c] sm:$0xf]
    %v168 = vld [vmem:[%s1 + $0x220] sm:$0xf]
    %v169 = vld [vmem:[%s1 + $0x224] sm:$0xf]
    %v170 = vld [vmem:[%s1 + $0x228] sm:$0xf]
    %v171 = vld [vmem:[%s1 + $0x22c] sm:$0xf]
    %v172 = vld [vmem:[%s1 + $0x230] sm:$0xf]
    %v173 = vld [vmem:[%s1 + $0x234] sm:$0xf]
    %v174 = vld [vmem:[%s1 + $0x238] sm:$0xf]
    %v175 = vld [vmem:[%s1 + $0x23c] sm:$0xf]
    %v176 = vld [vmem:[%s1 + $0x240] sm:$0xf]
    %v177 = vld [vmem:[%s1 + $0x244] sm:$0xf]
    %v178 = vld [vmem:[%s1 + $0x248] sm:$0xf]
    %v179 = vld [vmem:[%s1 + $0x24c] sm:$0xf]
    %v180 = vld [vmem:[%s1 + $0x250] sm:$0xf]
    %v181 = vld [vmem:[%s1 + $0x254] sm:$0xf]
    %v182 = vld [vmem:[%s1 + $0x258] sm:$0xf]
    %v183 = vld [vmem:[%s1 + $0x25c] sm:$0xf]
    %v184 = vld [vmem:[%s1 + $0x260] sm:$0xf]
    %v185 = vld [vmem:[%s1 + $0x264] sm:$0xf]
    %v186 = vld [vmem:[%s1 + $0x268] sm:$0xf]
    %v187 = vld [vmem:[%s1 + $0x26c] sm:$0xf]
    %v188 = vld [vmem:[%s1 + $0x270] sm:$0xf]
    %v189 = vld [vmem:[%s1 + $0x274] sm:$0xf]
    %v190 = vld [vmem:[%s1 + $0x278] sm:$0xf]
    %v191 = vld [vmem:[%s1 + $0x27c] sm:$0xf]
    %v192 = vld [vmem:[%s1 + $0x280] sm:$0xf]
    %v193 = vld [vmem:[%s1 + $0x284] sm:$0xf]
    %v194 = vld [vmem:[%s1 + $0x288] sm:$0xf]
    %v195 = vld [vmem:[%s1 + $0x28c] sm:$0xf]
    %v196 = vld [vmem:[%s1 + $0x290] sm:$0xf]
    %v197 = vld [vmem:[%s1 + $0x294] sm:$0xf]
    %v198 = vld [vmem:[%s1 + $0x298] sm:$0xf]
    %v199 = vld [vmem:[%s1 + $0x29c] sm:$0xf]
    %v200 = vld [vmem:[%s1 + $0x2a0] sm:$0xf]
    %v201 = vld [vmem:[%s1 + $0x2a4] sm:$0xf]
    %v202 = vld [vmem:[%s1 + $0x2a8] sm:$0xf]
    %v203 = vld [vmem:[%s1 + $0x2ac] sm:$0xf]
    %v204 = vld [vmem:[%s1 + $0x2b0] sm:$0xf]
    %v205 = vld [vmem:[%s1 + $0x2b4] sm:$0xf]
    %v206 = vld [vmem:[%s1 + $0x2b8] sm:$0xf]
    %v207 = vld [vmem:[%s1 + $0x2bc] sm:$0xf]
    %v208 = vld [vmem:[%s1 + $0x2c0] sm:$0xf]
    %v209 = vld [vmem:[%s1 + $0x2c4] sm:$0xf]
    %v210 = vld [vmem:[%s1 + $0x2c8] sm:$0xf]
    %v211 = vld [vmem:[%s1 + $0x2cc] sm:$0xf]
    %v212 = vld [vmem:[%s1 + $0x2d0] sm:$0xf]
    %v213 = vld [vmem:[%s1 + $0x2d4] sm:$0xf]
    %v214 = vld [vmem:[%s1 + $0x2d8] sm:$0xf]
    %v215 = vld [vmem:[%s1 + $0x2dc] sm:$0xf]
    %v216 = vld [vmem:[%s1 + $0x2e0] sm:$0xf]
    %v217 = vld [vmem:[%s1 + $0x2e4] sm:$0xf]
    %v218 = vld [vmem:[%s1 + $0x2e8] sm:$0xf]
    %v219 = vld [vmem:[%s1 + $0x2ec] sm:$0xf]
    %v220 = vld [vmem:[%s1 + $0x2f0] sm:$0xf]
    %v221 = vld [vmem:[%s1 + $0x2f4] sm:$0xf]
    %v222 = vld [vmem:[%s1 + $0x2f8] sm:$0xf]
    %v223 = vld [vmem:[%s1 + $0x2fc] sm:$0xf]
    %v224 = vld [vmem:[%s1 + $0x300] sm:$0xf]
    %v225 = vld [vmem:[%s1 + $0x304] sm:$0xf]
    %v226 = vld [vmem:[%s1 + $0x308] sm:$0xf]
    %v227 = vld [vmem:[%s1 + $0x30c] sm:$0xf]
    %v228 = vld [vmem:[%s1 + $0x310] sm:$0xf]
    %v229 = vld [vmem:[%s1 + $0x314] sm:$0xf]
    %v230 = vld [vmem:[%s1 + $0x318] sm:$0xf]
    %v231 = vld [vmem:[%s1 + $0x31c] sm:$0xf]
    %v232 = vld [vmem:[%s1 + $0x320] sm:$0xf]
    %v233 = vld [vmem:[%s1 + $0x324] sm:$0xf]
    %v234 = vld [vmem:[%s1 + $0x328] sm:$0xf]
    %v235 = vld [vmem:[%s1 + $0x32c] sm:$0xf]
    %v236 = vld [vmem:[%s1 + $0x330] sm:$0xf]
    %v237 = vld [vmem:[%s1 + $0x334] sm:$0xf]
    %v238 = vld [vmem:[%s1 + $0x338] sm:$0xf]
    %v239 = vld [vmem:[%s1 + $0x33c] sm:$0xf]
    %v240 = vld [vmem:[%s1 + $0x340] sm:$0xf]
    %v241 = vld [vmem:[%s1 + $0x344] sm:$0xf]
    %v242 = vld [vmem:[%s1 + $0x348] sm:$0xf]
    %v243 = vld [vmem:[%s1 + $0x34c] sm:$0xf]
    %v244 = vld [vmem:[%s1 + $0x350] sm:$0xf]
    %v245 = vld [vmem:[%s1 + $0x354] sm:$0xf]
    %v246 = vld [vmem:[%s1 + $0x358] sm:$0xf]
    %v247 = vld [vmem:[%s1 + $0x35c] sm:$0xf]
    %v248 = vld [vmem:[%s1 + $0x360] sm:$0xf]
    %v249 = vld [vmem:[%s1 + $0x364] sm:$0xf]
    %v250 = vld [vmem:[%s1 + $0x368] sm:$0xf]
    %v251 = vld [vmem:[%s1 + $0x36c] sm:$0xf]
    %v252 = vld [vmem:[%s1 + $0x370] sm:$0xf]
    %v253 = vld [vmem:[%s1 + $0x374] sm:$0xf]
    %v254 = vld [vmem:[%s1 + $0x378] sm:$0xf]
    %v255 = vld [vmem:[%s1 + $0x37c] sm:$0xf]
    %v256 = vld [vmem:[%s1 + $0x380] sm:$0xf]
    %v257 = vld [vmem:[%s1 + $0x384] sm:$0xf]
    %v258 = vld [vmem:[%s1 + $0x388] sm:$0xf]
    %v259 = vld [vmem:[%s1 + $0x38c] sm:$0xf]
    %v260 = vld [vmem:[%s1 + $0x390] sm:$0xf]
    %v261 = vld [vmem:[%s1 + $0x394] sm:$0xf]
    %v262 = vld [vmem:[%s1 + $0x398] sm:$0xf]
    %v263 = vld [vmem:[%s1 + $0x39c] sm:$0xf]
    %v264 = vld [vmem:[%s1 + $0x3a0] sm:$0xf]
    %v265 = vld [vmem:[%s1 + $0x3a4] sm:$0xf]
    %v266 = vld [vmem:[%s1 + $0x3a8] sm:$0xf]
    %v267 = vld [vmem:[%s1 + $0x3ac] sm:$0xf]
    %v268 = vld [vmem:[%s1 + $0x3b0] sm:$0xf]
    %v269 = vld [vmem:[%s1 + $0x3b4] sm:$0xf]
    %v270 = vld [vmem:[%s1 + $0x3b8] sm:$0xf]
    %v271 = vld [vmem:[%s1 + $0x3bc] sm:$0xf]
    %v272 = vld [vmem:[%s1 + $0x3c0] sm:$0xf]
    %v273 = vld [vmem:[%s1 + $0x3c4] sm:$0xf]
    %v274 = vld [vmem:[%s1 + $0x3c8] sm:$0xf]
    %v275 = vld [vmem:[%s1 + $0x3cc] sm:$0xf]
    %v276 = vld [vmem:[%s1 + $0x3d0] sm:$0xf]
    %v277 = vld [vmem:[%s1 + $0x3d4] sm:$0xf]
    %v278 = vld [vmem:[%s1 + $0x3d8] sm:$0xf]
    %v279 = vld [vmem:[%s1 + $0x3dc] sm:$0xf]
    %v280 = vld [vmem:[%s1 + $0x3e0] sm:$0xf]
    %v281 = vld [vmem:[%s1 + $0x3e4] sm:$0xf]
    %v282 = vld [vmem:[%s1 + $0x3e8] sm:$0xf]
    %v283 = vld [vmem:[%s1 + $0x3ec] sm:$0xf]
    %v284 = vld [vmem:[%s1 + $0x3f0] sm:$0xf]
    %v285 = vld [vmem:[%s1 + $0x3f4] sm:$0xf]
    %v286 = vld [vmem:[%s1 + $0x3f8] sm:$0xf]
    %v287 = vld [vmem:[%s1 + $0x3fc] sm:$0xf]
    %v288 = vld [vmem:[%s1 + $0x400] sm:$0xf]
    %v289 = vld [vmem:[%s1 + $0x404] sm:$0xf]
    %v290 = vld [vmem:[%s1 + $0x408] sm:$0xf]
    %v291 = vld [vmem:[%s1 + $0x40c] sm:$0xf]
    %v292 = vld [vmem:[%s1 + $0x410] sm:$0xf]
    %v293 = vld [vmem:[%s1 + $0x414] sm:$0xf]
    %v294 = vld [vmem:[%s1 + $0x418] sm:$0xf]
    %v295 = vld [vmem:[%s1 + $0x41c] sm:$0xf]
    %v296 = vld [vmem:[%s1 + $0x420] sm:$0xf]
    %v297 = vld [vmem:[%s1 + $0x424] sm:$0xf]
    %v298 = vld [vmem:[%s1 + $0x428] sm:$0xf]
    %v299 = vld [vmem:[%s1 + $0x42c] sm:$0xf]
    %v300 = vld [vmem:[%s1 + $0x430] sm:$0xf]
    %v301 = vld [vmem:[%s1 + $0x434] sm:$0xf]
    %v302 = vld [vmem:[%s1 + $0x438] sm:$0xf]
    %v303 = vld [vmem:[%s1 + $0x43c] sm:$0xf]
    %v304 = vld [vmem:[%s1 + $0x440] sm:$0xf]
    %v305 = vld [vmem:[%s1 + $0x444] sm:$0xf]
    %v306 = vld [vmem:[%s1 + $0x448] sm:$0xf]
    %v307 = vld [vmem:[%s1 + $0x44c] sm:$0xf]
    %v308 = vld [vmem:[%s1 + $0x450] sm:$0xf]
    %v309 = vld [vmem:[%s1 + $0x454] sm:$0xf]
    %v310 = vld [vmem:[%s1 + $0x458] sm:$0xf]
    %v311 = vld [vmem:[%s1 + $0x45c] sm:$0xf]
    %v312 = vld [vmem:[%s1 + $0x460] sm:$0xf]
    %v313 = vld [vmem:[%s1 + $0x464] sm:$0xf]
    %v314 = vld [vmem:[%s1 + $0x468] sm:$0xf]
    %v315 = vld [vmem:[%s1 + $0x46c] sm:$0xf]
    %v316 = vld [vmem:[%s1 + $0x470] sm:$0xf]
    %v317 = vld [vmem:[%s1 + $0x474] sm:$0xf]
    %v318 = vld [vmem:[%s1 + $0x478] sm:$0xf]
    %v319 = vld [vmem:[%s1 + $0x47c] sm:$0xf]
    %v320 = vld [vmem:[%s1 + $0x480] sm:$0xf]
    %v321 = vld [vmem:[%s1 + $0x484] sm:$0xf]
    %v322 = vld [vmem:[%s1 + $0x488] sm:$0xf]
    %v323 = vld [vmem:[%s1 + $0x48c] sm:$0xf]
    %v324 = vld [vmem:[%s1 + $0x490] sm:$0xf]
    %v325 = vld [vmem:[%s1 + $0x494] sm:$0xf]
    %v326 = vld [vmem:[%s1 + $0x498] sm:$0xf]
    %v327 = vld [vmem:[%s1 + $0x49c] sm:$0xf]
    %v328 = vld [vmem:[%s1 + $0x4a0] sm:$0xf]
    %v329 = vld [vmem:[%s1 + $0x4a4] sm:$0xf]
    %v330 = vld [vmem:[%s1 + $0x4a8] sm:$0xf]
    %v331 = vld [vmem:[%s1 + $0x4ac] sm:$0xf]
    %v332 = vld [vmem:[%s1 + $0x4b0] sm:$0xf]
    %v333 = vld [vmem:[%s1 + $0x4b4] sm:$0xf]
    %v334 = vld [vmem:[%s1 + $0x4b8] sm:$0xf]
    %v335 = vld [vmem:[%s1 + $0x4bc] sm:$0xf]
    %v336 = vld [vmem:[%s1 + $0x4c0] sm:$0xf]
    %v337 = vld [vmem:[%s1 + $0x4c4] sm:$0xf]
    %v338 = vld [vmem:[%s1 + $0x4c8] sm:$0xf]
    %v339 = vld [vmem:[%s1 + $0x4cc] sm:$0xf]
    %v340 = vld [vmem:[%s1 + $0x4d0] sm:$0xf]
    %v341 = vld [vmem:[%s1 + $0x4d4] sm:$0xf]
    %v342 = vld [vmem:[%s1 + $0x4d8] sm:$0xf]
    %v343 = vld [vmem:[%s1 + $0x4dc] sm:$0xf]
    %v344 = vld [vmem:[%s1 + $0x4e0] sm:$0xf]
    %v345 = vld [vmem:[%s1 + $0x4e4] sm:$0xf]
    %v346 = vld [vmem:[%s1 + $0x4e8] sm:$0xf]
    %v347 = vld [vmem:[%s1 + $0x4ec] sm:$0xf]
    %v348 = vld [vmem:[%s1 + $0x4f0] sm:$0xf]
    %v349 = vld [vmem:[%s1 + $0x4f4] sm:$0xf]
    %v350 = vld [vmem:[%s1 + $0x4f8] sm:$0xf]
    %v351 = vld [vmem:[%s1 + $0x4fc] sm:$0xf]
    %v352 = vld [vmem:[%s1 + $0x500] sm:$0xf]
    %v353 = vld [vmem:[%s1 + $0x504] sm:$0xf]
    %v354 = vld [vmem:[%s1 + $0x508] sm:$0xf]
    %v355 = vld [vmem:[%s1 + $0x50c] sm:$0xf]
    %v356 = vld [vmem:[%s1 + $0x510] sm:$0xf]
    %v357 = vld [vmem:[%s1 + $0x514] sm:$0xf]
    %v358 = vld [vmem:[%s1 + $0x518] sm:$0xf]
    %v359 = vld [vmem:[%s1 + $0x51c] sm:$0xf]
    %v360 = vld [vmem:[%s1 + $0x520] sm:$0xf]
    %v361 = vld [vmem:[%s1 + $0x524] sm:$0xf]
    %v362 = vld [vmem:[%s1 + $0x528] sm:$0xf]
    %v363 = vld [vmem:[%s1 + $0x52c] sm:$0xf]
    %v364 = vld [vmem:[%s1 + $0x530] sm:$0xf]
    %v365 = vld [vmem:[%s1 + $0x534] sm:$0xf]
    %v366 = vld [vmem:[%s1 + $0x538] sm:$0xf]
    %v367 = vld [vmem:[%s1 + $0x53c] sm:$0xf]
    %v368 = vld [vmem:[%s1 + $0x540] sm:$0xf]
    %v369 = vld [vmem:[%s1 + $0x544] sm:$0xf]
    %v370 = vld [vmem:[%s1 + $0x548] sm:$0xf]
    %v371 = vld [vmem:[%s1 + $0x54c] sm:$0xf]
    %v372 = vld [vmem:[%s1 + $0x550] sm:$0xf]
    %v373 = vld [vmem:[%s1 + $0x554] sm:$0xf]
    %v374 = vld [vmem:[%s1 + $0x558] sm:$0xf]
    %v375 = vld [vmem:[%s1 + $0x55c] sm:$0xf]
    %v376 = vld [vmem:[%s1 + $0x560] sm:$0xf]
    %v377 = vld [vmem:[%s1 + $0x564] sm:$0xf]
    %v378 = vld [vmem:[%s1 + $0x568] sm:$0xf]
    %v379 = vld [vmem:[%s1 + $0x56c] sm:$0xf]
    %v380 = vld [vmem:[%s1 + $0x570] sm:$0xf]
    %v381 = vld [vmem:[%s1 + $0x574] sm:$0xf]
    %v382 = vld [vmem:[%s1 + $0x578] sm:$0xf]
    %v383 = vld [vmem:[%s1 + $0x57c] sm:$0xf]
    %v384 = vld [vmem:[%s1 + $0x580] sm:$0xf]
    %v385 = vld [vmem:[%s1 + $0x584] sm:$0xf]
    %v386 = vld [vmem:[%s1 + $0x588] sm:$0xf]
    %v387 = vld [vmem:[%s1 + $0x58c] sm:$0xf]
    %v388 = vld [vmem:[%s1 + $0x590] sm:$0xf]
    %v389 = vld [vmem:[%s1 + $0x594] sm:$0xf]
    %v390 = vld [vmem:[%s1 + $0x598] sm:$0xf]
    %v391 = vld [vmem:[%s1 + $0x59c] sm:$0xf]
    %v392 = vld [vmem:[%s1 + $0x5a0] sm:$0xf]
    %v393 = vld [vmem:[%s1 + $0x5a4] sm:$0xf]
    %v394 = vld [vmem:[%s1 + $0x5a8] sm:$0xf]
    %v395 = vld [vmem:[%s1 + $0x5ac] sm:$0xf]
    %v396 = vld [vmem:[%s1 + $0x5b0] sm:$0xf]
    %v397 = vld [vmem:[%s1 + $0x5b4] sm:$0xf]
    %v398 = vld [vmem:[%s1 + $0x5b8] sm:$0xf]
    %v399 = vld [vmem:[%s1 + $0x5bc] sm:$0xf]
    %v400 = vld [vmem:[%s1 + $0x5c0] sm:$0xf]
    %v401 = vld [vmem:[%s1 + $0x5c4] sm:$0xf]
    %v402 = vld [vmem:[%s1 + $0x5c8] sm:$0xf]
    %v403 = vld [vmem:[%s1 + $0x5cc] sm:$0xf]
    %v404 = vld [vmem:[%s1 + $0x5d0] sm:$0xf]
    %v405 = vld [vmem:[%s1 + $0x5d4] sm:$0xf]
    %v406 = vld [vmem:[%s1 + $0x5d8] sm:$0xf]
    %v407 = vld [vmem:[%s1 + $0x5dc] sm:$0xf]
    %v408 = vld [vmem:[%s1 + $0x5e0] sm:$0xf]
    %v409 = vld [vmem:[%s1 + $0x5e4] sm:$0xf]
    %v410 = vld [vmem:[%s1 + $0x5e8] sm:$0xf]
    %v411 = vld [vmem:[%s1 + $0x5ec] sm:$0xf]
    %v412 = vld [vmem:[%s1 + $0x5f0] sm:$0xf]
    %v413 = vld [vmem:[%s1 + $0x5f4] sm:$0xf]
    %v414 = vld [vmem:[%s1 + $0x5f8] sm:$0xf]
    %v415 = vld [vmem:[%s1 + $0x5fc] sm:$0xf]
    %v416 = vld [vmem:[%s1 + $0x600] sm:$0xf]
    %v417 = vld [vmem:[%s1 + $0x604] sm:$0xf]
    %v418 = vld [vmem:[%s1 + $0x608] sm:$0xf]
    %v419 = vld [vmem:[%s1 + $0x60c] sm:$0xf]
    %v420 = vld [vmem:[%s1 + $0x610] sm:$0xf]
    %v421 = vld [vmem:[%s1 + $0x614] sm:$0xf]
    %v422 = vld [vmem:[%s1 + $0x618] sm:$0xf]
    %v423 = vld [vmem:[%s1 + $0x61c] sm:$0xf]
    %v424 = vld [vmem:[%s1 + $0x620] sm:$0xf]
    %v425 = vld [vmem:[%s1 + $0x624] sm:$0xf]
    %v426 = vld [vmem:[%s1 + $0x628] sm:$0xf]
    %v427 = vld [vmem:[%s1 + $0x62c] sm:$0xf]
    %v428 = vld [vmem:[%s1 + $0x630] sm:$0xf]
    %v429 = vld [vmem:[%s1 + $0x634] sm:$0xf]
    %v430 = vld [vmem:[%s1 + $0x638] sm:$0xf]
    %v431 = vld [vmem:[%s1 + $0x63c] sm:$0xf]
    %v432 = vld [vmem:[%s2] sm:$0x1]
    %v434 = vlaneseq
    %v435 = vshrl.u32 %v434, 7
    %v436 = vsub.s32 0, %v435
    %v437 = vrot.slane %v432, %v436
    %v443 = vcombine.high %v28, %v28
    %v445 = vunpack.c.l.s4 1966171168
    %v446 = vunpack.c.0.s8 %v445
    %v447 = vlaneseq
    %v448 = vshrl.u32 %v447, 7
    %v449 = vsub.s32 %v446, %v448
    %v450 = vrot.slane %v28, %v449
    %v452 = vunpack.c.l.s4 1966171168
    %v453 = vunpack.c.0.s8 %v452
    %v454 = vlaneseq
    %v455 = vshrl.u32 %v454, 7
    %v456 = vsub.s32 %v453, %v455
    %v457 = vrot.slane %v443, %v456
    %v458 = vcombine.high %v450, %v450
    %v459 = vcombine.high %v457, %v457
    %v461 = vunpack.c.l.s4 1966171168
    %v462 = vunpack.c.0.s8 %v461
    %v463 = vlaneseq
    %v464 = vshrl.u32 %v463, 7
    %v465 = vsub.s32 %v462, %v464
    %v466 = vrot.slane %v450, %v465
    %v468 = vunpack.c.l.s4 1966171168
    %v469 = vunpack.c.0.s8 %v468
    %v470 = vlaneseq
    %v471 = vshrl.u32 %v470, 7
    %v472 = vsub.s32 %v469, %v471
    %v473 = vrot.slane %v457, %v472
    %v475 = vunpack.c.l.s4 1966171168
    %v476 = vunpack.c.0.s8 %v475
    %v477 = vlaneseq
    %v478 = vshrl.u32 %v477, 7
    %v479 = vsub.s32 %v476, %v478
    %v480 = vrot.slane %v458, %v479
    %v482 = vunpack.c.l.s4 1966171168
    %v483 = vunpack.c.0.s8 %v482
    %v484 = vlaneseq
    %v485 = vshrl.u32 %v484, 7
    %v486 = vsub.s32 %v483, %v485
    %v487 = vrot.slane %v459, %v486
    %v488 = vcombine.high %v466, %v466
    %v489 = vcombine.high %v473, %v473
    %v490 = vcombine.high %v480, %v480
    %v491 = vcombine.high %v487, %v487
    %v492 = vcombine.high %v29, %v29
    %v494 = vunpack.c.l.s4 1966171168
    %v495 = vunpack.c.0.s8 %v494
    %v496 = vlaneseq
    %v497 = vshrl.u32 %v496, 7
    %v498 = vsub.s32 %v495, %v497
    %v499 = vrot.slane %v29, %v498
    %v501 = vunpack.c.l.s4 1966171168
    %v502 = vunpack.c.0.s8 %v501
    %v503 = vlaneseq
    %v504 = vshrl.u32 %v503, 7
    %v505 = vsub.s32 %v502, %v504
    %v506 = vrot.slane %v492, %v505
    %v507 = vcombine.high %v499, %v499
    %v508 = vcombine.high %v506, %v506
    %v510 = vunpack.c.l.s4 1966171168
    %v511 = vunpack.c.0.s8 %v510
    %v512 = vlaneseq
    %v513 = vshrl.u32 %v512, 7
    %v514 = vsub.s32 %v511, %v513
    %v515 = vrot.slane %v499, %v514
    %v517 = vunpack.c.l.s4 1966171168
    %v518 = vunpack.c.0.s8 %v517
    %v519 = vlaneseq
    %v520 = vshrl.u32 %v519, 7
    %v521 = vsub.s32 %v518, %v520
    %v522 = vrot.slane %v506, %v521
    %v524 = vunpack.c.l.s4 1966171168
    %v525 = vunpack.c.0.s8 %v524
    %v526 = vlaneseq
    %v527 = vshrl.u32 %v526, 7
    %v528 = vsub.s32 %v525, %v527
    %v529 = vrot.slane %v507, %v528
    %v531 = vunpack.c.l.s4 1966171168
    %v532 = vunpack.c.0.s8 %v531
    %v533 = vlaneseq
    %v534 = vshrl.u32 %v533, 7
    %v535 = vsub.s32 %v532, %v534
    %v536 = vrot.slane %v508, %v535
    %v537 = vcombine.high %v515, %v515
    %v538 = vcombine.high %v522, %v522
    %v539 = vcombine.high %v529, %v529
    %v540 = vcombine.high %v536, %v536
    %v541 = vcombine.high %v30, %v30
    %v543 = vunpack.c.l.s4 1966171168
    %v544 = vunpack.c.0.s8 %v543
    %v545 = vlaneseq
    %v546 = vshrl.u32 %v545, 7
    %v547 = vsub.s32 %v544, %v546
    %v548 = vrot.slane %v30, %v547
    %v550 = vunpack.c.l.s4 1966171168
    %v551 = vunpack.c.0.s8 %v550
    %v552 = vlaneseq
    %v553 = vshrl.u32 %v552, 7
    %v554 = vsub.s32 %v551, %v553
    %v555 = vrot.slane %v541, %v554
    %v556 = vcombine.high %v548, %v548
    %v557 = vcombine.high %v555, %v555
    %v559 = vunpack.c.l.s4 1966171168
    %v560 = vunpack.c.0.s8 %v559
    %v561 = vlaneseq
    %v562 = vshrl.u32 %v561, 7
    %v563 = vsub.s32 %v560, %v562
    %v564 = vrot.slane %v548, %v563
    %v566 = vunpack.c.l.s4 1966171168
    %v567 = vunpack.c.0.s8 %v566
    %v568 = vlaneseq
    %v569 = vshrl.u32 %v568, 7
    %v570 = vsub.s32 %v567, %v569
    %v571 = vrot.slane %v555, %v570
    %v573 = vunpack.c.l.s4 1966171168
    %v574 = vunpack.c.0.s8 %v573
    %v575 = vlaneseq
    %v576 = vshrl.u32 %v575, 7
    %v577 = vsub.s32 %v574, %v576
    %v578 = vrot.slane %v556, %v577
    %v580 = vunpack.c.l.s4 1966171168
    %v581 = vunpack.c.0.s8 %v580
    %v582 = vlaneseq
    %v583 = vshrl.u32 %v582, 7
    %v584 = vsub.s32 %v581, %v583
    %v585 = vrot.slane %v557, %v584
    %v586 = vcombine.high %v564, %v564
    %v587 = vcombine.high %v571, %v571
    %v588 = vcombine.high %v578, %v578
    %v589 = vcombine.high %v585, %v585
    %v591 = vunpack.c.l.s4 1966171168
    %v592 = vunpack.c.0.s8 %v591
    %v593 = vlaneseq
    %v594 = vshrl.u32 %v593, 7
    %v595 = vsub.s32 %v592, %v594
    %v596 = vrot.slane %v31, %v595
    %v598 = vunpack.c.l.s4 1966171168
    %v599 = vunpack.c.0.s8 %v598
    %v600 = vlaneseq
    %v601 = vshrl.u32 %v600, 7
    %v602 = vsub.s32 %v599, %v601
    %v603 = vrot.slane %v596, %v602
    %v1029 = vunpack.c.l.b16 %v32
    %v1030 = vunpack.c.l.b16 %v33
    %v1031 = vunpack.c.l.b16 %v34
    %v1032 = vunpack.c.l.b16 %v35
    %v1033 = vunpack.c.l.b16 %v36
    %v1034 = vunpack.c.l.b16 %v37
    %v1035 = vunpack.c.l.b16 %v38
    %v1036 = vunpack.c.l.b16 %v39
    %v1037 = vunpack.c.l.b16 %v40
    %v1038 = vunpack.c.l.b16 %v41
    %v1039 = vunpack.c.l.b16 %v42
    %v1040 = vunpack.c.l.b16 %v43
    %v1041 = vunpack.c.l.b16 %v44
    %v1042 = vunpack.c.l.b16 %v45
    %v1043 = vunpack.c.l.b16 %v46
    %v1044 = vunpack.c.l.b16 %v47
    %v1045 = vunpack.c.l.b16 %v48
    %v1046 = vunpack.c.l.b16 %v49
    %v1047 = vunpack.c.l.b16 %v50
    %v1048 = vunpack.c.l.b16 %v51
    %v1049 = vunpack.c.l.b16 %v52
    %v1050 = vunpack.c.l.b16 %v53
    %v1051 = vunpack.c.l.b16 %v54
    %v1052 = vunpack.c.l.b16 %v55
    %v1053 = vunpack.c.l.b16 %v56
    %v1054 = vunpack.c.l.b16 %v57
    %v1055 = vunpack.c.l.b16 %v58
    %v1056 = vunpack.c.l.b16 %v59
    %v1057 = vunpack.c.l.b16 %v60
    %v1058 = vunpack.c.l.b16 %v61
    %v1059 = vunpack.c.l.b16 %v62
    %v1060 = vunpack.c.l.b16 %v63
    %v1061 = vunpack.c.l.b16 %v64
    %v1062 = vunpack.c.l.b16 %v65
    %v1063 = vunpack.c.l.b16 %v66
    %v1064 = vunpack.c.l.b16 %v67
    %v1065 = vunpack.c.l.b16 %v68
    %v1066 = vunpack.c.l.b16 %v69
    %v1067 = vunpack.c.l.b16 %v70
    %v1068 = vunpack.c.l.b16 %v71
    %v1069 = vunpack.c.l.b16 %v72
    %v1070 = vunpack.c.l.b16 %v73
    %v1071 = vunpack.c.l.b16 %v74
    %v1072 = vunpack.c.l.b16 %v75
    %v1073 = vunpack.c.l.b16 %v76
    %v1074 = vunpack.c.l.b16 %v77
    %v1075 = vunpack.c.l.b16 %v78
    %v1076 = vunpack.c.l.b16 %v79
    %v1077 = vunpack.c.l.b16 %v80
    %v1078 = vunpack.c.l.b16 %v81
    %v1079 = vunpack.c.l.b16 %v82
    %v1080 = vunpack.c.l.b16 %v83
    %v1081 = vunpack.c.l.b16 %v84
    %v1082 = vunpack.c.l.b16 %v85
    %v1083 = vunpack.c.l.b16 %v86
    %v1084 = vunpack.c.l.b16 %v87
    %v1085 = vunpack.c.l.b16 %v88
    %v1086 = vunpack.c.l.b16 %v89
    %v1087 = vunpack.c.l.b16 %v90
    %v1088 = vunpack.c.l.b16 %v91
    %v1089 = vunpack.c.l.b16 %v92
    %v1090 = vunpack.c.l.b16 %v93
    %v1091 = vunpack.c.l.b16 %v94
    %v1092 = vunpack.c.l.b16 %v95
    %v1093 = vunpack.c.l.b16 %v96
    %v1094 = vunpack.c.l.b16 %v97
    %v1095 = vunpack.c.l.b16 %v98
    %v1096 = vunpack.c.l.b16 %v99
    %v1097 = vunpack.c.l.b16 %v100
    %v1098 = vunpack.c.l.b16 %v101
    %v1099 = vunpack.c.l.b16 %v102
    %v1100 = vunpack.c.l.b16 %v103
    %v1101 = vunpack.c.l.b16 %v104
    %v1102 = vunpack.c.l.b16 %v105
    %v1103 = vunpack.c.l.b16 %v106
    %v1104 = vunpack.c.l.b16 %v107
    %v1105 = vunpack.c.l.b16 %v108
    %v1106 = vunpack.c.l.b16 %v109
    %v1107 = vunpack.c.l.b16 %v110
    %v1108 = vunpack.c.l.b16 %v111
    %v1109 = vunpack.c.l.b16 %v112
    %v1110 = vunpack.c.l.b16 %v113
    %v1111 = vunpack.c.l.b16 %v114
    %v1112 = vunpack.c.l.b16 %v115
    %v1113 = vunpack.c.l.b16 %v116
    %v1114 = vunpack.c.l.b16 %v117
    %v1115 = vunpack.c.l.b16 %v118
    %v1116 = vunpack.c.l.b16 %v119
    %v1117 = vunpack.c.l.b16 %v120
    %v1118 = vunpack.c.l.b16 %v121
    %v1119 = vunpack.c.l.b16 %v122
    %v1120 = vunpack.c.l.b16 %v123
    %v1121 = vunpack.c.l.b16 %v124
    %v1122 = vunpack.c.l.b16 %v125
    %v1123 = vunpack.c.l.b16 %v126
    %v1124 = vunpack.c.l.b16 %v127
    %v1125 = vunpack.c.l.b16 %v128
    %v1126 = vunpack.c.l.b16 %v129
    %v1127 = vunpack.c.l.b16 %v130
    %v1128 = vunpack.c.l.b16 %v131
    %v1129 = vunpack.c.l.b16 %v132
    %v1130 = vunpack.c.l.b16 %v133
    %v1131 = vunpack.c.l.b16 %v134
    %v1132 = vunpack.c.l.b16 %v135
    %v1133 = vunpack.c.l.b16 %v136
    %v1134 = vunpack.c.l.b16 %v137
    %v1135 = vunpack.c.l.b16 %v138
    %v1136 = vunpack.c.l.b16 %v139
    %v1137 = vunpack.c.l.b16 %v140
    %v1138 = vunpack.c.l.b16 %v141
    %v1139 = vunpack.c.l.b16 %v142
    %v1140 = vunpack.c.l.b16 %v143
    %v1141 = vunpack.c.l.b16 %v144
    %v1142 = vunpack.c.l.b16 %v145
    %v1143 = vunpack.c.l.b16 %v146
    %v1144 = vunpack.c.l.b16 %v147
    %v1145 = vunpack.c.l.b16 %v148
    %v1146 = vunpack.c.l.b16 %v149
    %v1147 = vunpack.c.l.b16 %v150
    %v1148 = vunpack.c.l.b16 %v151
    %v1149 = vunpack.c.l.b16 %v152
    %v1150 = vunpack.c.l.b16 %v153
    %v1151 = vunpack.c.l.b16 %v154
    %v1152 = vunpack.c.l.b16 %v155
    %v1153 = vunpack.c.l.b16 %v156
    %v1154 = vunpack.c.l.b16 %v157
    %v1155 = vunpack.c.l.b16 %v158
    %v1156 = vunpack.c.l.b16 %v159
    %v1157 = vunpack.c.l.b16 %v160
    %v1158 = vunpack.c.l.b16 %v161
    %v1159 = vunpack.c.l.b16 %v162
    %v1160 = vunpack.c.l.b16 %v163
    %v1161 = vunpack.c.l.b16 %v164
    %v1162 = vunpack.c.l.b16 %v165
    %v1163 = vunpack.c.l.b16 %v166
    %v1164 = vunpack.c.l.b16 %v167
    %v1165 = vunpack.c.l.b16 %v168
    %v1166 = vunpack.c.l.b16 %v169
    %v1167 = vunpack.c.l.b16 %v170
    %v1168 = vunpack.c.l.b16 %v171
    %v1169 = vunpack.c.l.b16 %v172
    %v1170 = vunpack.c.l.b16 %v173
    %v1171 = vunpack.c.l.b16 %v174
    %v1172 = vunpack.c.l.b16 %v175
    %v1173 = vunpack.c.l.b16 %v176
    %v1174 = vunpack.c.l.b16 %v177
    %v1175 = vunpack.c.l.b16 %v178
    %v1176 = vunpack.c.l.b16 %v179
    %v1177 = vunpack.c.l.b16 %v180
    %v1178 = vunpack.c.l.b16 %v181
    %v1179 = vunpack.c.l.b16 %v182
    %v1180 = vunpack.c.l.b16 %v183
    %v1181 = vunpack.c.l.b16 %v184
    %v1182 = vunpack.c.l.b16 %v185
    %v1183 = vunpack.c.l.b16 %v186
    %v1184 = vunpack.c.l.b16 %v187
    %v1185 = vunpack.c.l.b16 %v188
    %v1186 = vunpack.c.l.b16 %v189
    %v1187 = vunpack.c.l.b16 %v190
    %v1188 = vunpack.c.l.b16 %v191
    %v1189 = vunpack.c.l.b16 %v192
    %v1190 = vunpack.c.l.b16 %v193
    %v1191 = vunpack.c.l.b16 %v194
    %v1192 = vunpack.c.l.b16 %v195
    %v1193 = vunpack.c.l.b16 %v196
    %v1194 = vunpack.c.l.b16 %v197
    %v1195 = vunpack.c.l.b16 %v198
    %v1196 = vunpack.c.l.b16 %v199
    %v1197 = vunpack.c.l.b16 %v200
    %v1198 = vunpack.c.l.b16 %v201
    %v1199 = vunpack.c.l.b16 %v202
    %v1200 = vunpack.c.l.b16 %v203
    %v1201 = vunpack.c.l.b16 %v204
    %v1202 = vunpack.c.l.b16 %v205
    %v1203 = vunpack.c.l.b16 %v206
    %v1204 = vunpack.c.l.b16 %v207
    %v1205 = vunpack.c.l.b16 %v208
    %v1206 = vunpack.c.l.b16 %v209
    %v1207 = vunpack.c.l.b16 %v210
    %v1208 = vunpack.c.l.b16 %v211
    %v1209 = vunpack.c.l.b16 %v212
    %v1210 = vunpack.c.l.b16 %v213
    %v1211 = vunpack.c.l.b16 %v214
    %v1212 = vunpack.c.l.b16 %v215
    %v1213 = vunpack.c.l.b16 %v216
    %v1214 = vunpack.c.l.b16 %v217
    %v1215 = vunpack.c.l.b16 %v218
    %v1216 = vunpack.c.l.b16 %v219
    %v1217 = vunpack.c.l.b16 %v220
    %v1218 = vunpack.c.l.b16 %v221
    %v1219 = vunpack.c.l.b16 %v222
    %v1220 = vunpack.c.l.b16 %v223
    %v1221 = vunpack.c.l.b16 %v224
    %v1222 = vunpack.c.l.b16 %v225
    %v1223 = vunpack.c.l.b16 %v226
    %v1224 = vunpack.c.l.b16 %v227
    %v1225 = vunpack.c.l.b16 %v228
    %v1226 = vunpack.c.l.b16 %v229
    %v1227 = vunpack.c.l.b16 %v230
    %v1228 = vunpack.c.l.b16 %v231
    %v1229 = vunpack.c.l.b16 %v232
    %v1230 = vunpack.c.l.b16 %v233
    %v1231 = vunpack.c.l.b16 %v234
    %v1232 = vunpack.c.l.b16 %v235
    %v1233 = vunpack.c.l.b16 %v236
    %v1234 = vunpack.c.l.b16 %v237
    %v1235 = vunpack.c.l.b16 %v238
    %v1236 = vunpack.c.l.b16 %v239
    %v1237 = vunpack.c.l.b16 %v240
    %v1238 = vunpack.c.l.b16 %v241
    %v1239 = vunpack.c.l.b16 %v242
    %v1240 = vunpack.c.l.b16 %v243
    %v1241 = vunpack.c.l.b16 %v244
    %v1242 = vunpack.c.l.b16 %v245
    %v1243 = vunpack.c.l.b16 %v246
    %v1244 = vunpack.c.l.b16 %v247
    %v1245 = vunpack.c.l.b16 %v248
    %v1246 = vunpack.c.l.b16 %v249
    %v1247 = vunpack.c.l.b16 %v250
    %v1248 = vunpack.c.l.b16 %v251
    %v1249 = vunpack.c.l.b16 %v252
    %v1250 = vunpack.c.l.b16 %v253
    %v1251 = vunpack.c.l.b16 %v254
    %v1252 = vunpack.c.l.b16 %v255
    %v1253 = vunpack.c.l.b16 %v256
    %v1254 = vunpack.c.l.b16 %v257
    %v1255 = vunpack.c.l.b16 %v258
    %v1256 = vunpack.c.l.b16 %v259
    %v1257 = vunpack.c.l.b16 %v260
    %v1258 = vunpack.c.l.b16 %v261
    %v1259 = vunpack.c.l.b16 %v262
    %v1260 = vunpack.c.l.b16 %v263
    %v1261 = vunpack.c.l.b16 %v264
    %v1262 = vunpack.c.l.b16 %v265
    %v1263 = vunpack.c.l.b16 %v266
    %v1264 = vunpack.c.l.b16 %v267
    %v1265 = vunpack.c.l.b16 %v268
    %v1266 = vunpack.c.l.b16 %v269
    %v1267 = vunpack.c.l.b16 %v270
    %v1268 = vunpack.c.l.b16 %v271
    %v1269 = vunpack.c.l.b16 %v272
    %v1270 = vunpack.c.l.b16 %v273
    %v1271 = vunpack.c.l.b16 %v274
    %v1272 = vunpack.c.l.b16 %v275
    %v1273 = vunpack.c.l.b16 %v276
    %v1274 = vunpack.c.l.b16 %v277
    %v1275 = vunpack.c.l.b16 %v278
    %v1276 = vunpack.c.l.b16 %v279
    %v1277 = vunpack.c.l.b16 %v280
    %v1278 = vunpack.c.l.b16 %v281
    %v1279 = vunpack.c.l.b16 %v282
    %v1280 = vunpack.c.l.b16 %v283
    %v1281 = vunpack.c.l.b16 %v284
    %v1282 = vunpack.c.l.b16 %v285
    %v1283 = vunpack.c.l.b16 %v286
    %v1284 = vunpack.c.l.b16 %v287
    %v1285 = vunpack.c.l.b16 %v288
    %v1286 = vunpack.c.l.b16 %v289
    %v1287 = vunpack.c.l.b16 %v290
    %v1288 = vunpack.c.l.b16 %v291
    %v1289 = vunpack.c.l.b16 %v292
    %v1290 = vunpack.c.l.b16 %v293
    %v1291 = vunpack.c.l.b16 %v294
    %v1292 = vunpack.c.l.b16 %v295
    %v1293 = vunpack.c.l.b16 %v296
    %v1294 = vunpack.c.l.b16 %v297
    %v1295 = vunpack.c.l.b16 %v298
    %v1296 = vunpack.c.l.b16 %v299
    %v1297 = vunpack.c.l.b16 %v300
    %v1298 = vunpack.c.l.b16 %v301
    %v1299 = vunpack.c.l.b16 %v302
    %v1300 = vunpack.c.l.b16 %v303
    %v1301 = vunpack.c.l.b16 %v304
    %v1302 = vunpack.c.l.b16 %v305
    %v1303 = vunpack.c.l.b16 %v306
    %v1304 = vunpack.c.l.b16 %v307
    %v1305 = vunpack.c.l.b16 %v308
    %v1306 = vunpack.c.l.b16 %v309
    %v1307 = vunpack.c.l.b16 %v310
    %v1308 = vunpack.c.l.b16 %v311
    %v1309 = vunpack.c.l.b16 %v312
    %v1310 = vunpack.c.l.b16 %v313
    %v1311 = vunpack.c.l.b16 %v314
    %v1312 = vunpack.c.l.b16 %v315
    %v1313 = vunpack.c.l.b16 %v316
    %v1314 = vunpack.c.l.b16 %v317
    %v1315 = vunpack.c.l.b16 %v318
    %v1316 = vunpack.c.l.b16 %v319
    %v1317 = vunpack.c.l.b16 %v320
    %v1318 = vunpack.c.l.b16 %v321
    %v1319 = vunpack.c.l.b16 %v322
    %v1320 = vunpack.c.l.b16 %v323
    %v1321 = vunpack.c.l.b16 %v324
    %v1322 = vunpack.c.l.b16 %v325
    %v1323 = vunpack.c.l.b16 %v326
    %v1324 = vunpack.c.l.b16 %v327
    %v1325 = vunpack.c.l.b16 %v328
    %v1326 = vunpack.c.l.b16 %v329
    %v1327 = vunpack.c.l.b16 %v330
    %v1328 = vunpack.c.l.b16 %v331
    %v1329 = vunpack.c.l.b16 %v332
    %v1330 = vunpack.c.l.b16 %v333
    %v1331 = vunpack.c.l.b16 %v334
    %v1332 = vunpack.c.l.b16 %v335
    %v1333 = vunpack.c.l.b16 %v336
    %v1334 = vunpack.c.l.b16 %v337
    %v1335 = vunpack.c.l.b16 %v338
    %v1336 = vunpack.c.l.b16 %v339
    %v1337 = vunpack.c.l.b16 %v340
    %v1338 = vunpack.c.l.b16 %v341
    %v1339 = vunpack.c.l.b16 %v342
    %v1340 = vunpack.c.l.b16 %v343
    %v1341 = vunpack.c.l.b16 %v344
    %v1342 = vunpack.c.l.b16 %v345
    %v1343 = vunpack.c.l.b16 %v346
    %v1344 = vunpack.c.l.b16 %v347
    %v1345 = vunpack.c.l.b16 %v348
    %v1346 = vunpack.c.l.b16 %v349
    %v1347 = vunpack.c.l.b16 %v350
    %v1348 = vunpack.c.l.b16 %v351
    %v1349 = vunpack.c.l.b16 %v352
    %v1350 = vunpack.c.l.b16 %v353
    %v1351 = vunpack.c.l.b16 %v354
    %v1352 = vunpack.c.l.b16 %v355
    %v1353 = vunpack.c.l.b16 %v356
    %v1354 = vunpack.c.l.b16 %v357
    %v1355 = vunpack.c.l.b16 %v358
    %v1356 = vunpack.c.l.b16 %v359
    %v1357 = vunpack.c.l.b16 %v360
    %v1358 = vunpack.c.l.b16 %v361
    %v1359 = vunpack.c.l.b16 %v362
    %v1360 = vunpack.c.l.b16 %v363
    %v1361 = vunpack.c.l.b16 %v364
    %v1362 = vunpack.c.l.b16 %v365
    %v1363 = vunpack.c.l.b16 %v366
    %v1364 = vunpack.c.l.b16 %v367
    %v1365 = vunpack.c.l.b16 %v368
    %v1366 = vunpack.c.l.b16 %v369
    %v1367 = vunpack.c.l.b16 %v370
    %v1368 = vunpack.c.l.b16 %v371
    %v1369 = vunpack.c.l.b16 %v372
    %v1370 = vunpack.c.l.b16 %v373
    %v1371 = vunpack.c.l.b16 %v374
    %v1372 = vunpack.c.l.b16 %v375
    %v1373 = vunpack.c.l.b16 %v376
    %v1374 = vunpack.c.l.b16 %v377
    %v1375 = vunpack.c.l.b16 %v378
    %v1376 = vunpack.c.l.b16 %v379
    %v1377 = vunpack.c.l.b16 %v380
    %v1378 = vunpack.c.l.b16 %v381
    %v1379 = vunpack.c.l.b16 %v382
    %v1380 = vunpack.c.l.b16 %v383
    %v1381 = vunpack.c.l.b16 %v384
    %v1382 = vunpack.c.l.b16 %v385
    %v1383 = vunpack.c.l.b16 %v386
    %v1384 = vunpack.c.l.b16 %v387
    %v1385 = vunpack.c.l.b16 %v388
    %v1386 = vunpack.c.l.b16 %v389
    %v1387 = vunpack.c.l.b16 %v390
    %v1388 = vunpack.c.l.b16 %v391
    %v1389 = vunpack.c.l.b16 %v392
    %v1390 = vunpack.c.l.b16 %v393
    %v1391 = vunpack.c.l.b16 %v394
    %v1392 = vunpack.c.l.b16 %v395
    %v1393 = vunpack.c.l.b16 %v396
    %v1394 = vunpack.c.l.b16 %v397
    %v1395 = vunpack.c.l.b16 %v398
    %v1396 = vunpack.c.l.b16 %v399
    %v1397 = vunpack.c.l.b16 %v400
    %v1398 = vunpack.c.l.b16 %v401
    %v1399 = vunpack.c.l.b16 %v402
    %v1400 = vunpack.c.l.b16 %v403
    %v1401 = vunpack.c.l.b16 %v404
    %v1402 = vunpack.c.l.b16 %v405
    %v1403 = vunpack.c.l.b16 %v406
    %v1404 = vunpack.c.l.b16 %v407
    %v1405 = vunpack.c.l.b16 %v408
    %v1406 = vunpack.c.l.b16 %v409
    %v1407 = vunpack.c.l.b16 %v410
    %v1408 = vunpack.c.l.b16 %v411
    %v1409 = vunpack.c.l.b16 %v412
    %v1410 = vunpack.c.l.b16 %v413
    %v1411 = vunpack.c.l.b16 %v414
    %v1412 = vunpack.c.l.b16 %v415
    %v1413 = vunpack.c.l.b16 %v416
    %v1414 = vunpack.c.l.b16 %v417
    %v1415 = vunpack.c.l.b16 %v418
    %v1416 = vunpack.c.l.b16 %v419
    %v1417 = vunpack.c.l.b16 %v420
    %v1418 = vunpack.c.l.b16 %v421
    %v1419 = vunpack.c.l.b16 %v422
    %v1420 = vunpack.c.l.b16 %v423
    %v1421 = vunpack.c.l.b16 %v424
    %v1422 = vunpack.c.l.b16 %v425
    %v1423 = vunpack.c.l.b16 %v426
    %v1424 = vunpack.c.l.b16 %v427
    %v1425 = vunpack.c.l.b16 %v428
    %v1426 = vunpack.c.l.b16 %v429
    %v1427 = vunpack.c.l.b16 %v430
    %v1428 = vunpack.c.l.b16 %v431
    %v1429 = vpack.c.b16 %v1030, %v1029
    %v1430 = vpack.c.b16 %v1032, %v1031
    %v1431 = vpack.c.b16 %v1034, %v1033
    %v1432 = vpack.c.b16 %v1036, %v1035
    %v1433 = vpack.c.b16 %v1038, %v1037
    %v1434 = vpack.c.b16 %v1040, %v1039
    %v1435 = vpack.c.b16 %v1042, %v1041
    %v1436 = vpack.c.b16 %v1044, %v1043
    %v1437 = vpack.c.b16 %v1046, %v1045
    %v1438 = vpack.c.b16 %v1048, %v1047
    %v1439 = vpack.c.b16 %v1050, %v1049
    %v1440 = vpack.c.b16 %v1052, %v1051
    %v1441 = vpack.c.b16 %v1054, %v1053
    %v1442 = vpack.c.b16 %v1056, %v1055
    %v1443 = vpack.c.b16 %v1058, %v1057
    %v1444 = vpack.c.b16 %v1060, %v1059
    %v1445 = vpack.c.b16 %v1062, %v1061
    %v1446 = vpack.c.b16 %v1064, %v1063
    %v1447 = vpack.c.b16 %v1066, %v1065
    %v1448 = vpack.c.b16 %v1068, %v1067
    %v1449 = vpack.c.b16 %v1070, %v1069
    %v1450 = vpack.c.b16 %v1072, %v1071
    %v1451 = vpack.c.b16 %v1074, %v1073
    %v1452 = vpack.c.b16 %v1076, %v1075
    %v1453 = vpack.c.b16 %v1078, %v1077
    %v1454 = vpack.c.b16 %v1080, %v1079
    %v1455 = vpack.c.b16 %v1082, %v1081
    %v1456 = vpack.c.b16 %v1084, %v1083
    %v1457 = vpack.c.b16 %v1086, %v1085
    %v1458 = vpack.c.b16 %v1088, %v1087
    %v1459 = vpack.c.b16 %v1090, %v1089
    %v1460 = vpack.c.b16 %v1092, %v1091
    %v1461 = vpack.c.b16 %v1094, %v1093
    %v1462 = vpack.c.b16 %v1096, %v1095
    %v1463 = vpack.c.b16 %v1098, %v1097
    %v1464 = vpack.c.b16 %v1100, %v1099
    %v1465 = vpack.c.b16 %v1102, %v1101
    %v1466 = vpack.c.b16 %v1104, %v1103
    %v1467 = vpack.c.b16 %v1106, %v1105
    %v1468 = vpack.c.b16 %v1108, %v1107
    %v1469 = vpack.c.b16 %v1110, %v1109
    %v1470 = vpack.c.b16 %v1112, %v1111
    %v1471 = vpack.c.b16 %v1114, %v1113
    %v1472 = vpack.c.b16 %v1116, %v1115
    %v1473 = vpack.c.b16 %v1118, %v1117
    %v1474 = vpack.c.b16 %v1120, %v1119
    %v1475 = vpack.c.b16 %v1122, %v1121
    %v1476 = vpack.c.b16 %v1124, %v1123
    %v1477 = vpack.c.b16 %v1126, %v1125
    %v1478 = vpack.c.b16 %v1128, %v1127
    %v1479 = vpack.c.b16 %v1130, %v1129
    %v1480 = vpack.c.b16 %v1132, %v1131
    %v1481 = vpack.c.b16 %v1134, %v1133
    %v1482 = vpack.c.b16 %v1136, %v1135
    %v1483 = vpack.c.b16 %v1138, %v1137
    %v1484 = vpack.c.b16 %v1140, %v1139
    %v1485 = vpack.c.b16 %v1142, %v1141
    %v1486 = vpack.c.b16 %v1144, %v1143
    %v1487 = vpack.c.b16 %v1146, %v1145
    %v1488 = vpack.c.b16 %v1148, %v1147
    %v1489 = vpack.c.b16 %v1150, %v1149
    %v1490 = vpack.c.b16 %v1152, %v1151
    %v1491 = vpack.c.b16 %v1154, %v1153
    %v1492 = vpack.c.b16 %v1156, %v1155
    %v1493 = vpack.c.b16 %v1158, %v1157
    %v1494 = vpack.c.b16 %v1160, %v1159
    %v1495 = vpack.c.b16 %v1162, %v1161
    %v1496 = vpack.c.b16 %v1164, %v1163
    %v1497 = vpack.c.b16 %v1166, %v1165
    %v1498 = vpack.c.b16 %v1168, %v1167
    %v1499 = vpack.c.b16 %v1170, %v1169
    %v1500 = vpack.c.b16 %v1172, %v1171
    %v1501 = vpack.c.b16 %v1174, %v1173
    %v1502 = vpack.c.b16 %v1176, %v1175
    %v1503 = vpack.c.b16 %v1178, %v1177
    %v1504 = vpack.c.b16 %v1180, %v1179
    %v1505 = vpack.c.b16 %v1182, %v1181
    %v1506 = vpack.c.b16 %v1184, %v1183
    %v1507 = vpack.c.b16 %v1186, %v1185
    %v1508 = vpack.c.b16 %v1188, %v1187
    %v1509 = vpack.c.b16 %v1190, %v1189
    %v1510 = vpack.c.b16 %v1192, %v1191
    %v1511 = vpack.c.b16 %v1194, %v1193
    %v1512 = vpack.c.b16 %v1196, %v1195
    %v1513 = vpack.c.b16 %v1198, %v1197
    %v1514 = vpack.c.b16 %v1200, %v1199
    %v1515 = vpack.c.b16 %v1202, %v1201
    %v1516 = vpack.c.b16 %v1204, %v1203
    %v1517 = vpack.c.b16 %v1206, %v1205
    %v1518 = vpack.c.b16 %v1208, %v1207
    %v1519 = vpack.c.b16 %v1210, %v1209
    %v1520 = vpack.c.b16 %v1212, %v1211
    %v1521 = vpack.c.b16 %v1214, %v1213
    %v1522 = vpack.c.b16 %v1216, %v1215
    %v1523 = vpack.c.b16 %v1218, %v1217
    %v1524 = vpack.c.b16 %v1220, %v1219
    %v1525 = vpack.c.b16 %v1222, %v1221
    %v1526 = vpack.c.b16 %v1224, %v1223
    %v1527 = vpack.c.b16 %v1226, %v1225
    %v1528 = vpack.c.b16 %v1228, %v1227
    %v1529 = vpack.c.b16 %v1230, %v1229
    %v1530 = vpack.c.b16 %v1232, %v1231
    %v1531 = vpack.c.b16 %v1234, %v1233
    %v1532 = vpack.c.b16 %v1236, %v1235
    %v1533 = vpack.c.b16 %v1238, %v1237
    %v1534 = vpack.c.b16 %v1240, %v1239
    %v1535 = vpack.c.b16 %v1242, %v1241
    %v1536 = vpack.c.b16 %v1244, %v1243
    %v1537 = vpack.c.b16 %v1246, %v1245
    %v1538 = vpack.c.b16 %v1248, %v1247
    %v1539 = vpack.c.b16 %v1250, %v1249
    %v1540 = vpack.c.b16 %v1252, %v1251
    %v1541 = vpack.c.b16 %v1254, %v1253
    %v1542 = vpack.c.b16 %v1256, %v1255
    %v1543 = vpack.c.b16 %v1258, %v1257
    %v1544 = vpack.c.b16 %v1260, %v1259
    %v1545 = vpack.c.b16 %v1262, %v1261
    %v1546 = vpack.c.b16 %v1264, %v1263
    %v1547 = vpack.c.b16 %v1266, %v1265
    %v1548 = vpack.c.b16 %v1268, %v1267
    %v1549 = vpack.c.b16 %v1270, %v1269
    %v1550 = vpack.c.b16 %v1272, %v1271
    %v1551 = vpack.c.b16 %v1274, %v1273
    %v1552 = vpack.c.b16 %v1276, %v1275
    %v1553 = vpack.c.b16 %v1278, %v1277
    %v1554 = vpack.c.b16 %v1280, %v1279
    %v1555 = vpack.c.b16 %v1282, %v1281
    %v1556 = vpack.c.b16 %v1284, %v1283
    %v1557 = vpack.c.b16 %v1286, %v1285
    %v1558 = vpack.c.b16 %v1288, %v1287
    %v1559 = vpack.c.b16 %v1290, %v1289
    %v1560 = vpack.c.b16 %v1292, %v1291
    %v1561 = vpack.c.b16 %v1294, %v1293
    %v1562 = vpack.c.b16 %v1296, %v1295
    %v1563 = vpack.c.b16 %v1298, %v1297
    %v1564 = vpack.c.b16 %v1300, %v1299
    %v1565 = vpack.c.b16 %v1302, %v1301
    %v1566 = vpack.c.b16 %v1304, %v1303
    %v1567 = vpack.c.b16 %v1306, %v1305
    %v1568 = vpack.c.b16 %v1308, %v1307
    %v1569 = vpack.c.b16 %v1310, %v1309
    %v1570 = vpack.c.b16 %v1312, %v1311
    %v1571 = vpack.c.b16 %v1314, %v1313
    %v1572 = vpack.c.b16 %v1316, %v1315
    %v1573 = vpack.c.b16 %v1318, %v1317
    %v1574 = vpack.c.b16 %v1320, %v1319
    %v1575 = vpack.c.b16 %v1322, %v1321
    %v1576 = vpack.c.b16 %v1324, %v1323
    %v1577 = vpack.c.b16 %v1326, %v1325
    %v1578 = vpack.c.b16 %v1328, %v1327
    %v1579 = vpack.c.b16 %v1330, %v1329
    %v1580 = vpack.c.b16 %v1332, %v1331
    %v1581 = vpack.c.b16 %v1334, %v1333
    %v1582 = vpack.c.b16 %v1336, %v1335
    %v1583 = vpack.c.b16 %v1338, %v1337
    %v1584 = vpack.c.b16 %v1340, %v1339
    %v1585 = vpack.c.b16 %v1342, %v1341
    %v1586 = vpack.c.b16 %v1344, %v1343
    %v1587 = vpack.c.b16 %v1346, %v1345
    %v1588 = vpack.c.b16 %v1348, %v1347
    %v1589 = vpack.c.b16 %v1350, %v1349
    %v1590 = vpack.c.b16 %v1352, %v1351
    %v1591 = vpack.c.b16 %v1354, %v1353
    %v1592 = vpack.c.b16 %v1356, %v1355
    %v1593 = vpack.c.b16 %v1358, %v1357
    %v1594 = vpack.c.b16 %v1360, %v1359
    %v1595 = vpack.c.b16 %v1362, %v1361
    %v1596 = vpack.c.b16 %v1364, %v1363
    %v1597 = vpack.c.b16 %v1366, %v1365
    %v1598 = vpack.c.b16 %v1368, %v1367
    %v1599 = vpack.c.b16 %v1370, %v1369
    %v1600 = vpack.c.b16 %v1372, %v1371
    %v1601 = vpack.c.b16 %v1374, %v1373
    %v1602 = vpack.c.b16 %v1376, %v1375
    %v1603 = vpack.c.b16 %v1378, %v1377
    %v1604 = vpack.c.b16 %v1380, %v1379
    %v1605 = vpack.c.b16 %v1382, %v1381
    %v1606 = vpack.c.b16 %v1384, %v1383
    %v1607 = vpack.c.b16 %v1386, %v1385
    %v1608 = vpack.c.b16 %v1388, %v1387
    %v1609 = vpack.c.b16 %v1390, %v1389
    %v1610 = vpack.c.b16 %v1392, %v1391
    %v1611 = vpack.c.b16 %v1394, %v1393
    %v1612 = vpack.c.b16 %v1396, %v1395
    %v1613 = vpack.c.b16 %v1398, %v1397
    %v1614 = vpack.c.b16 %v1400, %v1399
    %v1615 = vpack.c.b16 %v1402, %v1401
    %v1616 = vpack.c.b16 %v1404, %v1403
    %v1617 = vpack.c.b16 %v1406, %v1405
    %v1618 = vpack.c.b16 %v1408, %v1407
    %v1619 = vpack.c.b16 %v1410, %v1409
    %v1620 = vpack.c.b16 %v1412, %v1411
    %v1621 = vpack.c.b16 %v1414, %v1413
    %v1622 = vpack.c.b16 %v1416, %v1415
    %v1623 = vpack.c.b16 %v1418, %v1417
    %v1624 = vpack.c.b16 %v1420, %v1419
    %v1625 = vpack.c.b16 %v1422, %v1421
    %v1626 = vpack.c.b16 %v1424, %v1423
    %v1627 = vpack.c.b16 %v1426, %v1425
    %v1628 = vpack.c.b16 %v1428, %v1427
    %1829 = vmatprep.subr.bf16.mxu0 0
    %1830 = vmatpush1.bf16.msra.mxu0 %v1429
    %1831 = vmatprep.subr.bf16.mxu0 0
    %1832 = vmatpush1.bf16.msra.mxu0 %v1430
    %1833 = vmatprep.subr.bf16.mxu0 0
    %1834 = vmatpush1.bf16.msra.mxu0 %v1431
    %1835 = vmatprep.subr.bf16.mxu0 0
    %1836 = vmatpush1.bf16.msra.mxu0 %v1432
    %1837 = vmatprep.subr.bf16.mxu0 0
    %1838 = vmatpush1.bf16.msra.mxu0 %v1433
    %1839 = vmatprep.subr.bf16.mxu0 0
    %1840 = vmatpush1.bf16.msra.mxu0 %v1434
    %1841 = vmatprep.subr.bf16.mxu0 0
    %1842 = vmatpush1.bf16.msra.mxu0 %v1435
    %1843 = vmatprep.subr.bf16.mxu0 0
    %1844 = vmatpush1.bf16.msra.mxu0 %v1436
    %1845 = vmatprep.subr.bf16.mxu0 0
    %1846 = vmatpush1.bf16.msra.mxu0 %v1437
    %1847 = vmatprep.subr.bf16.mxu0 0
    %1848 = vmatpush1.bf16.msra.mxu0 %v1438
    %1849 = vmatprep.subr.bf16.mxu0 0
    %1850 = vmatpush1.bf16.msra.mxu0 %v1439
    %1851 = vmatprep.subr.bf16.mxu0 0
    %1852 = vmatpush1.bf16.msra.mxu0 %v1440
    %1853 = vmatprep.subr.bf16.mxu0 0
    %1854 = vmatpush1.bf16.msra.mxu0 %v1441
    %1855 = vmatprep.subr.bf16.mxu0 0
    %1856 = vmatpush1.bf16.msra.mxu0 %v1442
    %1857 = vmatprep.subr.bf16.mxu0 0
    %1858 = vmatpush1.bf16.msra.mxu0 %v1443
    %1859 = vmatprep.subr.bf16.mxu0 0
    %1860 = vmatpush1.bf16.msra.mxu0 %v1444
    %1861 = vmatprep.mubr.bf16.mxu0 %v480
    %1862 = vmatmul.mubr.bf16.gmra.mrb[0].mxu0 %v466
    %v1863 = vpop.f32.mrb[0].mxu0
    %v1864 = vadd.f32 %v437, %v1863
    %v1865 = vpop.f32.mrb[0].mxu0
    %v1866 = vpop.f32.mrb[0].mxu0
    %v1867 = vpop.f32.mrb[0].mxu0
    %1868 = vdwg.mxu0
    %1869 = vmatprep.subr.bf16.mxu0 0
    %1870 = vmatpush1.bf16.msra.mxu0 %v1445
    %1871 = vmatprep.subr.bf16.mxu0 0
    %1872 = vmatpush1.bf16.msra.mxu0 %v1446
    %1873 = vmatprep.subr.bf16.mxu0 0
    %1874 = vmatpush1.bf16.msra.mxu0 %v1447
    %1875 = vmatprep.subr.bf16.mxu0 0
    %1876 = vmatpush1.bf16.msra.mxu0 %v1448
    %1877 = vmatprep.subr.bf16.mxu0 0
    %1878 = vmatpush1.bf16.msra.mxu0 %v1449
    %1879 = vmatprep.subr.bf16.mxu0 0
    %1880 = vmatpush1.bf16.msra.mxu0 %v1450
    %1881 = vmatprep.subr.bf16.mxu0 0
    %1882 = vmatpush1.bf16.msra.mxu0 %v1451
    %1883 = vmatprep.subr.bf16.mxu0 0
    %1884 = vmatpush1.bf16.msra.mxu0 %v1452
    %1885 = vmatprep.subr.bf16.mxu0 0
    %1886 = vmatpush1.bf16.msra.mxu0 %v1453
    %1887 = vmatprep.subr.bf16.mxu0 0
    %1888 = vmatpush1.bf16.msra.mxu0 %v1454
    %1889 = vmatprep.subr.bf16.mxu0 0
    %1890 = vmatpush1.bf16.msra.mxu0 %v1455
    %1891 = vmatprep.subr.bf16.mxu0 0
    %1892 = vmatpush1.bf16.msra.mxu0 %v1456
    %1893 = vmatprep.subr.bf16.mxu0 0
    %1894 = vmatpush1.bf16.msra.mxu0 %v1457
    %1895 = vmatprep.subr.bf16.mxu0 0
    %1896 = vmatpush1.bf16.msra.mxu0 %v1458
    %1897 = vmatprep.subr.bf16.mxu0 0
    %1898 = vmatpush1.bf16.msra.mxu0 %v1459
    %1899 = vmatprep.subr.bf16.mxu0 0
    %1900 = vmatpush1.bf16.msra.mxu0 %v1460
    %1901 = vmatprep.mubr.bf16.mxu0 %v490
    %1902 = vmatmul.mubr.bf16.gmra.mrb[0].mxu0 %v488
    %v1903 = vpop.f32.mrb[0].mxu0
    %v1904 = vadd.f32 %v1864, %v1903
    %v1905 = vpop.f32.mrb[0].mxu0
    %v1906 = vpop.f32.mrb[0].mxu0
    %v1907 = vpop.f32.mrb[0].mxu0
    %1908 = vdwg.mxu0
    %1909 = vmatprep.subr.bf16.mxu0 0
    %1910 = vmatpush1.bf16.msra.mxu0 %v1461
    %1911 = vmatprep.subr.bf16.mxu0 0
    %1912 = vmatpush1.bf16.msra.mxu0 %v1462
    %1913 = vmatprep.subr.bf16.mxu0 0
    %1914 = vmatpush1.bf16.msra.mxu0 %v1463
    %1915 = vmatprep.subr.bf16.mxu0 0
    %1916 = vmatpush1.bf16.msra.mxu0 %v1464
    %1917 = vmatprep.subr.bf16.mxu0 0
    %1918 = vmatpush1.bf16.msra.mxu0 %v1465
    %1919 = vmatprep.subr.bf16.mxu0 0
    %1920 = vmatpush1.bf16.msra.mxu0 %v1466
    %1921 = vmatprep.subr.bf16.mxu0 0
    %1922 = vmatpush1.bf16.msra.mxu0 %v1467
    %1923 = vmatprep.subr.bf16.mxu0 0
    %1924 = vmatpush1.bf16.msra.mxu0 %v1468
    %1925 = vmatprep.subr.bf16.mxu0 0
    %1926 = vmatpush1.bf16.msra.mxu0 %v1469
    %1927 = vmatprep.subr.bf16.mxu0 0
    %1928 = vmatpush1.bf16.msra.mxu0 %v1470
    %1929 = vmatprep.subr.bf16.mxu0 0
    %1930 = vmatpush1.bf16.msra.mxu0 %v1471
    %1931 = vmatprep.subr.bf16.mxu0 0
    %1932 = vmatpush1.bf16.msra.mxu0 %v1472
    %1933 = vmatprep.subr.bf16.mxu0 0
    %1934 = vmatpush1.bf16.msra.mxu0 %v1473
    %1935 = vmatprep.subr.bf16.mxu0 0
    %1936 = vmatpush1.bf16.msra.mxu0 %v1474
    %1937 = vmatprep.subr.bf16.mxu0 0
    %1938 = vmatpush1.bf16.msra.mxu0 %v1475
    %1939 = vmatprep.subr.bf16.mxu0 0
    %1940 = vmatpush1.bf16.msra.mxu0 %v1476
    %1941 = vmatprep.mubr.bf16.mxu0 %v487
    %1942 = vmatmul.mubr.bf16.gmra.mrb[0].mxu0 %v473
    %v1943 = vpop.f32.mrb[0].mxu0
    %v1944 = vadd.f32 %v1904, %v1943
    %v1945 = vpop.f32.mrb[0].mxu0
    %v1946 = vpop.f32.mrb[0].mxu0
    %v1947 = vpop.f32.mrb[0].mxu0
    %1948 = vdwg.mxu0
    %1949 = vmatprep.subr.bf16.mxu0 0
    %1950 = vmatpush1.bf16.msra.mxu0 %v1477
    %1951 = vmatprep.subr.bf16.mxu0 0
    %1952 = vmatpush1.bf16.msra.mxu0 %v1478
    %1953 = vmatprep.subr.bf16.mxu0 0
    %1954 = vmatpush1.bf16.msra.mxu0 %v1479
    %1955 = vmatprep.subr.bf16.mxu0 0
    %1956 = vmatpush1.bf16.msra.mxu0 %v1480
    %1957 = vmatprep.subr.bf16.mxu0 0
    %1958 = vmatpush1.bf16.msra.mxu0 %v1481
    %1959 = vmatprep.subr.bf16.mxu0 0
    %1960 = vmatpush1.bf16.msra.mxu0 %v1482
    %1961 = vmatprep.subr.bf16.mxu0 0
    %1962 = vmatpush1.bf16.msra.mxu0 %v1483
    %1963 = vmatprep.subr.bf16.mxu0 0
    %1964 = vmatpush1.bf16.msra.mxu0 %v1484
    %1965 = vmatprep.subr.bf16.mxu0 0
    %1966 = vmatpush1.bf16.msra.mxu0 %v1485
    %1967 = vmatprep.subr.bf16.mxu0 0
    %1968 = vmatpush1.bf16.msra.mxu0 %v1486
    %1969 = vmatprep.subr.bf16.mxu0 0
    %1970 = vmatpush1.bf16.msra.mxu0 %v1487
    %1971 = vmatprep.subr.bf16.mxu0 0
    %1972 = vmatpush1.bf16.msra.mxu0 %v1488
    %1973 = vmatprep.subr.bf16.mxu0 0
    %1974 = vmatpush1.bf16.msra.mxu0 %v1489
    %1975 = vmatprep.subr.bf16.mxu0 0
    %1976 = vmatpush1.bf16.msra.mxu0 %v1490
    %1977 = vmatprep.subr.bf16.mxu0 0
    %1978 = vmatpush1.bf16.msra.mxu0 %v1491
    %1979 = vmatprep.subr.bf16.mxu0 0
    %1980 = vmatpush1.bf16.msra.mxu0 %v1492
    %1981 = vmatprep.mubr.bf16.mxu0 %v491
    %1982 = vmatmul.mubr.bf16.gmra.mrb[0].mxu0 %v489
    %v1983 = vpop.f32.mrb[0].mxu0
    %v1984 = vadd.f32 %v1944, %v1983
    %v1985 = vpop.f32.mrb[0].mxu0
    %v1986 = vpop.f32.mrb[0].mxu0
    %v1987 = vpop.f32.mrb[0].mxu0
    %1988 = vdwg.mxu0
    %1989 = vmatprep.subr.bf16.mxu0 0
    %1990 = vmatpush1.bf16.msra.mxu0 %v1493
    %1991 = vmatprep.subr.bf16.mxu0 0
    %1992 = vmatpush1.bf16.msra.mxu0 %v1494
    %1993 = vmatprep.subr.bf16.mxu0 0
    %1994 = vmatpush1.bf16.msra.mxu0 %v1495
    %1995 = vmatprep.subr.bf16.mxu0 0
    %1996 = vmatpush1.bf16.msra.mxu0 %v1496
    %1997 = vmatprep.subr.bf16.mxu0 0
    %1998 = vmatpush1.bf16.msra.mxu0 %v1497
    %1999 = vmatprep.subr.bf16.mxu0 0
    %2000 = vmatpush1.bf16.msra.mxu0 %v1498
    %2001 = vmatprep.subr.bf16.mxu0 0
    %2002 = vmatpush1.bf16.msra.mxu0 %v1499
    %2003 = vmatprep.subr.bf16.mxu0 0
    %2004 = vmatpush1.bf16.msra.mxu0 %v1500
    %2005 = vmatprep.subr.bf16.mxu0 0
    %2006 = vmatpush1.bf16.msra.mxu0 %v1501
    %2007 = vmatprep.subr.bf16.mxu0 0
    %2008 = vmatpush1.bf16.msra.mxu0 %v1502
    %2009 = vmatprep.subr.bf16.mxu0 0
    %2010 = vmatpush1.bf16.msra.mxu0 %v1503
    %2011 = vmatprep.subr.bf16.mxu0 0
    %2012 = vmatpush1.bf16.msra.mxu0 %v1504
    %2013 = vmatprep.subr.bf16.mxu0 0
    %2014 = vmatpush1.bf16.msra.mxu0 %v1505
    %2015 = vmatprep.subr.bf16.mxu0 0
    %2016 = vmatpush1.bf16.msra.mxu0 %v1506
    %2017 = vmatprep.subr.bf16.mxu0 0
    %2018 = vmatpush1.bf16.msra.mxu0 %v1507
    %2019 = vmatprep.subr.bf16.mxu0 0
    %2020 = vmatpush1.bf16.msra.mxu0 %v1508
    %2021 = vmatprep.mubr.bf16.mxu0 %v529
    %2022 = vmatmul.mubr.bf16.gmra.mrb[0].mxu0 %v515
    %v2023 = vpop.f32.mrb[0].mxu0
    %v2024 = vadd.f32 %v1984, %v2023
    %v2025 = vpop.f32.mrb[0].mxu0
    %v2026 = vpop.f32.mrb[0].mxu0
    %v2027 = vpop.f32.mrb[0].mxu0
    %2028 = vdwg.mxu0
    %2029 = vmatprep.subr.bf16.mxu0 0
    %2030 = vmatpush1.bf16.msra.mxu0 %v1509
    %2031 = vmatprep.subr.bf16.mxu0 0
    %2032 = vmatpush1.bf16.msra.mxu0 %v1510
    %2033 = vmatprep.subr.bf16.mxu0 0
    %2034 = vmatpush1.bf16.msra.mxu0 %v1511
    %2035 = vmatprep.subr.bf16.mxu0 0
    %2036 = vmatpush1.bf16.msra.mxu0 %v1512
    %2037 = vmatprep.subr.bf16.mxu0 0
    %2038 = vmatpush1.bf16.msra.mxu0 %v1513
    %2039 = vmatprep.subr.bf16.mxu0 0
    %2040 = vmatpush1.bf16.msra.mxu0 %v1514
    %2041 = vmatprep.subr.bf16.mxu0 0
    %2042 = vmatpush1.bf16.msra.mxu0 %v1515
    %2043 = vmatprep.subr.bf16.mxu0 0
    %2044 = vmatpush1.bf16.msra.mxu0 %v1516
    %2045 = vmatprep.subr.bf16.mxu0 0
    %2046 = vmatpush1.bf16.msra.mxu0 %v1517
    %2047 = vmatprep.subr.bf16.mxu0 0
    %2048 = vmatpush1.bf16.msra.mxu0 %v1518
    %2049 = vmatprep.subr.bf16.mxu0 0
    %2050 = vmatpush1.bf16.msra.mxu0 %v1519
    %2051 = vmatprep.subr.bf16.mxu0 0
    %2052 = vmatpush1.bf16.msra.mxu0 %v1520
    %2053 = vmatprep.subr.bf16.mxu0 0
    %2054 = vmatpush1.bf16.msra.mxu0 %v1521
    %2055 = vmatprep.subr.bf16.mxu0 0
    %2056 = vmatpush1.bf16.msra.mxu0 %v1522
    %2057 = vmatprep.subr.bf16.mxu0 0
    %2058 = vmatpush1.bf16.msra.mxu0 %v1523
    %2059 = vmatprep.subr.bf16.mxu0 0
    %2060 = vmatpush1.bf16.msra.mxu0 %v1524
    %2061 = vmatprep.mubr.bf16.mxu0 %v539
    %2062 = vmatmul.mubr.bf16.gmra.mrb[0].mxu0 %v537
    %v2063 = vpop.f32.mrb[0].mxu0
    %v2064 = vadd.f32 %v2024, %v2063
    %v2065 = vpop.f32.mrb[0].mxu0
    %v2066 = vpop.f32.mrb[0].mxu0
    %v2067 = vpop.f32.mrb[0].mxu0
    %2068 = vdwg.mxu0
    %2069 = vmatprep.subr.bf16.mxu0 0
    %2070 = vmatpush1.bf16.msra.mxu0 %v1525
    %2071 = vmatprep.subr.bf16.mxu0 0
    %2072 = vmatpush1.bf16.msra.mxu0 %v1526
    %2073 = vmatprep.subr.bf16.mxu0 0
    %2074 = vmatpush1.bf16.msra.mxu0 %v1527
    %2075 = vmatprep.subr.bf16.mxu0 0
    %2076 = vmatpush1.bf16.msra.mxu0 %v1528
    %2077 = vmatprep.subr.bf16.mxu0 0
    %2078 = vmatpush1.bf16.msra.mxu0 %v1529
    %2079 = vmatprep.subr.bf16.mxu0 0
    %2080 = vmatpush1.bf16.msra.mxu0 %v1530
    %2081 = vmatprep.subr.bf16.mxu0 0
    %2082 = vmatpush1.bf16.msra.mxu0 %v1531
    %2083 = vmatprep.subr.bf16.mxu0 0
    %2084 = vmatpush1.bf16.msra.mxu0 %v1532
    %2085 = vmatprep.subr.bf16.mxu0 0
    %2086 = vmatpush1.bf16.msra.mxu0 %v1533
    %2087 = vmatprep.subr.bf16.mxu0 0
    %2088 = vmatpush1.bf16.msra.mxu0 %v1534
    %2089 = vmatprep.subr.bf16.mxu0 0
    %2090 = vmatpush1.bf16.msra.mxu0 %v1535
    %2091 = vmatprep.subr.bf16.mxu0 0
    %2092 = vmatpush1.bf16.msra.mxu0 %v1536
    %2093 = vmatprep.subr.bf16.mxu0 0
    %2094 = vmatpush1.bf16.msra.mxu0 %v1537
    %2095 = vmatprep.subr.bf16.mxu0 0
    %2096 = vmatpush1.bf16.msra.mxu0 %v1538
    %2097 = vmatprep.subr.bf16.mxu0 0
    %2098 = vmatpush1.bf16.msra.mxu0 %v1539
    %2099 = vmatprep.subr.bf16.mxu0 0
    %2100 = vmatpush1.bf16.msra.mxu0 %v1540
    %2101 = vmatprep.mubr.bf16.mxu0 %v536
    %2102 = vmatmul.mubr.bf16.gmra.mrb[0].mxu0 %v522
    %v2103 = vpop.f32.mrb[0].mxu0
    %v2104 = vadd.f32 %v2064, %v2103
    %v2105 = vpop.f32.mrb[0].mxu0
    %v2106 = vpop.f32.mrb[0].mxu0
    %v2107 = vpop.f32.mrb[0].mxu0
    %2108 = vdwg.mxu0
    %2109 = vmatprep.subr.bf16.mxu0 0
    %2110 = vmatpush1.bf16.msra.mxu0 %v1541
    %2111 = vmatprep.subr.bf16.mxu0 0
    %2112 = vmatpush1.bf16.msra.mxu0 %v1542
    %2113 = vmatprep.subr.bf16.mxu0 0
    %2114 = vmatpush1.bf16.msra.mxu0 %v1543
    %2115 = vmatprep.subr.bf16.mxu0 0
    %2116 = vmatpush1.bf16.msra.mxu0 %v1544
    %2117 = vmatprep.subr.bf16.mxu0 0
    %2118 = vmatpush1.bf16.msra.mxu0 %v1545
    %2119 = vmatprep.subr.bf16.mxu0 0
    %2120 = vmatpush1.bf16.msra.mxu0 %v1546
    %2121 = vmatprep.subr.bf16.mxu0 0
    %2122 = vmatpush1.bf16.msra.mxu0 %v1547
    %2123 = vmatprep.subr.bf16.mxu0 0
    %2124 = vmatpush1.bf16.msra.mxu0 %v1548
    %2125 = vmatprep.subr.bf16.mxu0 0
    %2126 = vmatpush1.bf16.msra.mxu0 %v1549
    %2127 = vmatprep.subr.bf16.mxu0 0
    %2128 = vmatpush1.bf16.msra.mxu0 %v1550
    %2129 = vmatprep.subr.bf16.mxu0 0
    %2130 = vmatpush1.bf16.msra.mxu0 %v1551
    %2131 = vmatprep.subr.bf16.mxu0 0
    %2132 = vmatpush1.bf16.msra.mxu0 %v1552
    %2133 = vmatprep.subr.bf16.mxu0 0
    %2134 = vmatpush1.bf16.msra.mxu0 %v1553
    %2135 = vmatprep.subr.bf16.mxu0 0
    %2136 = vmatpush1.bf16.msra.mxu0 %v1554
    %2137 = vmatprep.subr.bf16.mxu0 0
    %2138 = vmatpush1.bf16.msra.mxu0 %v1555
    %2139 = vmatprep.subr.bf16.mxu0 0
    %2140 = vmatpush1.bf16.msra.mxu0 %v1556
    %2141 = vmatprep.mubr.bf16.mxu0 %v540
    %2142 = vmatmul.mubr.bf16.gmra.mrb[0].mxu0 %v538
    %v2143 = vpop.f32.mrb[0].mxu0
    %v2144 = vadd.f32 %v2104, %v2143
    %v2145 = vpop.f32.mrb[0].mxu0
    %v2146 = vpop.f32.mrb[0].mxu0
    %v2147 = vpop.f32.mrb[0].mxu0
    %2148 = vdwg.mxu0
    %2149 = vmatprep.subr.bf16.mxu0 0
    %2150 = vmatpush1.bf16.msra.mxu0 %v1557
    %2151 = vmatprep.subr.bf16.mxu0 0
    %2152 = vmatpush1.bf16.msra.mxu0 %v1558
    %2153 = vmatprep.subr.bf16.mxu0 0
    %2154 = vmatpush1.bf16.msra.mxu0 %v1559
    %2155 = vmatprep.subr.bf16.mxu0 0
    %2156 = vmatpush1.bf16.msra.mxu0 %v1560
    %2157 = vmatprep.subr.bf16.mxu0 0
    %2158 = vmatpush1.bf16.msra.mxu0 %v1561
    %2159 = vmatprep.subr.bf16.mxu0 0
    %2160 = vmatpush1.bf16.msra.mxu0 %v1562
    %2161 = vmatprep.subr.bf16.mxu0 0
    %2162 = vmatpush1.bf16.msra.mxu0 %v1563
    %2163 = vmatprep.subr.bf16.mxu0 0
    %2164 = vmatpush1.bf16.msra.mxu0 %v1564
    %2165 = vmatprep.subr.bf16.mxu0 0
    %2166 = vmatpush1.bf16.msra.mxu0 %v1565
    %2167 = vmatprep.subr.bf16.mxu0 0
    %2168 = vmatpush1.bf16.msra.mxu0 %v1566
    %2169 = vmatprep.subr.bf16.mxu0 0
    %2170 = vmatpush1.bf16.msra.mxu0 %v1567
    %2171 = vmatprep.subr.bf16.mxu0 0
    %2172 = vmatpush1.bf16.msra.mxu0 %v1568
    %2173 = vmatprep.subr.bf16.mxu0 0
    %2174 = vmatpush1.bf16.msra.mxu0 %v1569
    %2175 = vmatprep.subr.bf16.mxu0 0
    %2176 = vmatpush1.bf16.msra.mxu0 %v1570
    %2177 = vmatprep.subr.bf16.mxu0 0
    %2178 = vmatpush1.bf16.msra.mxu0 %v1571
    %2179 = vmatprep.subr.bf16.mxu0 0
    %2180 = vmatpush1.bf16.msra.mxu0 %v1572
    %2181 = vmatprep.mubr.bf16.mxu0 %v578
    %2182 = vmatmul.mubr.bf16.gmra.mrb[0].mxu0 %v564
    %v2183 = vpop.f32.mrb[0].mxu0
    %v2184 = vadd.f32 %v2144, %v2183
    %v2185 = vpop.f32.mrb[0].mxu0
    %v2186 = vpop.f32.mrb[0].mxu0
    %v2187 = vpop.f32.mrb[0].mxu0
    %2188 = vdwg.mxu0
    %2189 = vmatprep.subr.bf16.mxu0 0
    %2190 = vmatpush1.bf16.msra.mxu0 %v1573
    %2191 = vmatprep.subr.bf16.mxu0 0
    %2192 = vmatpush1.bf16.msra.mxu0 %v1574
    %2193 = vmatprep.subr.bf16.mxu0 0
    %2194 = vmatpush1.bf16.msra.mxu0 %v1575
    %2195 = vmatprep.subr.bf16.mxu0 0
    %2196 = vmatpush1.bf16.msra.mxu0 %v1576
    %2197 = vmatprep.subr.bf16.mxu0 0
    %2198 = vmatpush1.bf16.msra.mxu0 %v1577
    %2199 = vmatprep.subr.bf16.mxu0 0
    %2200 = vmatpush1.bf16.msra.mxu0 %v1578
    %2201 = vmatprep.subr.bf16.mxu0 0
    %2202 = vmatpush1.bf16.msra.mxu0 %v1579
    %2203 = vmatprep.subr.bf16.mxu0 0
    %2204 = vmatpush1.bf16.msra.mxu0 %v1580
    %2205 = vmatprep.subr.bf16.mxu0 0
    %2206 = vmatpush1.bf16.msra.mxu0 %v1581
    %2207 = vmatprep.subr.bf16.mxu0 0
    %2208 = vmatpush1.bf16.msra.mxu0 %v1582
    %2209 = vmatprep.subr.bf16.mxu0 0
    %2210 = vmatpush1.bf16.msra.mxu0 %v1583
    %2211 = vmatprep.subr.bf16.mxu0 0
    %2212 = vmatpush1.bf16.msra.mxu0 %v1584
    %2213 = vmatprep.subr.bf16.mxu0 0
    %2214 = vmatpush1.bf16.msra.mxu0 %v1585
    %2215 = vmatprep.subr.bf16.mxu0 0
    %2216 = vmatpush1.bf16.msra.mxu0 %v1586
    %2217 = vmatprep.subr.bf16.mxu0 0
    %2218 = vmatpush1.bf16.msra.mxu0 %v1587
    %2219 = vmatprep.subr.bf16.mxu0 0
    %2220 = vmatpush1.bf16.msra.mxu0 %v1588
    %2221 = vmatprep.mubr.bf16.mxu0 %v588
    %2222 = vmatmul.mubr.bf16.gmra.mrb[0].mxu0 %v586
    %v2223 = vpop.f32.mrb[0].mxu0
    %v2224 = vadd.f32 %v2184, %v2223
    %v2225 = vpop.f32.mrb[0].mxu0
    %v2226 = vpop.f32.mrb[0].mxu0
    %v2227 = vpop.f32.mrb[0].mxu0
    %2228 = vdwg.mxu0
    %2229 = vmatprep.subr.bf16.mxu0 0
    %2230 = vmatpush1.bf16.msra.mxu0 %v1589
    %2231 = vmatprep.subr.bf16.mxu0 0
    %2232 = vmatpush1.bf16.msra.mxu0 %v1590
    %2233 = vmatprep.subr.bf16.mxu0 0
    %2234 = vmatpush1.bf16.msra.mxu0 %v1591
    %2235 = vmatprep.subr.bf16.mxu0 0
    %2236 = vmatpush1.bf16.msra.mxu0 %v1592
    %2237 = vmatprep.subr.bf16.mxu0 0
    %2238 = vmatpush1.bf16.msra.mxu0 %v1593
    %2239 = vmatprep.subr.bf16.mxu0 0
    %2240 = vmatpush1.bf16.msra.mxu0 %v1594
    %2241 = vmatprep.subr.bf16.mxu0 0
    %2242 = vmatpush1.bf16.msra.mxu0 %v1595
    %2243 = vmatprep.subr.bf16.mxu0 0
    %2244 = vmatpush1.bf16.msra.mxu0 %v1596
    %2245 = vmatprep.subr.bf16.mxu0 0
    %2246 = vmatpush1.bf16.msra.mxu0 %v1597
    %2247 = vmatprep.subr.bf16.mxu0 0
    %2248 = vmatpush1.bf16.msra.mxu0 %v1598
    %2249 = vmatprep.subr.bf16.mxu0 0
    %2250 = vmatpush1.bf16.msra.mxu0 %v1599
    %2251 = vmatprep.subr.bf16.mxu0 0
    %2252 = vmatpush1.bf16.msra.mxu0 %v1600
    %2253 = vmatprep.subr.bf16.mxu0 0
    %2254 = vmatpush1.bf16.msra.mxu0 %v1601
    %2255 = vmatprep.subr.bf16.mxu0 0
    %2256 = vmatpush1.bf16.msra.mxu0 %v1602
    %2257 = vmatprep.subr.bf16.mxu0 0
    %2258 = vmatpush1.bf16.msra.mxu0 %v1603
    %2259 = vmatprep.subr.bf16.mxu0 0
    %2260 = vmatpush1.bf16.msra.mxu0 %v1604
    %2261 = vmatprep.mubr.bf16.mxu0 %v585
    %2262 = vmatmul.mubr.bf16.gmra.mrb[0].mxu0 %v571
    %v2263 = vpop.f32.mrb[0].mxu0
    %v2264 = vadd.f32 %v2224, %v2263
    %v2265 = vpop.f32.mrb[0].mxu0
    %v2266 = vpop.f32.mrb[0].mxu0
    %v2267 = vpop.f32.mrb[0].mxu0
    %2268 = vdwg.mxu0
    %2269 = vmatprep.subr.bf16.mxu0 0
    %2270 = vmatpush1.bf16.msra.mxu0 %v1605
    %2271 = vmatprep.subr.bf16.mxu0 0
    %2272 = vmatpush1.bf16.msra.mxu0 %v1606
    %2273 = vmatprep.subr.bf16.mxu0 0
    %2274 = vmatpush1.bf16.msra.mxu0 %v1607
    %2275 = vmatprep.subr.bf16.mxu0 0
    %2276 = vmatpush1.bf16.msra.mxu0 %v1608
    %2277 = vmatprep.subr.bf16.mxu0 0
    %2278 = vmatpush1.bf16.msra.mxu0 %v1609
    %2279 = vmatprep.subr.bf16.mxu0 0
    %2280 = vmatpush1.bf16.msra.mxu0 %v1610
    %2281 = vmatprep.subr.bf16.mxu0 0
    %2282 = vmatpush1.bf16.msra.mxu0 %v1611
    %2283 = vmatprep.subr.bf16.mxu0 0
    %2284 = vmatpush1.bf16.msra.mxu0 %v1612
    %2285 = vmatprep.subr.bf16.mxu0 0
    %2286 = vmatpush1.bf16.msra.mxu0 %v1613
    %2287 = vmatprep.subr.bf16.mxu0 0
    %2288 = vmatpush1.bf16.msra.mxu0 %v1614
    %2289 = vmatprep.subr.bf16.mxu0 0
    %2290 = vmatpush1.bf16.msra.mxu0 %v1615
    %2291 = vmatprep.subr.bf16.mxu0 0
    %2292 = vmatpush1.bf16.msra.mxu0 %v1616
    %2293 = vmatprep.subr.bf16.mxu0 0
    %2294 = vmatpush1.bf16.msra.mxu0 %v1617
    %2295 = vmatprep.subr.bf16.mxu0 0
    %2296 = vmatpush1.bf16.msra.mxu0 %v1618
    %2297 = vmatprep.subr.bf16.mxu0 0
    %2298 = vmatpush1.bf16.msra.mxu0 %v1619
    %2299 = vmatprep.subr.bf16.mxu0 0
    %2300 = vmatpush1.bf16.msra.mxu0 %v1620
    %2301 = vmatprep.mubr.bf16.mxu0 %v589
    %2302 = vmatmul.mubr.bf16.gmra.mrb[0].mxu0 %v587
    %v2303 = vpop.f32.mrb[0].mxu0
    %v2304 = vadd.f32 %v2264, %v2303
    %v2305 = vpop.f32.mrb[0].mxu0
    %v2306 = vpop.f32.mrb[0].mxu0
    %v2307 = vpop.f32.mrb[0].mxu0
    %2308 = vdwg.mxu0
    %2309 = vmatprep.subr.bf16.mxu0 0
    %2310 = vmatpush1.bf16.msra.mxu0 %v1621
    %2311 = vmatprep.subr.bf16.mxu0 0
    %2312 = vmatpush1.bf16.msra.mxu0 %v1622
    %2313 = vmatprep.subr.bf16.mxu0 0
    %2314 = vmatpush1.bf16.msra.mxu0 %v1623
    %2315 = vmatprep.subr.bf16.mxu0 0
    %2316 = vmatpush1.bf16.msra.mxu0 %v1624
    %2317 = vmatprep.subr.bf16.mxu0 0
    %2318 = vmatpush1.bf16.msra.mxu0 %v1625
    %2319 = vmatprep.subr.bf16.mxu0 0
    %2320 = vmatpush1.bf16.msra.mxu0 %v1626
    %2321 = vmatprep.subr.bf16.mxu0 0
    %2322 = vmatpush1.bf16.msra.mxu0 %v1627
    %2323 = vmatprep.subr.bf16.mxu0 0
    %2324 = vmatpush1.bf16.msra.mxu0 %v1628
    %2325 = vmatprep.subr.bf16.mxu0 0
    %2326 = vmatpush1.bf16.msra.mxu0 0
    %2327 = vmatprep.subr.bf16.mxu0 0
    %2328 = vmatpush1.bf16.msra.mxu0 0
    %2329 = vmatprep.subr.bf16.mxu0 0
    %2330 = vmatpush1.bf16.msra.mxu0 0
    %2331 = vmatprep.subr.bf16.mxu0 0
    %2332 = vmatpush1.bf16.msra.mxu0 0
    %2333 = vmatprep.subr.bf16.mxu0 0
    %2334 = vmatpush1.bf16.msra.mxu0 0
    %2335 = vmatprep.subr.bf16.mxu0 0
    %2336 = vmatpush1.bf16.msra.mxu0 0
    %2337 = vmatprep.subr.bf16.mxu0 0
    %2338 = vmatpush1.bf16.msra.mxu0 0
    %2339 = vmatprep.subr.bf16.mxu0 0
    %2340 = vmatpush1.bf16.msra.mxu0 0
    %2341 = vmatprep.mubr.bf16.mxu0 0
    %2342 = vmatmul.mubr.bf16.gmra.mrb[0].mxu0 %v603
    %v2343 = vpop.f32.mrb[0].mxu0
    %v2344 = vadd.f32 %v2304, %v2343
    %v2345 = vpop.f32.mrb[0].mxu0
    %v2346 = vpop.f32.mrb[0].mxu0
    %v2347 = vpop.f32.mrb[0].mxu0
    %2348 = vdwg.mxu0
    %v2349 = vmax.f32 %v2344, 0.0
    %v2350 = vpack.c.bf16 %v2349, %v2349
    %v2351 = vld [vmem:[%s3] sm:$0xf]
    %v2352 = vld [vmem:[%s3 + $0x4] sm:$0xf]
    %v2353 = vld [vmem:[%s3 + $0x8] sm:$0xf]
    %v2354 = vld [vmem:[%s3 + $0xc] sm:$0xf]
    %v2355 = vld [vmem:[%s3 + $0x10] sm:$0xf]
    %v2356 = vld [vmem:[%s3 + $0x14] sm:$0xf]
    %v2357 = vld [vmem:[%s3 + $0x18] sm:$0xf]
    %v2358 = vld [vmem:[%s3 + $0x1c] sm:$0xf]
    %v2359 = vld [vmem:[%s3 + $0x20] sm:$0xf]
    %v2360 = vld [vmem:[%s3 + $0x24] sm:$0xf]
    %v2361 = vld [vmem:[%s3 + $0x28] sm:$0xf]
    %v2362 = vld [vmem:[%s3 + $0x2c] sm:$0xf]
    %v2363 = vld [vmem:[%s3 + $0x30] sm:$0xf]
    %v2364 = vld [vmem:[%s3 + $0x34] sm:$0xf]
    %v2365 = vld [vmem:[%s3 + $0x38] sm:$0xf]
    %v2366 = vld [vmem:[%s3 + $0x3c] sm:$0xf]
    %v2367 = vld [vmem:[%s4] sm:$0x1]
    %v2369 = vlaneseq
    %v2370 = vshrl.u32 %v2369, 7
    %v2371 = vsub.s32 0, %v2370
    %v2372 = vrot.slane %v2367, %v2371
    %v2390 = vunpack.c.l.b16 %v2351
    %v2391 = vunpack.c.l.b16 %v2352
    %v2392 = vunpack.c.l.b16 %v2353
    %v2393 = vunpack.c.l.b16 %v2354
    %v2394 = vunpack.c.l.b16 %v2355
    %v2395 = vunpack.c.l.b16 %v2356
    %v2396 = vunpack.c.l.b16 %v2357
    %v2397 = vunpack.c.l.b16 %v2358
    %v2398 = vunpack.c.l.b16 %v2359
    %v2399 = vunpack.c.l.b16 %v2360
    %v2400 = vunpack.c.l.b16 %v2361
    %v2401 = vunpack.c.l.b16 %v2362
    %v2402 = vunpack.c.l.b16 %v2363
    %v2403 = vunpack.c.l.b16 %v2364
    %v2404 = vunpack.c.l.b16 %v2365
    %v2405 = vunpack.c.l.b16 %v2366
    %v2406 = vpack.c.b16 %v2391, %v2390
    %v2407 = vpack.c.b16 %v2393, %v2392
    %v2408 = vpack.c.b16 %v2395, %v2394
    %v2409 = vpack.c.b16 %v2397, %v2396
    %v2410 = vpack.c.b16 %v2399, %v2398
    %v2411 = vpack.c.b16 %v2401, %v2400
    %v2412 = vpack.c.b16 %v2403, %v2402
    %v2413 = vpack.c.b16 %v2405, %v2404
    %2422 = vmatprep.subr.bf16.mxu0 0
    %2423 = vmatpush1.bf16.msra.mxu0 %v2406
    %2424 = vmatprep.subr.bf16.mxu0 0
    %2425 = vmatpush1.bf16.msra.mxu0 %v2407
    %2426 = vmatprep.subr.bf16.mxu0 0
    %2427 = vmatpush1.bf16.msra.mxu0 %v2408
    %2428 = vmatprep.subr.bf16.mxu0 0
    %2429 = vmatpush1.bf16.msra.mxu0 %v2409
    %2430 = vmatprep.subr.bf16.mxu0 0
    %2431 = vmatpush1.bf16.msra.mxu0 %v2410
    %2432 = vmatprep.subr.bf16.mxu0 0
    %2433 = vmatpush1.bf16.msra.mxu0 %v2411
    %2434 = vmatprep.subr.bf16.mxu0 0
    %2435 = vmatpush1.bf16.msra.mxu0 %v2412
    %2436 = vmatprep.subr.bf16.mxu0 0
    %2437 = vmatpush1.bf16.msra.mxu0 %v2413
    %2438 = vmatprep.subr.bf16.mxu0 0
    %2439 = vmatpush1.bf16.msra.mxu0 0
    %2440 = vmatprep.subr.bf16.mxu0 0
    %2441 = vmatpush1.bf16.msra.mxu0 0
    %2442 = vmatprep.subr.bf16.mxu0 0
    %2443 = vmatpush1.bf16.msra.mxu0 0
    %2444 = vmatprep.subr.bf16.mxu0 0
    %2445 = vmatpush1.bf16.msra.mxu0 0
    %2446 = vmatprep.subr.bf16.mxu0 0
    %2447 = vmatpush1.bf16.msra.mxu0 0
    %2448 = vmatprep.subr.bf16.mxu0 0
    %2449 = vmatpush1.bf16.msra.mxu0 0
    %2450 = vmatprep.subr.bf16.mxu0 0
    %2451 = vmatpush1.bf16.msra.mxu0 0
    %2452 = vmatprep.subr.bf16.mxu0 0
    %2453 = vmatpush1.bf16.msra.mxu0 0
    %2454 = vmatprep.mubr.bf16.mxu0 0
    %2455 = vmatmul.mubr.bf16.gmra.mrb[0].mxu0 %v2350
    %v2456 = vpop.f32.mrb[0].mxu0
    %v2457 = vadd.f32 %v2372, %v2456
    %v2458 = vpop.f32.mrb[0].mxu0
    %v2459 = vpop.f32.mrb[0].mxu0
    %v2460 = vpop.f32.mrb[0].mxu0
    %2461 = vdwg.mxu0
    %v2462 = vmax.f32 %v2457, 0.0
    %v2463 = vpack.c.bf16 %v2462, %v2462
    %v2464 = vld [vmem:[%s5] sm:$0xf]
    %v2465 = vld [vmem:[%s5 + $0x4] sm:$0xf]
    %v2466 = vld [vmem:[%s5 + $0x8] sm:$0xf]
    %v2467 = vld [vmem:[%s5 + $0xc] sm:$0xf]
    %v2468 = vld [vmem:[%s5 + $0x10] sm:$0xf]
    %v2469 = vld [vmem:[%s5 + $0x14] sm:$0xf]
    %v2470 = vld [vmem:[%s5 + $0x18] sm:$0xf]
    %v2471 = vld [vmem:[%s5 + $0x1c] sm:$0xf]
    %v2472 = vld [vmem:[%s5 + $0x20] sm:$0xf]
    %v2473 = vld [vmem:[%s5 + $0x24] sm:$0xf]
    %v2474 = vld [vmem:[%s5 + $0x28] sm:$0xf]
    %v2475 = vld [vmem:[%s5 + $0x2c] sm:$0xf]
    %v2476 = vld [vmem:[%s5 + $0x30] sm:$0xf]
    %v2477 = vld [vmem:[%s5 + $0x34] sm:$0xf]
    %v2478 = vld [vmem:[%s5 + $0x38] sm:$0xf]
    %v2479 = vld [vmem:[%s5 + $0x3c] sm:$0xf]
    %v2480 = vld [vmem:[%s6] sm:$0x1]
    %v2482 = vlaneseq
    %v2483 = vshrl.u32 %v2482, 7
    %v2484 = vsub.s32 0, %v2483
    %v2485 = vrot.slane %v2480, %v2484
    %v2503 = vunpack.c.l.b16 %v2464
    %v2504 = vunpack.c.l.b16 %v2465
    %v2505 = vunpack.c.l.b16 %v2466
    %v2506 = vunpack.c.l.b16 %v2467
    %v2507 = vunpack.c.l.b16 %v2468
    %v2508 = vunpack.c.l.b16 %v2469
    %v2509 = vunpack.c.l.b16 %v2470
    %v2510 = vunpack.c.l.b16 %v2471
    %v2511 = vunpack.c.l.b16 %v2472
    %v2512 = vunpack.c.l.b16 %v2473
    %v2513 = vunpack.c.l.b16 %v2474
    %v2514 = vunpack.c.l.b16 %v2475
    %v2515 = vunpack.c.l.b16 %v2476
    %v2516 = vunpack.c.l.b16 %v2477
    %v2517 = vunpack.c.l.b16 %v2478
    %v2518 = vunpack.c.l.b16 %v2479
    %v2519 = vpack.c.b16 %v2504, %v2503
    %v2520 = vpack.c.b16 %v2506, %v2505
    %v2521 = vpack.c.b16 %v2508, %v2507
    %v2522 = vpack.c.b16 %v2510, %v2509
    %v2523 = vpack.c.b16 %v2512, %v2511
    %v2524 = vpack.c.b16 %v2514, %v2513
    %v2525 = vpack.c.b16 %v2516, %v2515
    %v2526 = vpack.c.b16 %v2518, %v2517
    %2535 = vmatprep.subr.bf16.mxu0 0
    %2536 = vmatpush1.bf16.msra.mxu0 %v2519
    %2537 = vmatprep.subr.bf16.mxu0 0
    %2538 = vmatpush1.bf16.msra.mxu0 %v2520
    %2539 = vmatprep.subr.bf16.mxu0 0
    %2540 = vmatpush1.bf16.msra.mxu0 %v2521
    %2541 = vmatprep.subr.bf16.mxu0 0
    %2542 = vmatpush1.bf16.msra.mxu0 %v2522
    %2543 = vmatprep.subr.bf16.mxu0 0
    %2544 = vmatpush1.bf16.msra.mxu0 %v2523
    %2545 = vmatprep.subr.bf16.mxu0 0
    %2546 = vmatpush1.bf16.msra.mxu0 %v2524
    %2547 = vmatprep.subr.bf16.mxu0 0
    %2548 = vmatpush1.bf16.msra.mxu0 %v2525
    %2549 = vmatprep.subr.bf16.mxu0 0
    %2550 = vmatpush1.bf16.msra.mxu0 %v2526
    %2551 = vmatprep.subr.bf16.mxu0 0
    %2552 = vmatpush1.bf16.msra.mxu0 0
    %2553 = vmatprep.subr.bf16.mxu0 0
    %2554 = vmatpush1.bf16.msra.mxu0 0
    %2555 = vmatprep.subr.bf16.mxu0 0
    %2556 = vmatpush1.bf16.msra.mxu0 0
    %2557 = vmatprep.subr.bf16.mxu0 0
    %2558 = vmatpush1.bf16.msra.mxu0 0
    %2559 = vmatprep.subr.bf16.mxu0 0
    %2560 = vmatpush1.bf16.msra.mxu0 0
    %2561 = vmatprep.subr.bf16.mxu0 0
    %2562 = vmatpush1.bf16.msra.mxu0 0
    %2563 = vmatprep.subr.bf16.mxu0 0
    %2564 = vmatpush1.bf16.msra.mxu0 0
    %2565 = vmatprep.subr.bf16.mxu0 0
    %2566 = vmatpush1.bf16.msra.mxu0 0
    %2567 = vmatprep.mubr.bf16.mxu0 0
    %2568 = vmatmul.mubr.bf16.gmra.mrb[0].mxu0 %v2463
    %v2569 = vpop.f32.mrb[0].mxu0
    %v2570 = vadd.f32 %v2485, %v2569
    %v2571 = vpop.f32.mrb[0].mxu0
    %v2572 = vpop.f32.mrb[0].mxu0
    %v2573 = vpop.f32.mrb[0].mxu0
    %2574 = vdwg.mxu0
    %2575 = vst [vmem:[#allocation2] sm:$0x3] %v2570
    // Predicated region
    $region30: #{lenet_forward.5} parent=1 // pred_check
      _
    $region31: #{lenet_forward.5} parent=1 // pred_check_branch
      %2577 = sbr.rel (0) target = $region33
    $region32: #{lenet_forward.5} parent=1 // pred_region
      %s2579 = ssub.s32 32, 32
      %2580 = vsyncadd [#allocation3], %s2579
      %s2582 = sshll.u32 [#allocation2], 4
      %s2583 = int_to_ptr.vmem [resolvable:$true] %s2582
      %2585 = dma.vmem_to_hbm [thread:$0]  %s2583, 32, %s7, [#allocation3]
    $region33: #{lenet_forward.5} parent=1 // pred_fallthru
      _
    // Predicated region
    $region34: #{lenet_forward.5} parent=1 // pred_check
      _
    $region35: #{lenet_forward.5} parent=1 // pred_check_branch
      %2587 = sbr.rel (0) target = $region37
    $region36: #{lenet_forward.5} parent=1 // pred_region
      %2588 = dma.done [#allocation3], 32
    $region37: #{lenet_forward.5} parent=1 // pred_fallthru
      _
    %2589 = vsyncpa [#allocation3], 1

// kernel: lenet_forward.4
$region0: #{lenet_forward.4}
  #allocation0 [shape = 'u32[]', space=smem, size = 0x4, offset = 0x4, fixed_abs, tag = 'smem constant byte address 0x4 - core index']
  #allocation1 [shape = 'u32[144,128]{1,0:T(1,128)}', space=vmem, size = 0x12000, scoped, tag = 'internal scratch']
  %s0 = inlined_call_operand.vmem [shape: bf16[2,14,14,128], index: 0, kind: input, shape index: {}]
  %s1 = inlined_call_operand.vmem [shape: bf16[3200,128], index: 1, kind: input, shape index: {}]
  %s2 = inlined_call_operand.vmem [shape: f32[1,128], index: 2, kind: input, shape index: {}]
  %s3 = inlined_call_operand.vmem [shape: bf16[2,5,5,128], index: 3, kind: output, shape index: {}]
  %s4 = sld [smem:[#allocation0]]
  $region45: #{lenet_forward.4} parent=0
    _
  %s6 = ssub.s32 1, %s4
  %s7 = scalar_select 0, %s6, %s4
  loop: start=0, step=1, limit=12
  $region2: #{lenet_forward.4} parent=0 // loop_pre_header
    _
  $region3: #{lenet_forward.4} parent=0 // loop_header
    %s9 = sphi 0, %s13
    %p10 = scmp.ge.s32.totalorder %s9, 12
    %s16 = sphi 0, %s28
    %s17 = sphi 0, %s24
    %s18 = sphi 0, %s16
    %s19 = sphi 0, %s17
    %s20 = sphi 0, %s18
    %s21 = sphi 0, %s19
    %s31 = sphi 0, %s33
    %s34 = sphi 0, %s31
    %s35 = sphi 0, %s34
    %s51 = sphi 0, %s35
    %s55 = sphi 0, %s55
    %s57 = sphi 0, %s55
    %s58 = sphi 0, %s57
    %s72 = sphi 0, %s58
    %s76 = sphi 0, %s76
    %s78 = sphi 0, %s76
    %s79 = sphi 0, %s78
    %s93 = sphi 0, %s79
    %s101 = sphi 0, %s103
    %s104 = sphi 0, %s101
    %s105 = sphi 0, %s104
    %s121 = sphi 0, %s105
  $region4: #{lenet_forward.4} parent=0 // loop_header_branch
    %12 = sbr.rel (%p10) target = $region8
  $region5: #{lenet_forward.4} parent=0 // loop_body
    %s14 = ssub.s32 %s9, 1
    %s15 = ssub.s32 %s9, 2
    %s22 = sadd.s32 1, %s17
    %p23 = scmp.ge.s32.totalorder %s22, 5
    %s24 = scalar_select %p23, 0, %s22
    %s25 = sadd.s32 1, %s16
    %s26 = scalar_select %p23, %s25, %s16
    %p27 = scmp.ge.s32.totalorder %s26, 2
    %s28 = scalar_select %p27, 0, %s26
    %s29 = ssub.s32 %s16, %s28
    %p30 = scmp.eq.s32.totalorder %s29, 0
    %s32 = sadd.s32 %s31, 1
    %s33 = scalar_select %p30, %s31, %s32
    %p36 = pneg %p30
    %p37 = scmp.eq.s32.totalorder %s9, 9
    %p38 = por %p36, %p37
    %p39 = scmp.ne.s32.totalorder %s31, %s34
    %p40 = scmp.eq.s32.totalorder %s9, 0
    %p41 = por %p39, %p40
    %p42 = scmp.ne.s32.totalorder %s31, %s34
    %p43 = scmp.eq.s32.totalorder %s14, 9
    %p44 = por %p42, %p43
    %p45 = scmp.ne.s32.totalorder %s34, %s35
    %p46 = scmp.eq.s32.totalorder %s14, 0
    %p47 = por %p45, %p46
    %p48 = scmp.ne.s32.totalorder %s34, %s35
    %p49 = scmp.eq.s32.totalorder %s15, 9
    %p50 = por %p48, %p49
    %p52 = scmp.ne.s32.totalorder %s35, %s51
    %p53 = scmp.eq.s32.totalorder %s15, 0
    %p54 = por %p52, %p53
    %s56 = sadd.s32 %s55, 1
    %p59 = scmp.eq.s32.totalorder %s9, 9
    %p60 = scmp.ne.s32.totalorder %s55, %s57
    %p61 = scmp.eq.s32.totalorder %s9, 0
    %p62 = por %p60, %p61
    %p63 = scmp.ne.s32.totalorder %s55, %s57
    %p64 = scmp.eq.s32.totalorder %s14, 9
    %p65 = por %p63, %p64
    %p66 = scmp.ne.s32.totalorder %s57, %s58
    %p67 = scmp.eq.s32.totalorder %s14, 0
    %p68 = por %p66, %p67
    %p69 = scmp.ne.s32.totalorder %s57, %s58
    %p70 = scmp.eq.s32.totalorder %s15, 9
    %p71 = por %p69, %p70
    %p73 = scmp.ne.s32.totalorder %s58, %s72
    %p74 = scmp.eq.s32.totalorder %s15, 0
    %p75 = por %p73, %p74
    %s77 = sadd.s32 %s76, 1
    %p80 = scmp.eq.s32.totalorder %s9, 9
    %p81 = scmp.ne.s32.totalorder %s76, %s78
    %p82 = scmp.eq.s32.totalorder %s9, 0
    %p83 = por %p81, %p82
    %p84 = scmp.ne.s32.totalorder %s76, %s78
    %p85 = scmp.eq.s32.totalorder %s14, 9
    %p86 = por %p84, %p85
    %p87 = scmp.ne.s32.totalorder %s78, %s79
    %p88 = scmp.eq.s32.totalorder %s14, 0
    %p89 = por %p87, %p88
    %p90 = scmp.ne.s32.totalorder %s78, %s79
    %p91 = scmp.eq.s32.totalorder %s15, 9
    %p92 = por %p90, %p91
    %p94 = scmp.ne.s32.totalorder %s79, %s93
    %p95 = scmp.eq.s32.totalorder %s15, 0
    %p96 = por %p94, %p95
    %s97 = ssub.s32 %s16, %s28
    %s98 = ssub.s32 %s17, %s24
    %s99 = sor.u32 %s97, %s98
    %p100 = scmp.eq.s32.totalorder %s99, 0
    %s102 = sadd.s32 %s101, 1
    %s103 = scalar_select %p100, %s101, %s102
    %p106 = pneg %p100
    %p107 = scmp.eq.s32.totalorder %s9, 9
    %p108 = por %p106, %p107
    %p109 = scmp.ne.s32.totalorder %s101, %s104
    %p110 = scmp.eq.s32.totalorder %s9, 0
    %p111 = por %p109, %p110
    %p112 = scmp.ne.s32.totalorder %s101, %s104
    %p113 = scmp.eq.s32.totalorder %s14, 9
    %p114 = por %p112, %p113
    %p115 = scmp.ne.s32.totalorder %s104, %s105
    %p116 = scmp.eq.s32.totalorder %s14, 0
    %p117 = por %p115, %p116
    %p118 = scmp.ne.s32.totalorder %s104, %s105
    %p119 = scmp.eq.s32.totalorder %s15, 9
    %p120 = por %p118, %p119
    %p122 = scmp.ne.s32.totalorder %s105, %s121
    %p123 = scmp.eq.s32.totalorder %s15, 0
    %p124 = por %p122, %p123
    %p125 = scmp.le.s32.totalorder 1, %s9
    %p126 = scmp.lt.s32.totalorder %s9, 11
    %p127 = pnand %p125, %p126
    %p128 = pneg %p127
    // Predicated region
    $region9: #{lenet_forward.4} parent=5 // pred_check
      _
    $region10: #{lenet_forward.4} parent=5 // pred_check_branch
      %130 = sbr.rel (%p127) target = $region12
    $region11: #{lenet_forward.4} parent=5 // pred_region
      %s131 = ssub.s32 %s9, 1
      // Predicated region
      $region13: #{lenet_forward.4} parent=11 // pred_check
        %p132 = pneg %p68
      $region14: #{lenet_forward.4} parent=11 // pred_check_branch
        %134 = sbr.rel (%p132) target = $region16
      $region15: #{lenet_forward.4} parent=11 // pred_region
        _
      $region16: #{lenet_forward.4} parent=11 // pred_fallthru
        _
      // Predicated region
      $region17: #{lenet_forward.4} parent=11 // pred_check
        %p135 = pneg %p89
      $region18: #{lenet_forward.4} parent=11 // pred_check_branch
        %137 = sbr.rel (%p135) target = $region20
      $region19: #{lenet_forward.4} parent=11 // pred_region
        _
      $region20: #{lenet_forward.4} parent=11 // pred_fallthru
        _
    $region12: #{lenet_forward.4} parent=5 // pred_fallthru
      _
    %p138 = scmp.lt.s32.totalorder %s9, 10
    // Predicated region
    $region21: #{lenet_forward.4} parent=5 // pred_check
      %p139 = pneg %p138
    $region22: #{lenet_forward.4} parent=5 // pred_check_branch
      %141 = sbr.rel (%p139) target = $region24
    $region23: #{lenet_forward.4} parent=5 // pred_region
      // Predicated region
      $region25: #{lenet_forward.4} parent=23 // pred_check
        %p142 = pneg %p41
      $region26: #{lenet_forward.4} parent=23 // pred_check_branch
        %144 = sbr.rel (%p142) target = $region28
      $region27: #{lenet_forward.4} parent=23 // pred_region
        %p145 = scmp.lt.s32.totalorder %s16, 1
        %s146 = scalar_select %p145, %s16, 1
        %s147 = smul.addr %s146, 28
        %s148 = smul.addr %s147, 4
        %s149 = scalar_lea.vmem %s0, %s148
      $region28: #{lenet_forward.4} parent=23 // pred_fallthru
        _
    $region24: #{lenet_forward.4} parent=5 // pred_fallthru
      _
    %p150 = scmp.le.s32.totalorder 1, %s9
    %p151 = scmp.lt.s32.totalorder %s9, 11
    %p152 = pnand %p150, %p151
    %p153 = pneg %p152
    // Predicated region
    $region29: #{lenet_forward.4} parent=5 // pred_check
      _
    $region30: #{lenet_forward.4} parent=5 // pred_check_branch
      %155 = sbr.rel (%p152) target = $region32
    $region31: #{lenet_forward.4} parent=5 // pred_region
      %s156 = ssub.s32 %s9, 1
      %p157 = scmp.lt.s32.totalorder %s18, 1
      %s158 = scalar_select %p157, %s18, 1
      %s159 = smul.addr %s158, 28
      %s160 = smul.addr %s159, 4
      %s161 = scalar_lea.vmem %s0, %s160
      %p162 = pneg %p47
      %p163 = pneg %p44
      %p164 = pneg %p68
      %p165 = pneg %p65
      %p166 = pneg %p89
      %p167 = pneg %p86
      %p168 = pneg %p117
      %p169 = pneg %p114
      %p170 = scmp.lt.s32.totalorder %s18, 1
      %s171 = scalar_select %p170, %s18, 1
      %p172 = scmp.lt.s32.totalorder %s19, 4
      %s173 = scalar_select %p172, %s19, 4
      %s174 = smul.addr %s171, 5
      %s175 = sadd.s32 %s173, %s174
      %s176 = smul.addr %s175, 4
      %s177 = scalar_lea.vmem %s3, %s176
      %p178 = scmp.lt.s32.totalorder %s18, 1
      %s179 = scalar_select %p178, %s18, 1
      %s180 = smul.addr %s179, 28
      %s181 = smul.addr %s180, 4
      %s182 = scalar_lea.vmem %s0, %s181
      %p183 = scmp.lt.s32.totalorder %s18, 1
      %s184 = scalar_select %p183, %s18, 1
      %p185 = scmp.lt.s32.totalorder %s19, 4
      %s186 = scalar_select %p185, %s19, 4
      %s187 = smul.addr %s184, 5
      %s188 = sadd.s32 %s186, %s187
      %s189 = smul.addr %s188, 4
      %s190 = scalar_lea.vmem %s3, %s189
      %s192 = smul.u32 %s19, 2
      %s193 = smul.u32 %s192, 2
      %s194 = smul.addr %s193, 4
      %s195 = scalar_lea.vmem %s182, %s194
      %v196 = vld [vmem:[%s195] sm:$0xf]
      %v197 = vld [vmem:[%s195 + $0x4] sm:$0x7]
      %v198 = vunpack.c.l.bf16 %v196
      %v199 = vunpack.c.l.bf16 %v197
      %s200 = sadd.s32 %s192, 1
      %s201 = smul.u32 %s200, 2
      %s202 = smul.addr %s201, 4
      %s203 = scalar_lea.vmem %s182, %s202
      %v204 = vld [vmem:[%s203] sm:$0xf]
      %v205 = vld [vmem:[%s203 + $0x4] sm:$0x7]
      %v206 = vunpack.c.l.bf16 %v204
      %v207 = vunpack.c.l.bf16 %v205
      %v208 = vld [vmem:[%s1] sm:$0xf]
      %v209 = vld [vmem:[%s1 + $0x4] sm:$0xf]
      %v210 = vld [vmem:[%s1 + $0x8] sm:$0xf]
      %v211 = vld [vmem:[%s1 + $0xc] sm:$0xf]
      %v212 = vld [vmem:[%s1 + $0x10] sm:$0xf]
      %v213 = vld [vmem:[%s1 + $0x14] sm:$0xf]
      %v214 = vld [vmem:[%s1 + $0x18] sm:$0xf]
      %v215 = vld [vmem:[%s1 + $0x1c] sm:$0xf]
      %v216 = vld [vmem:[%s1 + $0x20] sm:$0xf]
      %v217 = vld [vmem:[%s1 + $0x24] sm:$0xf]
      %v218 = vld [vmem:[%s1 + $0x28] sm:$0xf]
      %v219 = vld [vmem:[%s1 + $0x2c] sm:$0xf]
      %v220 = vld [vmem:[%s1 + $0x30] sm:$0xf]
      %v221 = vld [vmem:[%s1 + $0x34] sm:$0xf]
      %v222 = vld [vmem:[%s1 + $0x38] sm:$0xf]
      %v223 = vld [vmem:[%s1 + $0x3c] sm:$0xf]
      %v224 = vpack.c.bf16 %v199, %v198
      %v225 = vpack.c.bf16 %v207, %v206
      %v226 = vld [vmem:[%s1 + $0x40] sm:$0xf]
      %v227 = vld [vmem:[%s1 + $0x44] sm:$0xf]
      %v228 = vld [vmem:[%s1 + $0x48] sm:$0xf]
      %v229 = vld [vmem:[%s1 + $0x4c] sm:$0xf]
      %v230 = vld [vmem:[%s1 + $0x50] sm:$0xf]
      %v231 = vld [vmem:[%s1 + $0x54] sm:$0xf]
      %v232 = vld [vmem:[%s1 + $0x58] sm:$0xf]
      %v233 = vld [vmem:[%s1 + $0x5c] sm:$0xf]
      %v234 = vld [vmem:[%s1 + $0x60] sm:$0xf]
      %v235 = vld [vmem:[%s1 + $0x64] sm:$0xf]
      %v236 = vld [vmem:[%s1 + $0x68] sm:$0xf]
      %v237 = vld [vmem:[%s1 + $0x6c] sm:$0xf]
      %v238 = vld [vmem:[%s1 + $0x70] sm:$0xf]
      %v239 = vld [vmem:[%s1 + $0x74] sm:$0xf]
      %v240 = vld [vmem:[%s1 + $0x78] sm:$0xf]
      %v241 = vld [vmem:[%s1 + $0x7c] sm:$0xf]
      %v243 = vshrl.u32 %v224, 16
      %v245 = vshll.u32 %v224, 16
      %v247 = vrot.slane %v245, 1
      %v248 = vor.u32 %v243, %v247
      %v266 = vunpack.c.l.b16 %v226
      %v267 = vunpack.c.l.b16 %v227
      %v268 = vunpack.c.l.b16 %v228
      %v269 = vunpack.c.l.b16 %v229
      %v270 = vunpack.c.l.b16 %v230
      %v271 = vunpack.c.l.b16 %v231
      %v272 = vunpack.c.l.b16 %v232
      %v273 = vunpack.c.l.b16 %v233
      %v274 = vunpack.c.l.b16 %v234
      %v275 = vunpack.c.l.b16 %v235
      %v276 = vunpack.c.l.b16 %v236
      %v277 = vunpack.c.l.b16 %v237
      %v278 = vunpack.c.l.b16 %v238
      %v279 = vunpack.c.l.b16 %v239
      %v280 = vunpack.c.l.b16 %v240
      %v281 = vunpack.c.l.b16 %v241
      %v282 = vpack.c.b16 %v267, %v266
      %v283 = vpack.c.b16 %v269, %v268
      %v284 = vpack.c.b16 %v271, %v270
      %v285 = vpack.c.b16 %v273, %v272
      %v286 = vpack.c.b16 %v275, %v274
      %v287 = vpack.c.b16 %v277, %v276
      %v288 = vpack.c.b16 %v279, %v278
      %v289 = vpack.c.b16 %v281, %v280
      %298 = vmatprep.subr.bf16.mxu0 0
      %299 = vmatpush1.bf16.msra.mxu0 %v282
      %300 = vmatprep.subr.bf16.mxu0 0
      %301 = vmatpush1.bf16.msra.mxu0 %v283
      %302 = vmatprep.subr.bf16.mxu0 0
      %303 = vmatpush1.bf16.msra.mxu0 %v284
      %304 = vmatprep.subr.bf16.mxu0 0
      %305 = vmatpush1.bf16.msra.mxu0 %v285
      %306 = vmatprep.subr.bf16.mxu0 0
      %307 = vmatpush1.bf16.msra.mxu0 %v286
      %308 = vmatprep.subr.bf16.mxu0 0
      %309 = vmatpush1.bf16.msra.mxu0 %v287
      %310 = vmatprep.subr.bf16.mxu0 0
      %311 = vmatpush1.bf16.msra.mxu0 %v288
      %312 = vmatprep.subr.bf16.mxu0 0
      %313 = vmatpush1.bf16.msra.mxu0 %v289
      %314 = vmatprep.subr.bf16.mxu0 0
      %315 = vmatpush1.bf16.msra.mxu0 0
      %316 = vmatprep.subr.bf16.mxu0 0
      %317 = vmatpush1.bf16.msra.mxu0 0
      %318 = vmatprep.subr.bf16.mxu0 0
      %319 = vmatpush1.bf16.msra.mxu0 0
      %320 = vmatprep.subr.bf16.mxu0 0
      %321 = vmatpush1.bf16.msra.mxu0 0
      %322 = vmatprep.subr.bf16.mxu0 0
      %323 = vmatpush1.bf16.msra.mxu0 0
      %324 = vmatprep.subr.bf16.mxu0 0
      %325 = vmatpush1.bf16.msra.mxu0 0
      %326 = vmatprep.subr.bf16.mxu0 0
      %327 = vmatpush1.bf16.msra.mxu0 0
      %328 = vmatprep.subr.bf16.mxu0 0
      %329 = vmatpush1.bf16.msra.mxu0 0
      %330 = vmatprep.mubr.bf16.mxu0 0
      %331 = vmatmul.mubr.bf16.gmra.mrb[0].mxu0 %v248
      %v332 = vpop.f32.mrb[0].mxu0
      %v333 = vadd.f32 0.0, %v332
      %v334 = vpop.f32.mrb[0].mxu0
      %v335 = vpop.f32.mrb[0].mxu0
      %v336 = vadd.f32 0.0, %v335
      %v337 = vpop.f32.mrb[0].mxu0
      %338 = vdwg.mxu0
      %v355 = vunpack.c.l.b16 %v208
      %v356 = vunpack.c.l.b16 %v209
      %v357 = vunpack.c.l.b16 %v210
      %v358 = vunpack.c.l.b16 %v211
      %v359 = vunpack.c.l.b16 %v212
      %v360 = vunpack.c.l.b16 %v213
      %v361 = vunpack.c.l.b16 %v214
      %v362 = vunpack.c.l.b16 %v215
      %v363 = vunpack.c.l.b16 %v216
      %v364 = vunpack.c.l.b16 %v217
      %v365 = vunpack.c.l.b16 %v218
      %v366 = vunpack.c.l.b16 %v219
      %v367 = vunpack.c.l.b16 %v220
      %v368 = vunpack.c.l.b16 %v221
      %v369 = vunpack.c.l.b16 %v222
      %v370 = vunpack.c.l.b16 %v223
      %v371 = vpack.c.b16 %v356, %v355
      %v372 = vpack.c.b16 %v358, %v357
      %v373 = vpack.c.b16 %v360, %v359
      %v374 = vpack.c.b16 %v362, %v361
      %v375 = vpack.c.b16 %v364, %v363
      %v376 = vpack.c.b16 %v366, %v365
      %v377 = vpack.c.b16 %v368, %v367
      %v378 = vpack.c.b16 %v370, %v369
      %387 = vmatprep.subr.bf16.mxu0 0
      %388 = vmatpush1.bf16.msra.mxu0 %v371
      %389 = vmatprep.subr.bf16.mxu0 0
      %390 = vmatpush1.bf16.msra.mxu0 %v372
      %391 = vmatprep.subr.bf16.mxu0 0
      %392 = vmatpush1.bf16.msra.mxu0 %v373
      %393 = vmatprep.subr.bf16.mxu0 0
      %394 = vmatpush1.bf16.msra.mxu0 %v374
      %395 = vmatprep.subr.bf16.mxu0 0
      %396 = vmatpush1.bf16.msra.mxu0 %v375
      %397 = vmatprep.subr.bf16.mxu0 0
      %398 = vmatpush1.bf16.msra.mxu0 %v376
      %399 = vmatprep.subr.bf16.mxu0 0
      %400 = vmatpush1.bf16.msra.mxu0 %v377
      %401 = vmatprep.subr.bf16.mxu0 0
      %402 = vmatpush1.bf16.msra.mxu0 %v378
      %403 = vmatprep.subr.bf16.mxu0 0
      %404 = vmatpush1.bf16.msra.mxu0 0
      %405 = vmatprep.subr.bf16.mxu0 0
      %406 = vmatpush1.bf16.msra.mxu0 0
      %407 = vmatprep.subr.bf16.mxu0 0
      %408 = vmatpush1.bf16.msra.mxu0 0
      %409 = vmatprep.subr.bf16.mxu0 0
      %410 = vmatpush1.bf16.msra.mxu0 0
      %411 = vmatprep.subr.bf16.mxu0 0
      %412 = vmatpush1.bf16.msra.mxu0 0
      %413 = vmatprep.subr.bf16.mxu0 0
      %414 = vmatpush1.bf16.msra.mxu0 0
      %415 = vmatprep.subr.bf16.mxu0 0
      %416 = vmatpush1.bf16.msra.mxu0 0
      %417 = vmatprep.subr.bf16.mxu0 0
      %418 = vmatpush1.bf16.msra.mxu0 0
      %419 = vmatprep.mubr.bf16.mxu0 0
      %420 = vmatmul.mubr.bf16.gmra.mrb[0].mxu0 %v224
      %v421 = vpop.f32.mrb[0].mxu0
      %v422 = vadd.f32 %v333, %v421
      %v423 = vpop.f32.mrb[0].mxu0
      %v424 = vpop.f32.mrb[0].mxu0
      %v425 = vadd.f32 %v336, %v424
      %v426 = vpop.f32.mrb[0].mxu0
      %427 = vdwg.mxu0
      %v429 = vshrl.u32 %v225, 16
      %v431 = vshll.u32 %v225, 16
      %v433 = vrot.slane %v431, 1
      %v434 = vor.u32 %v429, %v433
      %436 = vmatprep.subr.bf16.mxu0 0
      %437 = vmatpush1.bf16.msra.mxu0 %v282
      %438 = vmatprep.subr.bf16.mxu0 0
      %439 = vmatpush1.bf16.msra.mxu0 %v283
      %440 = vmatprep.subr.bf16.mxu0 0
      %441 = vmatpush1.bf16.msra.mxu0 %v284
      %442 = vmatprep.subr.bf16.mxu0 0
      %443 = vmatpush1.bf16.msra.mxu0 %v285
      %444 = vmatprep.subr.bf16.mxu0 0
      %445 = vmatpush1.bf16.msra.mxu0 %v286
      %446 = vmatprep.subr.bf16.mxu0 0
      %447 = vmatpush1.bf16.msra.mxu0 %v287
      %448 = vmatprep.subr.bf16.mxu0 0
      %449 = vmatpush1.bf16.msra.mxu0 %v288
      %450 = vmatprep.subr.bf16.mxu0 0
      %451 = vmatpush1.bf16.msra.mxu0 %v289
      %452 = vmatprep.subr.bf16.mxu0 0
      %453 = vmatpush1.bf16.msra.mxu0 0
      %454 = vmatprep.subr.bf16.mxu0 0
      %455 = vmatpush1.bf16.msra.mxu0 0
      %456 = vmatprep.subr.bf16.mxu0 0
      %457 = vmatpush1.bf16.msra.mxu0 0
      %458 = vmatprep.subr.bf16.mxu0 0
      %459 = vmatpush1.bf16.msra.mxu0 0
      %460 = vmatprep.subr.bf16.mxu0 0
      %461 = vmatpush1.bf16.msra.mxu0 0
      %462 = vmatprep.subr.bf16.mxu0 0
      %463 = vmatpush1.bf16.msra.mxu0 0
      %464 = vmatprep.subr.bf16.mxu0 0
      %465 = vmatpush1.bf16.msra.mxu0 0
      %466 = vmatprep.subr.bf16.mxu0 0
      %467 = vmatpush1.bf16.msra.mxu0 0
      %468 = vmatprep.mubr.bf16.mxu0 0
      %469 = vmatmul.mubr.bf16.gmra.mrb[0].mxu0 %v434
      %v470 = vpop.f32.mrb[0].mxu0
      %v471 = vadd.f32 0.0, %v470
      %v472 = vpop.f32.mrb[0].mxu0
      %v473 = vpop.f32.mrb[0].mxu0
      %v474 = vadd.f32 0.0, %v473
      %v475 = vpop.f32.mrb[0].mxu0
      %476 = vdwg.mxu0
      %477 = vmatprep.subr.bf16.mxu0 0
      %478 = vmatpush1.bf16.msra.mxu0 %v371
      %479 = vmatprep.subr.bf16.mxu0 0
      %480 = vmatpush1.bf16.msra.mxu0 %v372
      %481 = vmatprep.subr.bf16.mxu0 0
      %482 = vmatpush1.bf16.msra.mxu0 %v373
      %483 = vmatprep.subr.bf16.mxu0 0
      %484 = vmatpush1.bf16.msra.mxu0 %v374
      %485 = vmatprep.subr.bf16.mxu0 0
      %486 = vmatpush1.bf16.msra.mxu0 %v375
      %487 = vmatprep.subr.bf16.mxu0 0
      %488 = vmatpush1.bf16.msra.mxu0 %v376
      %489 = vmatprep.subr.bf16.mxu0 0
      %490 = vmatpush1.bf16.msra.mxu0 %v377
      %491 = vmatprep.subr.bf16.mxu0 0
      %492 = vmatpush1.bf16.msra.mxu0 %v378
      %493 = vmatprep.subr.bf16.mxu0 0
      %494 = vmatpush1.bf16.msra.mxu0 0
      %495 = vmatprep.subr.bf16.mxu0 0
      %496 = vmatpush1.bf16.msra.mxu0 0
      %497 = vmatprep.subr.bf16.mxu0 0
      %498 = vmatpush1.bf16.msra.mxu0 0
      %499 = vmatprep.subr.bf16.mxu0 0
      %500 = vmatpush1.bf16.msra.mxu0 0
      %501 = vmatprep.subr.bf16.mxu0 0
      %502 = vmatpush1.bf16.msra.mxu0 0
      %503 = vmatprep.subr.bf16.mxu0 0
      %504 = vmatpush1.bf16.msra.mxu0 0
      %505 = vmatprep.subr.bf16.mxu0 0
      %506 = vmatpush1.bf16.msra.mxu0 0
      %507 = vmatprep.subr.bf16.mxu0 0
      %508 = vmatpush1.bf16.msra.mxu0 0
      %509 = vmatprep.mubr.bf16.mxu0 0
      %510 = vmatmul.mubr.bf16.gmra.mrb[0].mxu0 %v225
      %v511 = vpop.f32.mrb[0].mxu0
      %v512 = vadd.f32 %v471, %v511
      %v513 = vpop.f32.mrb[0].mxu0
      %v514 = vpop.f32.mrb[0].mxu0
      %v515 = vadd.f32 %v474, %v514
      %v516 = vpop.f32.mrb[0].mxu0
      %517 = vdwg.mxu0
      %v518 = vld [vmem:[%s1 + $0x80] sm:$0xf]
      %v519 = vld [vmem:[%s1 + $0x84] sm:$0xf]
      %v520 = vld [vmem:[%s1 + $0x88] sm:$0xf]
      %v521 = vld [vmem:[%s1 + $0x8c] sm:$0xf]
      %v522 = vld [vmem:[%s1 + $0x90] sm:$0xf]
      %v523 = vld [vmem:[%s1 + $0x94] sm:$0xf]
      %v524 = vld [vmem:[%s1 + $0x98] sm:$0xf]
      %v525 = vld [vmem:[%s1 + $0x9c] sm:$0xf]
      %v526 = vld [vmem:[%s1 + $0xa0] sm:$0xf]
      %v527 = vld [vmem:[%s1 + $0xa4] sm:$0xf]
      %v528 = vld [vmem:[%s1 + $0xa8] sm:$0xf]
      %v529 = vld [vmem:[%s1 + $0xac] sm:$0xf]
      %v530 = vld [vmem:[%s1 + $0xb0] sm:$0xf]
      %v531 = vld [vmem:[%s1 + $0xb4] sm:$0xf]
      %v532 = vld [vmem:[%s1 + $0xb8] sm:$0xf]
      %v533 = vld [vmem:[%s1 + $0xbc] sm:$0xf]
      %v535 = vrot.slane %v224, 1
      %v553 = vunpack.c.l.b16 %v518
      %v554 = vunpack.c.l.b16 %v519
      %v555 = vunpack.c.l.b16 %v520
      %v556 = vunpack.c.l.b16 %v521
      %v557 = vunpack.c.l.b16 %v522
      %v558 = vunpack.c.l.b16 %v523
      %v559 = vunpack.c.l.b16 %v524
      %v560 = vunpack.c.l.b16 %v525
      %v561 = vunpack.c.l.b16 %v526
      %v562 = vunpack.c.l.b16 %v527
      %v563 = vunpack.c.l.b16 %v528
      %v564 = vunpack.c.l.b16 %v529
      %v565 = vunpack.c.l.b16 %v530
      %v566 = vunpack.c.l.b16 %v531
      %v567 = vunpack.c.l.b16 %v532
      %v568 = vunpack.c.l.b16 %v533
      %v569 = vpack.c.b16 %v554, %v553
      %v570 = vpack.c.b16 %v556, %v555
      %v571 = vpack.c.b16 %v558, %v557
      %v572 = vpack.c.b16 %v560, %v559
      %v573 = vpack.c.b16 %v562, %v561
      %v574 = vpack.c.b16 %v564, %v563
      %v575 = vpack.c.b16 %v566, %v565
      %v576 = vpack.c.b16 %v568, %v567
      %585 = vmatprep.subr.bf16.mxu0 0
      %586 = vmatpush1.bf16.msra.mxu0 %v569
      %587 = vmatprep.subr.bf16.mxu0 0
      %588 = vmatpush1.bf16.msra.mxu0 %v570
      %589 = vmatprep.subr.bf16.mxu0 0
      %590 = vmatpush1.bf16.msra.mxu0 %v571
      %591 = vmatprep.subr.bf16.mxu0 0
      %592 = vmatpush1.bf16.msra.mxu0 %v572
      %593 = vmatprep.subr.bf16.mxu0 0
      %594 = vmatpush1.bf16.msra.mxu0 %v573
      %595 = vmatprep.subr.bf16.mxu0 0
      %596 = vmatpush1.bf16.msra.mxu0 %v574
      %597 = vmatprep.subr.bf16.mxu0 0
      %598 = vmatpush1.bf16.msra.mxu0 %v575
      %599 = vmatprep.subr.bf16.mxu0 0
      %600 = vmatpush1.bf16.msra.mxu0 %v576
      %601 = vmatprep.subr.bf16.mxu0 0
      %602 = vmatpush1.bf16.msra.mxu0 0
      %603 = vmatprep.subr.bf16.mxu0 0
      %604 = vmatpush1.bf16.msra.mxu0 0
      %605 = vmatprep.subr.bf16.mxu0 0
      %606 = vmatpush1.bf16.msra.mxu0 0
      %607 = vmatprep.subr.bf16.mxu0 0
      %608 = vmatpush1.bf16.msra.mxu0 0
      %609 = vmatprep.subr.bf16.mxu0 0
      %610 = vmatpush1.bf16.msra.mxu0 0
      %611 = vmatprep.subr.bf16.mxu0 0
      %612 = vmatpush1.bf16.msra.mxu0 0
      %613 = vmatprep.subr.bf16.mxu0 0
      %614 = vmatpush1.bf16.msra.mxu0 0
      %615 = vmatprep.subr.bf16.mxu0 0
      %616 = vmatpush1.bf16.msra.mxu0 0
      %617 = vmatprep.mubr.bf16.mxu0 0
      %618 = vmatmul.mubr.bf16.gmra.mrb[0].mxu0 %v535
      %v619 = vpop.f32.mrb[0].mxu0
      %v620 = vadd.f32 0.0, %v619
      %v621 = vpop.f32.mrb[0].mxu0
      %v622 = vpop.f32.mrb[0].mxu0
      %v623 = vadd.f32 0.0, %v622
      %v624 = vpop.f32.mrb[0].mxu0
      %625 = vdwg.mxu0
      %v626 = vadd.f32 %v422, %v620
      %v627 = vadd.f32 %v425, %v623
      %v629 = vrot.slane %v225, 1
      %631 = vmatprep.subr.bf16.mxu0 0
      %632 = vmatpush1.bf16.msra.mxu0 %v569
      %633 = vmatprep.subr.bf16.mxu0 0
      %634 = vmatpush1.bf16.msra.mxu0 %v570
      %635 = vmatprep.subr.bf16.mxu0 0
      %636 = vmatpush1.bf16.msra.mxu0 %v571
      %637 = vmatprep.subr.bf16.mxu0 0
      %638 = vmatpush1.bf16.msra.mxu0 %v572
      %639 = vmatprep.subr.bf16.mxu0 0
      %640 = vmatpush1.bf16.msra.mxu0 %v573
      %641 = vmatprep.subr.bf16.mxu0 0
      %642 = vmatpush1.bf16.msra.mxu0 %v574
      %643 = vmatprep.subr.bf16.mxu0 0
      %644 = vmatpush1.bf16.msra.mxu0 %v575
      %645 = vmatprep.subr.bf16.mxu0 0
      %646 = vmatpush1.bf16.msra.mxu0 %v576
      %647 = vmatprep.subr.bf16.mxu0 0
      %648 = vmatpush1.bf16.msra.mxu0 0
      %649 = vmatprep.subr.bf16.mxu0 0
      %650 = vmatpush1.bf16.msra.mxu0 0
      %651 = vmatprep.subr.bf16.mxu0 0
      %652 = vmatpush1.bf16.msra.mxu0 0
      %653 = vmatprep.subr.bf16.mxu0 0
      %654 = vmatpush1.bf16.msra.mxu0 0
      %655 = vmatprep.subr.bf16.mxu0 0
      %656 = vmatpush1.bf16.msra.mxu0 0
      %657 = vmatprep.subr.bf16.mxu0 0
      %658 = vmatpush1.bf16.msra.mxu0 0
      %659 = vmatprep.subr.bf16.mxu0 0
      %660 = vmatpush1.bf16.msra.mxu0 0
      %661 = vmatprep.subr.bf16.mxu0 0
      %662 = vmatpush1.bf16.msra.mxu0 0
      %663 = vmatprep.mubr.bf16.mxu0 0
      %664 = vmatmul.mubr.bf16.gmra.mrb[0].mxu0 %v629
      %v665 = vpop.f32.mrb[0].mxu0
      %v666 = vadd.f32 0.0, %v665
      %v667 = vpop.f32.mrb[0].mxu0
      %v668 = vpop.f32.mrb[0].mxu0
      %v669 = vadd.f32 0.0, %v668
      %v670 = vpop.f32.mrb[0].mxu0
      %671 = vdwg.mxu0
      %v672 = vadd.f32 %v512, %v666
      %v673 = vadd.f32 %v515, %v669
      %v674 = vld [vmem:[%s1 + $0xc0] sm:$0xf]
      %v675 = vld [vmem:[%s1 + $0xc4] sm:$0xf]
      %v676 = vld [vmem:[%s1 + $0xc8] sm:$0xf]
      %v677 = vld [vmem:[%s1 + $0xcc] sm:$0xf]
      %v678 = vld [vmem:[%s1 + $0xd0] sm:$0xf]
      %v679 = vld [vmem:[%s1 + $0xd4] sm:$0xf]
      %v680 = vld [vmem:[%s1 + $0xd8] sm:$0xf]
      %v681 = vld [vmem:[%s1 + $0xdc] sm:$0xf]
      %v682 = vld [vmem:[%s1 + $0xe0] sm:$0xf]
      %v683 = vld [vmem:[%s1 + $0xe4] sm:$0xf]
      %v684 = vld [vmem:[%s1 + $0xe8] sm:$0xf]
      %v685 = vld [vmem:[%s1 + $0xec] sm:$0xf]
      %v686 = vld [vmem:[%s1 + $0xf0] sm:$0xf]
      %v687 = vld [vmem:[%s1 + $0xf4] sm:$0xf]
      %v688 = vld [vmem:[%s1 + $0xf8] sm:$0xf]
      %v689 = vld [vmem:[%s1 + $0xfc] sm:$0xf]
      %v690 = vrot.slane %v243, 1
      %v691 = vrot.slane %v245, 2
      %v692 = vor.u32 %v690, %v691
      %v710 = vunpack.c.l.b16 %v674
      %v711 = vunpack.c.l.b16 %v675
      %v712 = vunpack.c.l.b16 %v676
      %v713 = vunpack.c.l.b16 %v677
      %v714 = vunpack.c.l.b16 %v678
      %v715 = vunpack.c.l.b16 %v679
      %v716 = vunpack.c.l.b16 %v680
      %v717 = vunpack.c.l.b16 %v681
      %v718 = vunpack.c.l.b16 %v682
      %v719 = vunpack.c.l.b16 %v683
      %v720 = vunpack.c.l.b16 %v684
      %v721 = vunpack.c.l.b16 %v685
      %v722 = vunpack.c.l.b16 %v686
      %v723 = vunpack.c.l.b16 %v687
      %v724 = vunpack.c.l.b16 %v688
      %v725 = vunpack.c.l.b16 %v689
      %v726 = vpack.c.b16 %v711, %v710
      %v727 = vpack.c.b16 %v713, %v712
      %v728 = vpack.c.b16 %v715, %v714
      %v729 = vpack.c.b16 %v717, %v716
      %v730 = vpack.c.b16 %v719, %v718
      %v731 = vpack.c.b16 %v721, %v720
      %v732 = vpack.c.b16 %v723, %v722
      %v733 = vpack.c.b16 %v725, %v724
      %742 = vmatprep.subr.bf16.mxu0 0
      %743 = vmatpush1.bf16.msra.mxu0 %v726
      %744 = vmatprep.subr.bf16.mxu0 0
      %745 = vmatpush1.bf16.msra.mxu0 %v727
      %746 = vmatprep.subr.bf16.mxu0 0
      %747 = vmatpush1.bf16.msra.mxu0 %v728
      %748 = vmatprep.subr.bf16.mxu0 0
      %749 = vmatpush1.bf16.msra.mxu0 %v729
      %750 = vmatprep.subr.bf16.mxu0 0
      %751 = vmatpush1.bf16.msra.mxu0 %v730
      %752 = vmatprep.subr.bf16.mxu0 0
      %753 = vmatpush1.bf16.msra.mxu0 %v731
      %754 = vmatprep.subr.bf16.mxu0 0
      %755 = vmatpush1.bf16.msra.mxu0 %v732
      %756 = vmatprep.subr.bf16.mxu0 0
      %757 = vmatpush1.bf16.msra.mxu0 %v733
      %758 = vmatprep.subr.bf16.mxu0 0
      %759 = vmatpush1.bf16.msra.mxu0 0
      %760 = vmatprep.subr.bf16.mxu0 0
      %761 = vmatpush1.bf16.msra.mxu0 0
      %762 = vmatprep.subr.bf16.mxu0 0
      %763 = vmatpush1.bf16.msra.mxu0 0
      %764 = vmatprep.subr.bf16.mxu0 0
      %765 = vmatpush1.bf16.msra.mxu0 0
      %766 = vmatprep.subr.bf16.mxu0 0
      %767 = vmatpush1.bf16.msra.mxu0 0
      %768 = vmatprep.subr.bf16.mxu0 0
      %769 = vmatpush1.bf16.msra.mxu0 0
      %770 = vmatprep.subr.bf16.mxu0 0
      %771 = vmatpush1.bf16.msra.mxu0 0
      %772 = vmatprep.subr.bf16.mxu0 0
      %773 = vmatpush1.bf16.msra.mxu0 0
      %774 = vmatprep.mubr.bf16.mxu0 0
      %775 = vmatmul.mubr.bf16.gmra.mrb[0].mxu0 %v692
      %v776 = vpop.f32.mrb[0].mxu0
      %v777 = vadd.f32 0.0, %v776
      %v778 = vpop.f32.mrb[0].mxu0
      %v779 = vpop.f32.mrb[0].mxu0
      %v780 = vadd.f32 0.0, %v779
      %v781 = vpop.f32.mrb[0].mxu0
      %782 = vdwg.mxu0
      %v783 = vadd.f32 %v626, %v777
      %v784 = vadd.f32 %v627, %v780
      %v785 = vrot.slane %v429, 1
      %v786 = vrot.slane %v431, 2
      %v787 = vor.u32 %v785, %v786
      %789 = vmatprep.subr.bf16.mxu0 0
      %790 = vmatpush1.bf16.msra.mxu0 %v726
      %791 = vmatprep.subr.bf16.mxu0 0
      %792 = vmatpush1.bf16.msra.mxu0 %v727
      %793 = vmatprep.subr.bf16.mxu0 0
      %794 = vmatpush1.bf16.msra.mxu0 %v728
      %795 = vmatprep.subr.bf16.mxu0 0
      %796 = vmatpush1.bf16.msra.mxu0 %v729
      %797 = vmatprep.subr.bf16.mxu0 0
      %798 = vmatpush1.bf16.msra.mxu0 %v730
      %799 = vmatprep.subr.bf16.mxu0 0
      %800 = vmatpush1.bf16.msra.mxu0 %v731
      %801 = vmatprep.subr.bf16.mxu0 0
      %802 = vmatpush1.bf16.msra.mxu0 %v732
      %803 = vmatprep.subr.bf16.mxu0 0
      %804 = vmatpush1.bf16.msra.mxu0 %v733
      %805 = vmatprep.subr.bf16.mxu0 0
      %806 = vmatpush1.bf16.msra.mxu0 0
      %807 = vmatprep.subr.bf16.mxu0 0
      %808 = vmatpush1.bf16.msra.mxu0 0
      %809 = vmatprep.subr.bf16.mxu0 0
      %810 = vmatpush1.bf16.msra.mxu0 0
      %811 = vmatprep.subr.bf16.mxu0 0
      %812 = vmatpush1.bf16.msra.mxu0 0
      %813 = vmatprep.subr.bf16.mxu0 0
      %814 = vmatpush1.bf16.msra.mxu0 0
      %815 = vmatprep.subr.bf16.mxu0 0
      %816 = vmatpush1.bf16.msra.mxu0 0
      %817 = vmatprep.subr.bf16.mxu0 0
      %818 = vmatpush1.bf16.msra.mxu0 0
      %819 = vmatprep.subr.bf16.mxu0 0
      %820 = vmatpush1.bf16.msra.mxu0 0
      %821 = vmatprep.mubr.bf16.mxu0 0
      %822 = vmatmul.mubr.bf16.gmra.mrb[0].mxu0 %v787
      %v823 = vpop.f32.mrb[0].mxu0
      %v824 = vadd.f32 0.0, %v823
      %v825 = vpop.f32.mrb[0].mxu0
      %v826 = vpop.f32.mrb[0].mxu0
      %v827 = vadd.f32 0.0, %v826
      %v828 = vpop.f32.mrb[0].mxu0
      %829 = vdwg.mxu0
      %v830 = vadd.f32 %v672, %v824
      %v831 = vadd.f32 %v673, %v827
      %v832 = vld [vmem:[%s1 + $0x100] sm:$0xf]
      %v833 = vld [vmem:[%s1 + $0x104] sm:$0xf]
      %v834 = vld [vmem:[%s1 + $0x108] sm:$0xf]
      %v835 = vld [vmem:[%s1 + $0x10c] sm:$0xf]
      %v836 = vld [vmem:[%s1 + $0x110] sm:$0xf]
      %v837 = vld [vmem:[%s1 + $0x114] sm:$0xf]
      %v838 = vld [vmem:[%s1 + $0x118] sm:$0xf]
      %v839 = vld [vmem:[%s1 + $0x11c] sm:$0xf]
      %v840 = vld [vmem:[%s1 + $0x120] sm:$0xf]
      %v841 = vld [vmem:[%s1 + $0x124] sm:$0xf]
      %v842 = vld [vmem:[%s1 + $0x128] sm:$0xf]
      %v843 = vld [vmem:[%s1 + $0x12c] sm:$0xf]
      %v844 = vld [vmem:[%s1 + $0x130] sm:$0xf]
      %v845 = vld [vmem:[%s1 + $0x134] sm:$0xf]
      %v846 = vld [vmem:[%s1 + $0x138] sm:$0xf]
      %v847 = vld [vmem:[%s1 + $0x13c] sm:$0xf]
      %v848 = vrot.slane %v224, 2
      %v866 = vunpack.c.l.b16 %v832
      %v867 = vunpack.c.l.b16 %v833
      %v868 = vunpack.c.l.b16 %v834
      %v869 = vunpack.c.l.b16 %v835
      %v870 = vunpack.c.l.b16 %v836
      %v871 = vunpack.c.l.b16 %v837
      %v872 = vunpack.c.l.b16 %v838
      %v873 = vunpack.c.l.b16 %v839
      %v874 = vunpack.c.l.b16 %v840
      %v875 = vunpack.c.l.b16 %v841
      %v876 = vunpack.c.l.b16 %v842
      %v877 = vunpack.c.l.b16 %v843
      %v878 = vunpack.c.l.b16 %v844
      %v879 = vunpack.c.l.b16 %v845
      %v880 = vunpack.c.l.b16 %v846
      %v881 = vunpack.c.l.b16 %v847
      %v882 = vpack.c.b16 %v867, %v866
      %v883 = vpack.c.b16 %v869, %v868
      %v884 = vpack.c.b16 %v871, %v870
      %v885 = vpack.c.b16 %v873, %v872
      %v886 = vpack.c.b16 %v875, %v874
      %v887 = vpack.c.b16 %v877, %v876
      %v888 = vpack.c.b16 %v879, %v878
      %v889 = vpack.c.b16 %v881, %v880
      %898 = vmatprep.subr.bf16.mxu0 0
      %899 = vmatpush1.bf16.msra.mxu0 %v882
      %900 = vmatprep.subr.bf16.mxu0 0
      %901 = vmatpush1.bf16.msra.mxu0 %v883
      %902 = vmatprep.subr.bf16.mxu0 0
      %903 = vmatpush1.bf16.msra.mxu0 %v884
      %904 = vmatprep.subr.bf16.mxu0 0
      %905 = vmatpush1.bf16.msra.mxu0 %v885
      %906 = vmatprep.subr.bf16.mxu0 0
      %907 = vmatpush1.bf16.msra.mxu0 %v886
      %908 = vmatprep.subr.bf16.mxu0 0
      %909 = vmatpush1.bf16.msra.mxu0 %v887
      %910 = vmatprep.subr.bf16.mxu0 0
      %911 = vmatpush1.bf16.msra.mxu0 %v888
      %912 = vmatprep.subr.bf16.mxu0 0
      %913 = vmatpush1.bf16.msra.mxu0 %v889
      %914 = vmatprep.subr.bf16.mxu0 0
      %915 = vmatpush1.bf16.msra.mxu0 0
      %916 = vmatprep.subr.bf16.mxu0 0
      %917 = vmatpush1.bf16.msra.mxu0 0
      %918 = vmatprep.subr.bf16.mxu0 0
      %919 = vmatpush1.bf16.msra.mxu0 0
      %920 = vmatprep.subr.bf16.mxu0 0
      %921 = vmatpush1.bf16.msra.mxu0 0
      %922 = vmatprep.subr.bf16.mxu0 0
      %923 = vmatpush1.bf16.msra.mxu0 0
      %924 = vmatprep.subr.bf16.mxu0 0
      %925 = vmatpush1.bf16.msra.mxu0 0
      %926 = vmatprep.subr.bf16.mxu0 0
      %927 = vmatpush1.bf16.msra.mxu0 0
      %928 = vmatprep.subr.bf16.mxu0 0
      %929 = vmatpush1.bf16.msra.mxu0 0
      %930 = vmatprep.mubr.bf16.mxu0 0
      %931 = vmatmul.mubr.bf16.gmra.mrb[0].mxu0 %v848
      %v932 = vpop.f32.mrb[0].mxu0
      %v933 = vadd.f32 0.0, %v932
      %v934 = vpop.f32.mrb[0].mxu0
      %v935 = vpop.f32.mrb[0].mxu0
      %v936 = vadd.f32 0.0, %v935
      %v937 = vpop.f32.mrb[0].mxu0
      %938 = vdwg.mxu0
      %v939 = vadd.f32 %v783, %v933
      %v940 = vadd.f32 %v784, %v936
      %v941 = vrot.slane %v225, 2
      %943 = vmatprep.subr.bf16.mxu0 0
      %944 = vmatpush1.bf16.msra.mxu0 %v882
      %945 = vmatprep.subr.bf16.mxu0 0
      %946 = vmatpush1.bf16.msra.mxu0 %v883
      %947 = vmatprep.subr.bf16.mxu0 0
      %948 = vmatpush1.bf16.msra.mxu0 %v884
      %949 = vmatprep.subr.bf16.mxu0 0
      %950 = vmatpush1.bf16.msra.mxu0 %v885
      %951 = vmatprep.subr.bf16.mxu0 0
      %952 = vmatpush1.bf16.msra.mxu0 %v886
      %953 = vmatprep.subr.bf16.mxu0 0
      %954 = vmatpush1.bf16.msra.mxu0 %v887
      %955 = vmatprep.subr.bf16.mxu0 0
      %956 = vmatpush1.bf16.msra.mxu0 %v888
      %957 = vmatprep.subr.bf16.mxu0 0
      %958 = vmatpush1.bf16.msra.mxu0 %v889
      %959 = vmatprep.subr.bf16.mxu0 0
      %960 = vmatpush1.bf16.msra.mxu0 0
      %961 = vmatprep.subr.bf16.mxu0 0
      %962 = vmatpush1.bf16.msra.mxu0 0
      %963 = vmatprep.subr.bf16.mxu0 0
      %964 = vmatpush1.bf16.msra.mxu0 0
      %965 = vmatprep.subr.bf16.mxu0 0
      %966 = vmatpush1.bf16.msra.mxu0 0
      %967 = vmatprep.subr.bf16.mxu0 0
      %968 = vmatpush1.bf16.msra.mxu0 0
      %969 = vmatprep.subr.bf16.mxu0 0
      %970 = vmatpush1.bf16.msra.mxu0 0
      %971 = vmatprep.subr.bf16.mxu0 0
      %972 = vmatpush1.bf16.msra.mxu0 0
      %973 = vmatprep.subr.bf16.mxu0 0
      %974 = vmatpush1.bf16.msra.mxu0 0
      %975 = vmatprep.mubr.bf16.mxu0 0
      %976 = vmatmul.mubr.bf16.gmra.mrb[0].mxu0 %v941
      %v977 = vpop.f32.mrb[0].mxu0
      %v978 = vadd.f32 0.0, %v977
      %v979 = vpop.f32.mrb[0].mxu0
      %v980 = vpop.f32.mrb[0].mxu0
      %v981 = vadd.f32 0.0, %v980
      %v982 = vpop.f32.mrb[0].mxu0
      %983 = vdwg.mxu0
      %v984 = vadd.f32 %v830, %v978
      %v985 = vadd.f32 %v831, %v981
      %s986 = sadd.s32 %s192, 2
      %s987 = smul.u32 %s986, 2
      %s988 = smul.addr %s987, 4
      %s989 = scalar_lea.vmem %s182, %s988
      %v990 = vld [vmem:[%s989] sm:$0xf]
      %v991 = vld [vmem:[%s989 + $0x4] sm:$0x7]
      %v992 = vunpack.c.l.bf16 %v990
      %v993 = vunpack.c.l.bf16 %v991
      %v994 = vld [vmem:[%s1 + $0x140] sm:$0xf]
      %v995 = vld [vmem:[%s1 + $0x144] sm:$0xf]
      %v996 = vld [vmem:[%s1 + $0x148] sm:$0xf]
      %v997 = vld [vmem:[%s1 + $0x14c] sm:$0xf]
      %v998 = vld [vmem:[%s1 + $0x150] sm:$0xf]
      %v999 = vld [vmem:[%s1 + $0x154] sm:$0xf]
      %v1000 = vld [vmem:[%s1 + $0x158] sm:$0xf]
      %v1001 = vld [vmem:[%s1 + $0x15c] sm:$0xf]
      %v1002 = vld [vmem:[%s1 + $0x160] sm:$0xf]
      %v1003 = vld [vmem:[%s1 + $0x164] sm:$0xf]
      %v1004 = vld [vmem:[%s1 + $0x168] sm:$0xf]
      %v1005 = vld [vmem:[%s1 + $0x16c] sm:$0xf]
      %v1006 = vld [vmem:[%s1 + $0x170] sm:$0xf]
      %v1007 = vld [vmem:[%s1 + $0x174] sm:$0xf]
      %v1008 = vld [vmem:[%s1 + $0x178] sm:$0xf]
      %v1009 = vld [vmem:[%s1 + $0x17c] sm:$0xf]
      %v1010 = vpack.c.bf16 %v993, %v992
      %v1027 = vunpack.c.l.b16 %v994
      %v1028 = vunpack.c.l.b16 %v995
      %v1029 = vunpack.c.l.b16 %v996
      %v1030 = vunpack.c.l.b16 %v997
      %v1031 = vunpack.c.l.b16 %v998
      %v1032 = vunpack.c.l.b16 %v999
      %v1033 = vunpack.c.l.b16 %v1000
      %v1034 = vunpack.c.l.b16 %v1001
      %v1035 = vunpack.c.l.b16 %v1002
      %v1036 = vunpack.c.l.b16 %v1003
      %v1037 = vunpack.c.l.b16 %v1004
      %v1038 = vunpack.c.l.b16 %v1005
      %v1039 = vunpack.c.l.b16 %v1006
      %v1040 = vunpack.c.l.b16 %v1007
      %v1041 = vunpack.c.l.b16 %v1008
      %v1042 = vunpack.c.l.b16 %v1009
      %v1043 = vpack.c.b16 %v1028, %v1027
      %v1044 = vpack.c.b16 %v1030, %v1029
      %v1045 = vpack.c.b16 %v1032, %v1031
      %v1046 = vpack.c.b16 %v1034, %v1033
      %v1047 = vpack.c.b16 %v1036, %v1035
      %v1048 = vpack.c.b16 %v1038, %v1037
      %v1049 = vpack.c.b16 %v1040, %v1039
      %v1050 = vpack.c.b16 %v1042, %v1041
      %1059 = vmatprep.subr.bf16.mxu0 0
      %1060 = vmatpush1.bf16.msra.mxu0 %v1043
      %1061 = vmatprep.subr.bf16.mxu0 0
      %1062 = vmatpush1.bf16.msra.mxu0 %v1044
      %1063 = vmatprep.subr.bf16.mxu0 0
      %1064 = vmatpush1.bf16.msra.mxu0 %v1045
      %1065 = vmatprep.subr.bf16.mxu0 0
      %1066 = vmatpush1.bf16.msra.mxu0 %v1046
      %1067 = vmatprep.subr.bf16.mxu0 0
      %1068 = vmatpush1.bf16.msra.mxu0 %v1047
      %1069 = vmatprep.subr.bf16.mxu0 0
      %1070 = vmatpush1.bf16.msra.mxu0 %v1048
      %1071 = vmatprep.subr.bf16.mxu0 0
      %1072 = vmatpush1.bf16.msra.mxu0 %v1049
      %1073 = vmatprep.subr.bf16.mxu0 0
      %1074 = vmatpush1.bf16.msra.mxu0 %v1050
      %1075 = vmatprep.subr.bf16.mxu0 0
      %1076 = vmatpush1.bf16.msra.mxu0 0
      %1077 = vmatprep.subr.bf16.mxu0 0
      %1078 = vmatpush1.bf16.msra.mxu0 0
      %1079 = vmatprep.subr.bf16.mxu0 0
      %1080 = vmatpush1.bf16.msra.mxu0 0
      %1081 = vmatprep.subr.bf16.mxu0 0
      %1082 = vmatpush1.bf16.msra.mxu0 0
      %1083 = vmatprep.subr.bf16.mxu0 0
      %1084 = vmatpush1.bf16.msra.mxu0 0
      %1085 = vmatprep.subr.bf16.mxu0 0
      %1086 = vmatpush1.bf16.msra.mxu0 0
      %1087 = vmatprep.subr.bf16.mxu0 0
      %1088 = vmatpush1.bf16.msra.mxu0 0
      %1089 = vmatprep.subr.bf16.mxu0 0
      %1090 = vmatpush1.bf16.msra.mxu0 0
      %1091 = vmatprep.mubr.bf16.mxu0 0
      %1092 = vmatmul.mubr.bf16.gmra.mrb[0].mxu0 %v225
      %v1093 = vpop.f32.mrb[0].mxu0
      %v1094 = vadd.f32 0.0, %v1093
      %v1095 = vpop.f32.mrb[0].mxu0
      %v1096 = vpop.f32.mrb[0].mxu0
      %v1097 = vadd.f32 0.0, %v1096
      %v1098 = vpop.f32.mrb[0].mxu0
      %1099 = vdwg.mxu0
      %v1100 = vadd.f32 %v939, %v1094
      %v1101 = vadd.f32 %v940, %v1097
      %1102 = vmatprep.subr.bf16.mxu0 0
      %1103 = vmatpush1.bf16.msra.mxu0 %v1043
      %1104 = vmatprep.subr.bf16.mxu0 0
      %1105 = vmatpush1.bf16.msra.mxu0 %v1044
      %1106 = vmatprep.subr.bf16.mxu0 0
      %1107 = vmatpush1.bf16.msra.mxu0 %v1045
      %1108 = vmatprep.subr.bf16.mxu0 0
      %1109 = vmatpush1.bf16.msra.mxu0 %v1046
      %1110 = vmatprep.subr.bf16.mxu0 0
      %1111 = vmatpush1.bf16.msra.mxu0 %v1047
      %1112 = vmatprep.subr.bf16.mxu0 0
      %1113 = vmatpush1.bf16.msra.mxu0 %v1048
      %1114 = vmatprep.subr.bf16.mxu0 0
      %1115 = vmatpush1.bf16.msra.mxu0 %v1049
      %1116 = vmatprep.subr.bf16.mxu0 0
      %1117 = vmatpush1.bf16.msra.mxu0 %v1050
      %1118 = vmatprep.subr.bf16.mxu0 0
      %1119 = vmatpush1.bf16.msra.mxu0 0
      %1120 = vmatprep.subr.bf16.mxu0 0
      %1121 = vmatpush1.bf16.msra.mxu0 0
      %1122 = vmatprep.subr.bf16.mxu0 0
      %1123 = vmatpush1.bf16.msra.mxu0 0
      %1124 = vmatprep.subr.bf16.mxu0 0
      %1125 = vmatpush1.bf16.msra.mxu0 0
      %1126 = vmatprep.subr.bf16.mxu0 0
      %1127 = vmatpush1.bf16.msra.mxu0 0
      %1128 = vmatprep.subr.bf16.mxu0 0
      %1129 = vmatpush1.bf16.msra.mxu0 0
      %1130 = vmatprep.subr.bf16.mxu0 0
      %1131 = vmatpush1.bf16.msra.mxu0 0
      %1132 = vmatprep.subr.bf16.mxu0 0
      %1133 = vmatpush1.bf16.msra.mxu0 0
      %1134 = vmatprep.mubr.bf16.mxu0 0
      %1135 = vmatmul.mubr.bf16.gmra.mrb[0].mxu0 %v1010
      %v1136 = vpop.f32.mrb[0].mxu0
      %v1137 = vadd.f32 0.0, %v1136
      %v1138 = vpop.f32.mrb[0].mxu0
      %v1139 = vpop.f32.mrb[0].mxu0
      %v1140 = vadd.f32 0.0, %v1139
      %v1141 = vpop.f32.mrb[0].mxu0
      %1142 = vdwg.mxu0
      %v1143 = vadd.f32 %v984, %v1137
      %v1144 = vadd.f32 %v985, %v1140
      %v1145 = vld [vmem:[%s1 + $0x180] sm:$0xf]
      %v1146 = vld [vmem:[%s1 + $0x184] sm:$0xf]
      %v1147 = vld [vmem:[%s1 + $0x188] sm:$0xf]
      %v1148 = vld [vmem:[%s1 + $0x18c] sm:$0xf]
      %v1149 = vld [vmem:[%s1 + $0x190] sm:$0xf]
      %v1150 = vld [vmem:[%s1 + $0x194] sm:$0xf]
      %v1151 = vld [vmem:[%s1 + $0x198] sm:$0xf]
      %v1152 = vld [vmem:[%s1 + $0x19c] sm:$0xf]
      %v1153 = vld [vmem:[%s1 + $0x1a0] sm:$0xf]
      %v1154 = vld [vmem:[%s1 + $0x1a4] sm:$0xf]
      %v1155 = vld [vmem:[%s1 + $0x1a8] sm:$0xf]
      %v1156 = vld [vmem:[%s1 + $0x1ac] sm:$0xf]
      %v1157 = vld [vmem:[%s1 + $0x1b0] sm:$0xf]
      %v1158 = vld [vmem:[%s1 + $0x1b4] sm:$0xf]
      %v1159 = vld [vmem:[%s1 + $0x1b8] sm:$0xf]
      %v1160 = vld [vmem:[%s1 + $0x1bc] sm:$0xf]
      %v1177 = vunpack.c.l.b16 %v1145
      %v1178 = vunpack.c.l.b16 %v1146
      %v1179 = vunpack.c.l.b16 %v1147
      %v1180 = vunpack.c.l.b16 %v1148
      %v1181 = vunpack.c.l.b16 %v1149
      %v1182 = vunpack.c.l.b16 %v1150
      %v1183 = vunpack.c.l.b16 %v1151
      %v1184 = vunpack.c.l.b16 %v1152
      %v1185 = vunpack.c.l.b16 %v1153
      %v1186 = vunpack.c.l.b16 %v1154
      %v1187 = vunpack.c.l.b16 %v1155
      %v1188 = vunpack.c.l.b16 %v1156
      %v1189 = vunpack.c.l.b16 %v1157
      %v1190 = vunpack.c.l.b16 %v1158
      %v1191 = vunpack.c.l.b16 %v1159
      %v1192 = vunpack.c.l.b16 %v1160
      %v1193 = vpack.c.b16 %v1178, %v1177
      %v1194 = vpack.c.b16 %v1180, %v1179
      %v1195 = vpack.c.b16 %v1182, %v1181
      %v1196 = vpack.c.b16 %v1184, %v1183
      %v1197 = vpack.c.b16 %v1186, %v1185
      %v1198 = vpack.c.b16 %v1188, %v1187
      %v1199 = vpack.c.b16 %v1190, %v1189
      %v1200 = vpack.c.b16 %v1192, %v1191
      %1209 = vmatprep.subr.bf16.mxu0 0
      %1210 = vmatpush1.bf16.msra.mxu0 %v1193
      %1211 = vmatprep.subr.bf16.mxu0 0
      %1212 = vmatpush1.bf16.msra.mxu0 %v1194
      %1213 = vmatprep.subr.bf16.mxu0 0
      %1214 = vmatpush1.bf16.msra.mxu0 %v1195
      %1215 = vmatprep.subr.bf16.mxu0 0
      %1216 = vmatpush1.bf16.msra.mxu0 %v1196
      %1217 = vmatprep.subr.bf16.mxu0 0
      %1218 = vmatpush1.bf16.msra.mxu0 %v1197
      %1219 = vmatprep.subr.bf16.mxu0 0
      %1220 = vmatpush1.bf16.msra.mxu0 %v1198
      %1221 = vmatprep.subr.bf16.mxu0 0
      %1222 = vmatpush1.bf16.msra.mxu0 %v1199
      %1223 = vmatprep.subr.bf16.mxu0 0
      %1224 = vmatpush1.bf16.msra.mxu0 %v1200
      %1225 = vmatprep.subr.bf16.mxu0 0
      %1226 = vmatpush1.bf16.msra.mxu0 0
      %1227 = vmatprep.subr.bf16.mxu0 0
      %1228 = vmatpush1.bf16.msra.mxu0 0
      %1229 = vmatprep.subr.bf16.mxu0 0
      %1230 = vmatpush1.bf16.msra.mxu0 0
      %1231 = vmatprep.subr.bf16.mxu0 0
      %1232 = vmatpush1.bf16.msra.mxu0 0
      %1233 = vmatprep.subr.bf16.mxu0 0
      %1234 = vmatpush1.bf16.msra.mxu0 0
      %1235 = vmatprep.subr.bf16.mxu0 0
      %1236 = vmatpush1.bf16.msra.mxu0 0
      %1237 = vmatprep.subr.bf16.mxu0 0
      %1238 = vmatpush1.bf16.msra.mxu0 0
      %1239 = vmatprep.subr.bf16.mxu0 0
      %1240 = vmatpush1.bf16.msra.mxu0 0
      %1241 = vmatprep.mubr.bf16.mxu0 0
      %1242 = vmatmul.mubr.bf16.gmra.mrb[0].mxu0 %v434
      %v1243 = vpop.f32.mrb[0].mxu0
      %v1244 = vadd.f32 0.0, %v1243
      %v1245 = vpop.f32.mrb[0].mxu0
      %v1246 = vpop.f32.mrb[0].mxu0
      %v1247 = vadd.f32 0.0, %v1246
      %v1248 = vpop.f32.mrb[0].mxu0
      %1249 = vdwg.mxu0
      %v1250 = vadd.f32 %v1100, %v1244
      %v1251 = vadd.f32 %v1101, %v1247
      %v1253 = vshrl.u32 %v1010, 16
      %v1255 = vshll.u32 %v1010, 16
      %v1257 = vrot.slane %v1255, 1
      %v1258 = vor.u32 %v1253, %v1257
      %1260 = vmatprep.subr.bf16.mxu0 0
      %1261 = vmatpush1.bf16.msra.mxu0 %v1193
      %1262 = vmatprep.subr.bf16.mxu0 0
      %1263 = vmatpush1.bf16.msra.mxu0 %v1194
      %1264 = vmatprep.subr.bf16.mxu0 0
      %1265 = vmatpush1.bf16.msra.mxu0 %v1195
      %1266 = vmatprep.subr.bf16.mxu0 0
      %1267 = vmatpush1.bf16.msra.mxu0 %v1196
      %1268 = vmatprep.subr.bf16.mxu0 0
      %1269 = vmatpush1.bf16.msra.mxu0 %v1197
      %1270 = vmatprep.subr.bf16.mxu0 0
      %1271 = vmatpush1.bf16.msra.mxu0 %v1198
      %1272 = vmatprep.subr.bf16.mxu0 0
      %1273 = vmatpush1.bf16.msra.mxu0 %v1199
      %1274 = vmatprep.subr.bf16.mxu0 0
      %1275 = vmatpush1.bf16.msra.mxu0 %v1200
      %1276 = vmatprep.subr.bf16.mxu0 0
      %1277 = vmatpush1.bf16.msra.mxu0 0
      %1278 = vmatprep.subr.bf16.mxu0 0
      %1279 = vmatpush1.bf16.msra.mxu0 0
      %1280 = vmatprep.subr.bf16.mxu0 0
      %1281 = vmatpush1.bf16.msra.mxu0 0
      %1282 = vmatprep.subr.bf16.mxu0 0
      %1283 = vmatpush1.bf16.msra.mxu0 0
      %1284 = vmatprep.subr.bf16.mxu0 0
      %1285 = vmatpush1.bf16.msra.mxu0 0
      %1286 = vmatprep.subr.bf16.mxu0 0
      %1287 = vmatpush1.bf16.msra.mxu0 0
      %1288 = vmatprep.subr.bf16.mxu0 0
      %1289 = vmatpush1.bf16.msra.mxu0 0
      %1290 = vmatprep.subr.bf16.mxu0 0
      %1291 = vmatpush1.bf16.msra.mxu0 0
      %1292 = vmatprep.mubr.bf16.mxu0 0
      %1293 = vmatmul.mubr.bf16.gmra.mrb[0].mxu0 %v1258
      %v1294 = vpop.f32.mrb[0].mxu0
      %v1295 = vadd.f32 0.0, %v1294
      %v1296 = vpop.f32.mrb[0].mxu0
      %v1297 = vpop.f32.mrb[0].mxu0
      %v1298 = vadd.f32 0.0, %v1297
      %v1299 = vpop.f32.mrb[0].mxu0
      %1300 = vdwg.mxu0
      %v1301 = vadd.f32 %v1143, %v1295
      %v1302 = vadd.f32 %v1144, %v1298
      %v1303 = vld [vmem:[%s1 + $0x1c0] sm:$0xf]
      %v1304 = vld [vmem:[%s1 + $0x1c4] sm:$0xf]
      %v1305 = vld [vmem:[%s1 + $0x1c8] sm:$0xf]
      %v1306 = vld [vmem:[%s1 + $0x1cc] sm:$0xf]
      %v1307 = vld [vmem:[%s1 + $0x1d0] sm:$0xf]
      %v1308 = vld [vmem:[%s1 + $0x1d4] sm:$0xf]
      %v1309 = vld [vmem:[%s1 + $0x1d8] sm:$0xf]
      %v1310 = vld [vmem:[%s1 + $0x1dc] sm:$0xf]
      %v1311 = vld [vmem:[%s1 + $0x1e0] sm:$0xf]
      %v1312 = vld [vmem:[%s1 + $0x1e4] sm:$0xf]
      %v1313 = vld [vmem:[%s1 + $0x1e8] sm:$0xf]
      %v1314 = vld [vmem:[%s1 + $0x1ec] sm:$0xf]
      %v1315 = vld [vmem:[%s1 + $0x1f0] sm:$0xf]
      %v1316 = vld [vmem:[%s1 + $0x1f4] sm:$0xf]
      %v1317 = vld [vmem:[%s1 + $0x1f8] sm:$0xf]
      %v1318 = vld [vmem:[%s1 + $0x1fc] sm:$0xf]
      %v1335 = vunpack.c.l.b16 %v1303
      %v1336 = vunpack.c.l.b16 %v1304
      %v1337 = vunpack.c.l.b16 %v1305
      %v1338 = vunpack.c.l.b16 %v1306
      %v1339 = vunpack.c.l.b16 %v1307
      %v1340 = vunpack.c.l.b16 %v1308
      %v1341 = vunpack.c.l.b16 %v1309
      %v1342 = vunpack.c.l.b16 %v1310
      %v1343 = vunpack.c.l.b16 %v1311
      %v1344 = vunpack.c.l.b16 %v1312
      %v1345 = vunpack.c.l.b16 %v1313
      %v1346 = vunpack.c.l.b16 %v1314
      %v1347 = vunpack.c.l.b16 %v1315
      %v1348 = vunpack.c.l.b16 %v1316
      %v1349 = vunpack.c.l.b16 %v1317
      %v1350 = vunpack.c.l.b16 %v1318
      %v1351 = vpack.c.b16 %v1336, %v1335
      %v1352 = vpack.c.b16 %v1338, %v1337
      %v1353 = vpack.c.b16 %v1340, %v1339
      %v1354 = vpack.c.b16 %v1342, %v1341
      %v1355 = vpack.c.b16 %v1344, %v1343
      %v1356 = vpack.c.b16 %v1346, %v1345
      %v1357 = vpack.c.b16 %v1348, %v1347
      %v1358 = vpack.c.b16 %v1350, %v1349
      %1367 = vmatprep.subr.bf16.mxu0 0
      %1368 = vmatpush1.bf16.msra.mxu0 %v1351
      %1369 = vmatprep.subr.bf16.mxu0 0
      %1370 = vmatpush1.bf16.msra.mxu0 %v1352
      %1371 = vmatprep.subr.bf16.mxu0 0
      %1372 = vmatpush1.bf16.msra.mxu0 %v1353
      %1373 = vmatprep.subr.bf16.mxu0 0
      %1374 = vmatpush1.bf16.msra.mxu0 %v1354
      %1375 = vmatprep.subr.bf16.mxu0 0
      %1376 = vmatpush1.bf16.msra.mxu0 %v1355
      %1377 = vmatprep.subr.bf16.mxu0 0
      %1378 = vmatpush1.bf16.msra.mxu0 %v1356
      %1379 = vmatprep.subr.bf16.mxu0 0
      %1380 = vmatpush1.bf16.msra.mxu0 %v1357
      %1381 = vmatprep.subr.bf16.mxu0 0
      %1382 = vmatpush1.bf16.msra.mxu0 %v1358
      %1383 = vmatprep.subr.bf16.mxu0 0
      %1384 = vmatpush1.bf16.msra.mxu0 0
      %1385 = vmatprep.subr.bf16.mxu0 0
      %1386 = vmatpush1.bf16.msra.mxu0 0
      %1387 = vmatprep.subr.bf16.mxu0 0
      %1388 = vmatpush1.bf16.msra.mxu0 0
      %1389 = vmatprep.subr.bf16.mxu0 0
      %1390 = vmatpush1.bf16.msra.mxu0 0
      %1391 = vmatprep.subr.bf16.mxu0 0
      %1392 = vmatpush1.bf16.msra.mxu0 0
      %1393 = vmatprep.subr.bf16.mxu0 0
      %1394 = vmatpush1.bf16.msra.mxu0 0
      %1395 = vmatprep.subr.bf16.mxu0 0
      %1396 = vmatpush1.bf16.msra.mxu0 0
      %1397 = vmatprep.subr.bf16.mxu0 0
      %1398 = vmatpush1.bf16.msra.mxu0 0
      %1399 = vmatprep.mubr.bf16.mxu0 0
      %1400 = vmatmul.mubr.bf16.gmra.mrb[0].mxu0 %v629
      %v1401 = vpop.f32.mrb[0].mxu0
      %v1402 = vadd.f32 0.0, %v1401
      %v1403 = vpop.f32.mrb[0].mxu0
      %v1404 = vpop.f32.mrb[0].mxu0
      %v1405 = vadd.f32 0.0, %v1404
      %v1406 = vpop.f32.mrb[0].mxu0
      %1407 = vdwg.mxu0
      %v1408 = vadd.f32 %v1250, %v1402
      %v1409 = vadd.f32 %v1251, %v1405
      %v1411 = vrot.slane %v1010, 1
      %1413 = vmatprep.subr.bf16.mxu0 0
      %1414 = vmatpush1.bf16.msra.mxu0 %v1351
      %1415 = vmatprep.subr.bf16.mxu0 0
      %1416 = vmatpush1.bf16.msra.mxu0 %v1352
      %1417 = vmatprep.subr.bf16.mxu0 0
      %1418 = vmatpush1.bf16.msra.mxu0 %v1353
      %1419 = vmatprep.subr.bf16.mxu0 0
      %1420 = vmatpush1.bf16.msra.mxu0 %v1354
      %1421 = vmatprep.subr.bf16.mxu0 0
      %1422 = vmatpush1.bf16.msra.mxu0 %v1355
      %1423 = vmatprep.subr.bf16.mxu0 0
      %1424 = vmatpush1.bf16.msra.mxu0 %v1356
      %1425 = vmatprep.subr.bf16.mxu0 0
      %1426 = vmatpush1.bf16.msra.mxu0 %v1357
      %1427 = vmatprep.subr.bf16.mxu0 0
      %1428 = vmatpush1.bf16.msra.mxu0 %v1358
      %1429 = vmatprep.subr.bf16.mxu0 0
      %1430 = vmatpush1.bf16.msra.mxu0 0
      %1431 = vmatprep.subr.bf16.mxu0 0
      %1432 = vmatpush1.bf16.msra.mxu0 0
      %1433 = vmatprep.subr.bf16.mxu0 0
      %1434 = vmatpush1.bf16.msra.mxu0 0
      %1435 = vmatprep.subr.bf16.mxu0 0
      %1436 = vmatpush1.bf16.msra.mxu0 0
      %1437 = vmatprep.subr.bf16.mxu0 0
      %1438 = vmatpush1.bf16.msra.mxu0 0
      %1439 = vmatprep.subr.bf16.mxu0 0
      %1440 = vmatpush1.bf16.msra.mxu0 0
      %1441 = vmatprep.subr.bf16.mxu0 0
      %1442 = vmatpush1.bf16.msra.mxu0 0
      %1443 = vmatprep.subr.bf16.mxu0 0
      %1444 = vmatpush1.bf16.msra.mxu0 0
      %1445 = vmatprep.mubr.bf16.mxu0 0
      %1446 = vmatmul.mubr.bf16.gmra.mrb[0].mxu0 %v1411
      %v1447 = vpop.f32.mrb[0].mxu0
      %v1448 = vadd.f32 0.0, %v1447
      %v1449 = vpop.f32.mrb[0].mxu0
      %v1450 = vpop.f32.mrb[0].mxu0
      %v1451 = vadd.f32 0.0, %v1450
      %v1452 = vpop.f32.mrb[0].mxu0
      %1453 = vdwg.mxu0
      %v1454 = vadd.f32 %v1301, %v1448
      %v1455 = vadd.f32 %v1302, %v1451
      %v1456 = vld [vmem:[%s1 + $0x200] sm:$0xf]
      %v1457 = vld [vmem:[%s1 + $0x204] sm:$0xf]
      %v1458 = vld [vmem:[%s1 + $0x208] sm:$0xf]
      %v1459 = vld [vmem:[%s1 + $0x20c] sm:$0xf]
      %v1460 = vld [vmem:[%s1 + $0x210] sm:$0xf]
      %v1461 = vld [vmem:[%s1 + $0x214] sm:$0xf]
      %v1462 = vld [vmem:[%s1 + $0x218] sm:$0xf]
      %v1463 = vld [vmem:[%s1 + $0x21c] sm:$0xf]
      %v1464 = vld [vmem:[%s1 + $0x220] sm:$0xf]
      %v1465 = vld [vmem:[%s1 + $0x224] sm:$0xf]
      %v1466 = vld [vmem:[%s1 + $0x228] sm:$0xf]
      %v1467 = vld [vmem:[%s1 + $0x22c] sm:$0xf]
      %v1468 = vld [vmem:[%s1 + $0x230] sm:$0xf]
      %v1469 = vld [vmem:[%s1 + $0x234] sm:$0xf]
      %v1470 = vld [vmem:[%s1 + $0x238] sm:$0xf]
      %v1471 = vld [vmem:[%s1 + $0x23c] sm:$0xf]
      %v1488 = vunpack.c.l.b16 %v1456
      %v1489 = vunpack.c.l.b16 %v1457
      %v1490 = vunpack.c.l.b16 %v1458
      %v1491 = vunpack.c.l.b16 %v1459
      %v1492 = vunpack.c.l.b16 %v1460
      %v1493 = vunpack.c.l.b16 %v1461
      %v1494 = vunpack.c.l.b16 %v1462
      %v1495 = vunpack.c.l.b16 %v1463
      %v1496 = vunpack.c.l.b16 %v1464
      %v1497 = vunpack.c.l.b16 %v1465
      %v1498 = vunpack.c.l.b16 %v1466
      %v1499 = vunpack.c.l.b16 %v1467
      %v1500 = vunpack.c.l.b16 %v1468
      %v1501 = vunpack.c.l.b16 %v1469
      %v1502 = vunpack.c.l.b16 %v1470
      %v1503 = vunpack.c.l.b16 %v1471
      %v1504 = vpack.c.b16 %v1489, %v1488
      %v1505 = vpack.c.b16 %v1491, %v1490
      %v1506 = vpack.c.b16 %v1493, %v1492
      %v1507 = vpack.c.b16 %v1495, %v1494
      %v1508 = vpack.c.b16 %v1497, %v1496
      %v1509 = vpack.c.b16 %v1499, %v1498
      %v1510 = vpack.c.b16 %v1501, %v1500
      %v1511 = vpack.c.b16 %v1503, %v1502
      %1520 = vmatprep.subr.bf16.mxu0 0
      %1521 = vmatpush1.bf16.msra.mxu0 %v1504
      %1522 = vmatprep.subr.bf16.mxu0 0
      %1523 = vmatpush1.bf16.msra.mxu0 %v1505
      %1524 = vmatprep.subr.bf16.mxu0 0
      %1525 = vmatpush1.bf16.msra.mxu0 %v1506
      %1526 = vmatprep.subr.bf16.mxu0 0
      %1527 = vmatpush1.bf16.msra.mxu0 %v1507
      %1528 = vmatprep.subr.bf16.mxu0 0
      %1529 = vmatpush1.bf16.msra.mxu0 %v1508
      %1530 = vmatprep.subr.bf16.mxu0 0
      %1531 = vmatpush1.bf16.msra.mxu0 %v1509
      %1532 = vmatprep.subr.bf16.mxu0 0
      %1533 = vmatpush1.bf16.msra.mxu0 %v1510
      %1534 = vmatprep.subr.bf16.mxu0 0
      %1535 = vmatpush1.bf16.msra.mxu0 %v1511
      %1536 = vmatprep.subr.bf16.mxu0 0
      %1537 = vmatpush1.bf16.msra.mxu0 0
      %1538 = vmatprep.subr.bf16.mxu0 0
      %1539 = vmatpush1.bf16.msra.mxu0 0
      %1540 = vmatprep.subr.bf16.mxu0 0
      %1541 = vmatpush1.bf16.msra.mxu0 0
      %1542 = vmatprep.subr.bf16.mxu0 0
      %1543 = vmatpush1.bf16.msra.mxu0 0
      %1544 = vmatprep.subr.bf16.mxu0 0
      %1545 = vmatpush1.bf16.msra.mxu0 0
      %1546 = vmatprep.subr.bf16.mxu0 0
      %1547 = vmatpush1.bf16.msra.mxu0 0
      %1548 = vmatprep.subr.bf16.mxu0 0
      %1549 = vmatpush1.bf16.msra.mxu0 0
      %1550 = vmatprep.subr.bf16.mxu0 0
      %1551 = vmatpush1.bf16.msra.mxu0 0
      %1552 = vmatprep.mubr.bf16.mxu0 0
      %1553 = vmatmul.mubr.bf16.gmra.mrb[0].mxu0 %v787
      %v1554 = vpop.f32.mrb[0].mxu0
      %v1555 = vadd.f32 0.0, %v1554
      %v1556 = vpop.f32.mrb[0].mxu0
      %v1557 = vpop.f32.mrb[0].mxu0
      %v1558 = vadd.f32 0.0, %v1557
      %v1559 = vpop.f32.mrb[0].mxu0
      %1560 = vdwg.mxu0
      %v1561 = vadd.f32 %v1408, %v1555
      %v1562 = vadd.f32 %v1409, %v1558
      %v1563 = vrot.slane %v1253, 1
      %v1564 = vrot.slane %v1255, 2
      %v1565 = vor.u32 %v1563, %v1564
      %1567 = vmatprep.subr.bf16.mxu0 0
      %1568 = vmatpush1.bf16.msra.mxu0 %v1504
      %1569 = vmatprep.subr.bf16.mxu0 0
      %1570 = vmatpush1.bf16.msra.mxu0 %v1505
      %1571 = vmatprep.subr.bf16.mxu0 0
      %1572 = vmatpush1.bf16.msra.mxu0 %v1506
      %1573 = vmatprep.subr.bf16.mxu0 0
      %1574 = vmatpush1.bf16.msra.mxu0 %v1507
      %1575 = vmatprep.subr.bf16.mxu0 0
      %1576 = vmatpush1.bf16.msra.mxu0 %v1508
      %1577 = vmatprep.subr.bf16.mxu0 0
      %1578 = vmatpush1.bf16.msra.mxu0 %v1509
      %1579 = vmatprep.subr.bf16.mxu0 0
      %1580 = vmatpush1.bf16.msra.mxu0 %v1510
      %1581 = vmatprep.subr.bf16.mxu0 0
      %1582 = vmatpush1.bf16.msra.mxu0 %v1511
      %1583 = vmatprep.subr.bf16.mxu0 0
      %1584 = vmatpush1.bf16.msra.mxu0 0
      %1585 = vmatprep.subr.bf16.mxu0 0
      %1586 = vmatpush1.bf16.msra.mxu0 0
      %1587 = vmatprep.subr.bf16.mxu0 0
      %1588 = vmatpush1.bf16.msra.mxu0 0
      %1589 = vmatprep.subr.bf16.mxu0 0
      %1590 = vmatpush1.bf16.msra.mxu0 0
      %1591 = vmatprep.subr.bf16.mxu0 0
      %1592 = vmatpush1.bf16.msra.mxu0 0
      %1593 = vmatprep.subr.bf16.mxu0 0
      %1594 = vmatpush1.bf16.msra.mxu0 0
      %1595 = vmatprep.subr.bf16.mxu0 0
      %1596 = vmatpush1.bf16.msra.mxu0 0
      %1597 = vmatprep.subr.bf16.mxu0 0
      %1598 = vmatpush1.bf16.msra.mxu0 0
      %1599 = vmatprep.mubr.bf16.mxu0 0
      %1600 = vmatmul.mubr.bf16.gmra.mrb[0].mxu0 %v1565
      %v1601 = vpop.f32.mrb[0].mxu0
      %v1602 = vadd.f32 0.0, %v1601
      %v1603 = vpop.f32.mrb[0].mxu0
      %v1604 = vpop.f32.mrb[0].mxu0
      %v1605 = vadd.f32 0.0, %v1604
      %v1606 = vpop.f32.mrb[0].mxu0
      %1607 = vdwg.mxu0
      %v1608 = vadd.f32 %v1454, %v1602
      %v1609 = vadd.f32 %v1455, %v1605
      %v1610 = vld [vmem:[%s1 + $0x240] sm:$0xf]
      %v1611 = vld [vmem:[%s1 + $0x244] sm:$0xf]
      %v1612 = vld [vmem:[%s1 + $0x248] sm:$0xf]
      %v1613 = vld [vmem:[%s1 + $0x24c] sm:$0xf]
      %v1614 = vld [vmem:[%s1 + $0x250] sm:$0xf]
      %v1615 = vld [vmem:[%s1 + $0x254] sm:$0xf]
      %v1616 = vld [vmem:[%s1 + $0x258] sm:$0xf]
      %v1617 = vld [vmem:[%s1 + $0x25c] sm:$0xf]
      %v1618 = vld [vmem:[%s1 + $0x260] sm:$0xf]
      %v1619 = vld [vmem:[%s1 + $0x264] sm:$0xf]
      %v1620 = vld [vmem:[%s1 + $0x268] sm:$0xf]
      %v1621 = vld [vmem:[%s1 + $0x26c] sm:$0xf]
      %v1622 = vld [vmem:[%s1 + $0x270] sm:$0xf]
      %v1623 = vld [vmem:[%s1 + $0x274] sm:$0xf]
      %v1624 = vld [vmem:[%s1 + $0x278] sm:$0xf]
      %v1625 = vld [vmem:[%s1 + $0x27c] sm:$0xf]
      %v1642 = vunpack.c.l.b16 %v1610
      %v1643 = vunpack.c.l.b16 %v1611
      %v1644 = vunpack.c.l.b16 %v1612
      %v1645 = vunpack.c.l.b16 %v1613
      %v1646 = vunpack.c.l.b16 %v1614
      %v1647 = vunpack.c.l.b16 %v1615
      %v1648 = vunpack.c.l.b16 %v1616
      %v1649 = vunpack.c.l.b16 %v1617
      %v1650 = vunpack.c.l.b16 %v1618
      %v1651 = vunpack.c.l.b16 %v1619
      %v1652 = vunpack.c.l.b16 %v1620
      %v1653 = vunpack.c.l.b16 %v1621
      %v1654 = vunpack.c.l.b16 %v1622
      %v1655 = vunpack.c.l.b16 %v1623
      %v1656 = vunpack.c.l.b16 %v1624
      %v1657 = vunpack.c.l.b16 %v1625
      %v1658 = vpack.c.b16 %v1643, %v1642
      %v1659 = vpack.c.b16 %v1645, %v1644
      %v1660 = vpack.c.b16 %v1647, %v1646
      %v1661 = vpack.c.b16 %v1649, %v1648
      %v1662 = vpack.c.b16 %v1651, %v1650
      %v1663 = vpack.c.b16 %v1653, %v1652
      %v1664 = vpack.c.b16 %v1655, %v1654
      %v1665 = vpack.c.b16 %v1657, %v1656
      %1674 = vmatprep.subr.bf16.mxu0 0
      %1675 = vmatpush1.bf16.msra.mxu0 %v1658
      %1676 = vmatprep.subr.bf16.mxu0 0
      %1677 = vmatpush1.bf16.msra.mxu0 %v1659
      %1678 = vmatprep.subr.bf16.mxu0 0
      %1679 = vmatpush1.bf16.msra.mxu0 %v1660
      %1680 = vmatprep.subr.bf16.mxu0 0
      %1681 = vmatpush1.bf16.msra.mxu0 %v1661
      %1682 = vmatprep.subr.bf16.mxu0 0
      %1683 = vmatpush1.bf16.msra.mxu0 %v1662
      %1684 = vmatprep.subr.bf16.mxu0 0
      %1685 = vmatpush1.bf16.msra.mxu0 %v1663
      %1686 = vmatprep.subr.bf16.mxu0 0
      %1687 = vmatpush1.bf16.msra.mxu0 %v1664
      %1688 = vmatprep.subr.bf16.mxu0 0
      %1689 = vmatpush1.bf16.msra.mxu0 %v1665
      %1690 = vmatprep.subr.bf16.mxu0 0
      %1691 = vmatpush1.bf16.msra.mxu0 0
      %1692 = vmatprep.subr.bf16.mxu0 0
      %1693 = vmatpush1.bf16.msra.mxu0 0
      %1694 = vmatprep.subr.bf16.mxu0 0
      %1695 = vmatpush1.bf16.msra.mxu0 0
      %1696 = vmatprep.subr.bf16.mxu0 0
      %1697 = vmatpush1.bf16.msra.mxu0 0
      %1698 = vmatprep.subr.bf16.mxu0 0
      %1699 = vmatpush1.bf16.msra.mxu0 0
      %1700 = vmatprep.subr.bf16.mxu0 0
      %1701 = vmatpush1.bf16.msra.mxu0 0
      %1702 = vmatprep.subr.bf16.mxu0 0
      %1703 = vmatpush1.bf16.msra.mxu0 0
      %1704 = vmatprep.subr.bf16.mxu0 0
      %1705 = vmatpush1.bf16.msra.mxu0 0
      %1706 = vmatprep.mubr.bf16.mxu0 0
      %1707 = vmatmul.mubr.bf16.gmra.mrb[0].mxu0 %v941
      %v1708 = vpop.f32.mrb[0].mxu0
      %v1709 = vadd.f32 0.0, %v1708
      %v1710 = vpop.f32.mrb[0].mxu0
      %v1711 = vpop.f32.mrb[0].mxu0
      %v1712 = vadd.f32 0.0, %v1711
      %v1713 = vpop.f32.mrb[0].mxu0
      %1714 = vdwg.mxu0
      %v1715 = vadd.f32 %v1561, %v1709
      %v1716 = vadd.f32 %v1562, %v1712
      %v1717 = vrot.slane %v1010, 2
      %1719 = vmatprep.subr.bf16.mxu0 0
      %1720 = vmatpush1.bf16.msra.mxu0 %v1658
      %1721 = vmatprep.subr.bf16.mxu0 0
      %1722 = vmatpush1.bf16.msra.mxu0 %v1659
      %1723 = vmatprep.subr.bf16.mxu0 0
      %1724 = vmatpush1.bf16.msra.mxu0 %v1660
      %1725 = vmatprep.subr.bf16.mxu0 0
      %1726 = vmatpush1.bf16.msra.mxu0 %v1661
      %1727 = vmatprep.subr.bf16.mxu0 0
      %1728 = vmatpush1.bf16.msra.mxu0 %v1662
      %1729 = vmatprep.subr.bf16.mxu0 0
      %1730 = vmatpush1.bf16.msra.mxu0 %v1663
      %1731 = vmatprep.subr.bf16.mxu0 0
      %1732 = vmatpush1.bf16.msra.mxu0 %v1664
      %1733 = vmatprep.subr.bf16.mxu0 0
      %1734 = vmatpush1.bf16.msra.mxu0 %v1665
      %1735 = vmatprep.subr.bf16.mxu0 0
      %1736 = vmatpush1.bf16.msra.mxu0 0
      %1737 = vmatprep.subr.bf16.mxu0 0
      %1738 = vmatpush1.bf16.msra.mxu0 0
      %1739 = vmatprep.subr.bf16.mxu0 0
      %1740 = vmatpush1.bf16.msra.mxu0 0
      %1741 = vmatprep.subr.bf16.mxu0 0
      %1742 = vmatpush1.bf16.msra.mxu0 0
      %1743 = vmatprep.subr.bf16.mxu0 0
      %1744 = vmatpush1.bf16.msra.mxu0 0
      %1745 = vmatprep.subr.bf16.mxu0 0
      %1746 = vmatpush1.bf16.msra.mxu0 0
      %1747 = vmatprep.subr.bf16.mxu0 0
      %1748 = vmatpush1.bf16.msra.mxu0 0
      %1749 = vmatprep.subr.bf16.mxu0 0
      %1750 = vmatpush1.bf16.msra.mxu0 0
      %1751 = vmatprep.mubr.bf16.mxu0 0
      %1752 = vmatmul.mubr.bf16.gmra.mrb[0].mxu0 %v1717
      %v1753 = vpop.f32.mrb[0].mxu0
      %v1754 = vadd.f32 0.0, %v1753
      %v1755 = vpop.f32.mrb[0].mxu0
      %v1756 = vpop.f32.mrb[0].mxu0
      %v1757 = vadd.f32 0.0, %v1756
      %v1758 = vpop.f32.mrb[0].mxu0
      %1759 = vdwg.mxu0
      %v1760 = vadd.f32 %v1608, %v1754
      %v1761 = vadd.f32 %v1609, %v1757
      %s1762 = sadd.s32 %s192, 3
      %s1763 = smul.u32 %s1762, 2
      %s1764 = smul.addr %s1763, 4
      %s1765 = scalar_lea.vmem %s182, %s1764
      %v1766 = vld [vmem:[%s1765] sm:$0xf]
      %v1767 = vld [vmem:[%s1765 + $0x4] sm:$0x7]
      %v1768 = vunpack.c.l.bf16 %v1766
      %v1769 = vunpack.c.l.bf16 %v1767
      %v1770 = vld [vmem:[%s1 + $0x280] sm:$0xf]
      %v1771 = vld [vmem:[%s1 + $0x284] sm:$0xf]
      %v1772 = vld [vmem:[%s1 + $0x288] sm:$0xf]
      %v1773 = vld [vmem:[%s1 + $0x28c] sm:$0xf]
      %v1774 = vld [vmem:[%s1 + $0x290] sm:$0xf]
      %v1775 = vld [vmem:[%s1 + $0x294] sm:$0xf]
      %v1776 = vld [vmem:[%s1 + $0x298] sm:$0xf]
      %v1777 = vld [vmem:[%s1 + $0x29c] sm:$0xf]
      %v1778 = vld [vmem:[%s1 + $0x2a0] sm:$0xf]
      %v1779 = vld [vmem:[%s1 + $0x2a4] sm:$0xf]
      %v1780 = vld [vmem:[%s1 + $0x2a8] sm:$0xf]
      %v1781 = vld [vmem:[%s1 + $0x2ac] sm:$0xf]
      %v1782 = vld [vmem:[%s1 + $0x2b0] sm:$0xf]
      %v1783 = vld [vmem:[%s1 + $0x2b4] sm:$0xf]
      %v1784 = vld [vmem:[%s1 + $0x2b8] sm:$0xf]
      %v1785 = vld [vmem:[%s1 + $0x2bc] sm:$0xf]
      %v1786 = vpack.c.bf16 %v1769, %v1768
      %v1803 = vunpack.c.l.b16 %v1770
      %v1804 = vunpack.c.l.b16 %v1771
      %v1805 = vunpack.c.l.b16 %v1772
      %v1806 = vunpack.c.l.b16 %v1773
      %v1807 = vunpack.c.l.b16 %v1774
      %v1808 = vunpack.c.l.b16 %v1775
      %v1809 = vunpack.c.l.b16 %v1776
      %v1810 = vunpack.c.l.b16 %v1777
      %v1811 = vunpack.c.l.b16 %v1778
      %v1812 = vunpack.c.l.b16 %v1779
      %v1813 = vunpack.c.l.b16 %v1780
      %v1814 = vunpack.c.l.b16 %v1781
      %v1815 = vunpack.c.l.b16 %v1782
      %v1816 = vunpack.c.l.b16 %v1783
      %v1817 = vunpack.c.l.b16 %v1784
      %v1818 = vunpack.c.l.b16 %v1785
      %v1819 = vpack.c.b16 %v1804, %v1803
      %v1820 = vpack.c.b16 %v1806, %v1805
      %v1821 = vpack.c.b16 %v1808, %v1807
      %v1822 = vpack.c.b16 %v1810, %v1809
      %v1823 = vpack.c.b16 %v1812, %v1811
      %v1824 = vpack.c.b16 %v1814, %v1813
      %v1825 = vpack.c.b16 %v1816, %v1815
      %v1826 = vpack.c.b16 %v1818, %v1817
      %1835 = vmatprep.subr.bf16.mxu0 0
      %1836 = vmatpush1.bf16.msra.mxu0 %v1819
      %1837 = vmatprep.subr.bf16.mxu0 0
      %1838 = vmatpush1.bf16.msra.mxu0 %v1820
      %1839 = vmatprep.subr.bf16.mxu0 0
      %1840 = vmatpush1.bf16.msra.mxu0 %v1821
      %1841 = vmatprep.subr.bf16.mxu0 0
      %1842 = vmatpush1.bf16.msra.mxu0 %v1822
      %1843 = vmatprep.subr.bf16.mxu0 0
      %1844 = vmatpush1.bf16.msra.mxu0 %v1823
      %1845 = vmatprep.subr.bf16.mxu0 0
      %1846 = vmatpush1.bf16.msra.mxu0 %v1824
      %1847 = vmatprep.subr.bf16.mxu0 0
      %1848 = vmatpush1.bf16.msra.mxu0 %v1825
      %1849 = vmatprep.subr.bf16.mxu0 0
      %1850 = vmatpush1.bf16.msra.mxu0 %v1826
      %1851 = vmatprep.subr.bf16.mxu0 0
      %1852 = vmatpush1.bf16.msra.mxu0 0
      %1853 = vmatprep.subr.bf16.mxu0 0
      %1854 = vmatpush1.bf16.msra.mxu0 0
      %1855 = vmatprep.subr.bf16.mxu0 0
      %1856 = vmatpush1.bf16.msra.mxu0 0
      %1857 = vmatprep.subr.bf16.mxu0 0
      %1858 = vmatpush1.bf16.msra.mxu0 0
      %1859 = vmatprep.subr.bf16.mxu0 0
      %1860 = vmatpush1.bf16.msra.mxu0 0
      %1861 = vmatprep.subr.bf16.mxu0 0
      %1862 = vmatpush1.bf16.msra.mxu0 0
      %1863 = vmatprep.subr.bf16.mxu0 0
      %1864 = vmatpush1.bf16.msra.mxu0 0
      %1865 = vmatprep.subr.bf16.mxu0 0
      %1866 = vmatpush1.bf16.msra.mxu0 0
      %1867 = vmatprep.mubr.bf16.mxu0 0
      %1868 = vmatmul.mubr.bf16.gmra.mrb[0].mxu0 %v1010
      %v1869 = vpop.f32.mrb[0].mxu0
      %v1870 = vadd.f32 0.0, %v1869
      %v1871 = vpop.f32.mrb[0].mxu0
      %v1872 = vpop.f32.mrb[0].mxu0
      %v1873 = vadd.f32 0.0, %v1872
      %v1874 = vpop.f32.mrb[0].mxu0
      %1875 = vdwg.mxu0
      %v1876 = vadd.f32 %v1715, %v1870
      %v1877 = vadd.f32 %v1716, %v1873
      %1878 = vmatprep.subr.bf16.mxu0 0
      %1879 = vmatpush1.bf16.msra.mxu0 %v1819
      %1880 = vmatprep.subr.bf16.mxu0 0
      %1881 = vmatpush1.bf16.msra.mxu0 %v1820
      %1882 = vmatprep.subr.bf16.mxu0 0
      %1883 = vmatpush1.bf16.msra.mxu0 %v1821
      %1884 = vmatprep.subr.bf16.mxu0 0
      %1885 = vmatpush1.bf16.msra.mxu0 %v1822
      %1886 = vmatprep.subr.bf16.mxu0 0
      %1887 = vmatpush1.bf16.msra.mxu0 %v1823
      %1888 = vmatprep.subr.bf16.mxu0 0
      %1889 = vmatpush1.bf16.msra.mxu0 %v1824
      %1890 = vmatprep.subr.bf16.mxu0 0
      %1891 = vmatpush1.bf16.msra.mxu0 %v1825
      %1892 = vmatprep.subr.bf16.mxu0 0
      %1893 = vmatpush1.bf16.msra.mxu0 %v1826
      %1894 = vmatprep.subr.bf16.mxu0 0
      %1895 = vmatpush1.bf16.msra.mxu0 0
      %1896 = vmatprep.subr.bf16.mxu0 0
      %1897 = vmatpush1.bf16.msra.mxu0 0
      %1898 = vmatprep.subr.bf16.mxu0 0
      %1899 = vmatpush1.bf16.msra.mxu0 0
      %1900 = vmatprep.subr.bf16.mxu0 0
      %1901 = vmatpush1.bf16.msra.mxu0 0
      %1902 = vmatprep.subr.bf16.mxu0 0
      %1903 = vmatpush1.bf16.msra.mxu0 0
      %1904 = vmatprep.subr.bf16.mxu0 0
      %1905 = vmatpush1.bf16.msra.mxu0 0
      %1906 = vmatprep.subr.bf16.mxu0 0
      %1907 = vmatpush1.bf16.msra.mxu0 0
      %1908 = vmatprep.subr.bf16.mxu0 0
      %1909 = vmatpush1.bf16.msra.mxu0 0
      %1910 = vmatprep.mubr.bf16.mxu0 0
      %1911 = vmatmul.mubr.bf16.gmra.mrb[0].mxu0 %v1786
      %v1912 = vpop.f32.mrb[0].mxu0
      %v1913 = vadd.f32 0.0, %v1912
      %v1914 = vpop.f32.mrb[0].mxu0
      %v1915 = vpop.f32.mrb[0].mxu0
      %v1916 = vadd.f32 0.0, %v1915
      %v1917 = vpop.f32.mrb[0].mxu0
      %1918 = vdwg.mxu0
      %v1919 = vadd.f32 %v1760, %v1913
      %v1920 = vadd.f32 %v1761, %v1916
      %v1921 = vld [vmem:[%s1 + $0x2c0] sm:$0xf]
      %v1922 = vld [vmem:[%s1 + $0x2c4] sm:$0xf]
      %v1923 = vld [vmem:[%s1 + $0x2c8] sm:$0xf]
      %v1924 = vld [vmem:[%s1 + $0x2cc] sm:$0xf]
      %v1925 = vld [vmem:[%s1 + $0x2d0] sm:$0xf]
      %v1926 = vld [vmem:[%s1 + $0x2d4] sm:$0xf]
      %v1927 = vld [vmem:[%s1 + $0x2d8] sm:$0xf]
      %v1928 = vld [vmem:[%s1 + $0x2dc] sm:$0xf]
      %v1929 = vld [vmem:[%s1 + $0x2e0] sm:$0xf]
      %v1930 = vld [vmem:[%s1 + $0x2e4] sm:$0xf]
      %v1931 = vld [vmem:[%s1 + $0x2e8] sm:$0xf]
      %v1932 = vld [vmem:[%s1 + $0x2ec] sm:$0xf]
      %v1933 = vld [vmem:[%s1 + $0x2f0] sm:$0xf]
      %v1934 = vld [vmem:[%s1 + $0x2f4] sm:$0xf]
      %v1935 = vld [vmem:[%s1 + $0x2f8] sm:$0xf]
      %v1936 = vld [vmem:[%s1 + $0x2fc] sm:$0xf]
      %v1953 = vunpack.c.l.b16 %v1921
      %v1954 = vunpack.c.l.b16 %v1922
      %v1955 = vunpack.c.l.b16 %v1923
      %v1956 = vunpack.c.l.b16 %v1924
      %v1957 = vunpack.c.l.b16 %v1925
      %v1958 = vunpack.c.l.b16 %v1926
      %v1959 = vunpack.c.l.b16 %v1927
      %v1960 = vunpack.c.l.b16 %v1928
      %v1961 = vunpack.c.l.b16 %v1929
      %v1962 = vunpack.c.l.b16 %v1930
      %v1963 = vunpack.c.l.b16 %v1931
      %v1964 = vunpack.c.l.b16 %v1932
      %v1965 = vunpack.c.l.b16 %v1933
      %v1966 = vunpack.c.l.b16 %v1934
      %v1967 = vunpack.c.l.b16 %v1935
      %v1968 = vunpack.c.l.b16 %v1936
      %v1969 = vpack.c.b16 %v1954, %v1953
      %v1970 = vpack.c.b16 %v1956, %v1955
      %v1971 = vpack.c.b16 %v1958, %v1957
      %v1972 = vpack.c.b16 %v1960, %v1959
      %v1973 = vpack.c.b16 %v1962, %v1961
      %v1974 = vpack.c.b16 %v1964, %v1963
      %v1975 = vpack.c.b16 %v1966, %v1965
      %v1976 = vpack.c.b16 %v1968, %v1967
      %1985 = vmatprep.subr.bf16.mxu0 0
      %1986 = vmatpush1.bf16.msra.mxu0 %v1969
      %1987 = vmatprep.subr.bf16.mxu0 0
      %1988 = vmatpush1.bf16.msra.mxu0 %v1970
      %1989 = vmatprep.subr.bf16.mxu0 0
      %1990 = vmatpush1.bf16.msra.mxu0 %v1971
      %1991 = vmatprep.subr.bf16.mxu0 0
      %1992 = vmatpush1.bf16.msra.mxu0 %v1972
      %1993 = vmatprep.subr.bf16.mxu0 0
      %1994 = vmatpush1.bf16.msra.mxu0 %v1973
      %1995 = vmatprep.subr.bf16.mxu0 0
      %1996 = vmatpush1.bf16.msra.mxu0 %v1974
      %1997 = vmatprep.subr.bf16.mxu0 0
      %1998 = vmatpush1.bf16.msra.mxu0 %v1975
      %1999 = vmatprep.subr.bf16.mxu0 0
      %2000 = vmatpush1.bf16.msra.mxu0 %v1976
      %2001 = vmatprep.subr.bf16.mxu0 0
      %2002 = vmatpush1.bf16.msra.mxu0 0
      %2003 = vmatprep.subr.bf16.mxu0 0
      %2004 = vmatpush1.bf16.msra.mxu0 0
      %2005 = vmatprep.subr.bf16.mxu0 0
      %2006 = vmatpush1.bf16.msra.mxu0 0
      %2007 = vmatprep.subr.bf16.mxu0 0
      %2008 = vmatpush1.bf16.msra.mxu0 0
      %2009 = vmatprep.subr.bf16.mxu0 0
      %2010 = vmatpush1.bf16.msra.mxu0 0
      %2011 = vmatprep.subr.bf16.mxu0 0
      %2012 = vmatpush1.bf16.msra.mxu0 0
      %2013 = vmatprep.subr.bf16.mxu0 0
      %2014 = vmatpush1.bf16.msra.mxu0 0
      %2015 = vmatprep.subr.bf16.mxu0 0
      %2016 = vmatpush1.bf16.msra.mxu0 0
      %2017 = vmatprep.mubr.bf16.mxu0 0
      %2018 = vmatmul.mubr.bf16.gmra.mrb[0].mxu0 %v1258
      %v2019 = vpop.f32.mrb[0].mxu0
      %v2020 = vadd.f32 0.0, %v2019
      %v2021 = vpop.f32.mrb[0].mxu0
      %v2022 = vpop.f32.mrb[0].mxu0
      %v2023 = vadd.f32 0.0, %v2022
      %v2024 = vpop.f32.mrb[0].mxu0
      %2025 = vdwg.mxu0
      %v2026 = vadd.f32 %v1876, %v2020
      %v2027 = vadd.f32 %v1877, %v2023
      %v2029 = vshrl.u32 %v1786, 16
      %v2031 = vshll.u32 %v1786, 16
      %v2033 = vrot.slane %v2031, 1
      %v2034 = vor.u32 %v2029, %v2033
      %2036 = vmatprep.subr.bf16.mxu0 0
      %2037 = vmatpush1.bf16.msra.mxu0 %v1969
      %2038 = vmatprep.subr.bf16.mxu0 0
      %2039 = vmatpush1.bf16.msra.mxu0 %v1970
      %2040 = vmatprep.subr.bf16.mxu0 0
      %2041 = vmatpush1.bf16.msra.mxu0 %v1971
      %2042 = vmatprep.subr.bf16.mxu0 0
      %2043 = vmatpush1.bf16.msra.mxu0 %v1972
      %2044 = vmatprep.subr.bf16.mxu0 0
      %2045 = vmatpush1.bf16.msra.mxu0 %v1973
      %2046 = vmatprep.subr.bf16.mxu0 0
      %2047 = vmatpush1.bf16.msra.mxu0 %v1974
      %2048 = vmatprep.subr.bf16.mxu0 0
      %2049 = vmatpush1.bf16.msra.mxu0 %v1975
      %2050 = vmatprep.subr.bf16.mxu0 0
      %2051 = vmatpush1.bf16.msra.mxu0 %v1976
      %2052 = vmatprep.subr.bf16.mxu0 0
      %2053 = vmatpush1.bf16.msra.mxu0 0
      %2054 = vmatprep.subr.bf16.mxu0 0
      %2055 = vmatpush1.bf16.msra.mxu0 0
      %2056 = vmatprep.subr.bf16.mxu0 0
      %2057 = vmatpush1.bf16.msra.mxu0 0
      %2058 = vmatprep.subr.bf16.mxu0 0
      %2059 = vmatpush1.bf16.msra.mxu0 0
      %2060 = vmatprep.subr.bf16.mxu0 0
      %2061 = vmatpush1.bf16.msra.mxu0 0
      %2062 = vmatprep.subr.bf16.mxu0 0
      %2063 = vmatpush1.bf16.msra.mxu0 0
      %2064 = vmatprep.subr.bf16.mxu0 0
      %2065 = vmatpush1.bf16.msra.mxu0 0
      %2066 = vmatprep.subr.bf16.mxu0 0
      %2067 = vmatpush1.bf16.msra.mxu0 0
      %2068 = vmatprep.mubr.bf16.mxu0 0
      %2069 = vmatmul.mubr.bf16.gmra.mrb[0].mxu0 %v2034
      %v2070 = vpop.f32.mrb[0].mxu0
      %v2071 = vadd.f32 0.0, %v2070
      %v2072 = vpop.f32.mrb[0].mxu0
      %v2073 = vpop.f32.mrb[0].mxu0
      %v2074 = vadd.f32 0.0, %v2073
      %v2075 = vpop.f32.mrb[0].mxu0
      %2076 = vdwg.mxu0
      %v2077 = vadd.f32 %v1919, %v2071
      %v2078 = vadd.f32 %v1920, %v2074
      %v2079 = vld [vmem:[%s1 + $0x300] sm:$0xf]
      %v2080 = vld [vmem:[%s1 + $0x304] sm:$0xf]
      %v2081 = vld [vmem:[%s1 + $0x308] sm:$0xf]
      %v2082 = vld [vmem:[%s1 + $0x30c] sm:$0xf]
      %v2083 = vld [vmem:[%s1 + $0x310] sm:$0xf]
      %v2084 = vld [vmem:[%s1 + $0x314] sm:$0xf]
      %v2085 = vld [vmem:[%s1 + $0x318] sm:$0xf]
      %v2086 = vld [vmem:[%s1 + $0x31c] sm:$0xf]
      %v2087 = vld [vmem:[%s1 + $0x320] sm:$0xf]
      %v2088 = vld [vmem:[%s1 + $0x324] sm:$0xf]
      %v2089 = vld [vmem:[%s1 + $0x328] sm:$0xf]
      %v2090 = vld [vmem:[%s1 + $0x32c] sm:$0xf]
      %v2091 = vld [vmem:[%s1 + $0x330] sm:$0xf]
      %v2092 = vld [vmem:[%s1 + $0x334] sm:$0xf]
      %v2093 = vld [vmem:[%s1 + $0x338] sm:$0xf]
      %v2094 = vld [vmem:[%s1 + $0x33c] sm:$0xf]
      %v2111 = vunpack.c.l.b16 %v2079
      %v2112 = vunpack.c.l.b16 %v2080
      %v2113 = vunpack.c.l.b16 %v2081
      %v2114 = vunpack.c.l.b16 %v2082
      %v2115 = vunpack.c.l.b16 %v2083
      %v2116 = vunpack.c.l.b16 %v2084
      %v2117 = vunpack.c.l.b16 %v2085
      %v2118 = vunpack.c.l.b16 %v2086
      %v2119 = vunpack.c.l.b16 %v2087
      %v2120 = vunpack.c.l.b16 %v2088
      %v2121 = vunpack.c.l.b16 %v2089
      %v2122 = vunpack.c.l.b16 %v2090
      %v2123 = vunpack.c.l.b16 %v2091
      %v2124 = vunpack.c.l.b16 %v2092
      %v2125 = vunpack.c.l.b16 %v2093
      %v2126 = vunpack.c.l.b16 %v2094
      %v2127 = vpack.c.b16 %v2112, %v2111
      %v2128 = vpack.c.b16 %v2114, %v2113
      %v2129 = vpack.c.b16 %v2116, %v2115
      %v2130 = vpack.c.b16 %v2118, %v2117
      %v2131 = vpack.c.b16 %v2120, %v2119
      %v2132 = vpack.c.b16 %v2122, %v2121
      %v2133 = vpack.c.b16 %v2124, %v2123
      %v2134 = vpack.c.b16 %v2126, %v2125
      %2143 = vmatprep.subr.bf16.mxu0 0
      %2144 = vmatpush1.bf16.msra.mxu0 %v2127
      %2145 = vmatprep.subr.bf16.mxu0 0
      %2146 = vmatpush1.bf16.msra.mxu0 %v2128
      %2147 = vmatprep.subr.bf16.mxu0 0
      %2148 = vmatpush1.bf16.msra.mxu0 %v2129
      %2149 = vmatprep.subr.bf16.mxu0 0
      %2150 = vmatpush1.bf16.msra.mxu0 %v2130
      %2151 = vmatprep.subr.bf16.mxu0 0
      %2152 = vmatpush1.bf16.msra.mxu0 %v2131
      %2153 = vmatprep.subr.bf16.mxu0 0
      %2154 = vmatpush1.bf16.msra.mxu0 %v2132
      %2155 = vmatprep.subr.bf16.mxu0 0
      %2156 = vmatpush1.bf16.msra.mxu0 %v2133
      %2157 = vmatprep.subr.bf16.mxu0 0
      %2158 = vmatpush1.bf16.msra.mxu0 %v2134
      %2159 = vmatprep.subr.bf16.mxu0 0
      %2160 = vmatpush1.bf16.msra.mxu0 0
      %2161 = vmatprep.subr.bf16.mxu0 0
      %2162 = vmatpush1.bf16.msra.mxu0 0
      %2163 = vmatprep.subr.bf16.mxu0 0
      %2164 = vmatpush1.bf16.msra.mxu0 0
      %2165 = vmatprep.subr.bf16.mxu0 0
      %2166 = vmatpush1.bf16.msra.mxu0 0
      %2167 = vmatprep.subr.bf16.mxu0 0
      %2168 = vmatpush1.bf16.msra.mxu0 0
      %2169 = vmatprep.subr.bf16.mxu0 0
      %2170 = vmatpush1.bf16.msra.mxu0 0
      %2171 = vmatprep.subr.bf16.mxu0 0
      %2172 = vmatpush1.bf16.msra.mxu0 0
      %2173 = vmatprep.subr.bf16.mxu0 0
      %2174 = vmatpush1.bf16.msra.mxu0 0
      %2175 = vmatprep.mubr.bf16.mxu0 0
      %2176 = vmatmul.mubr.bf16.gmra.mrb[0].mxu0 %v1411
      %v2177 = vpop.f32.mrb[0].mxu0
      %v2178 = vadd.f32 0.0, %v2177
      %v2179 = vpop.f32.mrb[0].mxu0
      %v2180 = vpop.f32.mrb[0].mxu0
      %v2181 = vadd.f32 0.0, %v2180
      %v2182 = vpop.f32.mrb[0].mxu0
      %2183 = vdwg.mxu0
      %v2184 = vadd.f32 %v2026, %v2178
      %v2185 = vadd.f32 %v2027, %v2181
      %v2187 = vrot.slane %v1786, 1
      %2189 = vmatprep.subr.bf16.mxu0 0
      %2190 = vmatpush1.bf16.msra.mxu0 %v2127
      %2191 = vmatprep.subr.bf16.mxu0 0
      %2192 = vmatpush1.bf16.msra.mxu0 %v2128
      %2193 = vmatprep.subr.bf16.mxu0 0
      %2194 = vmatpush1.bf16.msra.mxu0 %v2129
      %2195 = vmatprep.subr.bf16.mxu0 0
      %2196 = vmatpush1.bf16.msra.mxu0 %v2130
      %2197 = vmatprep.subr.bf16.mxu0 0
      %2198 = vmatpush1.bf16.msra.mxu0 %v2131
      %2199 = vmatprep.subr.bf16.mxu0 0
      %2200 = vmatpush1.bf16.msra.mxu0 %v2132
      %2201 = vmatprep.subr.bf16.mxu0 0
      %2202 = vmatpush1.bf16.msra.mxu0 %v2133
      %2203 = vmatprep.subr.bf16.mxu0 0
      %2204 = vmatpush1.bf16.msra.mxu0 %v2134
      %2205 = vmatprep.subr.bf16.mxu0 0
      %2206 = vmatpush1.bf16.msra.mxu0 0
      %2207 = vmatprep.subr.bf16.mxu0 0
      %2208 = vmatpush1.bf16.msra.mxu0 0
      %2209 = vmatprep.subr.bf16.mxu0 0
      %2210 = vmatpush1.bf16.msra.mxu0 0
      %2211 = vmatprep.subr.bf16.mxu0 0
      %2212 = vmatpush1.bf16.msra.mxu0 0
      %2213 = vmatprep.subr.bf16.mxu0 0
      %2214 = vmatpush1.bf16.msra.mxu0 0
      %2215 = vmatprep.subr.bf16.mxu0 0
      %2216 = vmatpush1.bf16.msra.mxu0 0
      %2217 = vmatprep.subr.bf16.mxu0 0
      %2218 = vmatpush1.bf16.msra.mxu0 0
      %2219 = vmatprep.subr.bf16.mxu0 0
      %2220 = vmatpush1.bf16.msra.mxu0 0
      %2221 = vmatprep.mubr.bf16.mxu0 0
      %2222 = vmatmul.mubr.bf16.gmra.mrb[0].mxu0 %v2187
      %v2223 = vpop.f32.mrb[0].mxu0
      %v2224 = vadd.f32 0.0, %v2223
      %v2225 = vpop.f32.mrb[0].mxu0
      %v2226 = vpop.f32.mrb[0].mxu0
      %v2227 = vadd.f32 0.0, %v2226
      %v2228 = vpop.f32.mrb[0].mxu0
      %2229 = vdwg.mxu0
      %v2230 = vadd.f32 %v2077, %v2224
      %v2231 = vadd.f32 %v2078, %v2227
      %v2232 = vld [vmem:[%s1 + $0x340] sm:$0xf]
      %v2233 = vld [vmem:[%s1 + $0x344] sm:$0xf]
      %v2234 = vld [vmem:[%s1 + $0x348] sm:$0xf]
      %v2235 = vld [vmem:[%s1 + $0x34c] sm:$0xf]
      %v2236 = vld [vmem:[%s1 + $0x350] sm:$0xf]
      %v2237 = vld [vmem:[%s1 + $0x354] sm:$0xf]
      %v2238 = vld [vmem:[%s1 + $0x358] sm:$0xf]
      %v2239 = vld [vmem:[%s1 + $0x35c] sm:$0xf]
      %v2240 = vld [vmem:[%s1 + $0x360] sm:$0xf]
      %v2241 = vld [vmem:[%s1 + $0x364] sm:$0xf]
      %v2242 = vld [vmem:[%s1 + $0x368] sm:$0xf]
      %v2243 = vld [vmem:[%s1 + $0x36c] sm:$0xf]
      %v2244 = vld [vmem:[%s1 + $0x370] sm:$0xf]
      %v2245 = vld [vmem:[%s1 + $0x374] sm:$0xf]
      %v2246 = vld [vmem:[%s1 + $0x378] sm:$0xf]
      %v2247 = vld [vmem:[%s1 + $0x37c] sm:$0xf]
      %v2264 = vunpack.c.l.b16 %v2232
      %v2265 = vunpack.c.l.b16 %v2233
      %v2266 = vunpack.c.l.b16 %v2234
      %v2267 = vunpack.c.l.b16 %v2235
      %v2268 = vunpack.c.l.b16 %v2236
      %v2269 = vunpack.c.l.b16 %v2237
      %v2270 = vunpack.c.l.b16 %v2238
      %v2271 = vunpack.c.l.b16 %v2239
      %v2272 = vunpack.c.l.b16 %v2240
      %v2273 = vunpack.c.l.b16 %v2241
      %v2274 = vunpack.c.l.b16 %v2242
      %v2275 = vunpack.c.l.b16 %v2243
      %v2276 = vunpack.c.l.b16 %v2244
      %v2277 = vunpack.c.l.b16 %v2245
      %v2278 = vunpack.c.l.b16 %v2246
      %v2279 = vunpack.c.l.b16 %v2247
      %v2280 = vpack.c.b16 %v2265, %v2264
      %v2281 = vpack.c.b16 %v2267, %v2266
      %v2282 = vpack.c.b16 %v2269, %v2268
      %v2283 = vpack.c.b16 %v2271, %v2270
      %v2284 = vpack.c.b16 %v2273, %v2272
      %v2285 = vpack.c.b16 %v2275, %v2274
      %v2286 = vpack.c.b16 %v2277, %v2276
      %v2287 = vpack.c.b16 %v2279, %v2278
      %2296 = vmatprep.subr.bf16.mxu0 0
      %2297 = vmatpush1.bf16.msra.mxu0 %v2280
      %2298 = vmatprep.subr.bf16.mxu0 0
      %2299 = vmatpush1.bf16.msra.mxu0 %v2281
      %2300 = vmatprep.subr.bf16.mxu0 0
      %2301 = vmatpush1.bf16.msra.mxu0 %v2282
      %2302 = vmatprep.subr.bf16.mxu0 0
      %2303 = vmatpush1.bf16.msra.mxu0 %v2283
      %2304 = vmatprep.subr.bf16.mxu0 0
      %2305 = vmatpush1.bf16.msra.mxu0 %v2284
      %2306 = vmatprep.subr.bf16.mxu0 0
      %2307 = vmatpush1.bf16.msra.mxu0 %v2285
      %2308 = vmatprep.subr.bf16.mxu0 0
      %2309 = vmatpush1.bf16.msra.mxu0 %v2286
      %2310 = vmatprep.subr.bf16.mxu0 0
      %2311 = vmatpush1.bf16.msra.mxu0 %v2287
      %2312 = vmatprep.subr.bf16.mxu0 0
      %2313 = vmatpush1.bf16.msra.mxu0 0
      %2314 = vmatprep.subr.bf16.mxu0 0
      %2315 = vmatpush1.bf16.msra.mxu0 0
      %2316 = vmatprep.subr.bf16.mxu0 0
      %2317 = vmatpush1.bf16.msra.mxu0 0
      %2318 = vmatprep.subr.bf16.mxu0 0
      %2319 = vmatpush1.bf16.msra.mxu0 0
      %2320 = vmatprep.subr.bf16.mxu0 0
      %2321 = vmatpush1.bf16.msra.mxu0 0
      %2322 = vmatprep.subr.bf16.mxu0 0
      %2323 = vmatpush1.bf16.msra.mxu0 0
      %2324 = vmatprep.subr.bf16.mxu0 0
      %2325 = vmatpush1.bf16.msra.mxu0 0
      %2326 = vmatprep.subr.bf16.mxu0 0
      %2327 = vmatpush1.bf16.msra.mxu0 0
      %2328 = vmatprep.mubr.bf16.mxu0 0
      %2329 = vmatmul.mubr.bf16.gmra.mrb[0].mxu0 %v1565
      %v2330 = vpop.f32.mrb[0].mxu0
      %v2331 = vadd.f32 0.0, %v2330
      %v2332 = vpop.f32.mrb[0].mxu0
      %v2333 = vpop.f32.mrb[0].mxu0
      %v2334 = vadd.f32 0.0, %v2333
      %v2335 = vpop.f32.mrb[0].mxu0
      %2336 = vdwg.mxu0
      %v2337 = vadd.f32 %v2184, %v2331
      %v2338 = vadd.f32 %v2185, %v2334
      %v2339 = vrot.slane %v2029, 1
      %v2340 = vrot.slane %v2031, 2
      %v2341 = vor.u32 %v2339, %v2340
      %2343 = vmatprep.subr.bf16.mxu0 0
      %2344 = vmatpush1.bf16.msra.mxu0 %v2280
      %2345 = vmatprep.subr.bf16.mxu0 0
      %2346 = vmatpush1.bf16.msra.mxu0 %v2281
      %2347 = vmatprep.subr.bf16.mxu0 0
      %2348 = vmatpush1.bf16.msra.mxu0 %v2282
      %2349 = vmatprep.subr.bf16.mxu0 0
      %2350 = vmatpush1.bf16.msra.mxu0 %v2283
      %2351 = vmatprep.subr.bf16.mxu0 0
      %2352 = vmatpush1.bf16.msra.mxu0 %v2284
      %2353 = vmatprep.subr.bf16.mxu0 0
      %2354 = vmatpush1.bf16.msra.mxu0 %v2285
      %2355 = vmatprep.subr.bf16.mxu0 0
      %2356 = vmatpush1.bf16.msra.mxu0 %v2286
      %2357 = vmatprep.subr.bf16.mxu0 0
      %2358 = vmatpush1.bf16.msra.mxu0 %v2287
      %2359 = vmatprep.subr.bf16.mxu0 0
      %2360 = vmatpush1.bf16.msra.mxu0 0
      %2361 = vmatprep.subr.bf16.mxu0 0
      %2362 = vmatpush1.bf16.msra.mxu0 0
      %2363 = vmatprep.subr.bf16.mxu0 0
      %2364 = vmatpush1.bf16.msra.mxu0 0
      %2365 = vmatprep.subr.bf16.mxu0 0
      %2366 = vmatpush1.bf16.msra.mxu0 0
      %2367 = vmatprep.subr.bf16.mxu0 0
      %2368 = vmatpush1.bf16.msra.mxu0 0
      %2369 = vmatprep.subr.bf16.mxu0 0
      %2370 = vmatpush1.bf16.msra.mxu0 0
      %2371 = vmatprep.subr.bf16.mxu0 0
      %2372 = vmatpush1.bf16.msra.mxu0 0
      %2373 = vmatprep.subr.bf16.mxu0 0
      %2374 = vmatpush1.bf16.msra.mxu0 0
      %2375 = vmatprep.mubr.bf16.mxu0 0
      %2376 = vmatmul.mubr.bf16.gmra.mrb[0].mxu0 %v2341
      %v2377 = vpop.f32.mrb[0].mxu0
      %v2378 = vadd.f32 0.0, %v2377
      %v2379 = vpop.f32.mrb[0].mxu0
      %v2380 = vpop.f32.mrb[0].mxu0
      %v2381 = vadd.f32 0.0, %v2380
      %v2382 = vpop.f32.mrb[0].mxu0
      %2383 = vdwg.mxu0
      %v2384 = vadd.f32 %v2230, %v2378
      %v2385 = vadd.f32 %v2231, %v2381
      %v2386 = vld [vmem:[%s1 + $0x380] sm:$0xf]
      %v2387 = vld [vmem:[%s1 + $0x384] sm:$0xf]
      %v2388 = vld [vmem:[%s1 + $0x388] sm:$0xf]
      %v2389 = vld [vmem:[%s1 + $0x38c] sm:$0xf]
      %v2390 = vld [vmem:[%s1 + $0x390] sm:$0xf]
      %v2391 = vld [vmem:[%s1 + $0x394] sm:$0xf]
      %v2392 = vld [vmem:[%s1 + $0x398] sm:$0xf]
      %v2393 = vld [vmem:[%s1 + $0x39c] sm:$0xf]
      %v2394 = vld [vmem:[%s1 + $0x3a0] sm:$0xf]
      %v2395 = vld [vmem:[%s1 + $0x3a4] sm:$0xf]
      %v2396 = vld [vmem:[%s1 + $0x3a8] sm:$0xf]
      %v2397 = vld [vmem:[%s1 + $0x3ac] sm:$0xf]
      %v2398 = vld [vmem:[%s1 + $0x3b0] sm:$0xf]
      %v2399 = vld [vmem:[%s1 + $0x3b4] sm:$0xf]
      %v2400 = vld [vmem:[%s1 + $0x3b8] sm:$0xf]
      %v2401 = vld [vmem:[%s1 + $0x3bc] sm:$0xf]
      %v2418 = vunpack.c.l.b16 %v2386
      %v2419 = vunpack.c.l.b16 %v2387
      %v2420 = vunpack.c.l.b16 %v2388
      %v2421 = vunpack.c.l.b16 %v2389
      %v2422 = vunpack.c.l.b16 %v2390
      %v2423 = vunpack.c.l.b16 %v2391
      %v2424 = vunpack.c.l.b16 %v2392
      %v2425 = vunpack.c.l.b16 %v2393
      %v2426 = vunpack.c.l.b16 %v2394
      %v2427 = vunpack.c.l.b16 %v2395
      %v2428 = vunpack.c.l.b16 %v2396
      %v2429 = vunpack.c.l.b16 %v2397
      %v2430 = vunpack.c.l.b16 %v2398
      %v2431 = vunpack.c.l.b16 %v2399
      %v2432 = vunpack.c.l.b16 %v2400
      %v2433 = vunpack.c.l.b16 %v2401
      %v2434 = vpack.c.b16 %v2419, %v2418
      %v2435 = vpack.c.b16 %v2421, %v2420
      %v2436 = vpack.c.b16 %v2423, %v2422
      %v2437 = vpack.c.b16 %v2425, %v2424
      %v2438 = vpack.c.b16 %v2427, %v2426
      %v2439 = vpack.c.b16 %v2429, %v2428
      %v2440 = vpack.c.b16 %v2431, %v2430
      %v2441 = vpack.c.b16 %v2433, %v2432
      %2450 = vmatprep.subr.bf16.mxu0 0
      %2451 = vmatpush1.bf16.msra.mxu0 %v2434
      %2452 = vmatprep.subr.bf16.mxu0 0
      %2453 = vmatpush1.bf16.msra.mxu0 %v2435
      %2454 = vmatprep.subr.bf16.mxu0 0
      %2455 = vmatpush1.bf16.msra.mxu0 %v2436
      %2456 = vmatprep.subr.bf16.mxu0 0
      %2457 = vmatpush1.bf16.msra.mxu0 %v2437
      %2458 = vmatprep.subr.bf16.mxu0 0
      %2459 = vmatpush1.bf16.msra.mxu0 %v2438
      %2460 = vmatprep.subr.bf16.mxu0 0
      %2461 = vmatpush1.bf16.msra.mxu0 %v2439
      %2462 = vmatprep.subr.bf16.mxu0 0
      %2463 = vmatpush1.bf16.msra.mxu0 %v2440
      %2464 = vmatprep.subr.bf16.mxu0 0
      %2465 = vmatpush1.bf16.msra.mxu0 %v2441
      %2466 = vmatprep.subr.bf16.mxu0 0
      %2467 = vmatpush1.bf16.msra.mxu0 0
      %2468 = vmatprep.subr.bf16.mxu0 0
      %2469 = vmatpush1.bf16.msra.mxu0 0
      %2470 = vmatprep.subr.bf16.mxu0 0
      %2471 = vmatpush1.bf16.msra.mxu0 0
      %2472 = vmatprep.subr.bf16.mxu0 0
      %2473 = vmatpush1.bf16.msra.mxu0 0
      %2474 = vmatprep.subr.bf16.mxu0 0
      %2475 = vmatpush1.bf16.msra.mxu0 0
      %2476 = vmatprep.subr.bf16.mxu0 0
      %2477 = vmatpush1.bf16.msra.mxu0 0
      %2478 = vmatprep.subr.bf16.mxu0 0
      %2479 = vmatpush1.bf16.msra.mxu0 0
      %2480 = vmatprep.subr.bf16.mxu0 0
      %2481 = vmatpush1.bf16.msra.mxu0 0
      %2482 = vmatprep.mubr.bf16.mxu0 0
      %2483 = vmatmul.mubr.bf16.gmra.mrb[0].mxu0 %v1717
      %v2484 = vpop.f32.mrb[0].mxu0
      %v2485 = vadd.f32 0.0, %v2484
      %v2486 = vpop.f32.mrb[0].mxu0
      %v2487 = vpop.f32.mrb[0].mxu0
      %v2488 = vadd.f32 0.0, %v2487
      %v2489 = vpop.f32.mrb[0].mxu0
      %2490 = vdwg.mxu0
      %v2491 = vadd.f32 %v2337, %v2485
      %v2492 = vadd.f32 %v2338, %v2488
      %v2493 = vrot.slane %v1786, 2
      %2495 = vmatprep.subr.bf16.mxu0 0
      %2496 = vmatpush1.bf16.msra.mxu0 %v2434
      %2497 = vmatprep.subr.bf16.mxu0 0
      %2498 = vmatpush1.bf16.msra.mxu0 %v2435
      %2499 = vmatprep.subr.bf16.mxu0 0
      %2500 = vmatpush1.bf16.msra.mxu0 %v2436
      %2501 = vmatprep.subr.bf16.mxu0 0
      %2502 = vmatpush1.bf16.msra.mxu0 %v2437
      %2503 = vmatprep.subr.bf16.mxu0 0
      %2504 = vmatpush1.bf16.msra.mxu0 %v2438
      %2505 = vmatprep.subr.bf16.mxu0 0
      %2506 = vmatpush1.bf16.msra.mxu0 %v2439
      %2507 = vmatprep.subr.bf16.mxu0 0
      %2508 = vmatpush1.bf16.msra.mxu0 %v2440
      %2509 = vmatprep.subr.bf16.mxu0 0
      %2510 = vmatpush1.bf16.msra.mxu0 %v2441
      %2511 = vmatprep.subr.bf16.mxu0 0
      %2512 = vmatpush1.bf16.msra.mxu0 0
      %2513 = vmatprep.subr.bf16.mxu0 0
      %2514 = vmatpush1.bf16.msra.mxu0 0
      %2515 = vmatprep.subr.bf16.mxu0 0
      %2516 = vmatpush1.bf16.msra.mxu0 0
      %2517 = vmatprep.subr.bf16.mxu0 0
      %2518 = vmatpush1.bf16.msra.mxu0 0
      %2519 = vmatprep.subr.bf16.mxu0 0
      %2520 = vmatpush1.bf16.msra.mxu0 0
      %2521 = vmatprep.subr.bf16.mxu0 0
      %2522 = vmatpush1.bf16.msra.mxu0 0
      %2523 = vmatprep.subr.bf16.mxu0 0
      %2524 = vmatpush1.bf16.msra.mxu0 0
      %2525 = vmatprep.subr.bf16.mxu0 0
      %2526 = vmatpush1.bf16.msra.mxu0 0
      %2527 = vmatprep.mubr.bf16.mxu0 0
      %2528 = vmatmul.mubr.bf16.gmra.mrb[0].mxu0 %v2493
      %v2529 = vpop.f32.mrb[0].mxu0
      %v2530 = vadd.f32 0.0, %v2529
      %v2531 = vpop.f32.mrb[0].mxu0
      %v2532 = vpop.f32.mrb[0].mxu0
      %v2533 = vadd.f32 0.0, %v2532
      %v2534 = vpop.f32.mrb[0].mxu0
      %2535 = vdwg.mxu0
      %v2536 = vadd.f32 %v2384, %v2530
      %v2537 = vadd.f32 %v2385, %v2533
      %s2538 = sadd.s32 %s192, 4
      %s2539 = smul.u32 %s2538, 2
      %s2540 = smul.addr %s2539, 4
      %s2541 = scalar_lea.vmem %s182, %s2540
      %v2542 = vld [vmem:[%s2541] sm:$0xf]
      %v2543 = vld [vmem:[%s2541 + $0x4] sm:$0x7]
      %v2544 = vunpack.c.l.bf16 %v2542
      %v2545 = vunpack.c.l.bf16 %v2543
      %v2546 = vld [vmem:[%s1 + $0x3c0] sm:$0xf]
      %v2547 = vld [vmem:[%s1 + $0x3c4] sm:$0xf]
      %v2548 = vld [vmem:[%s1 + $0x3c8] sm:$0xf]
      %v2549 = vld [vmem:[%s1 + $0x3cc] sm:$0xf]
      %v2550 = vld [vmem:[%s1 + $0x3d0] sm:$0xf]
      %v2551 = vld [vmem:[%s1 + $0x3d4] sm:$0xf]
      %v2552 = vld [vmem:[%s1 + $0x3d8] sm:$0xf]
      %v2553 = vld [vmem:[%s1 + $0x3dc] sm:$0xf]
      %v2554 = vld [vmem:[%s1 + $0x3e0] sm:$0xf]
      %v2555 = vld [vmem:[%s1 + $0x3e4] sm:$0xf]
      %v2556 = vld [vmem:[%s1 + $0x3e8] sm:$0xf]
      %v2557 = vld [vmem:[%s1 + $0x3ec] sm:$0xf]
      %v2558 = vld [vmem:[%s1 + $0x3f0] sm:$0xf]
      %v2559 = vld [vmem:[%s1 + $0x3f4] sm:$0xf]
      %v2560 = vld [vmem:[%s1 + $0x3f8] sm:$0xf]
      %v2561 = vld [vmem:[%s1 + $0x3fc] sm:$0xf]
      %v2562 = vpack.c.bf16 %v2545, %v2544
      %v2579 = vunpack.c.l.b16 %v2546
      %v2580 = vunpack.c.l.b16 %v2547
      %v2581 = vunpack.c.l.b16 %v2548
      %v2582 = vunpack.c.l.b16 %v2549
      %v2583 = vunpack.c.l.b16 %v2550
      %v2584 = vunpack.c.l.b16 %v2551
      %v2585 = vunpack.c.l.b16 %v2552
      %v2586 = vunpack.c.l.b16 %v2553
      %v2587 = vunpack.c.l.b16 %v2554
      %v2588 = vunpack.c.l.b16 %v2555
      %v2589 = vunpack.c.l.b16 %v2556
      %v2590 = vunpack.c.l.b16 %v2557
      %v2591 = vunpack.c.l.b16 %v2558
      %v2592 = vunpack.c.l.b16 %v2559
      %v2593 = vunpack.c.l.b16 %v2560
      %v2594 = vunpack.c.l.b16 %v2561
      %v2595 = vpack.c.b16 %v2580, %v2579
      %v2596 = vpack.c.b16 %v2582, %v2581
      %v2597 = vpack.c.b16 %v2584, %v2583
      %v2598 = vpack.c.b16 %v2586, %v2585
      %v2599 = vpack.c.b16 %v2588, %v2587
      %v2600 = vpack.c.b16 %v2590, %v2589
      %v2601 = vpack.c.b16 %v2592, %v2591
      %v2602 = vpack.c.b16 %v2594, %v2593
      %2611 = vmatprep.subr.bf16.mxu0 0
      %2612 = vmatpush1.bf16.msra.mxu0 %v2595
      %2613 = vmatprep.subr.bf16.mxu0 0
      %2614 = vmatpush1.bf16.msra.mxu0 %v2596
      %2615 = vmatprep.subr.bf16.mxu0 0
      %2616 = vmatpush1.bf16.msra.mxu0 %v2597
      %2617 = vmatprep.subr.bf16.mxu0 0
      %2618 = vmatpush1.bf16.msra.mxu0 %v2598
      %2619 = vmatprep.subr.bf16.mxu0 0
      %2620 = vmatpush1.bf16.msra.mxu0 %v2599
      %2621 = vmatprep.subr.bf16.mxu0 0
      %2622 = vmatpush1.bf16.msra.mxu0 %v2600
      %2623 = vmatprep.subr.bf16.mxu0 0
      %2624 = vmatpush1.bf16.msra.mxu0 %v2601
      %2625 = vmatprep.subr.bf16.mxu0 0
      %2626 = vmatpush1.bf16.msra.mxu0 %v2602
      %2627 = vmatprep.subr.bf16.mxu0 0
      %2628 = vmatpush1.bf16.msra.mxu0 0
      %2629 = vmatprep.subr.bf16.mxu0 0
      %2630 = vmatpush1.bf16.msra.mxu0 0
      %2631 = vmatprep.subr.bf16.mxu0 0
      %2632 = vmatpush1.bf16.msra.mxu0 0
      %2633 = vmatprep.subr.bf16.mxu0 0
      %2634 = vmatpush1.bf16.msra.mxu0 0
      %2635 = vmatprep.subr.bf16.mxu0 0
      %2636 = vmatpush1.bf16.msra.mxu0 0
      %2637 = vmatprep.subr.bf16.mxu0 0
      %2638 = vmatpush1.bf16.msra.mxu0 0
      %2639 = vmatprep.subr.bf16.mxu0 0
      %2640 = vmatpush1.bf16.msra.mxu0 0
      %2641 = vmatprep.subr.bf16.mxu0 0
      %2642 = vmatpush1.bf16.msra.mxu0 0
      %2643 = vmatprep.mubr.bf16.mxu0 0
      %2644 = vmatmul.mubr.bf16.gmra.mrb[0].mxu0 %v1786
      %v2645 = vpop.f32.mrb[0].mxu0
      %v2646 = vadd.f32 0.0, %v2645
      %v2647 = vpop.f32.mrb[0].mxu0
      %v2648 = vpop.f32.mrb[0].mxu0
      %v2649 = vadd.f32 0.0, %v2648
      %v2650 = vpop.f32.mrb[0].mxu0
      %2651 = vdwg.mxu0
      %v2652 = vadd.f32 %v2491, %v2646
      %v2653 = vadd.f32 %v2492, %v2649
      %2654 = vmatprep.subr.bf16.mxu0 0
      %2655 = vmatpush1.bf16.msra.mxu0 %v2595
      %2656 = vmatprep.subr.bf16.mxu0 0
      %2657 = vmatpush1.bf16.msra.mxu0 %v2596
      %2658 = vmatprep.subr.bf16.mxu0 0
      %2659 = vmatpush1.bf16.msra.mxu0 %v2597
      %2660 = vmatprep.subr.bf16.mxu0 0
      %2661 = vmatpush1.bf16.msra.mxu0 %v2598
      %2662 = vmatprep.subr.bf16.mxu0 0
      %2663 = vmatpush1.bf16.msra.mxu0 %v2599
      %2664 = vmatprep.subr.bf16.mxu0 0
      %2665 = vmatpush1.bf16.msra.mxu0 %v2600
      %2666 = vmatprep.subr.bf16.mxu0 0
      %2667 = vmatpush1.bf16.msra.mxu0 %v2601
      %2668 = vmatprep.subr.bf16.mxu0 0
      %2669 = vmatpush1.bf16.msra.mxu0 %v2602
      %2670 = vmatprep.subr.bf16.mxu0 0
      %2671 = vmatpush1.bf16.msra.mxu0 0
      %2672 = vmatprep.subr.bf16.mxu0 0
      %2673 = vmatpush1.bf16.msra.mxu0 0
      %2674 = vmatprep.subr.bf16.mxu0 0
      %2675 = vmatpush1.bf16.msra.mxu0 0
      %2676 = vmatprep.subr.bf16.mxu0 0
      %2677 = vmatpush1.bf16.msra.mxu0 0
      %2678 = vmatprep.subr.bf16.mxu0 0
      %2679 = vmatpush1.bf16.msra.mxu0 0
      %2680 = vmatprep.subr.bf16.mxu0 0
      %2681 = vmatpush1.bf16.msra.mxu0 0
      %2682 = vmatprep.subr.bf16.mxu0 0
      %2683 = vmatpush1.bf16.msra.mxu0 0
      %2684 = vmatprep.subr.bf16.mxu0 0
      %2685 = vmatpush1.bf16.msra.mxu0 0
      %2686 = vmatprep.mubr.bf16.mxu0 0
      %2687 = vmatmul.mubr.bf16.gmra.mrb[0].mxu0 %v2562
      %v2688 = vpop.f32.mrb[0].mxu0
      %v2689 = vadd.f32 0.0, %v2688
      %v2690 = vpop.f32.mrb[0].mxu0
      %v2691 = vpop.f32.mrb[0].mxu0
      %v2692 = vadd.f32 0.0, %v2691
      %v2693 = vpop.f32.mrb[0].mxu0
      %2694 = vdwg.mxu0
      %v2695 = vadd.f32 %v2536, %v2689
      %v2696 = vadd.f32 %v2537, %v2692
      %v2697 = vld [vmem:[%s1 + $0x400] sm:$0xf]
      %v2698 = vld [vmem:[%s1 + $0x404] sm:$0xf]
      %v2699 = vld [vmem:[%s1 + $0x408] sm:$0xf]
      %v2700 = vld [vmem:[%s1 + $0x40c] sm:$0xf]
      %v2701 = vld [vmem:[%s1 + $0x410] sm:$0xf]
      %v2702 = vld [vmem:[%s1 + $0x414] sm:$0xf]
      %v2703 = vld [vmem:[%s1 + $0x418] sm:$0xf]
      %v2704 = vld [vmem:[%s1 + $0x41c] sm:$0xf]
      %v2705 = vld [vmem:[%s1 + $0x420] sm:$0xf]
      %v2706 = vld [vmem:[%s1 + $0x424] sm:$0xf]
      %v2707 = vld [vmem:[%s1 + $0x428] sm:$0xf]
      %v2708 = vld [vmem:[%s1 + $0x42c] sm:$0xf]
      %v2709 = vld [vmem:[%s1 + $0x430] sm:$0xf]
      %v2710 = vld [vmem:[%s1 + $0x434] sm:$0xf]
      %v2711 = vld [vmem:[%s1 + $0x438] sm:$0xf]
      %v2712 = vld [vmem:[%s1 + $0x43c] sm:$0xf]
      %v2729 = vunpack.c.l.b16 %v2697
      %v2730 = vunpack.c.l.b16 %v2698
      %v2731 = vunpack.c.l.b16 %v2699
      %v2732 = vunpack.c.l.b16 %v2700
      %v2733 = vunpack.c.l.b16 %v2701
      %v2734 = vunpack.c.l.b16 %v2702
      %v2735 = vunpack.c.l.b16 %v2703
      %v2736 = vunpack.c.l.b16 %v2704
      %v2737 = vunpack.c.l.b16 %v2705
      %v2738 = vunpack.c.l.b16 %v2706
      %v2739 = vunpack.c.l.b16 %v2707
      %v2740 = vunpack.c.l.b16 %v2708
      %v2741 = vunpack.c.l.b16 %v2709
      %v2742 = vunpack.c.l.b16 %v2710
      %v2743 = vunpack.c.l.b16 %v2711
      %v2744 = vunpack.c.l.b16 %v2712
      %v2745 = vpack.c.b16 %v2730, %v2729
      %v2746 = vpack.c.b16 %v2732, %v2731
      %v2747 = vpack.c.b16 %v2734, %v2733
      %v2748 = vpack.c.b16 %v2736, %v2735
      %v2749 = vpack.c.b16 %v2738, %v2737
      %v2750 = vpack.c.b16 %v2740, %v2739
      %v2751 = vpack.c.b16 %v2742, %v2741
      %v2752 = vpack.c.b16 %v2744, %v2743
      %2761 = vmatprep.subr.bf16.mxu0 0
      %2762 = vmatpush1.bf16.msra.mxu0 %v2745
      %2763 = vmatprep.subr.bf16.mxu0 0
      %2764 = vmatpush1.bf16.msra.mxu0 %v2746
      %2765 = vmatprep.subr.bf16.mxu0 0
      %2766 = vmatpush1.bf16.msra.mxu0 %v2747
      %2767 = vmatprep.subr.bf16.mxu0 0
      %2768 = vmatpush1.bf16.msra.mxu0 %v2748
      %2769 = vmatprep.subr.bf16.mxu0 0
      %2770 = vmatpush1.bf16.msra.mxu0 %v2749
      %2771 = vmatprep.subr.bf16.mxu0 0
      %2772 = vmatpush1.bf16.msra.mxu0 %v2750
      %2773 = vmatprep.subr.bf16.mxu0 0
      %2774 = vmatpush1.bf16.msra.mxu0 %v2751
      %2775 = vmatprep.subr.bf16.mxu0 0
      %2776 = vmatpush1.bf16.msra.mxu0 %v2752
      %2777 = vmatprep.subr.bf16.mxu0 0
      %2778 = vmatpush1.bf16.msra.mxu0 0
      %2779 = vmatprep.subr.bf16.mxu0 0
      %2780 = vmatpush1.bf16.msra.mxu0 0
      %2781 = vmatprep.subr.bf16.mxu0 0
      %2782 = vmatpush1.bf16.msra.mxu0 0
      %2783 = vmatprep.subr.bf16.mxu0 0
      %2784 = vmatpush1.bf16.msra.mxu0 0
      %2785 = vmatprep.subr.bf16.mxu0 0
      %2786 = vmatpush1.bf16.msra.mxu0 0
      %2787 = vmatprep.subr.bf16.mxu0 0
      %2788 = vmatpush1.bf16.msra.mxu0 0
      %2789 = vmatprep.subr.bf16.mxu0 0
      %2790 = vmatpush1.bf16.msra.mxu0 0
      %2791 = vmatprep.subr.bf16.mxu0 0
      %2792 = vmatpush1.bf16.msra.mxu0 0
      %2793 = vmatprep.mubr.bf16.mxu0 0
      %2794 = vmatmul.mubr.bf16.gmra.mrb[0].mxu0 %v2034
      %v2795 = vpop.f32.mrb[0].mxu0
      %v2796 = vadd.f32 0.0, %v2795
      %v2797 = vpop.f32.mrb[0].mxu0
      %v2798 = vpop.f32.mrb[0].mxu0
      %v2799 = vadd.f32 0.0, %v2798
      %v2800 = vpop.f32.mrb[0].mxu0
      %2801 = vdwg.mxu0
      %v2802 = vadd.f32 %v2652, %v2796
      %v2803 = vadd.f32 %v2653, %v2799
      %v2805 = vshrl.u32 %v2562, 16
      %v2807 = vshll.u32 %v2562, 16
      %v2809 = vrot.slane %v2807, 1
      %v2810 = vor.u32 %v2805, %v2809
      %2812 = vmatprep.subr.bf16.mxu0 0
      %2813 = vmatpush1.bf16.msra.mxu0 %v2745
      %2814 = vmatprep.subr.bf16.mxu0 0
      %2815 = vmatpush1.bf16.msra.mxu0 %v2746
      %2816 = vmatprep.subr.bf16.mxu0 0
      %2817 = vmatpush1.bf16.msra.mxu0 %v2747
      %2818 = vmatprep.subr.bf16.mxu0 0
      %2819 = vmatpush1.bf16.msra.mxu0 %v2748
      %2820 = vmatprep.subr.bf16.mxu0 0
      %2821 = vmatpush1.bf16.msra.mxu0 %v2749
      %2822 = vmatprep.subr.bf16.mxu0 0
      %2823 = vmatpush1.bf16.msra.mxu0 %v2750
      %2824 = vmatprep.subr.bf16.mxu0 0
      %2825 = vmatpush1.bf16.msra.mxu0 %v2751
      %2826 = vmatprep.subr.bf16.mxu0 0
      %2827 = vmatpush1.bf16.msra.mxu0 %v2752
      %2828 = vmatprep.subr.bf16.mxu0 0
      %2829 = vmatpush1.bf16.msra.mxu0 0
      %2830 = vmatprep.subr.bf16.mxu0 0
      %2831 = vmatpush1.bf16.msra.mxu0 0
      %2832 = vmatprep.subr.bf16.mxu0 0
      %2833 = vmatpush1.bf16.msra.mxu0 0
      %2834 = vmatprep.subr.bf16.mxu0 0
      %2835 = vmatpush1.bf16.msra.mxu0 0
      %2836 = vmatprep.subr.bf16.mxu0 0
      %2837 = vmatpush1.bf16.msra.mxu0 0
      %2838 = vmatprep.subr.bf16.mxu0 0
      %2839 = vmatpush1.bf16.msra.mxu0 0
      %2840 = vmatprep.subr.bf16.mxu0 0
      %2841 = vmatpush1.bf16.msra.mxu0 0
      %2842 = vmatprep.subr.bf16.mxu0 0
      %2843 = vmatpush1.bf16.msra.mxu0 0
      %2844 = vmatprep.mubr.bf16.mxu0 0
      %2845 = vmatmul.mubr.bf16.gmra.mrb[0].mxu0 %v2810
      %v2846 = vpop.f32.mrb[0].mxu0
      %v2847 = vadd.f32 0.0, %v2846
      %v2848 = vpop.f32.mrb[0].mxu0
      %v2849 = vpop.f32.mrb[0].mxu0
      %v2850 = vadd.f32 0.0, %v2849
      %v2851 = vpop.f32.mrb[0].mxu0
      %2852 = vdwg.mxu0
      %v2853 = vadd.f32 %v2695, %v2847
      %v2854 = vadd.f32 %v2696, %v2850
      %v2855 = vld [vmem:[%s1 + $0x440] sm:$0xf]
      %v2856 = vld [vmem:[%s1 + $0x444] sm:$0xf]
      %v2857 = vld [vmem:[%s1 + $0x448] sm:$0xf]
      %v2858 = vld [vmem:[%s1 + $0x44c] sm:$0xf]
      %v2859 = vld [vmem:[%s1 + $0x450] sm:$0xf]
      %v2860 = vld [vmem:[%s1 + $0x454] sm:$0xf]
      %v2861 = vld [vmem:[%s1 + $0x458] sm:$0xf]
      %v2862 = vld [vmem:[%s1 + $0x45c] sm:$0xf]
      %v2863 = vld [vmem:[%s1 + $0x460] sm:$0xf]
      %v2864 = vld [vmem:[%s1 + $0x464] sm:$0xf]
      %v2865 = vld [vmem:[%s1 + $0x468] sm:$0xf]
      %v2866 = vld [vmem:[%s1 + $0x46c] sm:$0xf]
      %v2867 = vld [vmem:[%s1 + $0x470] sm:$0xf]
      %v2868 = vld [vmem:[%s1 + $0x474] sm:$0xf]
      %v2869 = vld [vmem:[%s1 + $0x478] sm:$0xf]
      %v2870 = vld [vmem:[%s1 + $0x47c] sm:$0xf]
      %v2887 = vunpack.c.l.b16 %v2855
      %v2888 = vunpack.c.l.b16 %v2856
      %v2889 = vunpack.c.l.b16 %v2857
      %v2890 = vunpack.c.l.b16 %v2858
      %v2891 = vunpack.c.l.b16 %v2859
      %v2892 = vunpack.c.l.b16 %v2860
      %v2893 = vunpack.c.l.b16 %v2861
      %v2894 = vunpack.c.l.b16 %v2862
      %v2895 = vunpack.c.l.b16 %v2863
      %v2896 = vunpack.c.l.b16 %v2864
      %v2897 = vunpack.c.l.b16 %v2865
      %v2898 = vunpack.c.l.b16 %v2866
      %v2899 = vunpack.c.l.b16 %v2867
      %v2900 = vunpack.c.l.b16 %v2868
      %v2901 = vunpack.c.l.b16 %v2869
      %v2902 = vunpack.c.l.b16 %v2870
      %v2903 = vpack.c.b16 %v2888, %v2887
      %v2904 = vpack.c.b16 %v2890, %v2889
      %v2905 = vpack.c.b16 %v2892, %v2891
      %v2906 = vpack.c.b16 %v2894, %v2893
      %v2907 = vpack.c.b16 %v2896, %v2895
      %v2908 = vpack.c.b16 %v2898, %v2897
      %v2909 = vpack.c.b16 %v2900, %v2899
      %v2910 = vpack.c.b16 %v2902, %v2901
      %2919 = vmatprep.subr.bf16.mxu0 0
      %2920 = vmatpush1.bf16.msra.mxu0 %v2903
      %2921 = vmatprep.subr.bf16.mxu0 0
      %2922 = vmatpush1.bf16.msra.mxu0 %v2904
      %2923 = vmatprep.subr.bf16.mxu0 0
      %2924 = vmatpush1.bf16.msra.mxu0 %v2905
      %2925 = vmatprep.subr.bf16.mxu0 0
      %2926 = vmatpush1.bf16.msra.mxu0 %v2906
      %2927 = vmatprep.subr.bf16.mxu0 0
      %2928 = vmatpush1.bf16.msra.mxu0 %v2907
      %2929 = vmatprep.subr.bf16.mxu0 0
      %2930 = vmatpush1.bf16.msra.mxu0 %v2908
      %2931 = vmatprep.subr.bf16.mxu0 0
      %2932 = vmatpush1.bf16.msra.mxu0 %v2909
      %2933 = vmatprep.subr.bf16.mxu0 0
      %2934 = vmatpush1.bf16.msra.mxu0 %v2910
      %2935 = vmatprep.subr.bf16.mxu0 0
      %2936 = vmatpush1.bf16.msra.mxu0 0
      %2937 = vmatprep.subr.bf16.mxu0 0
      %2938 = vmatpush1.bf16.msra.mxu0 0
      %2939 = vmatprep.subr.bf16.mxu0 0
      %2940 = vmatpush1.bf16.msra.mxu0 0
      %2941 = vmatprep.subr.bf16.mxu0 0
      %2942 = vmatpush1.bf16.msra.mxu0 0
      %2943 = vmatprep.subr.bf16.mxu0 0
      %2944 = vmatpush1.bf16.msra.mxu0 0
      %2945 = vmatprep.subr.bf16.mxu0 0
      %2946 = vmatpush1.bf16.msra.mxu0 0
      %2947 = vmatprep.subr.bf16.mxu0 0
      %2948 = vmatpush1.bf16.msra.mxu0 0
      %2949 = vmatprep.subr.bf16.mxu0 0
      %2950 = vmatpush1.bf16.msra.mxu0 0
      %2951 = vmatprep.mubr.bf16.mxu0 0
      %2952 = vmatmul.mubr.bf16.gmra.mrb[0].mxu0 %v2187
      %v2953 = vpop.f32.mrb[0].mxu0
      %v2954 = vadd.f32 0.0, %v2953
      %v2955 = vpop.f32.mrb[0].mxu0
      %v2956 = vpop.f32.mrb[0].mxu0
      %v2957 = vadd.f32 0.0, %v2956
      %v2958 = vpop.f32.mrb[0].mxu0
      %2959 = vdwg.mxu0
      %v2960 = vadd.f32 %v2802, %v2954
      %v2961 = vadd.f32 %v2803, %v2957
      %v2963 = vrot.slane %v2562, 1
      %2965 = vmatprep.subr.bf16.mxu0 0
      %2966 = vmatpush1.bf16.msra.mxu0 %v2903
      %2967 = vmatprep.subr.bf16.mxu0 0
      %2968 = vmatpush1.bf16.msra.mxu0 %v2904
      %2969 = vmatprep.subr.bf16.mxu0 0
      %2970 = vmatpush1.bf16.msra.mxu0 %v2905
      %2971 = vmatprep.subr.bf16.mxu0 0
      %2972 = vmatpush1.bf16.msra.mxu0 %v2906
      %2973 = vmatprep.subr.bf16.mxu0 0
      %2974 = vmatpush1.bf16.msra.mxu0 %v2907
      %2975 = vmatprep.subr.bf16.mxu0 0
      %2976 = vmatpush1.bf16.msra.mxu0 %v2908
      %2977 = vmatprep.subr.bf16.mxu0 0
      %2978 = vmatpush1.bf16.msra.mxu0 %v2909
      %2979 = vmatprep.subr.bf16.mxu0 0
      %2980 = vmatpush1.bf16.msra.mxu0 %v2910
      %2981 = vmatprep.subr.bf16.mxu0 0
      %2982 = vmatpush1.bf16.msra.mxu0 0
      %2983 = vmatprep.subr.bf16.mxu0 0
      %2984 = vmatpush1.bf16.msra.mxu0 0
      %2985 = vmatprep.subr.bf16.mxu0 0
      %2986 = vmatpush1.bf16.msra.mxu0 0
      %2987 = vmatprep.subr.bf16.mxu0 0
      %2988 = vmatpush1.bf16.msra.mxu0 0
      %2989 = vmatprep.subr.bf16.mxu0 0
      %2990 = vmatpush1.bf16.msra.mxu0 0
      %2991 = vmatprep.subr.bf16.mxu0 0
      %2992 = vmatpush1.bf16.msra.mxu0 0
      %2993 = vmatprep.subr.bf16.mxu0 0
      %2994 = vmatpush1.bf16.msra.mxu0 0
      %2995 = vmatprep.subr.bf16.mxu0 0
      %2996 = vmatpush1.bf16.msra.mxu0 0
      %2997 = vmatprep.mubr.bf16.mxu0 0
      %2998 = vmatmul.mubr.bf16.gmra.mrb[0].mxu0 %v2963
      %v2999 = vpop.f32.mrb[0].mxu0
      %v3000 = vadd.f32 0.0, %v2999
      %v3001 = vpop.f32.mrb[0].mxu0
      %v3002 = vpop.f32.mrb[0].mxu0
      %v3003 = vadd.f32 0.0, %v3002
      %v3004 = vpop.f32.mrb[0].mxu0
      %3005 = vdwg.mxu0
      %v3006 = vadd.f32 %v2853, %v3000
      %v3007 = vadd.f32 %v2854, %v3003
      %v3008 = vld [vmem:[%s1 + $0x480] sm:$0xf]
      %v3009 = vld [vmem:[%s1 + $0x484] sm:$0xf]
      %v3010 = vld [vmem:[%s1 + $0x488] sm:$0xf]
      %v3011 = vld [vmem:[%s1 + $0x48c] sm:$0xf]
      %v3012 = vld [vmem:[%s1 + $0x490] sm:$0xf]
      %v3013 = vld [vmem:[%s1 + $0x494] sm:$0xf]
      %v3014 = vld [vmem:[%s1 + $0x498] sm:$0xf]
      %v3015 = vld [vmem:[%s1 + $0x49c] sm:$0xf]
      %v3016 = vld [vmem:[%s1 + $0x4a0] sm:$0xf]
      %v3017 = vld [vmem:[%s1 + $0x4a4] sm:$0xf]
      %v3018 = vld [vmem:[%s1 + $0x4a8] sm:$0xf]
      %v3019 = vld [vmem:[%s1 + $0x4ac] sm:$0xf]
      %v3020 = vld [vmem:[%s1 + $0x4b0] sm:$0xf]
      %v3021 = vld [vmem:[%s1 + $0x4b4] sm:$0xf]
      %v3022 = vld [vmem:[%s1 + $0x4b8] sm:$0xf]
      %v3023 = vld [vmem:[%s1 + $0x4bc] sm:$0xf]
      %v3040 = vunpack.c.l.b16 %v3008
      %v3041 = vunpack.c.l.b16 %v3009
      %v3042 = vunpack.c.l.b16 %v3010
      %v3043 = vunpack.c.l.b16 %v3011
      %v3044 = vunpack.c.l.b16 %v3012
      %v3045 = vunpack.c.l.b16 %v3013
      %v3046 = vunpack.c.l.b16 %v3014
      %v3047 = vunpack.c.l.b16 %v3015
      %v3048 = vunpack.c.l.b16 %v3016
      %v3049 = vunpack.c.l.b16 %v3017
      %v3050 = vunpack.c.l.b16 %v3018
      %v3051 = vunpack.c.l.b16 %v3019
      %v3052 = vunpack.c.l.b16 %v3020
      %v3053 = vunpack.c.l.b16 %v3021
      %v3054 = vunpack.c.l.b16 %v3022
      %v3055 = vunpack.c.l.b16 %v3023
      %v3056 = vpack.c.b16 %v3041, %v3040
      %v3057 = vpack.c.b16 %v3043, %v3042
      %v3058 = vpack.c.b16 %v3045, %v3044
      %v3059 = vpack.c.b16 %v3047, %v3046
      %v3060 = vpack.c.b16 %v3049, %v3048
      %v3061 = vpack.c.b16 %v3051, %v3050
      %v3062 = vpack.c.b16 %v3053, %v3052
      %v3063 = vpack.c.b16 %v3055, %v3054
      %3072 = vmatprep.subr.bf16.mxu0 0
      %3073 = vmatpush1.bf16.msra.mxu0 %v3056
      %3074 = vmatprep.subr.bf16.mxu0 0
      %3075 = vmatpush1.bf16.msra.mxu0 %v3057
      %3076 = vmatprep.subr.bf16.mxu0 0
      %3077 = vmatpush1.bf16.msra.mxu0 %v3058
      %3078 = vmatprep.subr.bf16.mxu0 0
      %3079 = vmatpush1.bf16.msra.mxu0 %v3059
      %3080 = vmatprep.subr.bf16.mxu0 0
      %3081 = vmatpush1.bf16.msra.mxu0 %v3060
      %3082 = vmatprep.subr.bf16.mxu0 0
      %3083 = vmatpush1.bf16.msra.mxu0 %v3061
      %3084 = vmatprep.subr.bf16.mxu0 0
      %3085 = vmatpush1.bf16.msra.mxu0 %v3062
      %3086 = vmatprep.subr.bf16.mxu0 0
      %3087 = vmatpush1.bf16.msra.mxu0 %v3063
      %3088 = vmatprep.subr.bf16.mxu0 0
      %3089 = vmatpush1.bf16.msra.mxu0 0
      %3090 = vmatprep.subr.bf16.mxu0 0
      %3091 = vmatpush1.bf16.msra.mxu0 0
      %3092 = vmatprep.subr.bf16.mxu0 0
      %3093 = vmatpush1.bf16.msra.mxu0 0
      %3094 = vmatprep.subr.bf16.mxu0 0
      %3095 = vmatpush1.bf16.msra.mxu0 0
      %3096 = vmatprep.subr.bf16.mxu0 0
      %3097 = vmatpush1.bf16.msra.mxu0 0
      %3098 = vmatprep.subr.bf16.mxu0 0
      %3099 = vmatpush1.bf16.msra.mxu0 0
      %3100 = vmatprep.subr.bf16.mxu0 0
      %3101 = vmatpush1.bf16.msra.mxu0 0
      %3102 = vmatprep.subr.bf16.mxu0 0
      %3103 = vmatpush1.bf16.msra.mxu0 0
      %3104 = vmatprep.mubr.bf16.mxu0 0
      %3105 = vmatmul.mubr.bf16.gmra.mrb[0].mxu0 %v2341
      %v3106 = vpop.f32.mrb[0].mxu0
      %v3107 = vadd.f32 0.0, %v3106
      %v3108 = vpop.f32.mrb[0].mxu0
      %v3109 = vpop.f32.mrb[0].mxu0
      %v3110 = vadd.f32 0.0, %v3109
      %v3111 = vpop.f32.mrb[0].mxu0
      %3112 = vdwg.mxu0
      %v3113 = vadd.f32 %v2960, %v3107
      %v3114 = vadd.f32 %v2961, %v3110
      %v3115 = vrot.slane %v2805, 1
      %v3116 = vrot.slane %v2807, 2
      %v3117 = vor.u32 %v3115, %v3116
      %3119 = vmatprep.subr.bf16.mxu0 0
      %3120 = vmatpush1.bf16.msra.mxu0 %v3056
      %3121 = vmatprep.subr.bf16.mxu0 0
      %3122 = vmatpush1.bf16.msra.mxu0 %v3057
      %3123 = vmatprep.subr.bf16.mxu0 0
      %3124 = vmatpush1.bf16.msra.mxu0 %v3058
      %3125 = vmatprep.subr.bf16.mxu0 0
      %3126 = vmatpush1.bf16.msra.mxu0 %v3059
      %3127 = vmatprep.subr.bf16.mxu0 0
      %3128 = vmatpush1.bf16.msra.mxu0 %v3060
      %3129 = vmatprep.subr.bf16.mxu0 0
      %3130 = vmatpush1.bf16.msra.mxu0 %v3061
      %3131 = vmatprep.subr.bf16.mxu0 0
      %3132 = vmatpush1.bf16.msra.mxu0 %v3062
      %3133 = vmatprep.subr.bf16.mxu0 0
      %3134 = vmatpush1.bf16.msra.mxu0 %v3063
      %3135 = vmatprep.subr.bf16.mxu0 0
      %3136 = vmatpush1.bf16.msra.mxu0 0
      %3137 = vmatprep.subr.bf16.mxu0 0
      %3138 = vmatpush1.bf16.msra.mxu0 0
      %3139 = vmatprep.subr.bf16.mxu0 0
      %3140 = vmatpush1.bf16.msra.mxu0 0
      %3141 = vmatprep.subr.bf16.mxu0 0
      %3142 = vmatpush1.bf16.msra.mxu0 0
      %3143 = vmatprep.subr.bf16.mxu0 0
      %3144 = vmatpush1.bf16.msra.mxu0 0
      %3145 = vmatprep.subr.bf16.mxu0 0
      %3146 = vmatpush1.bf16.msra.mxu0 0
      %3147 = vmatprep.subr.bf16.mxu0 0
      %3148 = vmatpush1.bf16.msra.mxu0 0
      %3149 = vmatprep.subr.bf16.mxu0 0
      %3150 = vmatpush1.bf16.msra.mxu0 0
      %3151 = vmatprep.mubr.bf16.mxu0 0
      %3152 = vmatmul.mubr.bf16.gmra.mrb[0].mxu0 %v3117
      %v3153 = vpop.f32.mrb[0].mxu0
      %v3154 = vadd.f32 0.0, %v3153
      %v3155 = vpop.f32.mrb[0].mxu0
      %v3156 = vpop.f32.mrb[0].mxu0
      %v3157 = vadd.f32 0.0, %v3156
      %v3158 = vpop.f32.mrb[0].mxu0
      %3159 = vdwg.mxu0
      %v3160 = vadd.f32 %v3006, %v3154
      %v3161 = vadd.f32 %v3007, %v3157
      %v3162 = vld [vmem:[%s1 + $0x4c0] sm:$0xf]
      %v3163 = vld [vmem:[%s1 + $0x4c4] sm:$0xf]
      %v3164 = vld [vmem:[%s1 + $0x4c8] sm:$0xf]
      %v3165 = vld [vmem:[%s1 + $0x4cc] sm:$0xf]
      %v3166 = vld [vmem:[%s1 + $0x4d0] sm:$0xf]
      %v3167 = vld [vmem:[%s1 + $0x4d4] sm:$0xf]
      %v3168 = vld [vmem:[%s1 + $0x4d8] sm:$0xf]
      %v3169 = vld [vmem:[%s1 + $0x4dc] sm:$0xf]
      %v3170 = vld [vmem:[%s1 + $0x4e0] sm:$0xf]
      %v3171 = vld [vmem:[%s1 + $0x4e4] sm:$0xf]
      %v3172 = vld [vmem:[%s1 + $0x4e8] sm:$0xf]
      %v3173 = vld [vmem:[%s1 + $0x4ec] sm:$0xf]
      %v3174 = vld [vmem:[%s1 + $0x4f0] sm:$0xf]
      %v3175 = vld [vmem:[%s1 + $0x4f4] sm:$0xf]
      %v3176 = vld [vmem:[%s1 + $0x4f8] sm:$0xf]
      %v3177 = vld [vmem:[%s1 + $0x4fc] sm:$0xf]
      %v3194 = vunpack.c.l.b16 %v3162
      %v3195 = vunpack.c.l.b16 %v3163
      %v3196 = vunpack.c.l.b16 %v3164
      %v3197 = vunpack.c.l.b16 %v3165
      %v3198 = vunpack.c.l.b16 %v3166
      %v3199 = vunpack.c.l.b16 %v3167
      %v3200 = vunpack.c.l.b16 %v3168
      %v3201 = vunpack.c.l.b16 %v3169
      %v3202 = vunpack.c.l.b16 %v3170
      %v3203 = vunpack.c.l.b16 %v3171
      %v3204 = vunpack.c.l.b16 %v3172
      %v3205 = vunpack.c.l.b16 %v3173
      %v3206 = vunpack.c.l.b16 %v3174
      %v3207 = vunpack.c.l.b16 %v3175
      %v3208 = vunpack.c.l.b16 %v3176
      %v3209 = vunpack.c.l.b16 %v3177
      %v3210 = vpack.c.b16 %v3195, %v3194
      %v3211 = vpack.c.b16 %v3197, %v3196
      %v3212 = vpack.c.b16 %v3199, %v3198
      %v3213 = vpack.c.b16 %v3201, %v3200
      %v3214 = vpack.c.b16 %v3203, %v3202
      %v3215 = vpack.c.b16 %v3205, %v3204
      %v3216 = vpack.c.b16 %v3207, %v3206
      %v3217 = vpack.c.b16 %v3209, %v3208
      %3226 = vmatprep.subr.bf16.mxu0 0
      %3227 = vmatpush1.bf16.msra.mxu0 %v3210
      %3228 = vmatprep.subr.bf16.mxu0 0
      %3229 = vmatpush1.bf16.msra.mxu0 %v3211
      %3230 = vmatprep.subr.bf16.mxu0 0
      %3231 = vmatpush1.bf16.msra.mxu0 %v3212
      %3232 = vmatprep.subr.bf16.mxu0 0
      %3233 = vmatpush1.bf16.msra.mxu0 %v3213
      %3234 = vmatprep.subr.bf16.mxu0 0
      %3235 = vmatpush1.bf16.msra.mxu0 %v3214
      %3236 = vmatprep.subr.bf16.mxu0 0
      %3237 = vmatpush1.bf16.msra.mxu0 %v3215
      %3238 = vmatprep.subr.bf16.mxu0 0
      %3239 = vmatpush1.bf16.msra.mxu0 %v3216
      %3240 = vmatprep.subr.bf16.mxu0 0
      %3241 = vmatpush1.bf16.msra.mxu0 %v3217
      %3242 = vmatprep.subr.bf16.mxu0 0
      %3243 = vmatpush1.bf16.msra.mxu0 0
      %3244 = vmatprep.subr.bf16.mxu0 0
      %3245 = vmatpush1.bf16.msra.mxu0 0
      %3246 = vmatprep.subr.bf16.mxu0 0
      %3247 = vmatpush1.bf16.msra.mxu0 0
      %3248 = vmatprep.subr.bf16.mxu0 0
      %3249 = vmatpush1.bf16.msra.mxu0 0
      %3250 = vmatprep.subr.bf16.mxu0 0
      %3251 = vmatpush1.bf16.msra.mxu0 0
      %3252 = vmatprep.subr.bf16.mxu0 0
      %3253 = vmatpush1.bf16.msra.mxu0 0
      %3254 = vmatprep.subr.bf16.mxu0 0
      %3255 = vmatpush1.bf16.msra.mxu0 0
      %3256 = vmatprep.subr.bf16.mxu0 0
      %3257 = vmatpush1.bf16.msra.mxu0 0
      %3258 = vmatprep.mubr.bf16.mxu0 0
      %3259 = vmatmul.mubr.bf16.gmra.mrb[0].mxu0 %v2493
      %v3260 = vpop.f32.mrb[0].mxu0
      %v3261 = vadd.f32 0.0, %v3260
      %v3262 = vpop.f32.mrb[0].mxu0
      %v3263 = vpop.f32.mrb[0].mxu0
      %v3264 = vadd.f32 0.0, %v3263
      %v3265 = vpop.f32.mrb[0].mxu0
      %3266 = vdwg.mxu0
      %v3267 = vadd.f32 %v3113, %v3261
      %v3268 = vadd.f32 %v3114, %v3264
      %v3269 = vrot.slane %v2562, 2
      %3271 = vmatprep.subr.bf16.mxu0 0
      %3272 = vmatpush1.bf16.msra.mxu0 %v3210
      %3273 = vmatprep.subr.bf16.mxu0 0
      %3274 = vmatpush1.bf16.msra.mxu0 %v3211
      %3275 = vmatprep.subr.bf16.mxu0 0
      %3276 = vmatpush1.bf16.msra.mxu0 %v3212
      %3277 = vmatprep.subr.bf16.mxu0 0
      %3278 = vmatpush1.bf16.msra.mxu0 %v3213
      %3279 = vmatprep.subr.bf16.mxu0 0
      %3280 = vmatpush1.bf16.msra.mxu0 %v3214
      %3281 = vmatprep.subr.bf16.mxu0 0
      %3282 = vmatpush1.bf16.msra.mxu0 %v3215
      %3283 = vmatprep.subr.bf16.mxu0 0
      %3284 = vmatpush1.bf16.msra.mxu0 %v3216
      %3285 = vmatprep.subr.bf16.mxu0 0
      %3286 = vmatpush1.bf16.msra.mxu0 %v3217
      %3287 = vmatprep.subr.bf16.mxu0 0
      %3288 = vmatpush1.bf16.msra.mxu0 0
      %3289 = vmatprep.subr.bf16.mxu0 0
      %3290 = vmatpush1.bf16.msra.mxu0 0
      %3291 = vmatprep.subr.bf16.mxu0 0
      %3292 = vmatpush1.bf16.msra.mxu0 0
      %3293 = vmatprep.subr.bf16.mxu0 0
      %3294 = vmatpush1.bf16.msra.mxu0 0
      %3295 = vmatprep.subr.bf16.mxu0 0
      %3296 = vmatpush1.bf16.msra.mxu0 0
      %3297 = vmatprep.subr.bf16.mxu0 0
      %3298 = vmatpush1.bf16.msra.mxu0 0
      %3299 = vmatprep.subr.bf16.mxu0 0
      %3300 = vmatpush1.bf16.msra.mxu0 0
      %3301 = vmatprep.subr.bf16.mxu0 0
      %3302 = vmatpush1.bf16.msra.mxu0 0
      %3303 = vmatprep.mubr.bf16.mxu0 0
      %3304 = vmatmul.mubr.bf16.gmra.mrb[0].mxu0 %v3269
      %v3305 = vpop.f32.mrb[0].mxu0
      %v3306 = vadd.f32 0.0, %v3305
      %v3307 = vpop.f32.mrb[0].mxu0
      %v3308 = vpop.f32.mrb[0].mxu0
      %v3309 = vadd.f32 0.0, %v3308
      %v3310 = vpop.f32.mrb[0].mxu0
      %3311 = vdwg.mxu0
      %v3312 = vadd.f32 %v3160, %v3306
      %v3313 = vadd.f32 %v3161, %v3309
      %s3314 = sadd.s32 %s192, 5
      %s3315 = smul.u32 %s3314, 2
      %s3316 = smul.addr %s3315, 4
      %s3317 = scalar_lea.vmem %s182, %s3316
      %v3318 = vld [vmem:[%s3317] sm:$0xf]
      %v3319 = vld [vmem:[%s3317 + $0x4] sm:$0x7]
      %v3320 = vunpack.c.l.bf16 %v3318
      %v3321 = vunpack.c.l.bf16 %v3319
      %v3322 = vld [vmem:[%s1 + $0x500] sm:$0xf]
      %v3323 = vld [vmem:[%s1 + $0x504] sm:$0xf]
      %v3324 = vld [vmem:[%s1 + $0x508] sm:$0xf]
      %v3325 = vld [vmem:[%s1 + $0x50c] sm:$0xf]
      %v3326 = vld [vmem:[%s1 + $0x510] sm:$0xf]
      %v3327 = vld [vmem:[%s1 + $0x514] sm:$0xf]
      %v3328 = vld [vmem:[%s1 + $0x518] sm:$0xf]
      %v3329 = vld [vmem:[%s1 + $0x51c] sm:$0xf]
      %v3330 = vld [vmem:[%s1 + $0x520] sm:$0xf]
      %v3331 = vld [vmem:[%s1 + $0x524] sm:$0xf]
      %v3332 = vld [vmem:[%s1 + $0x528] sm:$0xf]
      %v3333 = vld [vmem:[%s1 + $0x52c] sm:$0xf]
      %v3334 = vld [vmem:[%s1 + $0x530] sm:$0xf]
      %v3335 = vld [vmem:[%s1 + $0x534] sm:$0xf]
      %v3336 = vld [vmem:[%s1 + $0x538] sm:$0xf]
      %v3337 = vld [vmem:[%s1 + $0x53c] sm:$0xf]
      %v3338 = vpack.c.bf16 %v3321, %v3320
      %v3355 = vunpack.c.l.b16 %v3322
      %v3356 = vunpack.c.l.b16 %v3323
      %v3357 = vunpack.c.l.b16 %v3324
      %v3358 = vunpack.c.l.b16 %v3325
      %v3359 = vunpack.c.l.b16 %v3326
      %v3360 = vunpack.c.l.b16 %v3327
      %v3361 = vunpack.c.l.b16 %v3328
      %v3362 = vunpack.c.l.b16 %v3329
      %v3363 = vunpack.c.l.b16 %v3330
      %v3364 = vunpack.c.l.b16 %v3331
      %v3365 = vunpack.c.l.b16 %v3332
      %v3366 = vunpack.c.l.b16 %v3333
      %v3367 = vunpack.c.l.b16 %v3334
      %v3368 = vunpack.c.l.b16 %v3335
      %v3369 = vunpack.c.l.b16 %v3336
      %v3370 = vunpack.c.l.b16 %v3337
      %v3371 = vpack.c.b16 %v3356, %v3355
      %v3372 = vpack.c.b16 %v3358, %v3357
      %v3373 = vpack.c.b16 %v3360, %v3359
      %v3374 = vpack.c.b16 %v3362, %v3361
      %v3375 = vpack.c.b16 %v3364, %v3363
      %v3376 = vpack.c.b16 %v3366, %v3365
      %v3377 = vpack.c.b16 %v3368, %v3367
      %v3378 = vpack.c.b16 %v3370, %v3369
      %3387 = vmatprep.subr.bf16.mxu0 0
      %3388 = vmatpush1.bf16.msra.mxu0 %v3371
      %3389 = vmatprep.subr.bf16.mxu0 0
      %3390 = vmatpush1.bf16.msra.mxu0 %v3372
      %3391 = vmatprep.subr.bf16.mxu0 0
      %3392 = vmatpush1.bf16.msra.mxu0 %v3373
      %3393 = vmatprep.subr.bf16.mxu0 0
      %3394 = vmatpush1.bf16.msra.mxu0 %v3374
      %3395 = vmatprep.subr.bf16.mxu0 0
      %3396 = vmatpush1.bf16.msra.mxu0 %v3375
      %3397 = vmatprep.subr.bf16.mxu0 0
      %3398 = vmatpush1.bf16.msra.mxu0 %v3376
      %3399 = vmatprep.subr.bf16.mxu0 0
      %3400 = vmatpush1.bf16.msra.mxu0 %v3377
      %3401 = vmatprep.subr.bf16.mxu0 0
      %3402 = vmatpush1.bf16.msra.mxu0 %v3378
      %3403 = vmatprep.subr.bf16.mxu0 0
      %3404 = vmatpush1.bf16.msra.mxu0 0
      %3405 = vmatprep.subr.bf16.mxu0 0
      %3406 = vmatpush1.bf16.msra.mxu0 0
      %3407 = vmatprep.subr.bf16.mxu0 0
      %3408 = vmatpush1.bf16.msra.mxu0 0
      %3409 = vmatprep.subr.bf16.mxu0 0
      %3410 = vmatpush1.bf16.msra.mxu0 0
      %3411 = vmatprep.subr.bf16.mxu0 0
      %3412 = vmatpush1.bf16.msra.mxu0 0
      %3413 = vmatprep.subr.bf16.mxu0 0
      %3414 = vmatpush1.bf16.msra.mxu0 0
      %3415 = vmatprep.subr.bf16.mxu0 0
      %3416 = vmatpush1.bf16.msra.mxu0 0
      %3417 = vmatprep.subr.bf16.mxu0 0
      %3418 = vmatpush1.bf16.msra.mxu0 0
      %3419 = vmatprep.mubr.bf16.mxu0 0
      %3420 = vmatmul.mubr.bf16.gmra.mrb[0].mxu0 %v2562
      %v3421 = vpop.f32.mrb[0].mxu0
      %v3422 = vadd.f32 0.0, %v3421
      %v3423 = vpop.f32.mrb[0].mxu0
      %v3424 = vpop.f32.mrb[0].mxu0
      %v3425 = vadd.f32 0.0, %v3424
      %v3426 = vpop.f32.mrb[0].mxu0
      %3427 = vdwg.mxu0
      %v3428 = vadd.f32 %v3267, %v3422
      %v3429 = vadd.f32 %v3268, %v3425
      %3430 = vmatprep.subr.bf16.mxu0 0
      %3431 = vmatpush1.bf16.msra.mxu0 %v3371
      %3432 = vmatprep.subr.bf16.mxu0 0
      %3433 = vmatpush1.bf16.msra.mxu0 %v3372
      %3434 = vmatprep.subr.bf16.mxu0 0
      %3435 = vmatpush1.bf16.msra.mxu0 %v3373
      %3436 = vmatprep.subr.bf16.mxu0 0
      %3437 = vmatpush1.bf16.msra.mxu0 %v3374
      %3438 = vmatprep.subr.bf16.mxu0 0
      %3439 = vmatpush1.bf16.msra.mxu0 %v3375
      %3440 = vmatprep.subr.bf16.mxu0 0
      %3441 = vmatpush1.bf16.msra.mxu0 %v3376
      %3442 = vmatprep.subr.bf16.mxu0 0
      %3443 = vmatpush1.bf16.msra.mxu0 %v3377
      %3444 = vmatprep.subr.bf16.mxu0 0
      %3445 = vmatpush1.bf16.msra.mxu0 %v3378
      %3446 = vmatprep.subr.bf16.mxu0 0
      %3447 = vmatpush1.bf16.msra.mxu0 0
      %3448 = vmatprep.subr.bf16.mxu0 0
      %3449 = vmatpush1.bf16.msra.mxu0 0
      %3450 = vmatprep.subr.bf16.mxu0 0
      %3451 = vmatpush1.bf16.msra.mxu0 0
      %3452 = vmatprep.subr.bf16.mxu0 0
      %3453 = vmatpush1.bf16.msra.mxu0 0
      %3454 = vmatprep.subr.bf16.mxu0 0
      %3455 = vmatpush1.bf16.msra.mxu0 0
      %3456 = vmatprep.subr.bf16.mxu0 0
      %3457 = vmatpush1.bf16.msra.mxu0 0
      %3458 = vmatprep.subr.bf16.mxu0 0
      %3459 = vmatpush1.bf16.msra.mxu0 0
      %3460 = vmatprep.subr.bf16.mxu0 0
      %3461 = vmatpush1.bf16.msra.mxu0 0
      %3462 = vmatprep.mubr.bf16.mxu0 0
      %3463 = vmatmul.mubr.bf16.gmra.mrb[0].mxu0 %v3338
      %v3464 = vpop.f32.mrb[0].mxu0
      %v3465 = vadd.f32 0.0, %v3464
      %v3466 = vpop.f32.mrb[0].mxu0
      %v3467 = vpop.f32.mrb[0].mxu0
      %v3468 = vadd.f32 0.0, %v3467
      %v3469 = vpop.f32.mrb[0].mxu0
      %3470 = vdwg.mxu0
      %v3471 = vadd.f32 %v3312, %v3465
      %v3472 = vadd.f32 %v3313, %v3468
      %v3473 = vld [vmem:[%s1 + $0x540] sm:$0xf]
      %v3474 = vld [vmem:[%s1 + $0x544] sm:$0xf]
      %v3475 = vld [vmem:[%s1 + $0x548] sm:$0xf]
      %v3476 = vld [vmem:[%s1 + $0x54c] sm:$0xf]
      %v3477 = vld [vmem:[%s1 + $0x550] sm:$0xf]
      %v3478 = vld [vmem:[%s1 + $0x554] sm:$0xf]
      %v3479 = vld [vmem:[%s1 + $0x558] sm:$0xf]
      %v3480 = vld [vmem:[%s1 + $0x55c] sm:$0xf]
      %v3481 = vld [vmem:[%s1 + $0x560] sm:$0xf]
      %v3482 = vld [vmem:[%s1 + $0x564] sm:$0xf]
      %v3483 = vld [vmem:[%s1 + $0x568] sm:$0xf]
      %v3484 = vld [vmem:[%s1 + $0x56c] sm:$0xf]
      %v3485 = vld [vmem:[%s1 + $0x570] sm:$0xf]
      %v3486 = vld [vmem:[%s1 + $0x574] sm:$0xf]
      %v3487 = vld [vmem:[%s1 + $0x578] sm:$0xf]
      %v3488 = vld [vmem:[%s1 + $0x57c] sm:$0xf]
      %v3505 = vunpack.c.l.b16 %v3473
      %v3506 = vunpack.c.l.b16 %v3474
      %v3507 = vunpack.c.l.b16 %v3475
      %v3508 = vunpack.c.l.b16 %v3476
      %v3509 = vunpack.c.l.b16 %v3477
      %v3510 = vunpack.c.l.b16 %v3478
      %v3511 = vunpack.c.l.b16 %v3479
      %v3512 = vunpack.c.l.b16 %v3480
      %v3513 = vunpack.c.l.b16 %v3481
      %v3514 = vunpack.c.l.b16 %v3482
      %v3515 = vunpack.c.l.b16 %v3483
      %v3516 = vunpack.c.l.b16 %v3484
      %v3517 = vunpack.c.l.b16 %v3485
      %v3518 = vunpack.c.l.b16 %v3486
      %v3519 = vunpack.c.l.b16 %v3487
      %v3520 = vunpack.c.l.b16 %v3488
      %v3521 = vpack.c.b16 %v3506, %v3505
      %v3522 = vpack.c.b16 %v3508, %v3507
      %v3523 = vpack.c.b16 %v3510, %v3509
      %v3524 = vpack.c.b16 %v3512, %v3511
      %v3525 = vpack.c.b16 %v3514, %v3513
      %v3526 = vpack.c.b16 %v3516, %v3515
      %v3527 = vpack.c.b16 %v3518, %v3517
      %v3528 = vpack.c.b16 %v3520, %v3519
      %3537 = vmatprep.subr.bf16.mxu0 0
      %3538 = vmatpush1.bf16.msra.mxu0 %v3521
      %3539 = vmatprep.subr.bf16.mxu0 0
      %3540 = vmatpush1.bf16.msra.mxu0 %v3522
      %3541 = vmatprep.subr.bf16.mxu0 0
      %3542 = vmatpush1.bf16.msra.mxu0 %v3523
      %3543 = vmatprep.subr.bf16.mxu0 0
      %3544 = vmatpush1.bf16.msra.mxu0 %v3524
      %3545 = vmatprep.subr.bf16.mxu0 0
      %3546 = vmatpush1.bf16.msra.mxu0 %v3525
      %3547 = vmatprep.subr.bf16.mxu0 0
      %3548 = vmatpush1.bf16.msra.mxu0 %v3526
      %3549 = vmatprep.subr.bf16.mxu0 0
      %3550 = vmatpush1.bf16.msra.mxu0 %v3527
      %3551 = vmatprep.subr.bf16.mxu0 0
      %3552 = vmatpush1.bf16.msra.mxu0 %v3528
      %3553 = vmatprep.subr.bf16.mxu0 0
      %3554 = vmatpush1.bf16.msra.mxu0 0
      %3555 = vmatprep.subr.bf16.mxu0 0
      %3556 = vmatpush1.bf16.msra.mxu0 0
      %3557 = vmatprep.subr.bf16.mxu0 0
      %3558 = vmatpush1.bf16.msra.mxu0 0
      %3559 = vmatprep.subr.bf16.mxu0 0
      %3560 = vmatpush1.bf16.msra.mxu0 0
      %3561 = vmatprep.subr.bf16.mxu0 0
      %3562 = vmatpush1.bf16.msra.mxu0 0
      %3563 = vmatprep.subr.bf16.mxu0 0
      %3564 = vmatpush1.bf16.msra.mxu0 0
      %3565 = vmatprep.subr.bf16.mxu0 0
      %3566 = vmatpush1.bf16.msra.mxu0 0
      %3567 = vmatprep.subr.bf16.mxu0 0
      %3568 = vmatpush1.bf16.msra.mxu0 0
      %3569 = vmatprep.mubr.bf16.mxu0 0
      %3570 = vmatmul.mubr.bf16.gmra.mrb[0].mxu0 %v2810
      %v3571 = vpop.f32.mrb[0].mxu0
      %v3572 = vadd.f32 0.0, %v3571
      %v3573 = vpop.f32.mrb[0].mxu0
      %v3574 = vpop.f32.mrb[0].mxu0
      %v3575 = vadd.f32 0.0, %v3574
      %v3576 = vpop.f32.mrb[0].mxu0
      %3577 = vdwg.mxu0
      %v3578 = vadd.f32 %v3428, %v3572
      %v3579 = vadd.f32 %v3429, %v3575
      %v3581 = vshrl.u32 %v3338, 16
      %v3583 = vshll.u32 %v3338, 16
      %v3585 = vrot.slane %v3583, 1
      %v3586 = vor.u32 %v3581, %v3585
      %3588 = vmatprep.subr.bf16.mxu0 0
      %3589 = vmatpush1.bf16.msra.mxu0 %v3521
      %3590 = vmatprep.subr.bf16.mxu0 0
      %3591 = vmatpush1.bf16.msra.mxu0 %v3522
      %3592 = vmatprep.subr.bf16.mxu0 0
      %3593 = vmatpush1.bf16.msra.mxu0 %v3523
      %3594 = vmatprep.subr.bf16.mxu0 0
      %3595 = vmatpush1.bf16.msra.mxu0 %v3524
      %3596 = vmatprep.subr.bf16.mxu0 0
      %3597 = vmatpush1.bf16.msra.mxu0 %v3525
      %3598 = vmatprep.subr.bf16.mxu0 0
      %3599 = vmatpush1.bf16.msra.mxu0 %v3526
      %3600 = vmatprep.subr.bf16.mxu0 0
      %3601 = vmatpush1.bf16.msra.mxu0 %v3527
      %3602 = vmatprep.subr.bf16.mxu0 0
      %3603 = vmatpush1.bf16.msra.mxu0 %v3528
      %3604 = vmatprep.subr.bf16.mxu0 0
      %3605 = vmatpush1.bf16.msra.mxu0 0
      %3606 = vmatprep.subr.bf16.mxu0 0
      %3607 = vmatpush1.bf16.msra.mxu0 0
      %3608 = vmatprep.subr.bf16.mxu0 0
      %3609 = vmatpush1.bf16.msra.mxu0 0
      %3610 = vmatprep.subr.bf16.mxu0 0
      %3611 = vmatpush1.bf16.msra.mxu0 0
      %3612 = vmatprep.subr.bf16.mxu0 0
      %3613 = vmatpush1.bf16.msra.mxu0 0
      %3614 = vmatprep.subr.bf16.mxu0 0
      %3615 = vmatpush1.bf16.msra.mxu0 0
      %3616 = vmatprep.subr.bf16.mxu0 0
      %3617 = vmatpush1.bf16.msra.mxu0 0
      %3618 = vmatprep.subr.bf16.mxu0 0
      %3619 = vmatpush1.bf16.msra.mxu0 0
      %3620 = vmatprep.mubr.bf16.mxu0 0
      %3621 = vmatmul.mubr.bf16.gmra.mrb[0].mxu0 %v3586
      %v3622 = vpop.f32.mrb[0].mxu0
      %v3623 = vadd.f32 0.0, %v3622
      %v3624 = vpop.f32.mrb[0].mxu0
      %v3625 = vpop.f32.mrb[0].mxu0
      %v3626 = vadd.f32 0.0, %v3625
      %v3627 = vpop.f32.mrb[0].mxu0
      %3628 = vdwg.mxu0
      %v3629 = vadd.f32 %v3471, %v3623
      %v3630 = vadd.f32 %v3472, %v3626
      %v3631 = vld [vmem:[%s1 + $0x580] sm:$0xf]
      %v3632 = vld [vmem:[%s1 + $0x584] sm:$0xf]
      %v3633 = vld [vmem:[%s1 + $0x588] sm:$0xf]
      %v3634 = vld [vmem:[%s1 + $0x58c] sm:$0xf]
      %v3635 = vld [vmem:[%s1 + $0x590] sm:$0xf]
      %v3636 = vld [vmem:[%s1 + $0x594] sm:$0xf]
      %v3637 = vld [vmem:[%s1 + $0x598] sm:$0xf]
      %v3638 = vld [vmem:[%s1 + $0x59c] sm:$0xf]
      %v3639 = vld [vmem:[%s1 + $0x5a0] sm:$0xf]
      %v3640 = vld [vmem:[%s1 + $0x5a4] sm:$0xf]
      %v3641 = vld [vmem:[%s1 + $0x5a8] sm:$0xf]
      %v3642 = vld [vmem:[%s1 + $0x5ac] sm:$0xf]
      %v3643 = vld [vmem:[%s1 + $0x5b0] sm:$0xf]
      %v3644 = vld [vmem:[%s1 + $0x5b4] sm:$0xf]
      %v3645 = vld [vmem:[%s1 + $0x5b8] sm:$0xf]
      %v3646 = vld [vmem:[%s1 + $0x5bc] sm:$0xf]
      %v3663 = vunpack.c.l.b16 %v3631
      %v3664 = vunpack.c.l.b16 %v3632
      %v3665 = vunpack.c.l.b16 %v3633
      %v3666 = vunpack.c.l.b16 %v3634
      %v3667 = vunpack.c.l.b16 %v3635
      %v3668 = vunpack.c.l.b16 %v3636
      %v3669 = vunpack.c.l.b16 %v3637
      %v3670 = vunpack.c.l.b16 %v3638
      %v3671 = vunpack.c.l.b16 %v3639
      %v3672 = vunpack.c.l.b16 %v3640
      %v3673 = vunpack.c.l.b16 %v3641
      %v3674 = vunpack.c.l.b16 %v3642
      %v3675 = vunpack.c.l.b16 %v3643
      %v3676 = vunpack.c.l.b16 %v3644
      %v3677 = vunpack.c.l.b16 %v3645
      %v3678 = vunpack.c.l.b16 %v3646
      %v3679 = vpack.c.b16 %v3664, %v3663
      %v3680 = vpack.c.b16 %v3666, %v3665
      %v3681 = vpack.c.b16 %v3668, %v3667
      %v3682 = vpack.c.b16 %v3670, %v3669
      %v3683 = vpack.c.b16 %v3672, %v3671
      %v3684 = vpack.c.b16 %v3674, %v3673
      %v3685 = vpack.c.b16 %v3676, %v3675
      %v3686 = vpack.c.b16 %v3678, %v3677
      %3695 = vmatprep.subr.bf16.mxu0 0
      %3696 = vmatpush1.bf16.msra.mxu0 %v3679
      %3697 = vmatprep.subr.bf16.mxu0 0
      %3698 = vmatpush1.bf16.msra.mxu0 %v3680
      %3699 = vmatprep.subr.bf16.mxu0 0
      %3700 = vmatpush1.bf16.msra.mxu0 %v3681
      %3701 = vmatprep.subr.bf16.mxu0 0
      %3702 = vmatpush1.bf16.msra.mxu0 %v3682
      %3703 = vmatprep.subr.bf16.mxu0 0
      %3704 = vmatpush1.bf16.msra.mxu0 %v3683
      %3705 = vmatprep.subr.bf16.mxu0 0
      %3706 = vmatpush1.bf16.msra.mxu0 %v3684
      %3707 = vmatprep.subr.bf16.mxu0 0
      %3708 = vmatpush1.bf16.msra.mxu0 %v3685
      %3709 = vmatprep.subr.bf16.mxu0 0
      %3710 = vmatpush1.bf16.msra.mxu0 %v3686
      %3711 = vmatprep.subr.bf16.mxu0 0
      %3712 = vmatpush1.bf16.msra.mxu0 0
      %3713 = vmatprep.subr.bf16.mxu0 0
      %3714 = vmatpush1.bf16.msra.mxu0 0
      %3715 = vmatprep.subr.bf16.mxu0 0
      %3716 = vmatpush1.bf16.msra.mxu0 0
      %3717 = vmatprep.subr.bf16.mxu0 0
      %3718 = vmatpush1.bf16.msra.mxu0 0
      %3719 = vmatprep.subr.bf16.mxu0 0
      %3720 = vmatpush1.bf16.msra.mxu0 0
      %3721 = vmatprep.subr.bf16.mxu0 0
      %3722 = vmatpush1.bf16.msra.mxu0 0
      %3723 = vmatprep.subr.bf16.mxu0 0
      %3724 = vmatpush1.bf16.msra.mxu0 0
      %3725 = vmatprep.subr.bf16.mxu0 0
      %3726 = vmatpush1.bf16.msra.mxu0 0
      %3727 = vmatprep.mubr.bf16.mxu0 0
      %3728 = vmatmul.mubr.bf16.gmra.mrb[0].mxu0 %v2963
      %v3729 = vpop.f32.mrb[0].mxu0
      %v3730 = vadd.f32 0.0, %v3729
      %v3731 = vpop.f32.mrb[0].mxu0
      %v3732 = vpop.f32.mrb[0].mxu0
      %v3733 = vadd.f32 0.0, %v3732
      %v3734 = vpop.f32.mrb[0].mxu0
      %3735 = vdwg.mxu0
      %v3736 = vadd.f32 %v3578, %v3730
      %v3737 = vadd.f32 %v3579, %v3733
      %v3739 = vrot.slane %v3338, 1
      %3741 = vmatprep.subr.bf16.mxu0 0
      %3742 = vmatpush1.bf16.msra.mxu0 %v3679
      %3743 = vmatprep.subr.bf16.mxu0 0
      %3744 = vmatpush1.bf16.msra.mxu0 %v3680
      %3745 = vmatprep.subr.bf16.mxu0 0
      %3746 = vmatpush1.bf16.msra.mxu0 %v3681
      %3747 = vmatprep.subr.bf16.mxu0 0
      %3748 = vmatpush1.bf16.msra.mxu0 %v3682
      %3749 = vmatprep.subr.bf16.mxu0 0
      %3750 = vmatpush1.bf16.msra.mxu0 %v3683
      %3751 = vmatprep.subr.bf16.mxu0 0
      %3752 = vmatpush1.bf16.msra.mxu0 %v3684
      %3753 = vmatprep.subr.bf16.mxu0 0
      %3754 = vmatpush1.bf16.msra.mxu0 %v3685
      %3755 = vmatprep.subr.bf16.mxu0 0
      %3756 = vmatpush1.bf16.msra.mxu0 %v3686
      %3757 = vmatprep.subr.bf16.mxu0 0
      %3758 = vmatpush1.bf16.msra.mxu0 0
      %3759 = vmatprep.subr.bf16.mxu0 0
      %3760 = vmatpush1.bf16.msra.mxu0 0
      %3761 = vmatprep.subr.bf16.mxu0 0
      %3762 = vmatpush1.bf16.msra.mxu0 0
      %3763 = vmatprep.subr.bf16.mxu0 0
      %3764 = vmatpush1.bf16.msra.mxu0 0
      %3765 = vmatprep.subr.bf16.mxu0 0
      %3766 = vmatpush1.bf16.msra.mxu0 0
      %3767 = vmatprep.subr.bf16.mxu0 0
      %3768 = vmatpush1.bf16.msra.mxu0 0
      %3769 = vmatprep.subr.bf16.mxu0 0
      %3770 = vmatpush1.bf16.msra.mxu0 0
      %3771 = vmatprep.subr.bf16.mxu0 0
      %3772 = vmatpush1.bf16.msra.mxu0 0
      %3773 = vmatprep.mubr.bf16.mxu0 0
      %3774 = vmatmul.mubr.bf16.gmra.mrb[0].mxu0 %v3739
      %v3775 = vpop.f32.mrb[0].mxu0
      %v3776 = vadd.f32 0.0, %v3775
      %v3777 = vpop.f32.mrb[0].mxu0
      %v3778 = vpop.f32.mrb[0].mxu0
      %v3779 = vadd.f32 0.0, %v3778
      %v3780 = vpop.f32.mrb[0].mxu0
      %3781 = vdwg.mxu0
      %v3782 = vadd.f32 %v3629, %v3776
      %v3783 = vadd.f32 %v3630, %v3779
      %v3784 = vld [vmem:[%s1 + $0x5c0] sm:$0xf]
      %v3785 = vld [vmem:[%s1 + $0x5c4] sm:$0xf]
      %v3786 = vld [vmem:[%s1 + $0x5c8] sm:$0xf]
      %v3787 = vld [vmem:[%s1 + $0x5cc] sm:$0xf]
      %v3788 = vld [vmem:[%s1 + $0x5d0] sm:$0xf]
      %v3789 = vld [vmem:[%s1 + $0x5d4] sm:$0xf]
      %v3790 = vld [vmem:[%s1 + $0x5d8] sm:$0xf]
      %v3791 = vld [vmem:[%s1 + $0x5dc] sm:$0xf]
      %v3792 = vld [vmem:[%s1 + $0x5e0] sm:$0xf]
      %v3793 = vld [vmem:[%s1 + $0x5e4] sm:$0xf]
      %v3794 = vld [vmem:[%s1 + $0x5e8] sm:$0xf]
      %v3795 = vld [vmem:[%s1 + $0x5ec] sm:$0xf]
      %v3796 = vld [vmem:[%s1 + $0x5f0] sm:$0xf]
      %v3797 = vld [vmem:[%s1 + $0x5f4] sm:$0xf]
      %v3798 = vld [vmem:[%s1 + $0x5f8] sm:$0xf]
      %v3799 = vld [vmem:[%s1 + $0x5fc] sm:$0xf]
      %v3816 = vunpack.c.l.b16 %v3784
      %v3817 = vunpack.c.l.b16 %v3785
      %v3818 = vunpack.c.l.b16 %v3786
      %v3819 = vunpack.c.l.b16 %v3787
      %v3820 = vunpack.c.l.b16 %v3788
      %v3821 = vunpack.c.l.b16 %v3789
      %v3822 = vunpack.c.l.b16 %v3790
      %v3823 = vunpack.c.l.b16 %v3791
      %v3824 = vunpack.c.l.b16 %v3792
      %v3825 = vunpack.c.l.b16 %v3793
      %v3826 = vunpack.c.l.b16 %v3794
      %v3827 = vunpack.c.l.b16 %v3795
      %v3828 = vunpack.c.l.b16 %v3796
      %v3829 = vunpack.c.l.b16 %v3797
      %v3830 = vunpack.c.l.b16 %v3798
      %v3831 = vunpack.c.l.b16 %v3799
      %v3832 = vpack.c.b16 %v3817, %v3816
      %v3833 = vpack.c.b16 %v3819, %v3818
      %v3834 = vpack.c.b16 %v3821, %v3820
      %v3835 = vpack.c.b16 %v3823, %v3822
      %v3836 = vpack.c.b16 %v3825, %v3824
      %v3837 = vpack.c.b16 %v3827, %v3826
      %v3838 = vpack.c.b16 %v3829, %v3828
      %v3839 = vpack.c.b16 %v3831, %v3830
      %3848 = vmatprep.subr.bf16.mxu0 0
      %3849 = vmatpush1.bf16.msra.mxu0 %v3832
      %3850 = vmatprep.subr.bf16.mxu0 0
      %3851 = vmatpush1.bf16.msra.mxu0 %v3833
      %3852 = vmatprep.subr.bf16.mxu0 0
      %3853 = vmatpush1.bf16.msra.mxu0 %v3834
      %3854 = vmatprep.subr.bf16.mxu0 0
      %3855 = vmatpush1.bf16.msra.mxu0 %v3835
      %3856 = vmatprep.subr.bf16.mxu0 0
      %3857 = vmatpush1.bf16.msra.mxu0 %v3836
      %3858 = vmatprep.subr.bf16.mxu0 0
      %3859 = vmatpush1.bf16.msra.mxu0 %v3837
      %3860 = vmatprep.subr.bf16.mxu0 0
      %3861 = vmatpush1.bf16.msra.mxu0 %v3838
      %3862 = vmatprep.subr.bf16.mxu0 0
      %3863 = vmatpush1.bf16.msra.mxu0 %v3839
      %3864 = vmatprep.subr.bf16.mxu0 0
      %3865 = vmatpush1.bf16.msra.mxu0 0
      %3866 = vmatprep.subr.bf16.mxu0 0
      %3867 = vmatpush1.bf16.msra.mxu0 0
      %3868 = vmatprep.subr.bf16.mxu0 0
      %3869 = vmatpush1.bf16.msra.mxu0 0
      %3870 = vmatprep.subr.bf16.mxu0 0
      %3871 = vmatpush1.bf16.msra.mxu0 0
      %3872 = vmatprep.subr.bf16.mxu0 0
      %3873 = vmatpush1.bf16.msra.mxu0 0
      %3874 = vmatprep.subr.bf16.mxu0 0
      %3875 = vmatpush1.bf16.msra.mxu0 0
      %3876 = vmatprep.subr.bf16.mxu0 0
      %3877 = vmatpush1.bf16.msra.mxu0 0
      %3878 = vmatprep.subr.bf16.mxu0 0
      %3879 = vmatpush1.bf16.msra.mxu0 0
      %3880 = vmatprep.mubr.bf16.mxu0 0
      %3881 = vmatmul.mubr.bf16.gmra.mrb[0].mxu0 %v3117
      %v3882 = vpop.f32.mrb[0].mxu0
      %v3883 = vadd.f32 0.0, %v3882
      %v3884 = vpop.f32.mrb[0].mxu0
      %v3885 = vpop.f32.mrb[0].mxu0
      %v3886 = vadd.f32 0.0, %v3885
      %v3887 = vpop.f32.mrb[0].mxu0
      %3888 = vdwg.mxu0
      %v3889 = vadd.f32 %v3736, %v3883
      %v3890 = vadd.f32 %v3737, %v3886
      %v3891 = vrot.slane %v3581, 1
      %v3892 = vrot.slane %v3583, 2
      %v3893 = vor.u32 %v3891, %v3892
      %3895 = vmatprep.subr.bf16.mxu0 0
      %3896 = vmatpush1.bf16.msra.mxu0 %v3832
      %3897 = vmatprep.subr.bf16.mxu0 0
      %3898 = vmatpush1.bf16.msra.mxu0 %v3833
      %3899 = vmatprep.subr.bf16.mxu0 0
      %3900 = vmatpush1.bf16.msra.mxu0 %v3834
      %3901 = vmatprep.subr.bf16.mxu0 0
      %3902 = vmatpush1.bf16.msra.mxu0 %v3835
      %3903 = vmatprep.subr.bf16.mxu0 0
      %3904 = vmatpush1.bf16.msra.mxu0 %v3836
      %3905 = vmatprep.subr.bf16.mxu0 0
      %3906 = vmatpush1.bf16.msra.mxu0 %v3837
      %3907 = vmatprep.subr.bf16.mxu0 0
      %3908 = vmatpush1.bf16.msra.mxu0 %v3838
      %3909 = vmatprep.subr.bf16.mxu0 0
      %3910 = vmatpush1.bf16.msra.mxu0 %v3839
      %3911 = vmatprep.subr.bf16.mxu0 0
      %3912 = vmatpush1.bf16.msra.mxu0 0
      %3913 = vmatprep.subr.bf16.mxu0 0
      %3914 = vmatpush1.bf16.msra.mxu0 0
      %3915 = vmatprep.subr.bf16.mxu0 0
      %3916 = vmatpush1.bf16.msra.mxu0 0
      %3917 = vmatprep.subr.bf16.mxu0 0
      %3918 = vmatpush1.bf16.msra.mxu0 0
      %3919 = vmatprep.subr.bf16.mxu0 0
      %3920 = vmatpush1.bf16.msra.mxu0 0
      %3921 = vmatprep.subr.bf16.mxu0 0
      %3922 = vmatpush1.bf16.msra.mxu0 0
      %3923 = vmatprep.subr.bf16.mxu0 0
      %3924 = vmatpush1.bf16.msra.mxu0 0
      %3925 = vmatprep.subr.bf16.mxu0 0
      %3926 = vmatpush1.bf16.msra.mxu0 0
      %3927 = vmatprep.mubr.bf16.mxu0 0
      %3928 = vmatmul.mubr.bf16.gmra.mrb[0].mxu0 %v3893
      %v3929 = vpop.f32.mrb[0].mxu0
      %v3930 = vadd.f32 0.0, %v3929
      %v3931 = vpop.f32.mrb[0].mxu0
      %v3932 = vpop.f32.mrb[0].mxu0
      %v3933 = vadd.f32 0.0, %v3932
      %v3934 = vpop.f32.mrb[0].mxu0
      %3935 = vdwg.mxu0
      %v3936 = vadd.f32 %v3782, %v3930
      %v3937 = vadd.f32 %v3783, %v3933
      %v3938 = vld [vmem:[%s1 + $0x600] sm:$0xf]
      %v3939 = vld [vmem:[%s1 + $0x604] sm:$0xf]
      %v3940 = vld [vmem:[%s1 + $0x608] sm:$0xf]
      %v3941 = vld [vmem:[%s1 + $0x60c] sm:$0xf]
      %v3942 = vld [vmem:[%s1 + $0x610] sm:$0xf]
      %v3943 = vld [vmem:[%s1 + $0x614] sm:$0xf]
      %v3944 = vld [vmem:[%s1 + $0x618] sm:$0xf]
      %v3945 = vld [vmem:[%s1 + $0x61c] sm:$0xf]
      %v3946 = vld [vmem:[%s1 + $0x620] sm:$0xf]
      %v3947 = vld [vmem:[%s1 + $0x624] sm:$0xf]
      %v3948 = vld [vmem:[%s1 + $0x628] sm:$0xf]
      %v3949 = vld [vmem:[%s1 + $0x62c] sm:$0xf]
      %v3950 = vld [vmem:[%s1 + $0x630] sm:$0xf]
      %v3951 = vld [vmem:[%s1 + $0x634] sm:$0xf]
      %v3952 = vld [vmem:[%s1 + $0x638] sm:$0xf]
      %v3953 = vld [vmem:[%s1 + $0x63c] sm:$0xf]
      %v3970 = vunpack.c.l.b16 %v3938
      %v3971 = vunpack.c.l.b16 %v3939
      %v3972 = vunpack.c.l.b16 %v3940
      %v3973 = vunpack.c.l.b16 %v3941
      %v3974 = vunpack.c.l.b16 %v3942
      %v3975 = vunpack.c.l.b16 %v3943
      %v3976 = vunpack.c.l.b16 %v3944
      %v3977 = vunpack.c.l.b16 %v3945
      %v3978 = vunpack.c.l.b16 %v3946
      %v3979 = vunpack.c.l.b16 %v3947
      %v3980 = vunpack.c.l.b16 %v3948
      %v3981 = vunpack.c.l.b16 %v3949
      %v3982 = vunpack.c.l.b16 %v3950
      %v3983 = vunpack.c.l.b16 %v3951
      %v3984 = vunpack.c.l.b16 %v3952
      %v3985 = vunpack.c.l.b16 %v3953
      %v3986 = vpack.c.b16 %v3971, %v3970
      %v3987 = vpack.c.b16 %v3973, %v3972
      %v3988 = vpack.c.b16 %v3975, %v3974
      %v3989 = vpack.c.b16 %v3977, %v3976
      %v3990 = vpack.c.b16 %v3979, %v3978
      %v3991 = vpack.c.b16 %v3981, %v3980
      %v3992 = vpack.c.b16 %v3983, %v3982
      %v3993 = vpack.c.b16 %v3985, %v3984
      %4002 = vmatprep.subr.bf16.mxu0 0
      %4003 = vmatpush1.bf16.msra.mxu0 %v3986
      %4004 = vmatprep.subr.bf16.mxu0 0
      %4005 = vmatpush1.bf16.msra.mxu0 %v3987
      %4006 = vmatprep.subr.bf16.mxu0 0
      %4007 = vmatpush1.bf16.msra.mxu0 %v3988
      %4008 = vmatprep.subr.bf16.mxu0 0
      %4009 = vmatpush1.bf16.msra.mxu0 %v3989
      %4010 = vmatprep.subr.bf16.mxu0 0
      %4011 = vmatpush1.bf16.msra.mxu0 %v3990
      %4012 = vmatprep.subr.bf16.mxu0 0
      %4013 = vmatpush1.bf16.msra.mxu0 %v3991
      %4014 = vmatprep.subr.bf16.mxu0 0
      %4015 = vmatpush1.bf16.msra.mxu0 %v3992
      %4016 = vmatprep.subr.bf16.mxu0 0
      %4017 = vmatpush1.bf16.msra.mxu0 %v3993
      %4018 = vmatprep.subr.bf16.mxu0 0
      %4019 = vmatpush1.bf16.msra.mxu0 0
      %4020 = vmatprep.subr.bf16.mxu0 0
      %4021 = vmatpush1.bf16.msra.mxu0 0
      %4022 = vmatprep.subr.bf16.mxu0 0
      %4023 = vmatpush1.bf16.msra.mxu0 0
      %4024 = vmatprep.subr.bf16.mxu0 0
      %4025 = vmatpush1.bf16.msra.mxu0 0
      %4026 = vmatprep.subr.bf16.mxu0 0
      %4027 = vmatpush1.bf16.msra.mxu0 0
      %4028 = vmatprep.subr.bf16.mxu0 0
      %4029 = vmatpush1.bf16.msra.mxu0 0
      %4030 = vmatprep.subr.bf16.mxu0 0
      %4031 = vmatpush1.bf16.msra.mxu0 0
      %4032 = vmatprep.subr.bf16.mxu0 0
      %4033 = vmatpush1.bf16.msra.mxu0 0
      %4034 = vmatprep.mubr.bf16.mxu0 0
      %4035 = vmatmul.mubr.bf16.gmra.mrb[0].mxu0 %v3269
      %v4036 = vpop.f32.mrb[0].mxu0
      %v4037 = vadd.f32 0.0, %v4036
      %v4038 = vpop.f32.mrb[0].mxu0
      %v4039 = vpop.f32.mrb[0].mxu0
      %v4040 = vadd.f32 0.0, %v4039
      %v4041 = vpop.f32.mrb[0].mxu0
      %4042 = vdwg.mxu0
      %v4043 = vadd.f32 %v3889, %v4037
      %v4044 = vadd.f32 %v3890, %v4040
      %v4045 = vrot.slane %v3338, 2
      %4047 = vmatprep.subr.bf16.mxu0 0
      %4048 = vmatpush1.bf16.msra.mxu0 %v3986
      %4049 = vmatprep.subr.bf16.mxu0 0
      %4050 = vmatpush1.bf16.msra.mxu0 %v3987
      %4051 = vmatprep.subr.bf16.mxu0 0
      %4052 = vmatpush1.bf16.msra.mxu0 %v3988
      %4053 = vmatprep.subr.bf16.mxu0 0
      %4054 = vmatpush1.bf16.msra.mxu0 %v3989
      %4055 = vmatprep.subr.bf16.mxu0 0
      %4056 = vmatpush1.bf16.msra.mxu0 %v3990
      %4057 = vmatprep.subr.bf16.mxu0 0
      %4058 = vmatpush1.bf16.msra.mxu0 %v3991
      %4059 = vmatprep.subr.bf16.mxu0 0
      %4060 = vmatpush1.bf16.msra.mxu0 %v3992
      %4061 = vmatprep.subr.bf16.mxu0 0
      %4062 = vmatpush1.bf16.msra.mxu0 %v3993
      %4063 = vmatprep.subr.bf16.mxu0 0
      %4064 = vmatpush1.bf16.msra.mxu0 0
      %4065 = vmatprep.subr.bf16.mxu0 0
      %4066 = vmatpush1.bf16.msra.mxu0 0
      %4067 = vmatprep.subr.bf16.mxu0 0
      %4068 = vmatpush1.bf16.msra.mxu0 0
      %4069 = vmatprep.subr.bf16.mxu0 0
      %4070 = vmatpush1.bf16.msra.mxu0 0
      %4071 = vmatprep.subr.bf16.mxu0 0
      %4072 = vmatpush1.bf16.msra.mxu0 0
      %4073 = vmatprep.subr.bf16.mxu0 0
      %4074 = vmatpush1.bf16.msra.mxu0 0
      %4075 = vmatprep.subr.bf16.mxu0 0
      %4076 = vmatpush1.bf16.msra.mxu0 0
      %4077 = vmatprep.subr.bf16.mxu0 0
      %4078 = vmatpush1.bf16.msra.mxu0 0
      %4079 = vmatprep.mubr.bf16.mxu0 0
      %4080 = vmatmul.mubr.bf16.gmra.mrb[0].mxu0 %v4045
      %v4081 = vpop.f32.mrb[0].mxu0
      %v4082 = vadd.f32 0.0, %v4081
      %v4083 = vpop.f32.mrb[0].mxu0
      %v4084 = vpop.f32.mrb[0].mxu0
      %v4085 = vadd.f32 0.0, %v4084
      %v4086 = vpop.f32.mrb[0].mxu0
      %4087 = vdwg.mxu0
      %v4088 = vadd.f32 %v3936, %v4082
      %v4089 = vadd.f32 %v3937, %v4085
      %v4090 = vld [vmem:[%s2] sm:$0x1]
      %v4092 = vlaneseq
      %v4093 = vshrl.u32 %v4092, 7
      %v4094 = vsub.s32 0, %v4093
      %v4095 = vrot.slane %v4090, %v4094
      %v4097 = vadd.f32 %v4043, %v4095
      %v4098 = vadd.f32 %v4044, %v4095
      %v4099 = vmax.f32 %v4097, 0.0
      %v4100 = vmax.f32 %v4098, 0.0
      %v4101 = vadd.f32 %v4088, %v4095
      %v4102 = vadd.f32 %v4089, %v4095
      %v4103 = vmax.f32 %v4101, 0.0
      %v4104 = vmax.f32 %v4102, 0.0
      %v4105 = vmax.f32 %v4099, %v4103
      %v4106 = vmax.f32 %v4100, %v4104
      %v4107 = vlaneseq
      %v4108 = vshrl.u32 %v4107, 7
      %v4109 = vlaneseq
      %v4110 = vand.u32 %v4109, 127
      %v4111 = vmul.u32 %v4108, 2
      %vm4112 = vcmp.eq.s32.totalorder %v4110, %v4111
      %v4113 = vsel %vm4112, 1.0, 0.0
      %v4114 = vadd.s32 %v4111, 1
      %vm4115 = vcmp.eq.s32.totalorder %v4110, %v4114
      %v4116 = vsel %vm4115, 1.0, 0.0
      %vm4117 = vcmask 80896
      %v4119 = vsel %vm4117, %v4113, 0
      %vm4121 = vcmask 1041408
      %v4123 = vsel %vm4121, %v4106, 0
      %4125 = vmatprep.subr.mxu0 0.0
      %4126 = vmatpush1.msra.mxu0 %v4105
      %4127 = vmatprep.subr.mxu0 0.0
      %4128 = vmatpush1.msra.mxu0 %v4123
      %4129 = vmatprep.subr.mxu0 0.0
      %4130 = vmatpush1.msra.mxu0 0.0
      %4131 = vmatprep.subr.mxu0 0.0
      %4132 = vmatpush1.msra.mxu0 0.0
      %4133 = vmatprep.subr.mxu0 0.0
      %4134 = vmatpush1.msra.mxu0 0.0
      %4135 = vmatprep.subr.mxu0 0.0
      %4136 = vmatpush1.msra.mxu0 0.0
      %4137 = vmatprep.subr.mxu0 0.0
      %4138 = vmatpush1.msra.mxu0 0.0
      %4139 = vmatprep.subr.mxu0 0.0
      %4140 = vmatpush1.msra.mxu0 0.0
      %4141 = vmatprep.subr.mxu0 0.0
      %4142 = vmatpush1.msra.mxu0 0.0
      %4143 = vmatprep.subr.mxu0 0.0
      %4144 = vmatpush1.msra.mxu0 0.0
      %4145 = vmatprep.subr.mxu0 0.0
      %4146 = vmatpush1.msra.mxu0 0.0
      %4147 = vmatprep.subr.mxu0 0.0
      %4148 = vmatpush1.msra.mxu0 0.0
      %4149 = vmatprep.subr.mxu0 0.0
      %4150 = vmatpush1.msra.mxu0 0.0
      %4151 = vmatprep.subr.mxu0 0.0
      %4152 = vmatpush1.msra.mxu0 0.0
      %4153 = vmatprep.subr.mxu0 0.0
      %4154 = vmatpush1.msra.mxu0 0.0
      %4155 = vmatprep.subr.mxu0 0.0
      %4156 = vmatpush1.msra.mxu0 0.0
      %4157 = vmatprep.subr.mxu0 0.0
      %4158 = vmatpush1.msra.mxu0 0.0
      %4159 = vmatprep.subr.mxu0 0.0
      %4160 = vmatpush1.msra.mxu0 0.0
      %4161 = vmatprep.subr.mxu0 0.0
      %4162 = vmatpush1.msra.mxu0 0.0
      %4163 = vmatprep.subr.mxu0 0.0
      %4164 = vmatpush1.msra.mxu0 0.0
      %4165 = vmatprep.subr.mxu0 0.0
      %4166 = vmatpush1.msra.mxu0 0.0
      %4167 = vmatprep.subr.mxu0 0.0
      %4168 = vmatpush1.msra.mxu0 0.0
      %4169 = vmatprep.subr.mxu0 0.0
      %4170 = vmatpush1.msra.mxu0 0.0
      %4171 = vmatprep.subr.mxu0 0.0
      %4172 = vmatpush1.msra.mxu0 0.0
      %4173 = vmatprep.subr.mxu0 0.0
      %4174 = vmatpush1.msra.mxu0 0.0
      %4175 = vmatprep.subr.mxu0 0.0
      %4176 = vmatpush1.msra.mxu0 0.0
      %4177 = vmatprep.subr.mxu0 0.0
      %4178 = vmatpush1.msra.mxu0 0.0
      %4179 = vmatprep.subr.mxu0 0.0
      %4180 = vmatpush1.msra.mxu0 0.0
      %4181 = vmatprep.subr.mxu0 0.0
      %4182 = vmatpush1.msra.mxu0 0.0
      %4183 = vmatprep.subr.mxu0 0.0
      %4184 = vmatpush1.msra.mxu0 0.0
      %4185 = vmatprep.subr.mxu0 0.0
      %4186 = vmatpush1.msra.mxu0 0.0
      %4187 = vmatprep.subr.mxu0 0.0
      %4188 = vmatpush1.msra.mxu0 0.0
      %4189 = vmatprep.mubr.f32.mxu0 0.0
      %4190 = vmatmul.mubr.f32.gmra.mrb[0].mxu0 %v4119
      %v4191 = vpop.f32.mrb[0].mxu0
      %v4192 = vadd.f32 0.0, %v4191
      %v4193 = vpop.f32.mrb[0].mxu0
      %4194 = vdwg.mxu0
      %v4196 = vsel %vm4117, %v4116, 0
      %4198 = vmatprep.subr.mxu0 0.0
      %4199 = vmatpush1.msra.mxu0 %v4105
      %4200 = vmatprep.subr.mxu0 0.0
      %4201 = vmatpush1.msra.mxu0 %v4123
      %4202 = vmatprep.subr.mxu0 0.0
      %4203 = vmatpush1.msra.mxu0 0.0
      %4204 = vmatprep.subr.mxu0 0.0
      %4205 = vmatpush1.msra.mxu0 0.0
      %4206 = vmatprep.subr.mxu0 0.0
      %4207 = vmatpush1.msra.mxu0 0.0
      %4208 = vmatprep.subr.mxu0 0.0
      %4209 = vmatpush1.msra.mxu0 0.0
      %4210 = vmatprep.subr.mxu0 0.0
      %4211 = vmatpush1.msra.mxu0 0.0
      %4212 = vmatprep.subr.mxu0 0.0
      %4213 = vmatpush1.msra.mxu0 0.0
      %4214 = vmatprep.subr.mxu0 0.0
      %4215 = vmatpush1.msra.mxu0 0.0
      %4216 = vmatprep.subr.mxu0 0.0
      %4217 = vmatpush1.msra.mxu0 0.0
      %4218 = vmatprep.subr.mxu0 0.0
      %4219 = vmatpush1.msra.mxu0 0.0
      %4220 = vmatprep.subr.mxu0 0.0
      %4221 = vmatpush1.msra.mxu0 0.0
      %4222 = vmatprep.subr.mxu0 0.0
      %4223 = vmatpush1.msra.mxu0 0.0
      %4224 = vmatprep.subr.mxu0 0.0
      %4225 = vmatpush1.msra.mxu0 0.0
      %4226 = vmatprep.subr.mxu0 0.0
      %4227 = vmatpush1.msra.mxu0 0.0
      %4228 = vmatprep.subr.mxu0 0.0
      %4229 = vmatpush1.msra.mxu0 0.0
      %4230 = vmatprep.subr.mxu0 0.0
      %4231 = vmatpush1.msra.mxu0 0.0
      %4232 = vmatprep.subr.mxu0 0.0
      %4233 = vmatpush1.msra.mxu0 0.0
      %4234 = vmatprep.subr.mxu0 0.0
      %4235 = vmatpush1.msra.mxu0 0.0
      %4236 = vmatprep.subr.mxu0 0.0
      %4237 = vmatpush1.msra.mxu0 0.0
      %4238 = vmatprep.subr.mxu0 0.0
      %4239 = vmatpush1.msra.mxu0 0.0
      %4240 = vmatprep.subr.mxu0 0.0
      %4241 = vmatpush1.msra.mxu0 0.0
      %4242 = vmatprep.subr.mxu0 0.0
      %4243 = vmatpush1.msra.mxu0 0.0
      %4244 = vmatprep.subr.mxu0 0.0
      %4245 = vmatpush1.msra.mxu0 0.0
      %4246 = vmatprep.subr.mxu0 0.0
      %4247 = vmatpush1.msra.mxu0 0.0
      %4248 = vmatprep.subr.mxu0 0.0
      %4249 = vmatpush1.msra.mxu0 0.0
      %4250 = vmatprep.subr.mxu0 0.0
      %4251 = vmatpush1.msra.mxu0 0.0
      %4252 = vmatprep.subr.mxu0 0.0
      %4253 = vmatpush1.msra.mxu0 0.0
      %4254 = vmatprep.subr.mxu0 0.0
      %4255 = vmatpush1.msra.mxu0 0.0
      %4256 = vmatprep.subr.mxu0 0.0
      %4257 = vmatpush1.msra.mxu0 0.0
      %4258 = vmatprep.subr.mxu0 0.0
      %4259 = vmatpush1.msra.mxu0 0.0
      %4260 = vmatprep.subr.mxu0 0.0
      %4261 = vmatpush1.msra.mxu0 0.0
      %4262 = vmatprep.mubr.f32.mxu0 0.0
      %4263 = vmatmul.mubr.f32.gmra.mrb[0].mxu0 %v4196
      %v4264 = vpop.f32.mrb[0].mxu0
      %v4265 = vadd.f32 0.0, %v4264
      %v4266 = vpop.f32.mrb[0].mxu0
      %4267 = vdwg.mxu0
      %v4268 = vmax.f32 %v4192, %v4265
      %v4269 = vpack.c.bf16 %v4268, %v4268
      %vm4270 = vcmask 1042432
      %vm4271 = vsmask.f32 2304
      %vm4272 = vmand %vm4270, %vm4271
      %v4273 = vld [vmem:[%s190] sm:$0x7]
      %v4274 = vsel %vm4272, %v4269, %v4273
      %4275 = vst [vmem:[%s190] sm:$0x7] %v4274
      %p4276 = scmp.lt.s32.totalorder %s18, 1
      %s4277 = scalar_select %p4276, %s18, 1
      %p4278 = scmp.lt.s32.totalorder %s19, 4
      %s4279 = scalar_select %p4278, %s19, 4
      %s4280 = smul.addr %s4277, 5
      %s4281 = sadd.s32 %s4279, %s4280
      %s4282 = smul.addr %s4281, 4
      %s4283 = scalar_lea.vmem %s3, %s4282
      // Predicated region
      $region33: #{lenet_forward.4} parent=31 // pred_check
        %p4284 = pneg %p114
      $region34: #{lenet_forward.4} parent=31 // pred_check_branch
        %4286 = sbr.rel (%p4284) target = $region36
      $region35: #{lenet_forward.4} parent=31 // pred_region
        _
      $region36: #{lenet_forward.4} parent=31 // pred_fallthru
        _
    $region32: #{lenet_forward.4} parent=5 // pred_fallthru
      _
    %p4287 = scmp.le.s32.totalorder 2, %s9
    // Predicated region
    $region37: #{lenet_forward.4} parent=5 // pred_check
      %p4288 = pneg %p4287
    $region38: #{lenet_forward.4} parent=5 // pred_check_branch
      %4290 = sbr.rel (%p4288) target = $region40
    $region39: #{lenet_forward.4} parent=5 // pred_region
      %s4291 = ssub.s32 %s9, 2
      // Predicated region
      $region41: #{lenet_forward.4} parent=39 // pred_check
        %p4292 = pneg %p120
      $region42: #{lenet_forward.4} parent=39 // pred_check_branch
        %4294 = sbr.rel (%p4292) target = $region44
      $region43: #{lenet_forward.4} parent=39 // pred_region
        %p4295 = scmp.lt.s32.totalorder %s20, 1
        %s4296 = scalar_select %p4295, %s20, 1
        %p4297 = scmp.lt.s32.totalorder %s21, 4
        %s4298 = scalar_select %p4297, %s21, 4
        %s4299 = smul.addr %s4296, 5
        %s4300 = sadd.s32 %s4298, %s4299
        %s4301 = smul.addr %s4300, 4
        %s4302 = scalar_lea.vmem %s3, %s4301
      $region44: #{lenet_forward.4} parent=39 // pred_fallthru
        _
    $region40: #{lenet_forward.4} parent=5 // pred_fallthru
      _
  $region6: #{lenet_forward.4} parent=0 // loop_footer
    %s13 = sadd.s32 1, %s9
  $region7: #{lenet_forward.4} parent=0 // loop_footer_branch
    %8 = sbr.rel target = $region3
  $region8: #{lenet_forward.4} parent=0 // loop_exit
    _

</llo_original>
